<compile_context>
chip_gen: v6e
topology: v6e:2x2x1
jax: 0.10.0
libtpu: 0.0.40
codegen_flags: <defaults>
</compile_context>

<pallas_src>
import functools

import jax
import jax.numpy as jnp
from jax.experimental import pallas as pl
from jax.experimental.pallas import tpu as pltpu


def _lstm_kernel(x_ref, wih_ref, whh_ref, b_ref, wlin_ref, blin_ref,
                 out_ref, gx_ref, hs_ref, *, seq_len, batch_p, hidden):
    H = hidden
    Bp = batch_p

    # ---- Prologue: hoisted input projection for ALL timesteps ----------------
    # gates_x = x @ W_ih^T + (b_ih + b_hh)  -> (SEQ*Bp, 4H) f32, kept in VMEM.
    gx_ref[...] = (jnp.dot(x_ref[...], wih_ref[...],
                           preferred_element_type=jnp.float32)
                   + b_ref[...])

    # ---- Recurrence: fully unrolled time loop (seq_len small & static) -------
    # PyTorch default: h0 = c0 = 0.
    h = jnp.zeros((Bp, H), jnp.float32)
    c = jnp.zeros((Bp, H), jnp.float32)

    # TODO(synk): hold W_hh^T stationary on the MXU across the seq_len steps
    # (pltpu.matmul_push_rhs / matmul_acc_lhs / matmul_pop) once the multi-tile
    # (H, 4H) RHS staging pattern is validated; the bf16 operands below already
    # cut the per-step RHS reload passes ~3x relative to f32-operand matmuls.
    for t in range(seq_len):
        gates = (gx_ref[t * Bp:(t + 1) * Bp, :]
                 + jnp.dot(h.astype(jnp.bfloat16), whh_ref[...],
                           preferred_element_type=jnp.float32))
        # Gate order (after wrapper reordering): [i, f, o, g]
        sig = jax.nn.sigmoid(gates[:, :3 * H])     # one EUP pass for i, f, o
        g_t = jnp.tanh(gates[:, 3 * H:])           # one EUP pass for g
        i_g = sig[:, 0 * H:1 * H]
        f_g = sig[:, 1 * H:2 * H]
        o_g = sig[:, 2 * H:3 * H]

        c = f_g * c + i_g * g_t
        h = o_g * jnp.tanh(c)

        # Lane-dense (last dim = H) hidden-sequence store.
        hs_ref[t * Bp:(t + 1) * Bp, :] = h

    # ---- Epilogue: lane-dense (padded to 128) linear head, applied once ------
    out_ref[...] = (jnp.dot(hs_ref[...].astype(jnp.bfloat16), wlin_ref[...],
                            preferred_element_type=jnp.float32)
                    + blin_ref[...])


def lstm_model_forward(x, params):
    """x: (seq_len, batch, input_size) f32 -> (seq_len, batch, output_size) f32."""
    seq_len, batch, input_size = x.shape
    w_ih, w_hh, b_ih, b_hh, w_lin, b_lin = (
        params["w_ih"], params["w_hh"], params["b_ih"], params["b_hh"],
        params["w_lin"], params["b_lin"])
    hidden = w_hh.shape[1]
    out_size = w_lin.shape[0]
    H = hidden

    # Gate slices (k*H : (k+1)*H and :3H) must stay (8,128)-tile aligned;
    # a misaligned slice materializes a VMEM copy per step on the critical path.
    assert H % 128 == 0, "hidden size must be a multiple of 128"

    # Pad batch up to the f32 sublane tile (8); padded rows are independent
    # bounded garbage (sigmoid/tanh keep them finite) and are sliced off.
    batch_p = max(8, ((batch + 7) // 8) * 8)
    if batch_p != batch:
        x = jnp.pad(x, ((0, 0), (0, batch_p - batch), (0, 0)))

    # Lane-dense output: pad the head to a multiple of 128 output columns.
    out_p = max(128, ((out_size + 127) // 128) * 128)

    # Reorder PyTorch gate blocks [i, f, g, o] -> [i, f, o, g] so the kernel can
    # apply one sigmoid to the first 3H columns and one tanh to the last H.
    def reorder(w):  # w: (4H, ...) along dim 0
        return jnp.concatenate(
            [w[0 * H:1 * H], w[1 * H:2 * H], w[3 * H:4 * H], w[2 * H:3 * H]],
            axis=0)

    # bf16 matmul operands (kernel accumulates in f32); biases stay f32.
    wih_t = jnp.transpose(reorder(w_ih)).astype(jnp.bfloat16)     # (I, 4H)
    whh_t = jnp.transpose(reorder(w_hh)).astype(jnp.bfloat16)     # (H, 4H)
    b_sum = reorder(b_ih + b_hh).reshape(1, 4 * H)                # (1, 4H) f32
    wlin_t = jnp.zeros((H, out_p), jnp.bfloat16).at[:, :out_size].set(
        jnp.transpose(w_lin).astype(jnp.bfloat16))                # (H, 128)
    blin_p = jnp.zeros((1, out_p), jnp.float32).at[:, :out_size].set(
        b_lin.reshape(1, out_size))                               # (1, 128)

    # Flatten (seq, batch_p) into one M dimension for the big prologue matmul.
    x2 = x.reshape(seq_len * batch_p, input_size).astype(jnp.bfloat16)

    kernel = functools.partial(_lstm_kernel, seq_len=seq_len,
                               batch_p=batch_p, hidden=H)

    # Whole-array-in-VMEM operands, no grid -> single buffer per operand.
    # Total VMEM ~2 MiB at these shapes; fits every generation's default
    # scoped limit.
    # TODO(synk): if the model is scaled (large seq/hidden/input), chunk the
    # gates_x prologue over a seq grid axis and set vmem_limit_bytes for the
    # v7x 64 MiB budget.
    vmem_spec = pl.BlockSpec(memory_space=pltpu.MemorySpace.VMEM)

    out2 = pl.pallas_call(
        kernel,
        out_shape=jax.ShapeDtypeStruct((seq_len * batch_p, out_p), jnp.float32),
        in_specs=[vmem_spec] * 6,
        out_specs=vmem_spec,
        scratch_shapes=[
            pltpu.VMEM((seq_len * batch_p, 4 * H), jnp.float32),  # gates_x
            pltpu.VMEM((seq_len * batch_p, H), jnp.float32),      # hidden seq
        ],
    )(x2, wih_t, whh_t, b_sum, wlin_t, blin_p)

    out = out2.reshape(seq_len, batch_p, out_p)[:, :batch, :out_size]
    return out


def init_params(key, input_size, hidden, out_size):
    """Deterministic synthetic params matching nn.LSTM/nn.Linear shapes."""
    ks = jax.random.split(key, 6)
    k = 1.0 / jnp.sqrt(hidden)
    u = lambda kk, shape: jax.random.uniform(kk, shape, jnp.float32, -k, k)
    return {
        "w_ih": u(ks[0], (4 * hidden, input_size)),   # weight_ih_l0
        "w_hh": u(ks[1], (4 * hidden, hidden)),       # weight_hh_l0
        "b_ih": u(ks[2], (4 * hidden,)),              # bias_ih_l0
        "b_hh": u(ks[3], (4 * hidden,)),              # bias_hh_l0
        "w_lin": u(ks[4], (out_size, hidden)),        # linear.weight
        "b_lin": u(ks[5], (out_size,)),               # linear.bias
    }


def reference_forward(x, params, *, matmul_dtype=jnp.float32):
    """Pure-JAX reference (lax.scan) mirroring PyTorch LSTM + Linear semantics.

    With matmul_dtype=jnp.bfloat16 it mirrors the kernel's exact math
    (bf16 matmul operands, f32 accumulation); with the default f32 it is the
    original module's fp32 forward pass.
    """
    hidden = params["w_hh"].shape[1]
    cast = lambda a: a.astype(matmul_dtype)
    wih_t = cast(params["w_ih"].T)
    whh_t = cast(params["w_hh"].T)
    wlin_t = cast(params["w_lin"].T)
    b = params["b_ih"] + params["b_hh"]

    def step(carry, x_t):
        h, c = carry
        gates = (jnp.dot(cast(x_t), wih_t, preferred_element_type=jnp.float32)
                 + jnp.dot(cast(h), whh_t, preferred_element_type=jnp.float32)
                 + b)
        i, f, g, o = jnp.split(gates, 4, axis=-1)    # PyTorch order: i, f, g, o
        i, f, o = jax.nn.sigmoid(i), jax.nn.sigmoid(f), jax.nn.sigmoid(o)
        g = jnp.tanh(g)
        c_new = f * c + i * g
        h_new = o * jnp.tanh(c_new)
        return (h_new, c_new), h_new

    B = x.shape[1]
    h0 = jnp.zeros((B, hidden), jnp.float32)
    c0 = jnp.zeros((B, hidden), jnp.float32)
    _, hs = jax.lax.scan(step, (h0, c0), x)
    return (jnp.dot(cast(hs), wlin_t, preferred_element_type=jnp.float32)
            + params["b_lin"])


if __name__ == "__main__":
    # Shapes consistent with the module defaults:
    # inputsize=512, hidensize=256, layer=1, outputsize=2; seq=8, batch=4.
    SEQ, BATCH, INPUT, HIDDEN, OUT = 8, 4, 512, 256, 2

    key = jax.random.PRNGKey(0)
    kx, kp = jax.random.split(key)
    x = jax.random.normal(kx, (SEQ, BATCH, INPUT), jnp.float32)
    params = init_params(kp, INPUT, HIDDEN, OUT)

    out = jax.block_until_ready(lstm_model_forward(x, params))
    assert out.shape == (SEQ, BATCH, OUT), out.shape

    # (a) Tight check against a reference using the SAME math as the kernel
    #     (bf16 matmul operands, f32 accumulation).
    ref_bf16 = jax.block_until_ready(
        reference_forward(x, params, matmul_dtype=jnp.bfloat16))
    err_bf16 = float(jnp.max(jnp.abs(out - ref_bf16)))
    assert jnp.allclose(out, ref_bf16, atol=1e-3, rtol=1e-3), \
        f"bf16-matched max abs err {err_bf16}"

    # (b) Fidelity against the pure-f32 module semantics; tolerance reflects
    #     bf16 operand rounding of the matmuls (accumulation stays f32).
    ref_f32 = jax.block_until_ready(reference_forward(x, params))
    err_f32 = float(jnp.max(jnp.abs(out - ref_f32)))
    assert jnp.allclose(out, ref_f32, atol=5e-2, rtol=5e-2), \
        f"f32 max abs err {err_f32}"

    print("KERNEL_OK")
</pallas_src>

<mosaic_0001>
module attributes {stable_mosaic.version = 11 : i64} {
  func.func @_lstm_kernel(%arg0: memref<64x512xbf16, #tpu.memory_space<vmem>>, %arg1: memref<512x1024xbf16, #tpu.memory_space<vmem>>, %arg2: memref<256x1024xbf16, #tpu.memory_space<vmem>>, %arg3: memref<1x1024xf32, #tpu.memory_space<vmem>>, %arg4: memref<256x128xbf16, #tpu.memory_space<vmem>>, %arg5: memref<1x128xf32, #tpu.memory_space<vmem>>, %arg6: memref<64x128xf32, #tpu.memory_space<vmem>>, %arg7: memref<64x1024xf32, #tpu.memory_space<vmem>>, %arg8: memref<64x256xf32, #tpu.memory_space<vmem>>) attributes {dimension_semantics = [], scalar_prefetch = 0 : i64, scratch_operands = 2 : i64, tpu.core_type = #tpu.core_type<tc>} {
    %c0 = arith.constant 0 : index
    %c0_0 = arith.constant 0 : index
    %0 = vector.load %arg0[%c0, %c0_0] : memref<64x512xbf16, #tpu.memory_space<vmem>>, vector<64x512xbf16>
    %c0_1 = arith.constant 0 : index
    %c0_2 = arith.constant 0 : index
    %1 = vector.load %arg1[%c0_1, %c0_2] : memref<512x1024xbf16, #tpu.memory_space<vmem>>, vector<512x1024xbf16>
    %cst = arith.constant dense<0.000000e+00> : vector<64x1024xf32>
    %2 = tpu.matmul %0, %1, %cst {dimension_numbers = #tpu.dot_dimension_numbers<[1], [0], [0], [1], [0, 0, 1, 1], [], []>} : vector<64x512xbf16>, vector<512x1024xbf16>, vector<64x1024xf32> -> vector<64x1024xf32>
    %c0_3 = arith.constant 0 : index
    %c0_4 = arith.constant 0 : index
    %3 = vector.load %arg3[%c0_3, %c0_4] : memref<1x1024xf32, #tpu.memory_space<vmem>>, vector<1x1024xf32>
    %4 = vector.broadcast %3 : vector<1x1024xf32> to vector<64x1024xf32>
    %5 = arith.addf %2, %4 : vector<64x1024xf32>
    %c0_5 = arith.constant 0 : index
    %c0_6 = arith.constant 0 : index
    %6 = vector.load %arg7[%c0_5, %c0_6] : memref<64x1024xf32, #tpu.memory_space<vmem>>, vector<64x1024xf32>
    tpu.vector_store %arg7[%c0_5, %c0_6], %5 {strides = array<i32>} : memref<64x1024xf32, #tpu.memory_space<vmem>>, vector<64x1024xf32>,
    %cst_7 = arith.constant 0.000000e+00 : f32
    %7 = vector.broadcast %cst_7 : f32 to vector<8x256xf32>
    %cst_8 = arith.constant 0.000000e+00 : f32
    %8 = vector.broadcast %cst_8 : f32 to vector<8x256xf32>
    %c0_9 = arith.constant 0 : index
    %c0_10 = arith.constant 0 : index
    %9 = vector.load %arg7[%c0_9, %c0_10] : memref<64x1024xf32, #tpu.memory_space<vmem>>, vector<8x1024xf32>
    %10 = arith.truncf %7 : vector<8x256xf32> to vector<8x256xbf16>
    %c0_11 = arith.constant 0 : index
    %c0_12 = arith.constant 0 : index
    %11 = vector.load %arg2[%c0_11, %c0_12] : memref<256x1024xbf16, #tpu.memory_space<vmem>>, vector<256x1024xbf16>
    %cst_13 = arith.constant dense<0.000000e+00> : vector<8x1024xf32>
    %12 = tpu.matmul %10, %11, %cst_13 {dimension_numbers = #tpu.dot_dimension_numbers<[1], [0], [0], [1], [0, 0, 1, 1], [], []>} : vector<8x256xbf16>, vector<256x1024xbf16>, vector<8x1024xf32> -> vector<8x1024xf32>
    %13 = arith.addf %9, %12 : vector<8x1024xf32>
    %14 = vector.extract_strided_slice %13 {offsets = [0, 0], sizes = [8, 768], strides = [1, 1]} : vector<8x1024xf32> to vector<8x768xf32>
    %15 = arith.negf %14 : vector<8x768xf32>
    %16 = math.exp %15 : vector<8x768xf32>
    %cst_14 = arith.constant 1.000000e+00 : f32
    %17 = vector.broadcast %cst_14 : f32 to vector<8x768xf32>
    %18 = arith.addf %17, %16 : vector<8x768xf32>
    %19 = arith.divf %17, %18 : vector<8x768xf32>
    %20 = vector.extract_strided_slice %13 {offsets = [0, 768], sizes = [8, 256], strides = [1, 1]} : vector<8x1024xf32> to vector<8x256xf32>
    %21 = math.tanh %20 : vector<8x256xf32>
    %22 = vector.extract_strided_slice %19 {offsets = [0, 0], sizes = [8, 256], strides = [1, 1]} : vector<8x768xf32> to vector<8x256xf32>
    %23 = vector.extract_strided_slice %19 {offsets = [0, 256], sizes = [8, 256], strides = [1, 1]} : vector<8x768xf32> to vector<8x256xf32>
    %24 = vector.extract_strided_slice %19 {offsets = [0, 512], sizes = [8, 256], strides = [1, 1]} : vector<8x768xf32> to vector<8x256xf32>
    %25 = arith.mulf %23, %8 : vector<8x256xf32>
    %26 = arith.mulf %22, %21 : vector<8x256xf32>
    %27 = arith.addf %25, %26 : vector<8x256xf32>
    %28 = math.tanh %27 : vector<8x256xf32>
    %29 = arith.mulf %24, %28 : vector<8x256xf32>
    %c0_15 = arith.constant 0 : index
    %c0_16 = arith.constant 0 : index
    %30 = vector.load %arg8[%c0_15, %c0_16] : memref<64x256xf32, #tpu.memory_space<vmem>>, vector<8x256xf32>
    tpu.vector_store %arg8[%c0_15, %c0_16], %29 {strides = array<i32>} : memref<64x256xf32, #tpu.memory_space<vmem>>, vector<8x256xf32>,
    %c8 = arith.constant 8 : index
    %c0_17 = arith.constant 0 : index
    %31 = vector.load %arg7[%c8, %c0_17] : memref<64x1024xf32, #tpu.memory_space<vmem>>, vector<8x1024xf32>
    %32 = arith.truncf %29 : vector<8x256xf32> to vector<8x256xbf16>
    %c0_18 = arith.constant 0 : index
    %c0_19 = arith.constant 0 : index
    %33 = vector.load %arg2[%c0_18, %c0_19] : memref<256x1024xbf16, #tpu.memory_space<vmem>>, vector<256x1024xbf16>
    %cst_20 = arith.constant dense<0.000000e+00> : vector<8x1024xf32>
    %34 = tpu.matmul %32, %33, %cst_20 {dimension_numbers = #tpu.dot_dimension_numbers<[1], [0], [0], [1], [0, 0, 1, 1], [], []>} : vector<8x256xbf16>, vector<256x1024xbf16>, vector<8x1024xf32> -> vector<8x1024xf32>
    %35 = arith.addf %31, %34 : vector<8x1024xf32>
    %36 = vector.extract_strided_slice %35 {offsets = [0, 0], sizes = [8, 768], strides = [1, 1]} : vector<8x1024xf32> to vector<8x768xf32>
    %37 = arith.negf %36 : vector<8x768xf32>
    %38 = math.exp %37 : vector<8x768xf32>
    %cst_21 = arith.constant 1.000000e+00 : f32
    %39 = vector.broadcast %cst_21 : f32 to vector<8x768xf32>
    %40 = arith.addf %39, %38 : vector<8x768xf32>
    %41 = arith.divf %39, %40 : vector<8x768xf32>
    %42 = vector.extract_strided_slice %35 {offsets = [0, 768], sizes = [8, 256], strides = [1, 1]} : vector<8x1024xf32> to vector<8x256xf32>
    %43 = math.tanh %42 : vector<8x256xf32>
    %44 = vector.extract_strided_slice %41 {offsets = [0, 0], sizes = [8, 256], strides = [1, 1]} : vector<8x768xf32> to vector<8x256xf32>
    %45 = vector.extract_strided_slice %41 {offsets = [0, 256], sizes = [8, 256], strides = [1, 1]} : vector<8x768xf32> to vector<8x256xf32>
    %46 = vector.extract_strided_slice %41 {offsets = [0, 512], sizes = [8, 256], strides = [1, 1]} : vector<8x768xf32> to vector<8x256xf32>
    %47 = arith.mulf %45, %27 : vector<8x256xf32>
    %48 = arith.mulf %44, %43 : vector<8x256xf32>
    %49 = arith.addf %47, %48 : vector<8x256xf32>
    %50 = math.tanh %49 : vector<8x256xf32>
    %51 = arith.mulf %46, %50 : vector<8x256xf32>
    %c8_22 = arith.constant 8 : index
    %c0_23 = arith.constant 0 : index
    %52 = vector.load %arg8[%c8_22, %c0_23] : memref<64x256xf32, #tpu.memory_space<vmem>>, vector<8x256xf32>
    tpu.vector_store %arg8[%c8_22, %c0_23], %51 {strides = array<i32>} : memref<64x256xf32, #tpu.memory_space<vmem>>, vector<8x256xf32>,
    %c16 = arith.constant 16 : index
    %c0_24 = arith.constant 0 : index
    %53 = vector.load %arg7[%c16, %c0_24] : memref<64x1024xf32, #tpu.memory_space<vmem>>, vector<8x1024xf32>
    %54 = arith.truncf %51 : vector<8x256xf32> to vector<8x256xbf16>
    %c0_25 = arith.constant 0 : index
    %c0_26 = arith.constant 0 : index
    %55 = vector.load %arg2[%c0_25, %c0_26] : memref<256x1024xbf16, #tpu.memory_space<vmem>>, vector<256x1024xbf16>
    %cst_27 = arith.constant dense<0.000000e+00> : vector<8x1024xf32>
    %56 = tpu.matmul %54, %55, %cst_27 {dimension_numbers = #tpu.dot_dimension_numbers<[1], [0], [0], [1], [0, 0, 1, 1], [], []>} : vector<8x256xbf16>, vector<256x1024xbf16>, vector<8x1024xf32> -> vector<8x1024xf32>
    %57 = arith.addf %53, %56 : vector<8x1024xf32>
    %58 = vector.extract_strided_slice %57 {offsets = [0, 0], sizes = [8, 768], strides = [1, 1]} : vector<8x1024xf32> to vector<8x768xf32>
    %59 = arith.negf %58 : vector<8x768xf32>
    %60 = math.exp %59 : vector<8x768xf32>
    %cst_28 = arith.constant 1.000000e+00 : f32
    %61 = vector.broadcast %cst_28 : f32 to vector<8x768xf32>
    %62 = arith.addf %61, %60 : vector<8x768xf32>
    %63 = arith.divf %61, %62 : vector<8x768xf32>
    %64 = vector.extract_strided_slice %57 {offsets = [0, 768], sizes = [8, 256], strides = [1, 1]} : vector<8x1024xf32> to vector<8x256xf32>
    %65 = math.tanh %64 : vector<8x256xf32>
    %66 = vector.extract_strided_slice %63 {offsets = [0, 0], sizes = [8, 256], strides = [1, 1]} : vector<8x768xf32> to vector<8x256xf32>
    %67 = vector.extract_strided_slice %63 {offsets = [0, 256], sizes = [8, 256], strides = [1, 1]} : vector<8x768xf32> to vector<8x256xf32>
    %68 = vector.extract_strided_slice %63 {offsets = [0, 512], sizes = [8, 256], strides = [1, 1]} : vector<8x768xf32> to vector<8x256xf32>
    %69 = arith.mulf %67, %49 : vector<8x256xf32>
    %70 = arith.mulf %66, %65 : vector<8x256xf32>
    %71 = arith.addf %69, %70 : vector<8x256xf32>
    %72 = math.tanh %71 : vector<8x256xf32>
    %73 = arith.mulf %68, %72 : vector<8x256xf32>
    %c16_29 = arith.constant 16 : index
    %c0_30 = arith.constant 0 : index
    %74 = vector.load %arg8[%c16_29, %c0_30] : memref<64x256xf32, #tpu.memory_space<vmem>>, vector<8x256xf32>
    tpu.vector_store %arg8[%c16_29, %c0_30], %73 {strides = array<i32>} : memref<64x256xf32, #tpu.memory_space<vmem>>, vector<8x256xf32>,
    %c24 = arith.constant 24 : index
    %c0_31 = arith.constant 0 : index
    %75 = vector.load %arg7[%c24, %c0_31] : memref<64x1024xf32, #tpu.memory_space<vmem>>, vector<8x1024xf32>
    %76 = arith.truncf %73 : vector<8x256xf32> to vector<8x256xbf16>
    %c0_32 = arith.constant 0 : index
    %c0_33 = arith.constant 0 : index
    %77 = vector.load %arg2[%c0_32, %c0_33] : memref<256x1024xbf16, #tpu.memory_space<vmem>>, vector<256x1024xbf16>
    %cst_34 = arith.constant dense<0.000000e+00> : vector<8x1024xf32>
    %78 = tpu.matmul %76, %77, %cst_34 {dimension_numbers = #tpu.dot_dimension_numbers<[1], [0], [0], [1], [0, 0, 1, 1], [], []>} : vector<8x256xbf16>, vector<256x1024xbf16>, vector<8x1024xf32> -> vector<8x1024xf32>
    %79 = arith.addf %75, %78 : vector<8x1024xf32>
    %80 = vector.extract_strided_slice %79 {offsets = [0, 0], sizes = [8, 768], strides = [1, 1]} : vector<8x1024xf32> to vector<8x768xf32>
    %81 = arith.negf %80 : vector<8x768xf32>
    %82 = math.exp %81 : vector<8x768xf32>
    %cst_35 = arith.constant 1.000000e+00 : f32
    %83 = vector.broadcast %cst_35 : f32 to vector<8x768xf32>
    %84 = arith.addf %83, %82 : vector<8x768xf32>
    %85 = arith.divf %83, %84 : vector<8x768xf32>
    %86 = vector.extract_strided_slice %79 {offsets = [0, 768], sizes = [8, 256], strides = [1, 1]} : vector<8x1024xf32> to vector<8x256xf32>
    %87 = math.tanh %86 : vector<8x256xf32>
    %88 = vector.extract_strided_slice %85 {offsets = [0, 0], sizes = [8, 256], strides = [1, 1]} : vector<8x768xf32> to vector<8x256xf32>
    %89 = vector.extract_strided_slice %85 {offsets = [0, 256], sizes = [8, 256], strides = [1, 1]} : vector<8x768xf32> to vector<8x256xf32>
    %90 = vector.extract_strided_slice %85 {offsets = [0, 512], sizes = [8, 256], strides = [1, 1]} : vector<8x768xf32> to vector<8x256xf32>
    %91 = arith.mulf %89, %71 : vector<8x256xf32>
    %92 = arith.mulf %88, %87 : vector<8x256xf32>
    %93 = arith.addf %91, %92 : vector<8x256xf32>
    %94 = math.tanh %93 : vector<8x256xf32>
    %95 = arith.mulf %90, %94 : vector<8x256xf32>
    %c24_36 = arith.constant 24 : index
    %c0_37 = arith.constant 0 : index
    %96 = vector.load %arg8[%c24_36, %c0_37] : memref<64x256xf32, #tpu.memory_space<vmem>>, vector<8x256xf32>
    tpu.vector_store %arg8[%c24_36, %c0_37], %95 {strides = array<i32>} : memref<64x256xf32, #tpu.memory_space<vmem>>, vector<8x256xf32>,
    %c32 = arith.constant 32 : index
    %c0_38 = arith.constant 0 : index
    %97 = vector.load %arg7[%c32, %c0_38] : memref<64x1024xf32, #tpu.memory_space<vmem>>, vector<8x1024xf32>
    %98 = arith.truncf %95 : vector<8x256xf32> to vector<8x256xbf16>
    %c0_39 = arith.constant 0 : index
    %c0_40 = arith.constant 0 : index
    %99 = vector.load %arg2[%c0_39, %c0_40] : memref<256x1024xbf16, #tpu.memory_space<vmem>>, vector<256x1024xbf16>
    %cst_41 = arith.constant dense<0.000000e+00> : vector<8x1024xf32>
    %100 = tpu.matmul %98, %99, %cst_41 {dimension_numbers = #tpu.dot_dimension_numbers<[1], [0], [0], [1], [0, 0, 1, 1], [], []>} : vector<8x256xbf16>, vector<256x1024xbf16>, vector<8x1024xf32> -> vector<8x1024xf32>
    %101 = arith.addf %97, %100 : vector<8x1024xf32>
    %102 = vector.extract_strided_slice %101 {offsets = [0, 0], sizes = [8, 768], strides = [1, 1]} : vector<8x1024xf32> to vector<8x768xf32>
    %103 = arith.negf %102 : vector<8x768xf32>
    %104 = math.exp %103 : vector<8x768xf32>
    %cst_42 = arith.constant 1.000000e+00 : f32
    %105 = vector.broadcast %cst_42 : f32 to vector<8x768xf32>
    %106 = arith.addf %105, %104 : vector<8x768xf32>
    %107 = arith.divf %105, %106 : vector<8x768xf32>
    %108 = vector.extract_strided_slice %101 {offsets = [0, 768], sizes = [8, 256], strides = [1, 1]} : vector<8x1024xf32> to vector<8x256xf32>
    %109 = math.tanh %108 : vector<8x256xf32>
    %110 = vector.extract_strided_slice %107 {offsets = [0, 0], sizes = [8, 256], strides = [1, 1]} : vector<8x768xf32> to vector<8x256xf32>
    %111 = vector.extract_strided_slice %107 {offsets = [0, 256], sizes = [8, 256], strides = [1, 1]} : vector<8x768xf32> to vector<8x256xf32>
    %112 = vector.extract_strided_slice %107 {offsets = [0, 512], sizes = [8, 256], strides = [1, 1]} : vector<8x768xf32> to vector<8x256xf32>
    %113 = arith.mulf %111, %93 : vector<8x256xf32>
    %114 = arith.mulf %110, %109 : vector<8x256xf32>
    %115 = arith.addf %113, %114 : vector<8x256xf32>
    %116 = math.tanh %115 : vector<8x256xf32>
    %117 = arith.mulf %112, %116 : vector<8x256xf32>
    %c32_43 = arith.constant 32 : index
    %c0_44 = arith.constant 0 : index
    %118 = vector.load %arg8[%c32_43, %c0_44] : memref<64x256xf32, #tpu.memory_space<vmem>>, vector<8x256xf32>
    tpu.vector_store %arg8[%c32_43, %c0_44], %117 {strides = array<i32>} : memref<64x256xf32, #tpu.memory_space<vmem>>, vector<8x256xf32>,
    %c40 = arith.constant 40 : index
    %c0_45 = arith.constant 0 : index
    %119 = vector.load %arg7[%c40, %c0_45] : memref<64x1024xf32, #tpu.memory_space<vmem>>, vector<8x1024xf32>
    %120 = arith.truncf %117 : vector<8x256xf32> to vector<8x256xbf16>
    %c0_46 = arith.constant 0 : index
    %c0_47 = arith.constant 0 : index
    %121 = vector.load %arg2[%c0_46, %c0_47] : memref<256x1024xbf16, #tpu.memory_space<vmem>>, vector<256x1024xbf16>
    %cst_48 = arith.constant dense<0.000000e+00> : vector<8x1024xf32>
    %122 = tpu.matmul %120, %121, %cst_48 {dimension_numbers = #tpu.dot_dimension_numbers<[1], [0], [0], [1], [0, 0, 1, 1], [], []>} : vector<8x256xbf16>, vector<256x1024xbf16>, vector<8x1024xf32> -> vector<8x1024xf32>
    %123 = arith.addf %119, %122 : vector<8x1024xf32>
    %124 = vector.extract_strided_slice %123 {offsets = [0, 0], sizes = [8, 768], strides = [1, 1]} : vector<8x1024xf32> to vector<8x768xf32>
    %125 = arith.negf %124 : vector<8x768xf32>
    %126 = math.exp %125 : vector<8x768xf32>
    %cst_49 = arith.constant 1.000000e+00 : f32
    %127 = vector.broadcast %cst_49 : f32 to vector<8x768xf32>
    %128 = arith.addf %127, %126 : vector<8x768xf32>
    %129 = arith.divf %127, %128 : vector<8x768xf32>
    %130 = vector.extract_strided_slice %123 {offsets = [0, 768], sizes = [8, 256], strides = [1, 1]} : vector<8x1024xf32> to vector<8x256xf32>
    %131 = math.tanh %130 : vector<8x256xf32>
    %132 = vector.extract_strided_slice %129 {offsets = [0, 0], sizes = [8, 256], strides = [1, 1]} : vector<8x768xf32> to vector<8x256xf32>
    %133 = vector.extract_strided_slice %129 {offsets = [0, 256], sizes = [8, 256], strides = [1, 1]} : vector<8x768xf32> to vector<8x256xf32>
    %134 = vector.extract_strided_slice %129 {offsets = [0, 512], sizes = [8, 256], strides = [1, 1]} : vector<8x768xf32> to vector<8x256xf32>
    %135 = arith.mulf %133, %115 : vector<8x256xf32>
    %136 = arith.mulf %132, %131 : vector<8x256xf32>
    %137 = arith.addf %135, %136 : vector<8x256xf32>
    %138 = math.tanh %137 : vector<8x256xf32>
    %139 = arith.mulf %134, %138 : vector<8x256xf32>
    %c40_50 = arith.constant 40 : index
    %c0_51 = arith.constant 0 : index
    %140 = vector.load %arg8[%c40_50, %c0_51] : memref<64x256xf32, #tpu.memory_space<vmem>>, vector<8x256xf32>
    tpu.vector_store %arg8[%c40_50, %c0_51], %139 {strides = array<i32>} : memref<64x256xf32, #tpu.memory_space<vmem>>, vector<8x256xf32>,
    %c48 = arith.constant 48 : index
    %c0_52 = arith.constant 0 : index
    %141 = vector.load %arg7[%c48, %c0_52] : memref<64x1024xf32, #tpu.memory_space<vmem>>, vector<8x1024xf32>
    %142 = arith.truncf %139 : vector<8x256xf32> to vector<8x256xbf16>
    %c0_53 = arith.constant 0 : index
    %c0_54 = arith.constant 0 : index
    %143 = vector.load %arg2[%c0_53, %c0_54] : memref<256x1024xbf16, #tpu.memory_space<vmem>>, vector<256x1024xbf16>
    %cst_55 = arith.constant dense<0.000000e+00> : vector<8x1024xf32>
    %144 = tpu.matmul %142, %143, %cst_55 {dimension_numbers = #tpu.dot_dimension_numbers<[1], [0], [0], [1], [0, 0, 1, 1], [], []>} : vector<8x256xbf16>, vector<256x1024xbf16>, vector<8x1024xf32> -> vector<8x1024xf32>
    %145 = arith.addf %141, %144 : vector<8x1024xf32>
    %146 = vector.extract_strided_slice %145 {offsets = [0, 0], sizes = [8, 768], strides = [1, 1]} : vector<8x1024xf32> to vector<8x768xf32>
    %147 = arith.negf %146 : vector<8x768xf32>
    %148 = math.exp %147 : vector<8x768xf32>
    %cst_56 = arith.constant 1.000000e+00 : f32
    %149 = vector.broadcast %cst_56 : f32 to vector<8x768xf32>
    %150 = arith.addf %149, %148 : vector<8x768xf32>
    %151 = arith.divf %149, %150 : vector<8x768xf32>
    %152 = vector.extract_strided_slice %145 {offsets = [0, 768], sizes = [8, 256], strides = [1, 1]} : vector<8x1024xf32> to vector<8x256xf32>
    %153 = math.tanh %152 : vector<8x256xf32>
    %154 = vector.extract_strided_slice %151 {offsets = [0, 0], sizes = [8, 256], strides = [1, 1]} : vector<8x768xf32> to vector<8x256xf32>
    %155 = vector.extract_strided_slice %151 {offsets = [0, 256], sizes = [8, 256], strides = [1, 1]} : vector<8x768xf32> to vector<8x256xf32>
    %156 = vector.extract_strided_slice %151 {offsets = [0, 512], sizes = [8, 256], strides = [1, 1]} : vector<8x768xf32> to vector<8x256xf32>
    %157 = arith.mulf %155, %137 : vector<8x256xf32>
    %158 = arith.mulf %154, %153 : vector<8x256xf32>
    %159 = arith.addf %157, %158 : vector<8x256xf32>
    %160 = math.tanh %159 : vector<8x256xf32>
    %161 = arith.mulf %156, %160 : vector<8x256xf32>
    %c48_57 = arith.constant 48 : index
    %c0_58 = arith.constant 0 : index
    %162 = vector.load %arg8[%c48_57, %c0_58] : memref<64x256xf32, #tpu.memory_space<vmem>>, vector<8x256xf32>
    tpu.vector_store %arg8[%c48_57, %c0_58], %161 {strides = array<i32>} : memref<64x256xf32, #tpu.memory_space<vmem>>, vector<8x256xf32>,
    %c56 = arith.constant 56 : index
    %c0_59 = arith.constant 0 : index
    %163 = vector.load %arg7[%c56, %c0_59] : memref<64x1024xf32, #tpu.memory_space<vmem>>, vector<8x1024xf32>
    %164 = arith.truncf %161 : vector<8x256xf32> to vector<8x256xbf16>
    %c0_60 = arith.constant 0 : index
    %c0_61 = arith.constant 0 : index
    %165 = vector.load %arg2[%c0_60, %c0_61] : memref<256x1024xbf16, #tpu.memory_space<vmem>>, vector<256x1024xbf16>
    %cst_62 = arith.constant dense<0.000000e+00> : vector<8x1024xf32>
    %166 = tpu.matmul %164, %165, %cst_62 {dimension_numbers = #tpu.dot_dimension_numbers<[1], [0], [0], [1], [0, 0, 1, 1], [], []>} : vector<8x256xbf16>, vector<256x1024xbf16>, vector<8x1024xf32> -> vector<8x1024xf32>
    %167 = arith.addf %163, %166 : vector<8x1024xf32>
    %168 = vector.extract_strided_slice %167 {offsets = [0, 0], sizes = [8, 768], strides = [1, 1]} : vector<8x1024xf32> to vector<8x768xf32>
    %169 = arith.negf %168 : vector<8x768xf32>
    %170 = math.exp %169 : vector<8x768xf32>
    %cst_63 = arith.constant 1.000000e+00 : f32
    %171 = vector.broadcast %cst_63 : f32 to vector<8x768xf32>
    %172 = arith.addf %171, %170 : vector<8x768xf32>
    %173 = arith.divf %171, %172 : vector<8x768xf32>
    %174 = vector.extract_strided_slice %167 {offsets = [0, 768], sizes = [8, 256], strides = [1, 1]} : vector<8x1024xf32> to vector<8x256xf32>
    %175 = math.tanh %174 : vector<8x256xf32>
    %176 = vector.extract_strided_slice %173 {offsets = [0, 0], sizes = [8, 256], strides = [1, 1]} : vector<8x768xf32> to vector<8x256xf32>
    %177 = vector.extract_strided_slice %173 {offsets = [0, 256], sizes = [8, 256], strides = [1, 1]} : vector<8x768xf32> to vector<8x256xf32>
    %178 = vector.extract_strided_slice %173 {offsets = [0, 512], sizes = [8, 256], strides = [1, 1]} : vector<8x768xf32> to vector<8x256xf32>
    %179 = arith.mulf %177, %159 : vector<8x256xf32>
    %180 = arith.mulf %176, %175 : vector<8x256xf32>
    %181 = arith.addf %179, %180 : vector<8x256xf32>
    %182 = math.tanh %181 : vector<8x256xf32>
    %183 = arith.mulf %178, %182 : vector<8x256xf32>
    %c56_64 = arith.constant 56 : index
    %c0_65 = arith.constant 0 : index
    %184 = vector.load %arg8[%c56_64, %c0_65] : memref<64x256xf32, #tpu.memory_space<vmem>>, vector<8x256xf32>
    tpu.vector_store %arg8[%c56_64, %c0_65], %183 {strides = array<i32>} : memref<64x256xf32, #tpu.memory_space<vmem>>, vector<8x256xf32>,
    %c0_66 = arith.constant 0 : index
    %c0_67 = arith.constant 0 : index
    %185 = vector.load %arg8[%c0_66, %c0_67] : memref<64x256xf32, #tpu.memory_space<vmem>>, vector<64x256xf32>
    %186 = arith.truncf %185 : vector<64x256xf32> to vector<64x256xbf16>
    %c0_68 = arith.constant 0 : index
    %c0_69 = arith.constant 0 : index
    %187 = vector.load %arg4[%c0_68, %c0_69] : memref<256x128xbf16, #tpu.memory_space<vmem>>, vector<256x128xbf16>
    %cst_70 = arith.constant dense<0.000000e+00> : vector<64x128xf32>
    %188 = tpu.matmul %186, %187, %cst_70 {dimension_numbers = #tpu.dot_dimension_numbers<[1], [0], [0], [1], [0, 0, 1, 1], [], []>} : vector<64x256xbf16>, vector<256x128xbf16>, vector<64x128xf32> -> vector<64x128xf32>
    %c0_71 = arith.constant 0 : index
    %c0_72 = arith.constant 0 : index
    %189 = vector.load %arg5[%c0_71, %c0_72] : memref<1x128xf32, #tpu.memory_space<vmem>>, vector<1x128xf32>
    %190 = vector.broadcast %189 : vector<1x128xf32> to vector<64x128xf32>
    %191 = arith.addf %188, %190 : vector<64x128xf32>
    %c0_73 = arith.constant 0 : index
    %c0_74 = arith.constant 0 : index
    %192 = vector.load %arg6[%c0_73, %c0_74] : memref<64x128xf32, #tpu.memory_space<vmem>>, vector<64x128xf32>
    tpu.vector_store %arg6[%c0_73, %c0_74], %191 {strides = array<i32>} : memref<64x128xf32, #tpu.memory_space<vmem>>, vector<64x128xf32>,
    return
  }
}

</mosaic_0001>

<llo_original>
// kernel: tpu_custom_call.1
$region0: #{tpu_custom_call.1}
  #allocation0 [shape = 'u32[]', space=smem, size = 0x4, offset = 0x4, fixed_abs, tag = 'smem constant byte address 0x4 - core index']
  #allocation1 [shape = 'u32[144,128]{1,0:T(1,128)}', space=vmem, size = 0x12000, scoped, tag = 'internal scratch']
  #allocation2 [shape = 'f32[64,1024]{1,0:T(8,128)}', space=vmem, size = 0x40000, scoped, tag = 'scratch operand']
  #allocation3 [shape = 'f32[64,256]{1,0:T(8,128)}', space=vmem, size = 0x10000, scoped, tag = 'scratch operand']
  %s0 = inlined_call_operand.hbm [shape: bf16[64,512], index: 0, kind: input, shape index: {}]
  %s1 = inlined_call_operand.hbm [shape: bf16[512,1024], index: 1, kind: input, shape index: {}]
  %s2 = inlined_call_operand.hbm [shape: bf16[256,1024], index: 2, kind: input, shape index: {}]
  %s3 = inlined_call_operand.hbm [shape: f32[1,1024], index: 3, kind: input, shape index: {}]
  %s4 = inlined_call_operand.hbm [shape: bf16[256,128], index: 4, kind: input, shape index: {}]
  %s5 = inlined_call_operand.vmem [shape: f32[1,128], index: 5, kind: input, shape index: {}]
  %s6 = inlined_call_operand.hbm [shape: f32[64,128], index: 6, kind: output, shape index: {}]
  %s7 = sld [smem:[#allocation0]]
  $region54: #{tpu_custom_call.1} parent=0
    _
  %s9 = ssub.s32 1, %s7
  %s10 = scalar_select 0, %s9, %s7
  $region1: #{tpu_custom_call.1} parent=0
    #allocation4 [shape = 'u8[65536]{0}', space=vmem, size = 0x10000, scoped, tag = 'input window, operand 0, single buffered']
    #allocation5 [shape = 's32[1]{0}', space=sflag, size = 0x4, scoped, tag = 'scoped memory for tpu_custom_call.1']
    #allocation6 [shape = 's32[1]{0}', space=sflag, size = 0x4, scoped, tag = 'scoped memory for tpu_custom_call.1']
    #allocation7 [shape = 'u8[1048576]{0}', space=vmem, size = 0x100000, scoped, tag = 'input window, operand 1, single buffered']
    #allocation8 [shape = 's32[1]{0}', space=sflag, size = 0x4, scoped, tag = 'scoped memory for tpu_custom_call.1']
    #allocation9 [shape = 'u8[524288]{0}', space=vmem, size = 0x80000, scoped, tag = 'input window, operand 2, single buffered']
    #allocation10 [shape = 'u8[4096]{0}', space=vmem, size = 0x1000, scoped, tag = 'input window, operand 3, single buffered']
    #allocation11 [shape = 's32[1]{0}', space=sflag, size = 0x4, scoped, tag = 'scoped memory for tpu_custom_call.1']
    #allocation12 [shape = 'u8[65536]{0}', space=vmem, size = 0x10000, scoped, tag = 'input window, operand 4, single buffered']
    #allocation13 [shape = 'u8[32768]{0}', space=vmem, size = 0x8000, scoped, tag = 'output window, operand 0, single buffered']
    %11 = vsyncpa [#allocation5], 0
    %12 = vsyncpa [#allocation8], 0
    %13 = vsyncpa [#allocation11], 0
    %14 = vsyncpa [#allocation6], 0
    // Predicated region
    $region2: #{tpu_custom_call.1} parent=1 // pred_check
      _
    $region3: #{tpu_custom_call.1} parent=1 // pred_check_branch
      %16 = sbr.rel (0) target = $region5
    $region4: #{tpu_custom_call.1} parent=1 // pred_region
      %s18 = ssub.s32 2048, 2048
      %19 = vsyncadd [#allocation5], %s18
      %s20 = sshll.u32 [#allocation4], 4
      %s21 = int_to_ptr.vmem [resolvable:$true] %s20
      %26 = dma.hbm_to_vmem [thread:$0]  %s0, 2048, %s21, [#allocation5], 256, 256, 16
    $region5: #{tpu_custom_call.1} parent=1 // pred_fallthru
      _
    // Predicated region
    $region6: #{tpu_custom_call.1} parent=1 // pred_check
      _
    $region7: #{tpu_custom_call.1} parent=1 // pred_check_branch
      %28 = sbr.rel (0) target = $region9
    $region8: #{tpu_custom_call.1} parent=1 // pred_region
      %s30 = ssub.s32 32768, 32768
      %31 = vsyncadd [#allocation8], %s30
      %s32 = sshll.u32 [#allocation7], 4
      %s33 = int_to_ptr.vmem [resolvable:$true] %s32
      %38 = dma.hbm_to_vmem [thread:$0]  %s1, 32768, %s33, [#allocation8], 512, 512, 32
    $region9: #{tpu_custom_call.1} parent=1 // pred_fallthru
      _
    // Predicated region
    $region10: #{tpu_custom_call.1} parent=1 // pred_check
      _
    $region11: #{tpu_custom_call.1} parent=1 // pred_check_branch
      %40 = sbr.rel (0) target = $region13
    $region12: #{tpu_custom_call.1} parent=1 // pred_region
      %s42 = ssub.s32 16384, 16384
      %43 = vsyncadd [#allocation8], %s42
      %s44 = sshll.u32 [#allocation9], 4
      %s45 = int_to_ptr.vmem [resolvable:$true] %s44
      %50 = dma.hbm_to_vmem [thread:$0]  %s2, 16384, %s45, [#allocation8], 512, 512, 32
    $region13: #{tpu_custom_call.1} parent=1 // pred_fallthru
      _
    // Predicated region
    $region14: #{tpu_custom_call.1} parent=1 // pred_check
      _
    $region15: #{tpu_custom_call.1} parent=1 // pred_check_branch
      %52 = sbr.rel (0) target = $region17
    $region16: #{tpu_custom_call.1} parent=1 // pred_region
      %s54 = ssub.s32 128, 128
      %55 = vsyncadd [#allocation11], %s54
      %s57 = sshll.u32 [#allocation10], 4
      %s58 = int_to_ptr.vmem [resolvable:$true] %s57
      %60 = dma.hbm_to_vmem [thread:$0]  %s3, 128, %s58, [#allocation11]
    $region17: #{tpu_custom_call.1} parent=1 // pred_fallthru
      _
    // Predicated region
    $region18: #{tpu_custom_call.1} parent=1 // pred_check
      _
    $region19: #{tpu_custom_call.1} parent=1 // pred_check_branch
      %62 = sbr.rel (0) target = $region21
    $region20: #{tpu_custom_call.1} parent=1 // pred_region
      %s64 = ssub.s32 2048, 2048
      %65 = vsyncadd [#allocation11], %s64
      %s66 = sshll.u32 [#allocation12], 4
      %s67 = int_to_ptr.vmem [resolvable:$true] %s66
      %72 = dma.hbm_to_vmem [thread:$0]  %s4, 2048, %s67, [#allocation11], 64, 64, 4
    $region21: #{tpu_custom_call.1} parent=1 // pred_fallthru
      _
    // Predicated region
    $region22: #{tpu_custom_call.1} parent=1 // pred_check
      _
    $region23: #{tpu_custom_call.1} parent=1 // pred_check_branch
      %74 = sbr.rel (0) target = $region25
    $region24: #{tpu_custom_call.1} parent=1 // pred_region
      _
    $region25: #{tpu_custom_call.1} parent=1 // pred_fallthru
      _
    // Predicated region
    $region26: #{tpu_custom_call.1} parent=1 // pred_check
      _
    $region27: #{tpu_custom_call.1} parent=1 // pred_check_branch
      %76 = sbr.rel (0) target = $region29
    $region28: #{tpu_custom_call.1} parent=1 // pred_region
      %77 = dma.done [#allocation5], 2048
    $region29: #{tpu_custom_call.1} parent=1 // pred_fallthru
      _
    // Predicated region
    $region30: #{tpu_custom_call.1} parent=1 // pred_check
      _
    $region31: #{tpu_custom_call.1} parent=1 // pred_check_branch
      %79 = sbr.rel (0) target = $region33
    $region32: #{tpu_custom_call.1} parent=1 // pred_region
      %80 = dma.done [#allocation8], 32768
    $region33: #{tpu_custom_call.1} parent=1 // pred_fallthru
      _
    // Predicated region
    $region34: #{tpu_custom_call.1} parent=1 // pred_check
      _
    $region35: #{tpu_custom_call.1} parent=1 // pred_check_branch
      %82 = sbr.rel (0) target = $region37
    $region36: #{tpu_custom_call.1} parent=1 // pred_region
      %83 = dma.done [#allocation8], 16384
    $region37: #{tpu_custom_call.1} parent=1 // pred_fallthru
      _
    // Predicated region
    $region38: #{tpu_custom_call.1} parent=1 // pred_check
      _
    $region39: #{tpu_custom_call.1} parent=1 // pred_check_branch
      %85 = sbr.rel (0) target = $region41
    $region40: #{tpu_custom_call.1} parent=1 // pred_region
      %86 = dma.done [#allocation11], 128
    $region41: #{tpu_custom_call.1} parent=1 // pred_fallthru
      _
    // Predicated region
    $region42: #{tpu_custom_call.1} parent=1 // pred_check
      _
    $region43: #{tpu_custom_call.1} parent=1 // pred_check_branch
      %88 = sbr.rel (0) target = $region45
    $region44: #{tpu_custom_call.1} parent=1 // pred_region
      %89 = dma.done [#allocation11], 2048
    $region45: #{tpu_custom_call.1} parent=1 // pred_fallthru
      _
    %v91 = vld [vmem:[#allocation4] sm:$0xff]
    %v92 = vld [vmem:[#allocation4 + $0x8] sm:$0xff]
    %v93 = vld [vmem:[#allocation4 + $0x10] sm:$0xff]
    %v94 = vld [vmem:[#allocation4 + $0x18] sm:$0xff]
    %v95 = vld [vmem:[#allocation4 + $0x20] sm:$0xff]
    %v96 = vld [vmem:[#allocation4 + $0x28] sm:$0xff]
    %v97 = vld [vmem:[#allocation4 + $0x30] sm:$0xff]
    %v98 = vld [vmem:[#allocation4 + $0x38] sm:$0xff]
    %v99 = vld [vmem:[#allocation4 + $0x40] sm:$0xff]
    %v100 = vld [vmem:[#allocation4 + $0x48] sm:$0xff]
    %v101 = vld [vmem:[#allocation4 + $0x50] sm:$0xff]
    %v102 = vld [vmem:[#allocation4 + $0x58] sm:$0xff]
    %v103 = vld [vmem:[#allocation4 + $0x60] sm:$0xff]
    %v104 = vld [vmem:[#allocation4 + $0x68] sm:$0xff]
    %v105 = vld [vmem:[#allocation4 + $0x70] sm:$0xff]
    %v106 = vld [vmem:[#allocation4 + $0x78] sm:$0xff]
    %v107 = vld [vmem:[#allocation7] sm:$0xff]
    %v108 = vld [vmem:[#allocation7 + $0x8] sm:$0xff]
    %v109 = vld [vmem:[#allocation7 + $0x10] sm:$0xff]
    %v110 = vld [vmem:[#allocation7 + $0x18] sm:$0xff]
    %v111 = vld [vmem:[#allocation7 + $0x20] sm:$0xff]
    %v112 = vld [vmem:[#allocation7 + $0x28] sm:$0xff]
    %v113 = vld [vmem:[#allocation7 + $0x30] sm:$0xff]
    %v114 = vld [vmem:[#allocation7 + $0x38] sm:$0xff]
    %v115 = vld [vmem:[#allocation7 + $0x40] sm:$0xff]
    %v116 = vld [vmem:[#allocation7 + $0x48] sm:$0xff]
    %v117 = vld [vmem:[#allocation7 + $0x50] sm:$0xff]
    %v118 = vld [vmem:[#allocation7 + $0x58] sm:$0xff]
    %v119 = vld [vmem:[#allocation7 + $0x60] sm:$0xff]
    %v120 = vld [vmem:[#allocation7 + $0x68] sm:$0xff]
    %v121 = vld [vmem:[#allocation7 + $0x70] sm:$0xff]
    %v122 = vld [vmem:[#allocation7 + $0x78] sm:$0xff]
    %v123 = vld [vmem:[#allocation7 + $0x80] sm:$0xff]
    %v124 = vld [vmem:[#allocation7 + $0x88] sm:$0xff]
    %v125 = vld [vmem:[#allocation7 + $0x90] sm:$0xff]
    %v126 = vld [vmem:[#allocation7 + $0x98] sm:$0xff]
    %v127 = vld [vmem:[#allocation7 + $0xa0] sm:$0xff]
    %v128 = vld [vmem:[#allocation7 + $0xa8] sm:$0xff]
    %v129 = vld [vmem:[#allocation7 + $0xb0] sm:$0xff]
    %v130 = vld [vmem:[#allocation7 + $0xb8] sm:$0xff]
    %v131 = vld [vmem:[#allocation7 + $0xc0] sm:$0xff]
    %v132 = vld [vmem:[#allocation7 + $0xc8] sm:$0xff]
    %v133 = vld [vmem:[#allocation7 + $0xd0] sm:$0xff]
    %v134 = vld [vmem:[#allocation7 + $0xd8] sm:$0xff]
    %v135 = vld [vmem:[#allocation7 + $0xe0] sm:$0xff]
    %v136 = vld [vmem:[#allocation7 + $0xe8] sm:$0xff]
    %v137 = vld [vmem:[#allocation7 + $0xf0] sm:$0xff]
    %v138 = vld [vmem:[#allocation7 + $0xf8] sm:$0xff]
    %v139 = vld [vmem:[#allocation7 + $0x100] sm:$0xff]
    %v140 = vld [vmem:[#allocation7 + $0x108] sm:$0xff]
    %v141 = vld [vmem:[#allocation7 + $0x110] sm:$0xff]
    %v142 = vld [vmem:[#allocation7 + $0x118] sm:$0xff]
    %v143 = vld [vmem:[#allocation7 + $0x120] sm:$0xff]
    %v144 = vld [vmem:[#allocation7 + $0x128] sm:$0xff]
    %v145 = vld [vmem:[#allocation7 + $0x130] sm:$0xff]
    %v146 = vld [vmem:[#allocation7 + $0x138] sm:$0xff]
    %v147 = vld [vmem:[#allocation7 + $0x140] sm:$0xff]
    %v148 = vld [vmem:[#allocation7 + $0x148] sm:$0xff]
    %v149 = vld [vmem:[#allocation7 + $0x150] sm:$0xff]
    %v150 = vld [vmem:[#allocation7 + $0x158] sm:$0xff]
    %v151 = vld [vmem:[#allocation7 + $0x160] sm:$0xff]
    %v152 = vld [vmem:[#allocation7 + $0x168] sm:$0xff]
    %v153 = vld [vmem:[#allocation7 + $0x170] sm:$0xff]
    %v154 = vld [vmem:[#allocation7 + $0x178] sm:$0xff]
    %v155 = vld [vmem:[#allocation7 + $0x180] sm:$0xff]
    %v156 = vld [vmem:[#allocation7 + $0x188] sm:$0xff]
    %v157 = vld [vmem:[#allocation7 + $0x190] sm:$0xff]
    %v158 = vld [vmem:[#allocation7 + $0x198] sm:$0xff]
    %v159 = vld [vmem:[#allocation7 + $0x1a0] sm:$0xff]
    %v160 = vld [vmem:[#allocation7 + $0x1a8] sm:$0xff]
    %v161 = vld [vmem:[#allocation7 + $0x1b0] sm:$0xff]
    %v162 = vld [vmem:[#allocation7 + $0x1b8] sm:$0xff]
    %v163 = vld [vmem:[#allocation7 + $0x1c0] sm:$0xff]
    %v164 = vld [vmem:[#allocation7 + $0x1c8] sm:$0xff]
    %v165 = vld [vmem:[#allocation7 + $0x1d0] sm:$0xff]
    %v166 = vld [vmem:[#allocation7 + $0x1d8] sm:$0xff]
    %v167 = vld [vmem:[#allocation7 + $0x1e0] sm:$0xff]
    %v168 = vld [vmem:[#allocation7 + $0x1e8] sm:$0xff]
    %v169 = vld [vmem:[#allocation7 + $0x1f0] sm:$0xff]
    %v170 = vld [vmem:[#allocation7 + $0x1f8] sm:$0xff]
    %v171 = vld [vmem:[#allocation7 + $0x200] sm:$0xff]
    %v172 = vld [vmem:[#allocation7 + $0x208] sm:$0xff]
    %v173 = vld [vmem:[#allocation7 + $0x210] sm:$0xff]
    %v174 = vld [vmem:[#allocation7 + $0x218] sm:$0xff]
    %v175 = vld [vmem:[#allocation7 + $0x220] sm:$0xff]
    %v176 = vld [vmem:[#allocation7 + $0x228] sm:$0xff]
    %v177 = vld [vmem:[#allocation7 + $0x230] sm:$0xff]
    %v178 = vld [vmem:[#allocation7 + $0x238] sm:$0xff]
    %v179 = vld [vmem:[#allocation7 + $0x240] sm:$0xff]
    %v180 = vld [vmem:[#allocation7 + $0x248] sm:$0xff]
    %v181 = vld [vmem:[#allocation7 + $0x250] sm:$0xff]
    %v182 = vld [vmem:[#allocation7 + $0x258] sm:$0xff]
    %v183 = vld [vmem:[#allocation7 + $0x260] sm:$0xff]
    %v184 = vld [vmem:[#allocation7 + $0x268] sm:$0xff]
    %v185 = vld [vmem:[#allocation7 + $0x270] sm:$0xff]
    %v186 = vld [vmem:[#allocation7 + $0x278] sm:$0xff]
    %v187 = vld [vmem:[#allocation7 + $0x280] sm:$0xff]
    %v188 = vld [vmem:[#allocation7 + $0x288] sm:$0xff]
    %v189 = vld [vmem:[#allocation7 + $0x290] sm:$0xff]
    %v190 = vld [vmem:[#allocation7 + $0x298] sm:$0xff]
    %v191 = vld [vmem:[#allocation7 + $0x2a0] sm:$0xff]
    %v192 = vld [vmem:[#allocation7 + $0x2a8] sm:$0xff]
    %v193 = vld [vmem:[#allocation7 + $0x2b0] sm:$0xff]
    %v194 = vld [vmem:[#allocation7 + $0x2b8] sm:$0xff]
    %v195 = vld [vmem:[#allocation7 + $0x2c0] sm:$0xff]
    %v196 = vld [vmem:[#allocation7 + $0x2c8] sm:$0xff]
    %v197 = vld [vmem:[#allocation7 + $0x2d0] sm:$0xff]
    %v198 = vld [vmem:[#allocation7 + $0x2d8] sm:$0xff]
    %v199 = vld [vmem:[#allocation7 + $0x2e0] sm:$0xff]
    %v200 = vld [vmem:[#allocation7 + $0x2e8] sm:$0xff]
    %v201 = vld [vmem:[#allocation7 + $0x2f0] sm:$0xff]
    %v202 = vld [vmem:[#allocation7 + $0x2f8] sm:$0xff]
    %v203 = vld [vmem:[#allocation7 + $0x300] sm:$0xff]
    %v204 = vld [vmem:[#allocation7 + $0x308] sm:$0xff]
    %v205 = vld [vmem:[#allocation7 + $0x310] sm:$0xff]
    %v206 = vld [vmem:[#allocation7 + $0x318] sm:$0xff]
    %v207 = vld [vmem:[#allocation7 + $0x320] sm:$0xff]
    %v208 = vld [vmem:[#allocation7 + $0x328] sm:$0xff]
    %v209 = vld [vmem:[#allocation7 + $0x330] sm:$0xff]
    %v210 = vld [vmem:[#allocation7 + $0x338] sm:$0xff]
    %v211 = vld [vmem:[#allocation7 + $0x340] sm:$0xff]
    %v212 = vld [vmem:[#allocation7 + $0x348] sm:$0xff]
    %v213 = vld [vmem:[#allocation7 + $0x350] sm:$0xff]
    %v214 = vld [vmem:[#allocation7 + $0x358] sm:$0xff]
    %v215 = vld [vmem:[#allocation7 + $0x360] sm:$0xff]
    %v216 = vld [vmem:[#allocation7 + $0x368] sm:$0xff]
    %v217 = vld [vmem:[#allocation7 + $0x370] sm:$0xff]
    %v218 = vld [vmem:[#allocation7 + $0x378] sm:$0xff]
    %v219 = vld [vmem:[#allocation7 + $0x380] sm:$0xff]
    %v220 = vld [vmem:[#allocation7 + $0x388] sm:$0xff]
    %v221 = vld [vmem:[#allocation7 + $0x390] sm:$0xff]
    %v222 = vld [vmem:[#allocation7 + $0x398] sm:$0xff]
    %v223 = vld [vmem:[#allocation7 + $0x3a0] sm:$0xff]
    %v224 = vld [vmem:[#allocation7 + $0x3a8] sm:$0xff]
    %v225 = vld [vmem:[#allocation7 + $0x3b0] sm:$0xff]
    %v226 = vld [vmem:[#allocation7 + $0x3b8] sm:$0xff]
    %v227 = vld [vmem:[#allocation7 + $0x3c0] sm:$0xff]
    %v228 = vld [vmem:[#allocation7 + $0x3c8] sm:$0xff]
    %v229 = vld [vmem:[#allocation7 + $0x3d0] sm:$0xff]
    %v230 = vld [vmem:[#allocation7 + $0x3d8] sm:$0xff]
    %v231 = vld [vmem:[#allocation7 + $0x3e0] sm:$0xff]
    %v232 = vld [vmem:[#allocation7 + $0x3e8] sm:$0xff]
    %v233 = vld [vmem:[#allocation7 + $0x3f0] sm:$0xff]
    %v234 = vld [vmem:[#allocation7 + $0x3f8] sm:$0xff]
    %v235 = vld [vmem:[#allocation7 + $0x400] sm:$0xff]
    %v236 = vld [vmem:[#allocation7 + $0x408] sm:$0xff]
    %v237 = vld [vmem:[#allocation7 + $0x410] sm:$0xff]
    %v238 = vld [vmem:[#allocation7 + $0x418] sm:$0xff]
    %v239 = vld [vmem:[#allocation7 + $0x420] sm:$0xff]
    %v240 = vld [vmem:[#allocation7 + $0x428] sm:$0xff]
    %v241 = vld [vmem:[#allocation7 + $0x430] sm:$0xff]
    %v242 = vld [vmem:[#allocation7 + $0x438] sm:$0xff]
    %v243 = vld [vmem:[#allocation7 + $0x440] sm:$0xff]
    %v244 = vld [vmem:[#allocation7 + $0x448] sm:$0xff]
    %v245 = vld [vmem:[#allocation7 + $0x450] sm:$0xff]
    %v246 = vld [vmem:[#allocation7 + $0x458] sm:$0xff]
    %v247 = vld [vmem:[#allocation7 + $0x460] sm:$0xff]
    %v248 = vld [vmem:[#allocation7 + $0x468] sm:$0xff]
    %v249 = vld [vmem:[#allocation7 + $0x470] sm:$0xff]
    %v250 = vld [vmem:[#allocation7 + $0x478] sm:$0xff]
    %v251 = vld [vmem:[#allocation7 + $0x480] sm:$0xff]
    %v252 = vld [vmem:[#allocation7 + $0x488] sm:$0xff]
    %v253 = vld [vmem:[#allocation7 + $0x490] sm:$0xff]
    %v254 = vld [vmem:[#allocation7 + $0x498] sm:$0xff]
    %v255 = vld [vmem:[#allocation7 + $0x4a0] sm:$0xff]
    %v256 = vld [vmem:[#allocation7 + $0x4a8] sm:$0xff]
    %v257 = vld [vmem:[#allocation7 + $0x4b0] sm:$0xff]
    %v258 = vld [vmem:[#allocation7 + $0x4b8] sm:$0xff]
    %v259 = vld [vmem:[#allocation7 + $0x4c0] sm:$0xff]
    %v260 = vld [vmem:[#allocation7 + $0x4c8] sm:$0xff]
    %v261 = vld [vmem:[#allocation7 + $0x4d0] sm:$0xff]
    %v262 = vld [vmem:[#allocation7 + $0x4d8] sm:$0xff]
    %v263 = vld [vmem:[#allocation7 + $0x4e0] sm:$0xff]
    %v264 = vld [vmem:[#allocation7 + $0x4e8] sm:$0xff]
    %v265 = vld [vmem:[#allocation7 + $0x4f0] sm:$0xff]
    %v266 = vld [vmem:[#allocation7 + $0x4f8] sm:$0xff]
    %v267 = vld [vmem:[#allocation7 + $0x500] sm:$0xff]
    %v268 = vld [vmem:[#allocation7 + $0x508] sm:$0xff]
    %v269 = vld [vmem:[#allocation7 + $0x510] sm:$0xff]
    %v270 = vld [vmem:[#allocation7 + $0x518] sm:$0xff]
    %v271 = vld [vmem:[#allocation7 + $0x520] sm:$0xff]
    %v272 = vld [vmem:[#allocation7 + $0x528] sm:$0xff]
    %v273 = vld [vmem:[#allocation7 + $0x530] sm:$0xff]
    %v274 = vld [vmem:[#allocation7 + $0x538] sm:$0xff]
    %v275 = vld [vmem:[#allocation7 + $0x540] sm:$0xff]
    %v276 = vld [vmem:[#allocation7 + $0x548] sm:$0xff]
    %v277 = vld [vmem:[#allocation7 + $0x550] sm:$0xff]
    %v278 = vld [vmem:[#allocation7 + $0x558] sm:$0xff]
    %v279 = vld [vmem:[#allocation7 + $0x560] sm:$0xff]
    %v280 = vld [vmem:[#allocation7 + $0x568] sm:$0xff]
    %v281 = vld [vmem:[#allocation7 + $0x570] sm:$0xff]
    %v282 = vld [vmem:[#allocation7 + $0x578] sm:$0xff]
    %v283 = vld [vmem:[#allocation7 + $0x580] sm:$0xff]
    %v284 = vld [vmem:[#allocation7 + $0x588] sm:$0xff]
    %v285 = vld [vmem:[#allocation7 + $0x590] sm:$0xff]
    %v286 = vld [vmem:[#allocation7 + $0x598] sm:$0xff]
    %v287 = vld [vmem:[#allocation7 + $0x5a0] sm:$0xff]
    %v288 = vld [vmem:[#allocation7 + $0x5a8] sm:$0xff]
    %v289 = vld [vmem:[#allocation7 + $0x5b0] sm:$0xff]
    %v290 = vld [vmem:[#allocation7 + $0x5b8] sm:$0xff]
    %v291 = vld [vmem:[#allocation7 + $0x5c0] sm:$0xff]
    %v292 = vld [vmem:[#allocation7 + $0x5c8] sm:$0xff]
    %v293 = vld [vmem:[#allocation7 + $0x5d0] sm:$0xff]
    %v294 = vld [vmem:[#allocation7 + $0x5d8] sm:$0xff]
    %v295 = vld [vmem:[#allocation7 + $0x5e0] sm:$0xff]
    %v296 = vld [vmem:[#allocation7 + $0x5e8] sm:$0xff]
    %v297 = vld [vmem:[#allocation7 + $0x5f0] sm:$0xff]
    %v298 = vld [vmem:[#allocation7 + $0x5f8] sm:$0xff]
    %v299 = vld [vmem:[#allocation7 + $0x600] sm:$0xff]
    %v300 = vld [vmem:[#allocation7 + $0x608] sm:$0xff]
    %v301 = vld [vmem:[#allocation7 + $0x610] sm:$0xff]
    %v302 = vld [vmem:[#allocation7 + $0x618] sm:$0xff]
    %v303 = vld [vmem:[#allocation7 + $0x620] sm:$0xff]
    %v304 = vld [vmem:[#allocation7 + $0x628] sm:$0xff]
    %v305 = vld [vmem:[#allocation7 + $0x630] sm:$0xff]
    %v306 = vld [vmem:[#allocation7 + $0x638] sm:$0xff]
    %v307 = vld [vmem:[#allocation7 + $0x640] sm:$0xff]
    %v308 = vld [vmem:[#allocation7 + $0x648] sm:$0xff]
    %v309 = vld [vmem:[#allocation7 + $0x650] sm:$0xff]
    %v310 = vld [vmem:[#allocation7 + $0x658] sm:$0xff]
    %v311 = vld [vmem:[#allocation7 + $0x660] sm:$0xff]
    %v312 = vld [vmem:[#allocation7 + $0x668] sm:$0xff]
    %v313 = vld [vmem:[#allocation7 + $0x670] sm:$0xff]
    %v314 = vld [vmem:[#allocation7 + $0x678] sm:$0xff]
    %v315 = vld [vmem:[#allocation7 + $0x680] sm:$0xff]
    %v316 = vld [vmem:[#allocation7 + $0x688] sm:$0xff]
    %v317 = vld [vmem:[#allocation7 + $0x690] sm:$0xff]
    %v318 = vld [vmem:[#allocation7 + $0x698] sm:$0xff]
    %v319 = vld [vmem:[#allocation7 + $0x6a0] sm:$0xff]
    %v320 = vld [vmem:[#allocation7 + $0x6a8] sm:$0xff]
    %v321 = vld [vmem:[#allocation7 + $0x6b0] sm:$0xff]
    %v322 = vld [vmem:[#allocation7 + $0x6b8] sm:$0xff]
    %v323 = vld [vmem:[#allocation7 + $0x6c0] sm:$0xff]
    %v324 = vld [vmem:[#allocation7 + $0x6c8] sm:$0xff]
    %v325 = vld [vmem:[#allocation7 + $0x6d0] sm:$0xff]
    %v326 = vld [vmem:[#allocation7 + $0x6d8] sm:$0xff]
    %v327 = vld [vmem:[#allocation7 + $0x6e0] sm:$0xff]
    %v328 = vld [vmem:[#allocation7 + $0x6e8] sm:$0xff]
    %v329 = vld [vmem:[#allocation7 + $0x6f0] sm:$0xff]
    %v330 = vld [vmem:[#allocation7 + $0x6f8] sm:$0xff]
    %v331 = vld [vmem:[#allocation7 + $0x700] sm:$0xff]
    %v332 = vld [vmem:[#allocation7 + $0x708] sm:$0xff]
    %v333 = vld [vmem:[#allocation7 + $0x710] sm:$0xff]
    %v334 = vld [vmem:[#allocation7 + $0x718] sm:$0xff]
    %v335 = vld [vmem:[#allocation7 + $0x720] sm:$0xff]
    %v336 = vld [vmem:[#allocation7 + $0x728] sm:$0xff]
    %v337 = vld [vmem:[#allocation7 + $0x730] sm:$0xff]
    %v338 = vld [vmem:[#allocation7 + $0x738] sm:$0xff]
    %v339 = vld [vmem:[#allocation7 + $0x740] sm:$0xff]
    %v340 = vld [vmem:[#allocation7 + $0x748] sm:$0xff]
    %v341 = vld [vmem:[#allocation7 + $0x750] sm:$0xff]
    %v342 = vld [vmem:[#allocation7 + $0x758] sm:$0xff]
    %v343 = vld [vmem:[#allocation7 + $0x760] sm:$0xff]
    %v344 = vld [vmem:[#allocation7 + $0x768] sm:$0xff]
    %v345 = vld [vmem:[#allocation7 + $0x770] sm:$0xff]
    %v346 = vld [vmem:[#allocation7 + $0x778] sm:$0xff]
    %v347 = vld [vmem:[#allocation7 + $0x780] sm:$0xff]
    %v348 = vld [vmem:[#allocation7 + $0x788] sm:$0xff]
    %v349 = vld [vmem:[#allocation7 + $0x790] sm:$0xff]
    %v350 = vld [vmem:[#allocation7 + $0x798] sm:$0xff]
    %v351 = vld [vmem:[#allocation7 + $0x7a0] sm:$0xff]
    %v352 = vld [vmem:[#allocation7 + $0x7a8] sm:$0xff]
    %v353 = vld [vmem:[#allocation7 + $0x7b0] sm:$0xff]
    %v354 = vld [vmem:[#allocation7 + $0x7b8] sm:$0xff]
    %v355 = vld [vmem:[#allocation7 + $0x7c0] sm:$0xff]
    %v356 = vld [vmem:[#allocation7 + $0x7c8] sm:$0xff]
    %v357 = vld [vmem:[#allocation7 + $0x7d0] sm:$0xff]
    %v358 = vld [vmem:[#allocation7 + $0x7d8] sm:$0xff]
    %v359 = vld [vmem:[#allocation7 + $0x7e0] sm:$0xff]
    %v360 = vld [vmem:[#allocation7 + $0x7e8] sm:$0xff]
    %v361 = vld [vmem:[#allocation7 + $0x7f0] sm:$0xff]
    %v362 = vld [vmem:[#allocation7 + $0x7f8] sm:$0xff]
    %v363 = vld [vmem:[#allocation10] sm:$0xff]
    %v365 = vlaneseq
    %v366 = vshrl.u32 %v365, 7
    %v367 = vsub.s32 0, %v366
    %v368 = vrot.slane %v363, %v367
    %v369 = vlaneseq
    %v370 = vshrl.u32 %v369, 7
    %v371 = vsub.s32 1, %v370
    %v372 = vrot.slane %v363, %v371
    %v373 = vlaneseq
    %v374 = vshrl.u32 %v373, 7
    %v375 = vsub.s32 2, %v374
    %v376 = vrot.slane %v363, %v375
    %v377 = vlaneseq
    %v378 = vshrl.u32 %v377, 7
    %v379 = vsub.s32 3, %v378
    %v380 = vrot.slane %v363, %v379
    %v381 = vlaneseq
    %v382 = vshrl.u32 %v381, 7
    %v383 = vsub.s32 4, %v382
    %v384 = vrot.slane %v363, %v383
    %v385 = vlaneseq
    %v386 = vshrl.u32 %v385, 7
    %v387 = vsub.s32 5, %v386
    %v388 = vrot.slane %v363, %v387
    %v389 = vlaneseq
    %v390 = vshrl.u32 %v389, 7
    %v391 = vsub.s32 6, %v390
    %v392 = vrot.slane %v363, %v391
    %v393 = vlaneseq
    %v394 = vshrl.u32 %v393, 7
    %v395 = vsub.s32 7, %v394
    %v396 = vrot.slane %v363, %v395
    %v421 = vunpack.c.l.b16 %v91
    %v422 = vunpack.c.h.b16 %v91
    %v423 = vunpack.c.l.b16 %v92
    %v424 = vunpack.c.h.b16 %v92
    %v425 = vunpack.c.l.b16 %v93
    %v426 = vunpack.c.h.b16 %v93
    %v427 = vunpack.c.l.b16 %v94
    %v428 = vunpack.c.h.b16 %v94
    %v429 = vunpack.c.l.b16 %v95
    %v430 = vunpack.c.h.b16 %v95
    %v431 = vunpack.c.l.b16 %v96
    %v432 = vunpack.c.h.b16 %v96
    %v433 = vunpack.c.l.b16 %v97
    %v434 = vunpack.c.h.b16 %v97
    %v435 = vunpack.c.l.b16 %v98
    %v436 = vunpack.c.h.b16 %v98
    %v437 = vunpack.c.l.b16 %v99
    %v438 = vunpack.c.h.b16 %v99
    %v439 = vunpack.c.l.b16 %v100
    %v440 = vunpack.c.h.b16 %v100
    %v441 = vunpack.c.l.b16 %v101
    %v442 = vunpack.c.h.b16 %v101
    %v443 = vunpack.c.l.b16 %v102
    %v444 = vunpack.c.h.b16 %v102
    %v445 = vunpack.c.l.b16 %v103
    %v446 = vunpack.c.h.b16 %v103
    %v447 = vunpack.c.l.b16 %v104
    %v448 = vunpack.c.h.b16 %v104
    %v449 = vunpack.c.l.b16 %v105
    %v450 = vunpack.c.h.b16 %v105
    %v451 = vunpack.c.l.b16 %v106
    %v452 = vunpack.c.h.b16 %v106
    %v453 = vpack.c.b16 %v425, %v421
    %v454 = vpack.c.b16 %v426, %v422
    %v455 = vpack.c.b16 %v427, %v423
    %v456 = vpack.c.b16 %v428, %v424
    %v457 = vpack.c.b16 %v433, %v429
    %v458 = vpack.c.b16 %v434, %v430
    %v459 = vpack.c.b16 %v435, %v431
    %v460 = vpack.c.b16 %v436, %v432
    %v461 = vpack.c.b16 %v441, %v437
    %v462 = vpack.c.b16 %v442, %v438
    %v463 = vpack.c.b16 %v443, %v439
    %v464 = vpack.c.b16 %v444, %v440
    %v465 = vpack.c.b16 %v449, %v445
    %v466 = vpack.c.b16 %v450, %v446
    %v467 = vpack.c.b16 %v451, %v447
    %v468 = vpack.c.b16 %v452, %v448
    %v741 = vunpack.c.l.b16 %v107
    %v742 = vunpack.c.h.b16 %v107
    %v743 = vunpack.c.l.b16 %v108
    %v744 = vunpack.c.h.b16 %v108
    %v745 = vunpack.c.l.b16 %v109
    %v746 = vunpack.c.h.b16 %v109
    %v747 = vunpack.c.l.b16 %v110
    %v748 = vunpack.c.h.b16 %v110
    %v749 = vunpack.c.l.b16 %v111
    %v750 = vunpack.c.h.b16 %v111
    %v751 = vunpack.c.l.b16 %v112
    %v752 = vunpack.c.h.b16 %v112
    %v753 = vunpack.c.l.b16 %v113
    %v754 = vunpack.c.h.b16 %v113
    %v755 = vunpack.c.l.b16 %v114
    %v756 = vunpack.c.h.b16 %v114
    %v757 = vunpack.c.l.b16 %v115
    %v758 = vunpack.c.h.b16 %v115
    %v759 = vunpack.c.l.b16 %v116
    %v760 = vunpack.c.h.b16 %v116
    %v761 = vunpack.c.l.b16 %v117
    %v762 = vunpack.c.h.b16 %v117
    %v763 = vunpack.c.l.b16 %v118
    %v764 = vunpack.c.h.b16 %v118
    %v765 = vunpack.c.l.b16 %v119
    %v766 = vunpack.c.h.b16 %v119
    %v767 = vunpack.c.l.b16 %v120
    %v768 = vunpack.c.h.b16 %v120
    %v769 = vunpack.c.l.b16 %v121
    %v770 = vunpack.c.h.b16 %v121
    %v771 = vunpack.c.l.b16 %v122
    %v772 = vunpack.c.h.b16 %v122
    %v773 = vunpack.c.l.b16 %v123
    %v774 = vunpack.c.h.b16 %v123
    %v775 = vunpack.c.l.b16 %v124
    %v776 = vunpack.c.h.b16 %v124
    %v777 = vunpack.c.l.b16 %v125
    %v778 = vunpack.c.h.b16 %v125
    %v779 = vunpack.c.l.b16 %v126
    %v780 = vunpack.c.h.b16 %v126
    %v781 = vunpack.c.l.b16 %v127
    %v782 = vunpack.c.h.b16 %v127
    %v783 = vunpack.c.l.b16 %v128
    %v784 = vunpack.c.h.b16 %v128
    %v785 = vunpack.c.l.b16 %v129
    %v786 = vunpack.c.h.b16 %v129
    %v787 = vunpack.c.l.b16 %v130
    %v788 = vunpack.c.h.b16 %v130
    %v789 = vunpack.c.l.b16 %v131
    %v790 = vunpack.c.h.b16 %v131
    %v791 = vunpack.c.l.b16 %v132
    %v792 = vunpack.c.h.b16 %v132
    %v793 = vunpack.c.l.b16 %v133
    %v794 = vunpack.c.h.b16 %v133
    %v795 = vunpack.c.l.b16 %v134
    %v796 = vunpack.c.h.b16 %v134
    %v797 = vunpack.c.l.b16 %v135
    %v798 = vunpack.c.h.b16 %v135
    %v799 = vunpack.c.l.b16 %v136
    %v800 = vunpack.c.h.b16 %v136
    %v801 = vunpack.c.l.b16 %v137
    %v802 = vunpack.c.h.b16 %v137
    %v803 = vunpack.c.l.b16 %v138
    %v804 = vunpack.c.h.b16 %v138
    %v805 = vunpack.c.l.b16 %v139
    %v806 = vunpack.c.h.b16 %v139
    %v807 = vunpack.c.l.b16 %v140
    %v808 = vunpack.c.h.b16 %v140
    %v809 = vunpack.c.l.b16 %v141
    %v810 = vunpack.c.h.b16 %v141
    %v811 = vunpack.c.l.b16 %v142
    %v812 = vunpack.c.h.b16 %v142
    %v813 = vunpack.c.l.b16 %v143
    %v814 = vunpack.c.h.b16 %v143
    %v815 = vunpack.c.l.b16 %v144
    %v816 = vunpack.c.h.b16 %v144
    %v817 = vunpack.c.l.b16 %v145
    %v818 = vunpack.c.h.b16 %v145
    %v819 = vunpack.c.l.b16 %v146
    %v820 = vunpack.c.h.b16 %v146
    %v821 = vunpack.c.l.b16 %v147
    %v822 = vunpack.c.h.b16 %v147
    %v823 = vunpack.c.l.b16 %v148
    %v824 = vunpack.c.h.b16 %v148
    %v825 = vunpack.c.l.b16 %v149
    %v826 = vunpack.c.h.b16 %v149
    %v827 = vunpack.c.l.b16 %v150
    %v828 = vunpack.c.h.b16 %v150
    %v829 = vunpack.c.l.b16 %v151
    %v830 = vunpack.c.h.b16 %v151
    %v831 = vunpack.c.l.b16 %v152
    %v832 = vunpack.c.h.b16 %v152
    %v833 = vunpack.c.l.b16 %v153
    %v834 = vunpack.c.h.b16 %v153
    %v835 = vunpack.c.l.b16 %v154
    %v836 = vunpack.c.h.b16 %v154
    %v837 = vunpack.c.l.b16 %v155
    %v838 = vunpack.c.h.b16 %v155
    %v839 = vunpack.c.l.b16 %v156
    %v840 = vunpack.c.h.b16 %v156
    %v841 = vunpack.c.l.b16 %v157
    %v842 = vunpack.c.h.b16 %v157
    %v843 = vunpack.c.l.b16 %v158
    %v844 = vunpack.c.h.b16 %v158
    %v845 = vunpack.c.l.b16 %v159
    %v846 = vunpack.c.h.b16 %v159
    %v847 = vunpack.c.l.b16 %v160
    %v848 = vunpack.c.h.b16 %v160
    %v849 = vunpack.c.l.b16 %v161
    %v850 = vunpack.c.h.b16 %v161
    %v851 = vunpack.c.l.b16 %v162
    %v852 = vunpack.c.h.b16 %v162
    %v853 = vunpack.c.l.b16 %v163
    %v854 = vunpack.c.h.b16 %v163
    %v855 = vunpack.c.l.b16 %v164
    %v856 = vunpack.c.h.b16 %v164
    %v857 = vunpack.c.l.b16 %v165
    %v858 = vunpack.c.h.b16 %v165
    %v859 = vunpack.c.l.b16 %v166
    %v860 = vunpack.c.h.b16 %v166
    %v861 = vunpack.c.l.b16 %v167
    %v862 = vunpack.c.h.b16 %v167
    %v863 = vunpack.c.l.b16 %v168
    %v864 = vunpack.c.h.b16 %v168
    %v865 = vunpack.c.l.b16 %v169
    %v866 = vunpack.c.h.b16 %v169
    %v867 = vunpack.c.l.b16 %v170
    %v868 = vunpack.c.h.b16 %v170
    %v869 = vunpack.c.l.b16 %v171
    %v870 = vunpack.c.h.b16 %v171
    %v871 = vunpack.c.l.b16 %v172
    %v872 = vunpack.c.h.b16 %v172
    %v873 = vunpack.c.l.b16 %v173
    %v874 = vunpack.c.h.b16 %v173
    %v875 = vunpack.c.l.b16 %v174
    %v876 = vunpack.c.h.b16 %v174
    %v877 = vunpack.c.l.b16 %v175
    %v878 = vunpack.c.h.b16 %v175
    %v879 = vunpack.c.l.b16 %v176
    %v880 = vunpack.c.h.b16 %v176
    %v881 = vunpack.c.l.b16 %v177
    %v882 = vunpack.c.h.b16 %v177
    %v883 = vunpack.c.l.b16 %v178
    %v884 = vunpack.c.h.b16 %v178
    %v885 = vunpack.c.l.b16 %v179
    %v886 = vunpack.c.h.b16 %v179
    %v887 = vunpack.c.l.b16 %v180
    %v888 = vunpack.c.h.b16 %v180
    %v889 = vunpack.c.l.b16 %v181
    %v890 = vunpack.c.h.b16 %v181
    %v891 = vunpack.c.l.b16 %v182
    %v892 = vunpack.c.h.b16 %v182
    %v893 = vunpack.c.l.b16 %v183
    %v894 = vunpack.c.h.b16 %v183
    %v895 = vunpack.c.l.b16 %v184
    %v896 = vunpack.c.h.b16 %v184
    %v897 = vunpack.c.l.b16 %v185
    %v898 = vunpack.c.h.b16 %v185
    %v899 = vunpack.c.l.b16 %v186
    %v900 = vunpack.c.h.b16 %v186
    %v901 = vunpack.c.l.b16 %v187
    %v902 = vunpack.c.h.b16 %v187
    %v903 = vunpack.c.l.b16 %v188
    %v904 = vunpack.c.h.b16 %v188
    %v905 = vunpack.c.l.b16 %v189
    %v906 = vunpack.c.h.b16 %v189
    %v907 = vunpack.c.l.b16 %v190
    %v908 = vunpack.c.h.b16 %v190
    %v909 = vunpack.c.l.b16 %v191
    %v910 = vunpack.c.h.b16 %v191
    %v911 = vunpack.c.l.b16 %v192
    %v912 = vunpack.c.h.b16 %v192
    %v913 = vunpack.c.l.b16 %v193
    %v914 = vunpack.c.h.b16 %v193
    %v915 = vunpack.c.l.b16 %v194
    %v916 = vunpack.c.h.b16 %v194
    %v917 = vunpack.c.l.b16 %v195
    %v918 = vunpack.c.h.b16 %v195
    %v919 = vunpack.c.l.b16 %v196
    %v920 = vunpack.c.h.b16 %v196
    %v921 = vunpack.c.l.b16 %v197
    %v922 = vunpack.c.h.b16 %v197
    %v923 = vunpack.c.l.b16 %v198
    %v924 = vunpack.c.h.b16 %v198
    %v925 = vunpack.c.l.b16 %v199
    %v926 = vunpack.c.h.b16 %v199
    %v927 = vunpack.c.l.b16 %v200
    %v928 = vunpack.c.h.b16 %v200
    %v929 = vunpack.c.l.b16 %v201
    %v930 = vunpack.c.h.b16 %v201
    %v931 = vunpack.c.l.b16 %v202
    %v932 = vunpack.c.h.b16 %v202
    %v933 = vunpack.c.l.b16 %v203
    %v934 = vunpack.c.h.b16 %v203
    %v935 = vunpack.c.l.b16 %v204
    %v936 = vunpack.c.h.b16 %v204
    %v937 = vunpack.c.l.b16 %v205
    %v938 = vunpack.c.h.b16 %v205
    %v939 = vunpack.c.l.b16 %v206
    %v940 = vunpack.c.h.b16 %v206
    %v941 = vunpack.c.l.b16 %v207
    %v942 = vunpack.c.h.b16 %v207
    %v943 = vunpack.c.l.b16 %v208
    %v944 = vunpack.c.h.b16 %v208
    %v945 = vunpack.c.l.b16 %v209
    %v946 = vunpack.c.h.b16 %v209
    %v947 = vunpack.c.l.b16 %v210
    %v948 = vunpack.c.h.b16 %v210
    %v949 = vunpack.c.l.b16 %v211
    %v950 = vunpack.c.h.b16 %v211
    %v951 = vunpack.c.l.b16 %v212
    %v952 = vunpack.c.h.b16 %v212
    %v953 = vunpack.c.l.b16 %v213
    %v954 = vunpack.c.h.b16 %v213
    %v955 = vunpack.c.l.b16 %v214
    %v956 = vunpack.c.h.b16 %v214
    %v957 = vunpack.c.l.b16 %v215
    %v958 = vunpack.c.h.b16 %v215
    %v959 = vunpack.c.l.b16 %v216
    %v960 = vunpack.c.h.b16 %v216
    %v961 = vunpack.c.l.b16 %v217
    %v962 = vunpack.c.h.b16 %v217
    %v963 = vunpack.c.l.b16 %v218
    %v964 = vunpack.c.h.b16 %v218
    %v965 = vunpack.c.l.b16 %v219
    %v966 = vunpack.c.h.b16 %v219
    %v967 = vunpack.c.l.b16 %v220
    %v968 = vunpack.c.h.b16 %v220
    %v969 = vunpack.c.l.b16 %v221
    %v970 = vunpack.c.h.b16 %v221
    %v971 = vunpack.c.l.b16 %v222
    %v972 = vunpack.c.h.b16 %v222
    %v973 = vunpack.c.l.b16 %v223
    %v974 = vunpack.c.h.b16 %v223
    %v975 = vunpack.c.l.b16 %v224
    %v976 = vunpack.c.h.b16 %v224
    %v977 = vunpack.c.l.b16 %v225
    %v978 = vunpack.c.h.b16 %v225
    %v979 = vunpack.c.l.b16 %v226
    %v980 = vunpack.c.h.b16 %v226
    %v981 = vunpack.c.l.b16 %v227
    %v982 = vunpack.c.h.b16 %v227
    %v983 = vunpack.c.l.b16 %v228
    %v984 = vunpack.c.h.b16 %v228
    %v985 = vunpack.c.l.b16 %v229
    %v986 = vunpack.c.h.b16 %v229
    %v987 = vunpack.c.l.b16 %v230
    %v988 = vunpack.c.h.b16 %v230
    %v989 = vunpack.c.l.b16 %v231
    %v990 = vunpack.c.h.b16 %v231
    %v991 = vunpack.c.l.b16 %v232
    %v992 = vunpack.c.h.b16 %v232
    %v993 = vunpack.c.l.b16 %v233
    %v994 = vunpack.c.h.b16 %v233
    %v995 = vunpack.c.l.b16 %v234
    %v996 = vunpack.c.h.b16 %v234
    %v997 = vunpack.c.l.b16 %v235
    %v998 = vunpack.c.h.b16 %v235
    %v999 = vunpack.c.l.b16 %v236
    %v1000 = vunpack.c.h.b16 %v236
    %v1001 = vunpack.c.l.b16 %v237
    %v1002 = vunpack.c.h.b16 %v237
    %v1003 = vunpack.c.l.b16 %v238
    %v1004 = vunpack.c.h.b16 %v238
    %v1005 = vunpack.c.l.b16 %v239
    %v1006 = vunpack.c.h.b16 %v239
    %v1007 = vunpack.c.l.b16 %v240
    %v1008 = vunpack.c.h.b16 %v240
    %v1009 = vunpack.c.l.b16 %v241
    %v1010 = vunpack.c.h.b16 %v241
    %v1011 = vunpack.c.l.b16 %v242
    %v1012 = vunpack.c.h.b16 %v242
    %v1013 = vunpack.c.l.b16 %v243
    %v1014 = vunpack.c.h.b16 %v243
    %v1015 = vunpack.c.l.b16 %v244
    %v1016 = vunpack.c.h.b16 %v244
    %v1017 = vunpack.c.l.b16 %v245
    %v1018 = vunpack.c.h.b16 %v245
    %v1019 = vunpack.c.l.b16 %v246
    %v1020 = vunpack.c.h.b16 %v246
    %v1021 = vunpack.c.l.b16 %v247
    %v1022 = vunpack.c.h.b16 %v247
    %v1023 = vunpack.c.l.b16 %v248
    %v1024 = vunpack.c.h.b16 %v248
    %v1025 = vunpack.c.l.b16 %v249
    %v1026 = vunpack.c.h.b16 %v249
    %v1027 = vunpack.c.l.b16 %v250
    %v1028 = vunpack.c.h.b16 %v250
    %v1029 = vunpack.c.l.b16 %v251
    %v1030 = vunpack.c.h.b16 %v251
    %v1031 = vunpack.c.l.b16 %v252
    %v1032 = vunpack.c.h.b16 %v252
    %v1033 = vunpack.c.l.b16 %v253
    %v1034 = vunpack.c.h.b16 %v253
    %v1035 = vunpack.c.l.b16 %v254
    %v1036 = vunpack.c.h.b16 %v254
    %v1037 = vunpack.c.l.b16 %v255
    %v1038 = vunpack.c.h.b16 %v255
    %v1039 = vunpack.c.l.b16 %v256
    %v1040 = vunpack.c.h.b16 %v256
    %v1041 = vunpack.c.l.b16 %v257
    %v1042 = vunpack.c.h.b16 %v257
    %v1043 = vunpack.c.l.b16 %v258
    %v1044 = vunpack.c.h.b16 %v258
    %v1045 = vunpack.c.l.b16 %v259
    %v1046 = vunpack.c.h.b16 %v259
    %v1047 = vunpack.c.l.b16 %v260
    %v1048 = vunpack.c.h.b16 %v260
    %v1049 = vunpack.c.l.b16 %v261
    %v1050 = vunpack.c.h.b16 %v261
    %v1051 = vunpack.c.l.b16 %v262
    %v1052 = vunpack.c.h.b16 %v262
    %v1053 = vunpack.c.l.b16 %v263
    %v1054 = vunpack.c.h.b16 %v263
    %v1055 = vunpack.c.l.b16 %v264
    %v1056 = vunpack.c.h.b16 %v264
    %v1057 = vunpack.c.l.b16 %v265
    %v1058 = vunpack.c.h.b16 %v265
    %v1059 = vunpack.c.l.b16 %v266
    %v1060 = vunpack.c.h.b16 %v266
    %v1061 = vunpack.c.l.b16 %v267
    %v1062 = vunpack.c.h.b16 %v267
    %v1063 = vunpack.c.l.b16 %v268
    %v1064 = vunpack.c.h.b16 %v268
    %v1065 = vunpack.c.l.b16 %v269
    %v1066 = vunpack.c.h.b16 %v269
    %v1067 = vunpack.c.l.b16 %v270
    %v1068 = vunpack.c.h.b16 %v270
    %v1069 = vunpack.c.l.b16 %v271
    %v1070 = vunpack.c.h.b16 %v271
    %v1071 = vunpack.c.l.b16 %v272
    %v1072 = vunpack.c.h.b16 %v272
    %v1073 = vunpack.c.l.b16 %v273
    %v1074 = vunpack.c.h.b16 %v273
    %v1075 = vunpack.c.l.b16 %v274
    %v1076 = vunpack.c.h.b16 %v274
    %v1077 = vunpack.c.l.b16 %v275
    %v1078 = vunpack.c.h.b16 %v275
    %v1079 = vunpack.c.l.b16 %v276
    %v1080 = vunpack.c.h.b16 %v276
    %v1081 = vunpack.c.l.b16 %v277
    %v1082 = vunpack.c.h.b16 %v277
    %v1083 = vunpack.c.l.b16 %v278
    %v1084 = vunpack.c.h.b16 %v278
    %v1085 = vunpack.c.l.b16 %v279
    %v1086 = vunpack.c.h.b16 %v279
    %v1087 = vunpack.c.l.b16 %v280
    %v1088 = vunpack.c.h.b16 %v280
    %v1089 = vunpack.c.l.b16 %v281
    %v1090 = vunpack.c.h.b16 %v281
    %v1091 = vunpack.c.l.b16 %v282
    %v1092 = vunpack.c.h.b16 %v282
    %v1093 = vunpack.c.l.b16 %v283
    %v1094 = vunpack.c.h.b16 %v283
    %v1095 = vunpack.c.l.b16 %v284
    %v1096 = vunpack.c.h.b16 %v284
    %v1097 = vunpack.c.l.b16 %v285
    %v1098 = vunpack.c.h.b16 %v285
    %v1099 = vunpack.c.l.b16 %v286
    %v1100 = vunpack.c.h.b16 %v286
    %v1101 = vunpack.c.l.b16 %v287
    %v1102 = vunpack.c.h.b16 %v287
    %v1103 = vunpack.c.l.b16 %v288
    %v1104 = vunpack.c.h.b16 %v288
    %v1105 = vunpack.c.l.b16 %v289
    %v1106 = vunpack.c.h.b16 %v289
    %v1107 = vunpack.c.l.b16 %v290
    %v1108 = vunpack.c.h.b16 %v290
    %v1109 = vunpack.c.l.b16 %v291
    %v1110 = vunpack.c.h.b16 %v291
    %v1111 = vunpack.c.l.b16 %v292
    %v1112 = vunpack.c.h.b16 %v292
    %v1113 = vunpack.c.l.b16 %v293
    %v1114 = vunpack.c.h.b16 %v293
    %v1115 = vunpack.c.l.b16 %v294
    %v1116 = vunpack.c.h.b16 %v294
    %v1117 = vunpack.c.l.b16 %v295
    %v1118 = vunpack.c.h.b16 %v295
    %v1119 = vunpack.c.l.b16 %v296
    %v1120 = vunpack.c.h.b16 %v296
    %v1121 = vunpack.c.l.b16 %v297
    %v1122 = vunpack.c.h.b16 %v297
    %v1123 = vunpack.c.l.b16 %v298
    %v1124 = vunpack.c.h.b16 %v298
    %v1125 = vunpack.c.l.b16 %v299
    %v1126 = vunpack.c.h.b16 %v299
    %v1127 = vunpack.c.l.b16 %v300
    %v1128 = vunpack.c.h.b16 %v300
    %v1129 = vunpack.c.l.b16 %v301
    %v1130 = vunpack.c.h.b16 %v301
    %v1131 = vunpack.c.l.b16 %v302
    %v1132 = vunpack.c.h.b16 %v302
    %v1133 = vunpack.c.l.b16 %v303
    %v1134 = vunpack.c.h.b16 %v303
    %v1135 = vunpack.c.l.b16 %v304
    %v1136 = vunpack.c.h.b16 %v304
    %v1137 = vunpack.c.l.b16 %v305
    %v1138 = vunpack.c.h.b16 %v305
    %v1139 = vunpack.c.l.b16 %v306
    %v1140 = vunpack.c.h.b16 %v306
    %v1141 = vunpack.c.l.b16 %v307
    %v1142 = vunpack.c.h.b16 %v307
    %v1143 = vunpack.c.l.b16 %v308
    %v1144 = vunpack.c.h.b16 %v308
    %v1145 = vunpack.c.l.b16 %v309
    %v1146 = vunpack.c.h.b16 %v309
    %v1147 = vunpack.c.l.b16 %v310
    %v1148 = vunpack.c.h.b16 %v310
    %v1149 = vunpack.c.l.b16 %v311
    %v1150 = vunpack.c.h.b16 %v311
    %v1151 = vunpack.c.l.b16 %v312
    %v1152 = vunpack.c.h.b16 %v312
    %v1153 = vunpack.c.l.b16 %v313
    %v1154 = vunpack.c.h.b16 %v313
    %v1155 = vunpack.c.l.b16 %v314
    %v1156 = vunpack.c.h.b16 %v314
    %v1157 = vunpack.c.l.b16 %v315
    %v1158 = vunpack.c.h.b16 %v315
    %v1159 = vunpack.c.l.b16 %v316
    %v1160 = vunpack.c.h.b16 %v316
    %v1161 = vunpack.c.l.b16 %v317
    %v1162 = vunpack.c.h.b16 %v317
    %v1163 = vunpack.c.l.b16 %v318
    %v1164 = vunpack.c.h.b16 %v318
    %v1165 = vunpack.c.l.b16 %v319
    %v1166 = vunpack.c.h.b16 %v319
    %v1167 = vunpack.c.l.b16 %v320
    %v1168 = vunpack.c.h.b16 %v320
    %v1169 = vunpack.c.l.b16 %v321
    %v1170 = vunpack.c.h.b16 %v321
    %v1171 = vunpack.c.l.b16 %v322
    %v1172 = vunpack.c.h.b16 %v322
    %v1173 = vunpack.c.l.b16 %v323
    %v1174 = vunpack.c.h.b16 %v323
    %v1175 = vunpack.c.l.b16 %v324
    %v1176 = vunpack.c.h.b16 %v324
    %v1177 = vunpack.c.l.b16 %v325
    %v1178 = vunpack.c.h.b16 %v325
    %v1179 = vunpack.c.l.b16 %v326
    %v1180 = vunpack.c.h.b16 %v326
    %v1181 = vunpack.c.l.b16 %v327
    %v1182 = vunpack.c.h.b16 %v327
    %v1183 = vunpack.c.l.b16 %v328
    %v1184 = vunpack.c.h.b16 %v328
    %v1185 = vunpack.c.l.b16 %v329
    %v1186 = vunpack.c.h.b16 %v329
    %v1187 = vunpack.c.l.b16 %v330
    %v1188 = vunpack.c.h.b16 %v330
    %v1189 = vunpack.c.l.b16 %v331
    %v1190 = vunpack.c.h.b16 %v331
    %v1191 = vunpack.c.l.b16 %v332
    %v1192 = vunpack.c.h.b16 %v332
    %v1193 = vunpack.c.l.b16 %v333
    %v1194 = vunpack.c.h.b16 %v333
    %v1195 = vunpack.c.l.b16 %v334
    %v1196 = vunpack.c.h.b16 %v334
    %v1197 = vunpack.c.l.b16 %v335
    %v1198 = vunpack.c.h.b16 %v335
    %v1199 = vunpack.c.l.b16 %v336
    %v1200 = vunpack.c.h.b16 %v336
    %v1201 = vunpack.c.l.b16 %v337
    %v1202 = vunpack.c.h.b16 %v337
    %v1203 = vunpack.c.l.b16 %v338
    %v1204 = vunpack.c.h.b16 %v338
    %v1205 = vunpack.c.l.b16 %v339
    %v1206 = vunpack.c.h.b16 %v339
    %v1207 = vunpack.c.l.b16 %v340
    %v1208 = vunpack.c.h.b16 %v340
    %v1209 = vunpack.c.l.b16 %v341
    %v1210 = vunpack.c.h.b16 %v341
    %v1211 = vunpack.c.l.b16 %v342
    %v1212 = vunpack.c.h.b16 %v342
    %v1213 = vunpack.c.l.b16 %v343
    %v1214 = vunpack.c.h.b16 %v343
    %v1215 = vunpack.c.l.b16 %v344
    %v1216 = vunpack.c.h.b16 %v344
    %v1217 = vunpack.c.l.b16 %v345
    %v1218 = vunpack.c.h.b16 %v345
    %v1219 = vunpack.c.l.b16 %v346
    %v1220 = vunpack.c.h.b16 %v346
    %v1221 = vunpack.c.l.b16 %v347
    %v1222 = vunpack.c.h.b16 %v347
    %v1223 = vunpack.c.l.b16 %v348
    %v1224 = vunpack.c.h.b16 %v348
    %v1225 = vunpack.c.l.b16 %v349
    %v1226 = vunpack.c.h.b16 %v349
    %v1227 = vunpack.c.l.b16 %v350
    %v1228 = vunpack.c.h.b16 %v350
    %v1229 = vunpack.c.l.b16 %v351
    %v1230 = vunpack.c.h.b16 %v351
    %v1231 = vunpack.c.l.b16 %v352
    %v1232 = vunpack.c.h.b16 %v352
    %v1233 = vunpack.c.l.b16 %v353
    %v1234 = vunpack.c.h.b16 %v353
    %v1235 = vunpack.c.l.b16 %v354
    %v1236 = vunpack.c.h.b16 %v354
    %v1237 = vunpack.c.l.b16 %v355
    %v1238 = vunpack.c.h.b16 %v355
    %v1239 = vunpack.c.l.b16 %v356
    %v1240 = vunpack.c.h.b16 %v356
    %v1241 = vunpack.c.l.b16 %v357
    %v1242 = vunpack.c.h.b16 %v357
    %v1243 = vunpack.c.l.b16 %v358
    %v1244 = vunpack.c.h.b16 %v358
    %v1245 = vunpack.c.l.b16 %v359
    %v1246 = vunpack.c.h.b16 %v359
    %v1247 = vunpack.c.l.b16 %v360
    %v1248 = vunpack.c.h.b16 %v360
    %v1249 = vunpack.c.l.b16 %v361
    %v1250 = vunpack.c.h.b16 %v361
    %v1251 = vunpack.c.l.b16 %v362
    %v1252 = vunpack.c.h.b16 %v362
    %v1253 = vpack.c.b16 %v749, %v741
    %v1254 = vpack.c.b16 %v750, %v742
    %v1255 = vpack.c.b16 %v751, %v743
    %v1256 = vpack.c.b16 %v752, %v744
    %v1257 = vpack.c.b16 %v753, %v745
    %v1258 = vpack.c.b16 %v754, %v746
    %v1259 = vpack.c.b16 %v755, %v747
    %v1260 = vpack.c.b16 %v756, %v748
    %v1261 = vpack.c.b16 %v765, %v757
    %v1262 = vpack.c.b16 %v766, %v758
    %v1263 = vpack.c.b16 %v767, %v759
    %v1264 = vpack.c.b16 %v768, %v760
    %v1265 = vpack.c.b16 %v769, %v761
    %v1266 = vpack.c.b16 %v770, %v762
    %v1267 = vpack.c.b16 %v771, %v763
    %v1268 = vpack.c.b16 %v772, %v764
    %v1269 = vpack.c.b16 %v781, %v773
    %v1270 = vpack.c.b16 %v782, %v774
    %v1271 = vpack.c.b16 %v783, %v775
    %v1272 = vpack.c.b16 %v784, %v776
    %v1273 = vpack.c.b16 %v785, %v777
    %v1274 = vpack.c.b16 %v786, %v778
    %v1275 = vpack.c.b16 %v787, %v779
    %v1276 = vpack.c.b16 %v788, %v780
    %v1277 = vpack.c.b16 %v797, %v789
    %v1278 = vpack.c.b16 %v798, %v790
    %v1279 = vpack.c.b16 %v799, %v791
    %v1280 = vpack.c.b16 %v800, %v792
    %v1281 = vpack.c.b16 %v801, %v793
    %v1282 = vpack.c.b16 %v802, %v794
    %v1283 = vpack.c.b16 %v803, %v795
    %v1284 = vpack.c.b16 %v804, %v796
    %v1285 = vpack.c.b16 %v813, %v805
    %v1286 = vpack.c.b16 %v814, %v806
    %v1287 = vpack.c.b16 %v815, %v807
    %v1288 = vpack.c.b16 %v816, %v808
    %v1289 = vpack.c.b16 %v817, %v809
    %v1290 = vpack.c.b16 %v818, %v810
    %v1291 = vpack.c.b16 %v819, %v811
    %v1292 = vpack.c.b16 %v820, %v812
    %v1293 = vpack.c.b16 %v829, %v821
    %v1294 = vpack.c.b16 %v830, %v822
    %v1295 = vpack.c.b16 %v831, %v823
    %v1296 = vpack.c.b16 %v832, %v824
    %v1297 = vpack.c.b16 %v833, %v825
    %v1298 = vpack.c.b16 %v834, %v826
    %v1299 = vpack.c.b16 %v835, %v827
    %v1300 = vpack.c.b16 %v836, %v828
    %v1301 = vpack.c.b16 %v845, %v837
    %v1302 = vpack.c.b16 %v846, %v838
    %v1303 = vpack.c.b16 %v847, %v839
    %v1304 = vpack.c.b16 %v848, %v840
    %v1305 = vpack.c.b16 %v849, %v841
    %v1306 = vpack.c.b16 %v850, %v842
    %v1307 = vpack.c.b16 %v851, %v843
    %v1308 = vpack.c.b16 %v852, %v844
    %v1309 = vpack.c.b16 %v861, %v853
    %v1310 = vpack.c.b16 %v862, %v854
    %v1311 = vpack.c.b16 %v863, %v855
    %v1312 = vpack.c.b16 %v864, %v856
    %v1313 = vpack.c.b16 %v865, %v857
    %v1314 = vpack.c.b16 %v866, %v858
    %v1315 = vpack.c.b16 %v867, %v859
    %v1316 = vpack.c.b16 %v868, %v860
    %v1317 = vpack.c.b16 %v877, %v869
    %v1318 = vpack.c.b16 %v878, %v870
    %v1319 = vpack.c.b16 %v879, %v871
    %v1320 = vpack.c.b16 %v880, %v872
    %v1321 = vpack.c.b16 %v881, %v873
    %v1322 = vpack.c.b16 %v882, %v874
    %v1323 = vpack.c.b16 %v883, %v875
    %v1324 = vpack.c.b16 %v884, %v876
    %v1325 = vpack.c.b16 %v893, %v885
    %v1326 = vpack.c.b16 %v894, %v886
    %v1327 = vpack.c.b16 %v895, %v887
    %v1328 = vpack.c.b16 %v896, %v888
    %v1329 = vpack.c.b16 %v897, %v889
    %v1330 = vpack.c.b16 %v898, %v890
    %v1331 = vpack.c.b16 %v899, %v891
    %v1332 = vpack.c.b16 %v900, %v892
    %v1333 = vpack.c.b16 %v909, %v901
    %v1334 = vpack.c.b16 %v910, %v902
    %v1335 = vpack.c.b16 %v911, %v903
    %v1336 = vpack.c.b16 %v912, %v904
    %v1337 = vpack.c.b16 %v913, %v905
    %v1338 = vpack.c.b16 %v914, %v906
    %v1339 = vpack.c.b16 %v915, %v907
    %v1340 = vpack.c.b16 %v916, %v908
    %v1341 = vpack.c.b16 %v925, %v917
    %v1342 = vpack.c.b16 %v926, %v918
    %v1343 = vpack.c.b16 %v927, %v919
    %v1344 = vpack.c.b16 %v928, %v920
    %v1345 = vpack.c.b16 %v929, %v921
    %v1346 = vpack.c.b16 %v930, %v922
    %v1347 = vpack.c.b16 %v931, %v923
    %v1348 = vpack.c.b16 %v932, %v924
    %v1349 = vpack.c.b16 %v941, %v933
    %v1350 = vpack.c.b16 %v942, %v934
    %v1351 = vpack.c.b16 %v943, %v935
    %v1352 = vpack.c.b16 %v944, %v936
    %v1353 = vpack.c.b16 %v945, %v937
    %v1354 = vpack.c.b16 %v946, %v938
    %v1355 = vpack.c.b16 %v947, %v939
    %v1356 = vpack.c.b16 %v948, %v940
    %v1357 = vpack.c.b16 %v957, %v949
    %v1358 = vpack.c.b16 %v958, %v950
    %v1359 = vpack.c.b16 %v959, %v951
    %v1360 = vpack.c.b16 %v960, %v952
    %v1361 = vpack.c.b16 %v961, %v953
    %v1362 = vpack.c.b16 %v962, %v954
    %v1363 = vpack.c.b16 %v963, %v955
    %v1364 = vpack.c.b16 %v964, %v956
    %v1365 = vpack.c.b16 %v973, %v965
    %v1366 = vpack.c.b16 %v974, %v966
    %v1367 = vpack.c.b16 %v975, %v967
    %v1368 = vpack.c.b16 %v976, %v968
    %v1369 = vpack.c.b16 %v977, %v969
    %v1370 = vpack.c.b16 %v978, %v970
    %v1371 = vpack.c.b16 %v979, %v971
    %v1372 = vpack.c.b16 %v980, %v972
    %v1373 = vpack.c.b16 %v989, %v981
    %v1374 = vpack.c.b16 %v990, %v982
    %v1375 = vpack.c.b16 %v991, %v983
    %v1376 = vpack.c.b16 %v992, %v984
    %v1377 = vpack.c.b16 %v993, %v985
    %v1378 = vpack.c.b16 %v994, %v986
    %v1379 = vpack.c.b16 %v995, %v987
    %v1380 = vpack.c.b16 %v996, %v988
    %v1381 = vpack.c.b16 %v1005, %v997
    %v1382 = vpack.c.b16 %v1006, %v998
    %v1383 = vpack.c.b16 %v1007, %v999
    %v1384 = vpack.c.b16 %v1008, %v1000
    %v1385 = vpack.c.b16 %v1009, %v1001
    %v1386 = vpack.c.b16 %v1010, %v1002
    %v1387 = vpack.c.b16 %v1011, %v1003
    %v1388 = vpack.c.b16 %v1012, %v1004
    %v1389 = vpack.c.b16 %v1021, %v1013
    %v1390 = vpack.c.b16 %v1022, %v1014
    %v1391 = vpack.c.b16 %v1023, %v1015
    %v1392 = vpack.c.b16 %v1024, %v1016
    %v1393 = vpack.c.b16 %v1025, %v1017
    %v1394 = vpack.c.b16 %v1026, %v1018
    %v1395 = vpack.c.b16 %v1027, %v1019
    %v1396 = vpack.c.b16 %v1028, %v1020
    %v1397 = vpack.c.b16 %v1037, %v1029
    %v1398 = vpack.c.b16 %v1038, %v1030
    %v1399 = vpack.c.b16 %v1039, %v1031
    %v1400 = vpack.c.b16 %v1040, %v1032
    %v1401 = vpack.c.b16 %v1041, %v1033
    %v1402 = vpack.c.b16 %v1042, %v1034
    %v1403 = vpack.c.b16 %v1043, %v1035
    %v1404 = vpack.c.b16 %v1044, %v1036
    %v1405 = vpack.c.b16 %v1053, %v1045
    %v1406 = vpack.c.b16 %v1054, %v1046
    %v1407 = vpack.c.b16 %v1055, %v1047
    %v1408 = vpack.c.b16 %v1056, %v1048
    %v1409 = vpack.c.b16 %v1057, %v1049
    %v1410 = vpack.c.b16 %v1058, %v1050
    %v1411 = vpack.c.b16 %v1059, %v1051
    %v1412 = vpack.c.b16 %v1060, %v1052
    %v1413 = vpack.c.b16 %v1069, %v1061
    %v1414 = vpack.c.b16 %v1070, %v1062
    %v1415 = vpack.c.b16 %v1071, %v1063
    %v1416 = vpack.c.b16 %v1072, %v1064
    %v1417 = vpack.c.b16 %v1073, %v1065
    %v1418 = vpack.c.b16 %v1074, %v1066
    %v1419 = vpack.c.b16 %v1075, %v1067
    %v1420 = vpack.c.b16 %v1076, %v1068
    %v1421 = vpack.c.b16 %v1085, %v1077
    %v1422 = vpack.c.b16 %v1086, %v1078
    %v1423 = vpack.c.b16 %v1087, %v1079
    %v1424 = vpack.c.b16 %v1088, %v1080
    %v1425 = vpack.c.b16 %v1089, %v1081
    %v1426 = vpack.c.b16 %v1090, %v1082
    %v1427 = vpack.c.b16 %v1091, %v1083
    %v1428 = vpack.c.b16 %v1092, %v1084
    %v1429 = vpack.c.b16 %v1101, %v1093
    %v1430 = vpack.c.b16 %v1102, %v1094
    %v1431 = vpack.c.b16 %v1103, %v1095
    %v1432 = vpack.c.b16 %v1104, %v1096
    %v1433 = vpack.c.b16 %v1105, %v1097
    %v1434 = vpack.c.b16 %v1106, %v1098
    %v1435 = vpack.c.b16 %v1107, %v1099
    %v1436 = vpack.c.b16 %v1108, %v1100
    %v1437 = vpack.c.b16 %v1117, %v1109
    %v1438 = vpack.c.b16 %v1118, %v1110
    %v1439 = vpack.c.b16 %v1119, %v1111
    %v1440 = vpack.c.b16 %v1120, %v1112
    %v1441 = vpack.c.b16 %v1121, %v1113
    %v1442 = vpack.c.b16 %v1122, %v1114
    %v1443 = vpack.c.b16 %v1123, %v1115
    %v1444 = vpack.c.b16 %v1124, %v1116
    %v1445 = vpack.c.b16 %v1133, %v1125
    %v1446 = vpack.c.b16 %v1134, %v1126
    %v1447 = vpack.c.b16 %v1135, %v1127
    %v1448 = vpack.c.b16 %v1136, %v1128
    %v1449 = vpack.c.b16 %v1137, %v1129
    %v1450 = vpack.c.b16 %v1138, %v1130
    %v1451 = vpack.c.b16 %v1139, %v1131
    %v1452 = vpack.c.b16 %v1140, %v1132
    %v1453 = vpack.c.b16 %v1149, %v1141
    %v1454 = vpack.c.b16 %v1150, %v1142
    %v1455 = vpack.c.b16 %v1151, %v1143
    %v1456 = vpack.c.b16 %v1152, %v1144
    %v1457 = vpack.c.b16 %v1153, %v1145
    %v1458 = vpack.c.b16 %v1154, %v1146
    %v1459 = vpack.c.b16 %v1155, %v1147
    %v1460 = vpack.c.b16 %v1156, %v1148
    %v1461 = vpack.c.b16 %v1165, %v1157
    %v1462 = vpack.c.b16 %v1166, %v1158
    %v1463 = vpack.c.b16 %v1167, %v1159
    %v1464 = vpack.c.b16 %v1168, %v1160
    %v1465 = vpack.c.b16 %v1169, %v1161
    %v1466 = vpack.c.b16 %v1170, %v1162
    %v1467 = vpack.c.b16 %v1171, %v1163
    %v1468 = vpack.c.b16 %v1172, %v1164
    %v1469 = vpack.c.b16 %v1181, %v1173
    %v1470 = vpack.c.b16 %v1182, %v1174
    %v1471 = vpack.c.b16 %v1183, %v1175
    %v1472 = vpack.c.b16 %v1184, %v1176
    %v1473 = vpack.c.b16 %v1185, %v1177
    %v1474 = vpack.c.b16 %v1186, %v1178
    %v1475 = vpack.c.b16 %v1187, %v1179
    %v1476 = vpack.c.b16 %v1188, %v1180
    %v1477 = vpack.c.b16 %v1197, %v1189
    %v1478 = vpack.c.b16 %v1198, %v1190
    %v1479 = vpack.c.b16 %v1199, %v1191
    %v1480 = vpack.c.b16 %v1200, %v1192
    %v1481 = vpack.c.b16 %v1201, %v1193
    %v1482 = vpack.c.b16 %v1202, %v1194
    %v1483 = vpack.c.b16 %v1203, %v1195
    %v1484 = vpack.c.b16 %v1204, %v1196
    %v1485 = vpack.c.b16 %v1213, %v1205
    %v1486 = vpack.c.b16 %v1214, %v1206
    %v1487 = vpack.c.b16 %v1215, %v1207
    %v1488 = vpack.c.b16 %v1216, %v1208
    %v1489 = vpack.c.b16 %v1217, %v1209
    %v1490 = vpack.c.b16 %v1218, %v1210
    %v1491 = vpack.c.b16 %v1219, %v1211
    %v1492 = vpack.c.b16 %v1220, %v1212
    %v1493 = vpack.c.b16 %v1229, %v1221
    %v1494 = vpack.c.b16 %v1230, %v1222
    %v1495 = vpack.c.b16 %v1231, %v1223
    %v1496 = vpack.c.b16 %v1232, %v1224
    %v1497 = vpack.c.b16 %v1233, %v1225
    %v1498 = vpack.c.b16 %v1234, %v1226
    %v1499 = vpack.c.b16 %v1235, %v1227
    %v1500 = vpack.c.b16 %v1236, %v1228
    %v1501 = vpack.c.b16 %v1245, %v1237
    %v1502 = vpack.c.b16 %v1246, %v1238
    %v1503 = vpack.c.b16 %v1247, %v1239
    %v1504 = vpack.c.b16 %v1248, %v1240
    %v1505 = vpack.c.b16 %v1249, %v1241
    %v1506 = vpack.c.b16 %v1250, %v1242
    %v1507 = vpack.c.b16 %v1251, %v1243
    %v1508 = vpack.c.b16 %v1252, %v1244
    %1765 = vmatprep.subr.bf16.mxu0 %v1310
    %1766 = vmatpush1.bf16.msra.mxu0 %v1309
    %1767 = vmatprep.subr.bf16.mxu0 %v1302
    %1768 = vmatpush1.bf16.msra.mxu0 %v1301
    %1769 = vmatprep.subr.bf16.mxu0 %v1294
    %1770 = vmatpush1.bf16.msra.mxu0 %v1293
    %1771 = vmatprep.subr.bf16.mxu0 %v1286
    %1772 = vmatpush1.bf16.msra.mxu0 %v1285
    %1773 = vmatprep.subr.bf16.mxu0 %v1278
    %1774 = vmatpush1.bf16.msra.mxu0 %v1277
    %1775 = vmatprep.subr.bf16.mxu0 %v1270
    %1776 = vmatpush1.bf16.msra.mxu0 %v1269
    %1777 = vmatprep.subr.bf16.mxu0 %v1262
    %1778 = vmatpush1.bf16.msra.mxu0 %v1261
    %1779 = vmatprep.subr.bf16.mxu0 %v1254
    %1780 = vmatpush1.bf16.msra.mxu0 %v1253
    %1781 = vmatprep.subr.bf16.mxu0 %v1374
    %1782 = vmatpush2.bf16.msra.mxu0 %v1373
    %1783 = vmatprep.subr.bf16.mxu0 %v1366
    %1784 = vmatpush2.bf16.msra.mxu0 %v1365
    %1785 = vmatprep.subr.bf16.mxu0 %v1358
    %1786 = vmatpush2.bf16.msra.mxu0 %v1357
    %1787 = vmatprep.subr.bf16.mxu0 %v1350
    %1788 = vmatpush2.bf16.msra.mxu0 %v1349
    %1789 = vmatprep.subr.bf16.mxu0 %v1342
    %1790 = vmatpush2.bf16.msra.mxu0 %v1341
    %1791 = vmatprep.subr.bf16.mxu0 %v1334
    %1792 = vmatpush2.bf16.msra.mxu0 %v1333
    %1793 = vmatprep.subr.bf16.mxu0 %v1326
    %1794 = vmatpush2.bf16.msra.mxu0 %v1325
    %1795 = vmatprep.subr.bf16.mxu0 %v1318
    %1796 = vmatpush2.bf16.msra.mxu0 %v1317
    %1797 = vmatprep.mubr.bf16.mxu0 %v454
    %1798 = vmatmul.mubr.bf16.gmra.mxu0 %v453
    %v1799 = vpop.f32.mrf.mxu0
    %v1800 = vadd.f32 %v368, %v1799
    %v1801 = vpop.f32.mrf.mxu0
    %v1802 = vadd.f32 %v372, %v1801
    %v1803 = vpop.f32.mrf.mxu0
    %v1804 = vadd.f32 %v368, %v1803
    %v1805 = vpop.f32.mrf.mxu0
    %v1806 = vadd.f32 %v372, %v1805
    %1807 = vmatprep.mubr.bf16.mxu0 %v458
    %1808 = vmatmul.mubr.bf16.gmra.mxu0 %v457
    %v1809 = vpop.f32.mrf.mxu0
    %v1810 = vadd.f32 %v368, %v1809
    %v1811 = vpop.f32.mrf.mxu0
    %v1812 = vadd.f32 %v372, %v1811
    %v1813 = vpop.f32.mrf.mxu0
    %v1814 = vadd.f32 %v368, %v1813
    %v1815 = vpop.f32.mrf.mxu0
    %v1816 = vadd.f32 %v372, %v1815
    %1817 = vmatprep.mubr.bf16.mxu0 %v462
    %1818 = vmatmul.mubr.bf16.gmra.mxu0 %v461
    %v1819 = vpop.f32.mrf.mxu0
    %v1820 = vadd.f32 %v368, %v1819
    %v1821 = vpop.f32.mrf.mxu0
    %v1822 = vadd.f32 %v372, %v1821
    %v1823 = vpop.f32.mrf.mxu0
    %v1824 = vadd.f32 %v368, %v1823
    %v1825 = vpop.f32.mrf.mxu0
    %v1826 = vadd.f32 %v372, %v1825
    %1827 = vmatprep.mubr.bf16.mxu0 %v466
    %1828 = vmatmul.mubr.bf16.gmra.mxu0 %v465
    %v1829 = vpop.f32.mrf.mxu0
    %v1830 = vadd.f32 %v368, %v1829
    %v1831 = vpop.f32.mrf.mxu0
    %v1832 = vadd.f32 %v372, %v1831
    %v1833 = vpop.f32.mrf.mxu0
    %v1834 = vadd.f32 %v368, %v1833
    %v1835 = vpop.f32.mrf.mxu0
    %v1836 = vadd.f32 %v372, %v1835
    %1837 = vdwg.mxu0
    %1838 = vmatprep.subr.bf16.mxu0 %v1438
    %1839 = vmatpush1.bf16.msra.mxu0 %v1437
    %1840 = vmatprep.subr.bf16.mxu0 %v1430
    %1841 = vmatpush1.bf16.msra.mxu0 %v1429
    %1842 = vmatprep.subr.bf16.mxu0 %v1422
    %1843 = vmatpush1.bf16.msra.mxu0 %v1421
    %1844 = vmatprep.subr.bf16.mxu0 %v1414
    %1845 = vmatpush1.bf16.msra.mxu0 %v1413
    %1846 = vmatprep.subr.bf16.mxu0 %v1406
    %1847 = vmatpush1.bf16.msra.mxu0 %v1405
    %1848 = vmatprep.subr.bf16.mxu0 %v1398
    %1849 = vmatpush1.bf16.msra.mxu0 %v1397
    %1850 = vmatprep.subr.bf16.mxu0 %v1390
    %1851 = vmatpush1.bf16.msra.mxu0 %v1389
    %1852 = vmatprep.subr.bf16.mxu0 %v1382
    %1853 = vmatpush1.bf16.msra.mxu0 %v1381
    %1854 = vmatprep.subr.bf16.mxu0 %v1502
    %1855 = vmatpush2.bf16.msra.mxu0 %v1501
    %1856 = vmatprep.subr.bf16.mxu0 %v1494
    %1857 = vmatpush2.bf16.msra.mxu0 %v1493
    %1858 = vmatprep.subr.bf16.mxu0 %v1486
    %1859 = vmatpush2.bf16.msra.mxu0 %v1485
    %1860 = vmatprep.subr.bf16.mxu0 %v1478
    %1861 = vmatpush2.bf16.msra.mxu0 %v1477
    %1862 = vmatprep.subr.bf16.mxu0 %v1470
    %1863 = vmatpush2.bf16.msra.mxu0 %v1469
    %1864 = vmatprep.subr.bf16.mxu0 %v1462
    %1865 = vmatpush2.bf16.msra.mxu0 %v1461
    %1866 = vmatprep.subr.bf16.mxu0 %v1454
    %1867 = vmatpush2.bf16.msra.mxu0 %v1453
    %1868 = vmatprep.subr.bf16.mxu0 %v1446
    %1869 = vmatpush2.bf16.msra.mxu0 %v1445
    %1870 = vmatprep.mubr.bf16.mxu0 %v456
    %1871 = vmatmul.mubr.bf16.gmra.mxu0 %v455
    %v1872 = vpop.f32.mrf.mxu0
    %v1873 = vadd.f32 %v1800, %v1872
    %v1874 = vpop.f32.mrf.mxu0
    %v1875 = vadd.f32 %v1802, %v1874
    %v1876 = vpop.f32.mrf.mxu0
    %v1877 = vadd.f32 %v1804, %v1876
    %v1878 = vpop.f32.mrf.mxu0
    %v1879 = vadd.f32 %v1806, %v1878
    %1880 = vmatprep.mubr.bf16.mxu0 %v460
    %1881 = vmatmul.mubr.bf16.gmra.mxu0 %v459
    %v1882 = vpop.f32.mrf.mxu0
    %v1883 = vadd.f32 %v1810, %v1882
    %v1884 = vpop.f32.mrf.mxu0
    %v1885 = vadd.f32 %v1812, %v1884
    %v1886 = vpop.f32.mrf.mxu0
    %v1887 = vadd.f32 %v1814, %v1886
    %v1888 = vpop.f32.mrf.mxu0
    %v1889 = vadd.f32 %v1816, %v1888
    %1890 = vmatprep.mubr.bf16.mxu0 %v464
    %1891 = vmatmul.mubr.bf16.gmra.mxu0 %v463
    %v1892 = vpop.f32.mrf.mxu0
    %v1893 = vadd.f32 %v1820, %v1892
    %v1894 = vpop.f32.mrf.mxu0
    %v1895 = vadd.f32 %v1822, %v1894
    %v1896 = vpop.f32.mrf.mxu0
    %v1897 = vadd.f32 %v1824, %v1896
    %v1898 = vpop.f32.mrf.mxu0
    %v1899 = vadd.f32 %v1826, %v1898
    %1900 = vmatprep.mubr.bf16.mxu0 %v468
    %1901 = vmatmul.mubr.bf16.gmra.mxu0 %v467
    %v1902 = vpop.f32.mrf.mxu0
    %v1903 = vadd.f32 %v1830, %v1902
    %v1904 = vpop.f32.mrf.mxu0
    %v1905 = vadd.f32 %v1832, %v1904
    %v1906 = vpop.f32.mrf.mxu0
    %v1907 = vadd.f32 %v1834, %v1906
    %v1908 = vpop.f32.mrf.mxu0
    %v1909 = vadd.f32 %v1836, %v1908
    %1910 = vdwg.mxu0
    %1911 = vmatprep.subr.bf16.mxu0 %v1312
    %1912 = vmatpush1.bf16.msra.mxu0 %v1311
    %1913 = vmatprep.subr.bf16.mxu0 %v1304
    %1914 = vmatpush1.bf16.msra.mxu0 %v1303
    %1915 = vmatprep.subr.bf16.mxu0 %v1296
    %1916 = vmatpush1.bf16.msra.mxu0 %v1295
    %1917 = vmatprep.subr.bf16.mxu0 %v1288
    %1918 = vmatpush1.bf16.msra.mxu0 %v1287
    %1919 = vmatprep.subr.bf16.mxu0 %v1280
    %1920 = vmatpush1.bf16.msra.mxu0 %v1279
    %1921 = vmatprep.subr.bf16.mxu0 %v1272
    %1922 = vmatpush1.bf16.msra.mxu0 %v1271
    %1923 = vmatprep.subr.bf16.mxu0 %v1264
    %1924 = vmatpush1.bf16.msra.mxu0 %v1263
    %1925 = vmatprep.subr.bf16.mxu0 %v1256
    %1926 = vmatpush1.bf16.msra.mxu0 %v1255
    %1927 = vmatprep.subr.bf16.mxu0 %v1376
    %1928 = vmatpush2.bf16.msra.mxu0 %v1375
    %1929 = vmatprep.subr.bf16.mxu0 %v1368
    %1930 = vmatpush2.bf16.msra.mxu0 %v1367
    %1931 = vmatprep.subr.bf16.mxu0 %v1360
    %1932 = vmatpush2.bf16.msra.mxu0 %v1359
    %1933 = vmatprep.subr.bf16.mxu0 %v1352
    %1934 = vmatpush2.bf16.msra.mxu0 %v1351
    %1935 = vmatprep.subr.bf16.mxu0 %v1344
    %1936 = vmatpush2.bf16.msra.mxu0 %v1343
    %1937 = vmatprep.subr.bf16.mxu0 %v1336
    %1938 = vmatpush2.bf16.msra.mxu0 %v1335
    %1939 = vmatprep.subr.bf16.mxu0 %v1328
    %1940 = vmatpush2.bf16.msra.mxu0 %v1327
    %1941 = vmatprep.subr.bf16.mxu0 %v1320
    %1942 = vmatpush2.bf16.msra.mxu0 %v1319
    %1943 = vmatprep.mubr.bf16.mxu0 %v454
    %1944 = vmatmul.mubr.bf16.gmra.mxu0 %v453
    %v1945 = vpop.f32.mrf.mxu0
    %v1946 = vadd.f32 %v376, %v1945
    %v1947 = vpop.f32.mrf.mxu0
    %v1948 = vadd.f32 %v380, %v1947
    %v1949 = vpop.f32.mrf.mxu0
    %v1950 = vadd.f32 %v376, %v1949
    %v1951 = vpop.f32.mrf.mxu0
    %v1952 = vadd.f32 %v380, %v1951
    %1953 = vmatprep.mubr.bf16.mxu0 %v458
    %1954 = vmatmul.mubr.bf16.gmra.mxu0 %v457
    %v1955 = vpop.f32.mrf.mxu0
    %v1956 = vadd.f32 %v376, %v1955
    %v1957 = vpop.f32.mrf.mxu0
    %v1958 = vadd.f32 %v380, %v1957
    %v1959 = vpop.f32.mrf.mxu0
    %v1960 = vadd.f32 %v376, %v1959
    %v1961 = vpop.f32.mrf.mxu0
    %v1962 = vadd.f32 %v380, %v1961
    %1963 = vmatprep.mubr.bf16.mxu0 %v462
    %1964 = vmatmul.mubr.bf16.gmra.mxu0 %v461
    %v1965 = vpop.f32.mrf.mxu0
    %v1966 = vadd.f32 %v376, %v1965
    %v1967 = vpop.f32.mrf.mxu0
    %v1968 = vadd.f32 %v380, %v1967
    %v1969 = vpop.f32.mrf.mxu0
    %v1970 = vadd.f32 %v376, %v1969
    %v1971 = vpop.f32.mrf.mxu0
    %v1972 = vadd.f32 %v380, %v1971
    %1973 = vmatprep.mubr.bf16.mxu0 %v466
    %1974 = vmatmul.mubr.bf16.gmra.mxu0 %v465
    %v1975 = vpop.f32.mrf.mxu0
    %v1976 = vadd.f32 %v376, %v1975
    %v1977 = vpop.f32.mrf.mxu0
    %v1978 = vadd.f32 %v380, %v1977
    %v1979 = vpop.f32.mrf.mxu0
    %v1980 = vadd.f32 %v376, %v1979
    %v1981 = vpop.f32.mrf.mxu0
    %v1982 = vadd.f32 %v380, %v1981
    %1983 = vdwg.mxu0
    %1984 = vmatprep.subr.bf16.mxu0 %v1440
    %1985 = vmatpush1.bf16.msra.mxu0 %v1439
    %1986 = vmatprep.subr.bf16.mxu0 %v1432
    %1987 = vmatpush1.bf16.msra.mxu0 %v1431
    %1988 = vmatprep.subr.bf16.mxu0 %v1424
    %1989 = vmatpush1.bf16.msra.mxu0 %v1423
    %1990 = vmatprep.subr.bf16.mxu0 %v1416
    %1991 = vmatpush1.bf16.msra.mxu0 %v1415
    %1992 = vmatprep.subr.bf16.mxu0 %v1408
    %1993 = vmatpush1.bf16.msra.mxu0 %v1407
    %1994 = vmatprep.subr.bf16.mxu0 %v1400
    %1995 = vmatpush1.bf16.msra.mxu0 %v1399
    %1996 = vmatprep.subr.bf16.mxu0 %v1392
    %1997 = vmatpush1.bf16.msra.mxu0 %v1391
    %1998 = vmatprep.subr.bf16.mxu0 %v1384
    %1999 = vmatpush1.bf16.msra.mxu0 %v1383
    %2000 = vmatprep.subr.bf16.mxu0 %v1504
    %2001 = vmatpush2.bf16.msra.mxu0 %v1503
    %2002 = vmatprep.subr.bf16.mxu0 %v1496
    %2003 = vmatpush2.bf16.msra.mxu0 %v1495
    %2004 = vmatprep.subr.bf16.mxu0 %v1488
    %2005 = vmatpush2.bf16.msra.mxu0 %v1487
    %2006 = vmatprep.subr.bf16.mxu0 %v1480
    %2007 = vmatpush2.bf16.msra.mxu0 %v1479
    %2008 = vmatprep.subr.bf16.mxu0 %v1472
    %2009 = vmatpush2.bf16.msra.mxu0 %v1471
    %2010 = vmatprep.subr.bf16.mxu0 %v1464
    %2011 = vmatpush2.bf16.msra.mxu0 %v1463
    %2012 = vmatprep.subr.bf16.mxu0 %v1456
    %2013 = vmatpush2.bf16.msra.mxu0 %v1455
    %2014 = vmatprep.subr.bf16.mxu0 %v1448
    %2015 = vmatpush2.bf16.msra.mxu0 %v1447
    %2016 = vmatprep.mubr.bf16.mxu0 %v456
    %2017 = vmatmul.mubr.bf16.gmra.mxu0 %v455
    %v2018 = vpop.f32.mrf.mxu0
    %v2019 = vadd.f32 %v1946, %v2018
    %v2020 = vpop.f32.mrf.mxu0
    %v2021 = vadd.f32 %v1948, %v2020
    %v2022 = vpop.f32.mrf.mxu0
    %v2023 = vadd.f32 %v1950, %v2022
    %v2024 = vpop.f32.mrf.mxu0
    %v2025 = vadd.f32 %v1952, %v2024
    %2026 = vmatprep.mubr.bf16.mxu0 %v460
    %2027 = vmatmul.mubr.bf16.gmra.mxu0 %v459
    %v2028 = vpop.f32.mrf.mxu0
    %v2029 = vadd.f32 %v1956, %v2028
    %v2030 = vpop.f32.mrf.mxu0
    %v2031 = vadd.f32 %v1958, %v2030
    %v2032 = vpop.f32.mrf.mxu0
    %v2033 = vadd.f32 %v1960, %v2032
    %v2034 = vpop.f32.mrf.mxu0
    %v2035 = vadd.f32 %v1962, %v2034
    %2036 = vmatprep.mubr.bf16.mxu0 %v464
    %2037 = vmatmul.mubr.bf16.gmra.mxu0 %v463
    %v2038 = vpop.f32.mrf.mxu0
    %v2039 = vadd.f32 %v1966, %v2038
    %v2040 = vpop.f32.mrf.mxu0
    %v2041 = vadd.f32 %v1968, %v2040
    %v2042 = vpop.f32.mrf.mxu0
    %v2043 = vadd.f32 %v1970, %v2042
    %v2044 = vpop.f32.mrf.mxu0
    %v2045 = vadd.f32 %v1972, %v2044
    %2046 = vmatprep.mubr.bf16.mxu0 %v468
    %2047 = vmatmul.mubr.bf16.gmra.mxu0 %v467
    %v2048 = vpop.f32.mrf.mxu0
    %v2049 = vadd.f32 %v1976, %v2048
    %v2050 = vpop.f32.mrf.mxu0
    %v2051 = vadd.f32 %v1978, %v2050
    %v2052 = vpop.f32.mrf.mxu0
    %v2053 = vadd.f32 %v1980, %v2052
    %v2054 = vpop.f32.mrf.mxu0
    %v2055 = vadd.f32 %v1982, %v2054
    %2056 = vdwg.mxu0
    %2057 = vmatprep.subr.bf16.mxu0 %v1314
    %2058 = vmatpush1.bf16.msra.mxu0 %v1313
    %2059 = vmatprep.subr.bf16.mxu0 %v1306
    %2060 = vmatpush1.bf16.msra.mxu0 %v1305
    %2061 = vmatprep.subr.bf16.mxu0 %v1298
    %2062 = vmatpush1.bf16.msra.mxu0 %v1297
    %2063 = vmatprep.subr.bf16.mxu0 %v1290
    %2064 = vmatpush1.bf16.msra.mxu0 %v1289
    %2065 = vmatprep.subr.bf16.mxu0 %v1282
    %2066 = vmatpush1.bf16.msra.mxu0 %v1281
    %2067 = vmatprep.subr.bf16.mxu0 %v1274
    %2068 = vmatpush1.bf16.msra.mxu0 %v1273
    %2069 = vmatprep.subr.bf16.mxu0 %v1266
    %2070 = vmatpush1.bf16.msra.mxu0 %v1265
    %2071 = vmatprep.subr.bf16.mxu0 %v1258
    %2072 = vmatpush1.bf16.msra.mxu0 %v1257
    %2073 = vmatprep.subr.bf16.mxu0 %v1378
    %2074 = vmatpush2.bf16.msra.mxu0 %v1377
    %2075 = vmatprep.subr.bf16.mxu0 %v1370
    %2076 = vmatpush2.bf16.msra.mxu0 %v1369
    %2077 = vmatprep.subr.bf16.mxu0 %v1362
    %2078 = vmatpush2.bf16.msra.mxu0 %v1361
    %2079 = vmatprep.subr.bf16.mxu0 %v1354
    %2080 = vmatpush2.bf16.msra.mxu0 %v1353
    %2081 = vmatprep.subr.bf16.mxu0 %v1346
    %2082 = vmatpush2.bf16.msra.mxu0 %v1345
    %2083 = vmatprep.subr.bf16.mxu0 %v1338
    %2084 = vmatpush2.bf16.msra.mxu0 %v1337
    %2085 = vmatprep.subr.bf16.mxu0 %v1330
    %2086 = vmatpush2.bf16.msra.mxu0 %v1329
    %2087 = vmatprep.subr.bf16.mxu0 %v1322
    %2088 = vmatpush2.bf16.msra.mxu0 %v1321
    %2089 = vmatprep.mubr.bf16.mxu0 %v454
    %2090 = vmatmul.mubr.bf16.gmra.mxu0 %v453
    %v2091 = vpop.f32.mrf.mxu0
    %v2092 = vadd.f32 %v384, %v2091
    %v2093 = vpop.f32.mrf.mxu0
    %v2094 = vadd.f32 %v388, %v2093
    %v2095 = vpop.f32.mrf.mxu0
    %v2096 = vadd.f32 %v384, %v2095
    %v2097 = vpop.f32.mrf.mxu0
    %v2098 = vadd.f32 %v388, %v2097
    %2099 = vmatprep.mubr.bf16.mxu0 %v458
    %2100 = vmatmul.mubr.bf16.gmra.mxu0 %v457
    %v2101 = vpop.f32.mrf.mxu0
    %v2102 = vadd.f32 %v384, %v2101
    %v2103 = vpop.f32.mrf.mxu0
    %v2104 = vadd.f32 %v388, %v2103
    %v2105 = vpop.f32.mrf.mxu0
    %v2106 = vadd.f32 %v384, %v2105
    %v2107 = vpop.f32.mrf.mxu0
    %v2108 = vadd.f32 %v388, %v2107
    %2109 = vmatprep.mubr.bf16.mxu0 %v462
    %2110 = vmatmul.mubr.bf16.gmra.mxu0 %v461
    %v2111 = vpop.f32.mrf.mxu0
    %v2112 = vadd.f32 %v384, %v2111
    %v2113 = vpop.f32.mrf.mxu0
    %v2114 = vadd.f32 %v388, %v2113
    %v2115 = vpop.f32.mrf.mxu0
    %v2116 = vadd.f32 %v384, %v2115
    %v2117 = vpop.f32.mrf.mxu0
    %v2118 = vadd.f32 %v388, %v2117
    %2119 = vmatprep.mubr.bf16.mxu0 %v466
    %2120 = vmatmul.mubr.bf16.gmra.mxu0 %v465
    %v2121 = vpop.f32.mrf.mxu0
    %v2122 = vadd.f32 %v384, %v2121
    %v2123 = vpop.f32.mrf.mxu0
    %v2124 = vadd.f32 %v388, %v2123
    %v2125 = vpop.f32.mrf.mxu0
    %v2126 = vadd.f32 %v384, %v2125
    %v2127 = vpop.f32.mrf.mxu0
    %v2128 = vadd.f32 %v388, %v2127
    %2129 = vdwg.mxu0
    %2130 = vmatprep.subr.bf16.mxu0 %v1442
    %2131 = vmatpush1.bf16.msra.mxu0 %v1441
    %2132 = vmatprep.subr.bf16.mxu0 %v1434
    %2133 = vmatpush1.bf16.msra.mxu0 %v1433
    %2134 = vmatprep.subr.bf16.mxu0 %v1426
    %2135 = vmatpush1.bf16.msra.mxu0 %v1425
    %2136 = vmatprep.subr.bf16.mxu0 %v1418
    %2137 = vmatpush1.bf16.msra.mxu0 %v1417
    %2138 = vmatprep.subr.bf16.mxu0 %v1410
    %2139 = vmatpush1.bf16.msra.mxu0 %v1409
    %2140 = vmatprep.subr.bf16.mxu0 %v1402
    %2141 = vmatpush1.bf16.msra.mxu0 %v1401
    %2142 = vmatprep.subr.bf16.mxu0 %v1394
    %2143 = vmatpush1.bf16.msra.mxu0 %v1393
    %2144 = vmatprep.subr.bf16.mxu0 %v1386
    %2145 = vmatpush1.bf16.msra.mxu0 %v1385
    %2146 = vmatprep.subr.bf16.mxu0 %v1506
    %2147 = vmatpush2.bf16.msra.mxu0 %v1505
    %2148 = vmatprep.subr.bf16.mxu0 %v1498
    %2149 = vmatpush2.bf16.msra.mxu0 %v1497
    %2150 = vmatprep.subr.bf16.mxu0 %v1490
    %2151 = vmatpush2.bf16.msra.mxu0 %v1489
    %2152 = vmatprep.subr.bf16.mxu0 %v1482
    %2153 = vmatpush2.bf16.msra.mxu0 %v1481
    %2154 = vmatprep.subr.bf16.mxu0 %v1474
    %2155 = vmatpush2.bf16.msra.mxu0 %v1473
    %2156 = vmatprep.subr.bf16.mxu0 %v1466
    %2157 = vmatpush2.bf16.msra.mxu0 %v1465
    %2158 = vmatprep.subr.bf16.mxu0 %v1458
    %2159 = vmatpush2.bf16.msra.mxu0 %v1457
    %2160 = vmatprep.subr.bf16.mxu0 %v1450
    %2161 = vmatpush2.bf16.msra.mxu0 %v1449
    %2162 = vmatprep.mubr.bf16.mxu0 %v456
    %2163 = vmatmul.mubr.bf16.gmra.mxu0 %v455
    %v2164 = vpop.f32.mrf.mxu0
    %v2165 = vadd.f32 %v2092, %v2164
    %v2166 = vpop.f32.mrf.mxu0
    %v2167 = vadd.f32 %v2094, %v2166
    %v2168 = vpop.f32.mrf.mxu0
    %v2169 = vadd.f32 %v2096, %v2168
    %v2170 = vpop.f32.mrf.mxu0
    %v2171 = vadd.f32 %v2098, %v2170
    %2172 = vmatprep.mubr.bf16.mxu0 %v460
    %2173 = vmatmul.mubr.bf16.gmra.mxu0 %v459
    %v2174 = vpop.f32.mrf.mxu0
    %v2175 = vadd.f32 %v2102, %v2174
    %v2176 = vpop.f32.mrf.mxu0
    %v2177 = vadd.f32 %v2104, %v2176
    %v2178 = vpop.f32.mrf.mxu0
    %v2179 = vadd.f32 %v2106, %v2178
    %v2180 = vpop.f32.mrf.mxu0
    %v2181 = vadd.f32 %v2108, %v2180
    %2182 = vmatprep.mubr.bf16.mxu0 %v464
    %2183 = vmatmul.mubr.bf16.gmra.mxu0 %v463
    %v2184 = vpop.f32.mrf.mxu0
    %v2185 = vadd.f32 %v2112, %v2184
    %v2186 = vpop.f32.mrf.mxu0
    %v2187 = vadd.f32 %v2114, %v2186
    %v2188 = vpop.f32.mrf.mxu0
    %v2189 = vadd.f32 %v2116, %v2188
    %v2190 = vpop.f32.mrf.mxu0
    %v2191 = vadd.f32 %v2118, %v2190
    %2192 = vmatprep.mubr.bf16.mxu0 %v468
    %2193 = vmatmul.mubr.bf16.gmra.mxu0 %v467
    %v2194 = vpop.f32.mrf.mxu0
    %v2195 = vadd.f32 %v2122, %v2194
    %v2196 = vpop.f32.mrf.mxu0
    %v2197 = vadd.f32 %v2124, %v2196
    %v2198 = vpop.f32.mrf.mxu0
    %v2199 = vadd.f32 %v2126, %v2198
    %v2200 = vpop.f32.mrf.mxu0
    %v2201 = vadd.f32 %v2128, %v2200
    %2202 = vdwg.mxu0
    %2203 = vmatprep.subr.bf16.mxu0 %v1316
    %2204 = vmatpush1.bf16.msra.mxu0 %v1315
    %2205 = vmatprep.subr.bf16.mxu0 %v1308
    %2206 = vmatpush1.bf16.msra.mxu0 %v1307
    %2207 = vmatprep.subr.bf16.mxu0 %v1300
    %2208 = vmatpush1.bf16.msra.mxu0 %v1299
    %2209 = vmatprep.subr.bf16.mxu0 %v1292
    %2210 = vmatpush1.bf16.msra.mxu0 %v1291
    %2211 = vmatprep.subr.bf16.mxu0 %v1284
    %2212 = vmatpush1.bf16.msra.mxu0 %v1283
    %2213 = vmatprep.subr.bf16.mxu0 %v1276
    %2214 = vmatpush1.bf16.msra.mxu0 %v1275
    %2215 = vmatprep.subr.bf16.mxu0 %v1268
    %2216 = vmatpush1.bf16.msra.mxu0 %v1267
    %2217 = vmatprep.subr.bf16.mxu0 %v1260
    %2218 = vmatpush1.bf16.msra.mxu0 %v1259
    %2219 = vmatprep.subr.bf16.mxu0 %v1380
    %2220 = vmatpush2.bf16.msra.mxu0 %v1379
    %2221 = vmatprep.subr.bf16.mxu0 %v1372
    %2222 = vmatpush2.bf16.msra.mxu0 %v1371
    %2223 = vmatprep.subr.bf16.mxu0 %v1364
    %2224 = vmatpush2.bf16.msra.mxu0 %v1363
    %2225 = vmatprep.subr.bf16.mxu0 %v1356
    %2226 = vmatpush2.bf16.msra.mxu0 %v1355
    %2227 = vmatprep.subr.bf16.mxu0 %v1348
    %2228 = vmatpush2.bf16.msra.mxu0 %v1347
    %2229 = vmatprep.subr.bf16.mxu0 %v1340
    %2230 = vmatpush2.bf16.msra.mxu0 %v1339
    %2231 = vmatprep.subr.bf16.mxu0 %v1332
    %2232 = vmatpush2.bf16.msra.mxu0 %v1331
    %2233 = vmatprep.subr.bf16.mxu0 %v1324
    %2234 = vmatpush2.bf16.msra.mxu0 %v1323
    %2235 = vmatprep.mubr.bf16.mxu0 %v454
    %2236 = vmatmul.mubr.bf16.gmra.mxu0 %v453
    %v2237 = vpop.f32.mrf.mxu0
    %v2238 = vadd.f32 %v392, %v2237
    %v2239 = vpop.f32.mrf.mxu0
    %v2240 = vadd.f32 %v396, %v2239
    %v2241 = vpop.f32.mrf.mxu0
    %v2242 = vadd.f32 %v392, %v2241
    %v2243 = vpop.f32.mrf.mxu0
    %v2244 = vadd.f32 %v396, %v2243
    %2245 = vmatprep.mubr.bf16.mxu0 %v458
    %2246 = vmatmul.mubr.bf16.gmra.mxu0 %v457
    %v2247 = vpop.f32.mrf.mxu0
    %v2248 = vadd.f32 %v392, %v2247
    %v2249 = vpop.f32.mrf.mxu0
    %v2250 = vadd.f32 %v396, %v2249
    %v2251 = vpop.f32.mrf.mxu0
    %v2252 = vadd.f32 %v392, %v2251
    %v2253 = vpop.f32.mrf.mxu0
    %v2254 = vadd.f32 %v396, %v2253
    %2255 = vmatprep.mubr.bf16.mxu0 %v462
    %2256 = vmatmul.mubr.bf16.gmra.mxu0 %v461
    %v2257 = vpop.f32.mrf.mxu0
    %v2258 = vadd.f32 %v392, %v2257
    %v2259 = vpop.f32.mrf.mxu0
    %v2260 = vadd.f32 %v396, %v2259
    %v2261 = vpop.f32.mrf.mxu0
    %v2262 = vadd.f32 %v392, %v2261
    %v2263 = vpop.f32.mrf.mxu0
    %v2264 = vadd.f32 %v396, %v2263
    %2265 = vmatprep.mubr.bf16.mxu0 %v466
    %2266 = vmatmul.mubr.bf16.gmra.mxu0 %v465
    %v2267 = vpop.f32.mrf.mxu0
    %v2268 = vadd.f32 %v392, %v2267
    %v2269 = vpop.f32.mrf.mxu0
    %v2270 = vadd.f32 %v396, %v2269
    %v2271 = vpop.f32.mrf.mxu0
    %v2272 = vadd.f32 %v392, %v2271
    %v2273 = vpop.f32.mrf.mxu0
    %v2274 = vadd.f32 %v396, %v2273
    %2275 = vdwg.mxu0
    %2276 = vmatprep.subr.bf16.mxu0 %v1444
    %2277 = vmatpush1.bf16.msra.mxu0 %v1443
    %2278 = vmatprep.subr.bf16.mxu0 %v1436
    %2279 = vmatpush1.bf16.msra.mxu0 %v1435
    %2280 = vmatprep.subr.bf16.mxu0 %v1428
    %2281 = vmatpush1.bf16.msra.mxu0 %v1427
    %2282 = vmatprep.subr.bf16.mxu0 %v1420
    %2283 = vmatpush1.bf16.msra.mxu0 %v1419
    %2284 = vmatprep.subr.bf16.mxu0 %v1412
    %2285 = vmatpush1.bf16.msra.mxu0 %v1411
    %2286 = vmatprep.subr.bf16.mxu0 %v1404
    %2287 = vmatpush1.bf16.msra.mxu0 %v1403
    %2288 = vmatprep.subr.bf16.mxu0 %v1396
    %2289 = vmatpush1.bf16.msra.mxu0 %v1395
    %2290 = vmatprep.subr.bf16.mxu0 %v1388
    %2291 = vmatpush1.bf16.msra.mxu0 %v1387
    %2292 = vmatprep.subr.bf16.mxu0 %v1508
    %2293 = vmatpush2.bf16.msra.mxu0 %v1507
    %2294 = vmatprep.subr.bf16.mxu0 %v1500
    %2295 = vmatpush2.bf16.msra.mxu0 %v1499
    %2296 = vmatprep.subr.bf16.mxu0 %v1492
    %2297 = vmatpush2.bf16.msra.mxu0 %v1491
    %2298 = vmatprep.subr.bf16.mxu0 %v1484
    %2299 = vmatpush2.bf16.msra.mxu0 %v1483
    %2300 = vmatprep.subr.bf16.mxu0 %v1476
    %2301 = vmatpush2.bf16.msra.mxu0 %v1475
    %2302 = vmatprep.subr.bf16.mxu0 %v1468
    %2303 = vmatpush2.bf16.msra.mxu0 %v1467
    %2304 = vmatprep.subr.bf16.mxu0 %v1460
    %2305 = vmatpush2.bf16.msra.mxu0 %v1459
    %2306 = vmatprep.subr.bf16.mxu0 %v1452
    %2307 = vmatpush2.bf16.msra.mxu0 %v1451
    %2308 = vmatprep.mubr.bf16.mxu0 %v456
    %2309 = vmatmul.mubr.bf16.gmra.mxu0 %v455
    %v2310 = vpop.f32.mrf.mxu0
    %v2311 = vadd.f32 %v2238, %v2310
    %v2312 = vpop.f32.mrf.mxu0
    %v2313 = vadd.f32 %v2240, %v2312
    %v2314 = vpop.f32.mrf.mxu0
    %v2315 = vadd.f32 %v2242, %v2314
    %v2316 = vpop.f32.mrf.mxu0
    %v2317 = vadd.f32 %v2244, %v2316
    %2318 = vmatprep.mubr.bf16.mxu0 %v460
    %2319 = vmatmul.mubr.bf16.gmra.mxu0 %v459
    %v2320 = vpop.f32.mrf.mxu0
    %v2321 = vadd.f32 %v2248, %v2320
    %v2322 = vpop.f32.mrf.mxu0
    %v2323 = vadd.f32 %v2250, %v2322
    %v2324 = vpop.f32.mrf.mxu0
    %v2325 = vadd.f32 %v2252, %v2324
    %v2326 = vpop.f32.mrf.mxu0
    %v2327 = vadd.f32 %v2254, %v2326
    %2328 = vmatprep.mubr.bf16.mxu0 %v464
    %2329 = vmatmul.mubr.bf16.gmra.mxu0 %v463
    %v2330 = vpop.f32.mrf.mxu0
    %v2331 = vadd.f32 %v2258, %v2330
    %v2332 = vpop.f32.mrf.mxu0
    %v2333 = vadd.f32 %v2260, %v2332
    %v2334 = vpop.f32.mrf.mxu0
    %v2335 = vadd.f32 %v2262, %v2334
    %v2336 = vpop.f32.mrf.mxu0
    %v2337 = vadd.f32 %v2264, %v2336
    %2338 = vmatprep.mubr.bf16.mxu0 %v468
    %2339 = vmatmul.mubr.bf16.gmra.mxu0 %v467
    %v2340 = vpop.f32.mrf.mxu0
    %v2341 = vadd.f32 %v2268, %v2340
    %v2342 = vpop.f32.mrf.mxu0
    %v2343 = vadd.f32 %v2270, %v2342
    %v2344 = vpop.f32.mrf.mxu0
    %v2345 = vadd.f32 %v2272, %v2344
    %v2346 = vpop.f32.mrf.mxu0
    %v2347 = vadd.f32 %v2274, %v2346
    %2348 = vdwg.mxu0
    %2349 = vst [vmem:[#allocation2] sm:$0xff] %v1873
    %2350 = vst [vmem:[#allocation2 + $0x8] sm:$0xff] %v1875
    %2351 = vst [vmem:[#allocation2 + $0x10] sm:$0xff] %v2019
    %2352 = vst [vmem:[#allocation2 + $0x18] sm:$0xff] %v2021
    %2353 = vst [vmem:[#allocation2 + $0x20] sm:$0xff] %v2165
    %2354 = vst [vmem:[#allocation2 + $0x28] sm:$0xff] %v2167
    %2355 = vst [vmem:[#allocation2 + $0x30] sm:$0xff] %v2311
    %2356 = vst [vmem:[#allocation2 + $0x38] sm:$0xff] %v2313
    %2357 = vst [vmem:[#allocation2 + $0x40] sm:$0xff] %v1877
    %2358 = vst [vmem:[#allocation2 + $0x48] sm:$0xff] %v1879
    %2359 = vst [vmem:[#allocation2 + $0x50] sm:$0xff] %v2023
    %2360 = vst [vmem:[#allocation2 + $0x58] sm:$0xff] %v2025
    %2361 = vst [vmem:[#allocation2 + $0x60] sm:$0xff] %v2169
    %2362 = vst [vmem:[#allocation2 + $0x68] sm:$0xff] %v2171
    %2363 = vst [vmem:[#allocation2 + $0x70] sm:$0xff] %v2315
    %2364 = vst [vmem:[#allocation2 + $0x78] sm:$0xff] %v2317
    %2365 = vst [vmem:[#allocation2 + $0x80] sm:$0xff] %v1883
    %2366 = vst [vmem:[#allocation2 + $0x88] sm:$0xff] %v1885
    %2367 = vst [vmem:[#allocation2 + $0x90] sm:$0xff] %v2029
    %2368 = vst [vmem:[#allocation2 + $0x98] sm:$0xff] %v2031
    %2369 = vst [vmem:[#allocation2 + $0xa0] sm:$0xff] %v2175
    %2370 = vst [vmem:[#allocation2 + $0xa8] sm:$0xff] %v2177
    %2371 = vst [vmem:[#allocation2 + $0xb0] sm:$0xff] %v2321
    %2372 = vst [vmem:[#allocation2 + $0xb8] sm:$0xff] %v2323
    %2373 = vst [vmem:[#allocation2 + $0xc0] sm:$0xff] %v1887
    %2374 = vst [vmem:[#allocation2 + $0xc8] sm:$0xff] %v1889
    %2375 = vst [vmem:[#allocation2 + $0xd0] sm:$0xff] %v2033
    %2376 = vst [vmem:[#allocation2 + $0xd8] sm:$0xff] %v2035
    %2377 = vst [vmem:[#allocation2 + $0xe0] sm:$0xff] %v2179
    %2378 = vst [vmem:[#allocation2 + $0xe8] sm:$0xff] %v2181
    %2379 = vst [vmem:[#allocation2 + $0xf0] sm:$0xff] %v2325
    %2380 = vst [vmem:[#allocation2 + $0xf8] sm:$0xff] %v2327
    %2381 = vst [vmem:[#allocation2 + $0x100] sm:$0xff] %v1893
    %2382 = vst [vmem:[#allocation2 + $0x108] sm:$0xff] %v1895
    %2383 = vst [vmem:[#allocation2 + $0x110] sm:$0xff] %v2039
    %2384 = vst [vmem:[#allocation2 + $0x118] sm:$0xff] %v2041
    %2385 = vst [vmem:[#allocation2 + $0x120] sm:$0xff] %v2185
    %2386 = vst [vmem:[#allocation2 + $0x128] sm:$0xff] %v2187
    %2387 = vst [vmem:[#allocation2 + $0x130] sm:$0xff] %v2331
    %2388 = vst [vmem:[#allocation2 + $0x138] sm:$0xff] %v2333
    %2389 = vst [vmem:[#allocation2 + $0x140] sm:$0xff] %v1897
    %2390 = vst [vmem:[#allocation2 + $0x148] sm:$0xff] %v1899
    %2391 = vst [vmem:[#allocation2 + $0x150] sm:$0xff] %v2043
    %2392 = vst [vmem:[#allocation2 + $0x158] sm:$0xff] %v2045
    %2393 = vst [vmem:[#allocation2 + $0x160] sm:$0xff] %v2189
    %2394 = vst [vmem:[#allocation2 + $0x168] sm:$0xff] %v2191
    %2395 = vst [vmem:[#allocation2 + $0x170] sm:$0xff] %v2335
    %2396 = vst [vmem:[#allocation2 + $0x178] sm:$0xff] %v2337
    %2397 = vst [vmem:[#allocation2 + $0x180] sm:$0xff] %v1903
    %2398 = vst [vmem:[#allocation2 + $0x188] sm:$0xff] %v1905
    %2399 = vst [vmem:[#allocation2 + $0x190] sm:$0xff] %v2049
    %2400 = vst [vmem:[#allocation2 + $0x198] sm:$0xff] %v2051
    %2401 = vst [vmem:[#allocation2 + $0x1a0] sm:$0xff] %v2195
    %2402 = vst [vmem:[#allocation2 + $0x1a8] sm:$0xff] %v2197
    %2403 = vst [vmem:[#allocation2 + $0x1b0] sm:$0xff] %v2341
    %2404 = vst [vmem:[#allocation2 + $0x1b8] sm:$0xff] %v2343
    %2405 = vst [vmem:[#allocation2 + $0x1c0] sm:$0xff] %v1907
    %2406 = vst [vmem:[#allocation2 + $0x1c8] sm:$0xff] %v1909
    %2407 = vst [vmem:[#allocation2 + $0x1d0] sm:$0xff] %v2053
    %2408 = vst [vmem:[#allocation2 + $0x1d8] sm:$0xff] %v2055
    %2409 = vst [vmem:[#allocation2 + $0x1e0] sm:$0xff] %v2199
    %2410 = vst [vmem:[#allocation2 + $0x1e8] sm:$0xff] %v2201
    %2411 = vst [vmem:[#allocation2 + $0x1f0] sm:$0xff] %v2345
    %2412 = vst [vmem:[#allocation2 + $0x1f8] sm:$0xff] %v2347
    %v2413 = vld [vmem:[#allocation2] sm:$0xff]
    %v2414 = vld [vmem:[#allocation2 + $0x8] sm:$0xff]
    %v2415 = vld [vmem:[#allocation2 + $0x10] sm:$0xff]
    %v2416 = vld [vmem:[#allocation2 + $0x18] sm:$0xff]
    %v2417 = vld [vmem:[#allocation2 + $0x20] sm:$0xff]
    %v2418 = vld [vmem:[#allocation2 + $0x28] sm:$0xff]
    %v2419 = vld [vmem:[#allocation2 + $0x30] sm:$0xff]
    %v2420 = vld [vmem:[#allocation2 + $0x38] sm:$0xff]
    %v2421 = vld [vmem:[#allocation9] sm:$0xff]
    %v2422 = vld [vmem:[#allocation9 + $0x8] sm:$0xff]
    %v2423 = vld [vmem:[#allocation9 + $0x10] sm:$0xff]
    %v2424 = vld [vmem:[#allocation9 + $0x18] sm:$0xff]
    %v2425 = vld [vmem:[#allocation9 + $0x20] sm:$0xff]
    %v2426 = vld [vmem:[#allocation9 + $0x28] sm:$0xff]
    %v2427 = vld [vmem:[#allocation9 + $0x30] sm:$0xff]
    %v2428 = vld [vmem:[#allocation9 + $0x38] sm:$0xff]
    %v2429 = vld [vmem:[#allocation9 + $0x40] sm:$0xff]
    %v2430 = vld [vmem:[#allocation9 + $0x48] sm:$0xff]
    %v2431 = vld [vmem:[#allocation9 + $0x50] sm:$0xff]
    %v2432 = vld [vmem:[#allocation9 + $0x58] sm:$0xff]
    %v2433 = vld [vmem:[#allocation9 + $0x60] sm:$0xff]
    %v2434 = vld [vmem:[#allocation9 + $0x68] sm:$0xff]
    %v2435 = vld [vmem:[#allocation9 + $0x70] sm:$0xff]
    %v2436 = vld [vmem:[#allocation9 + $0x78] sm:$0xff]
    %v2437 = vld [vmem:[#allocation9 + $0x80] sm:$0xff]
    %v2438 = vld [vmem:[#allocation9 + $0x88] sm:$0xff]
    %v2439 = vld [vmem:[#allocation9 + $0x90] sm:$0xff]
    %v2440 = vld [vmem:[#allocation9 + $0x98] sm:$0xff]
    %v2441 = vld [vmem:[#allocation9 + $0xa0] sm:$0xff]
    %v2442 = vld [vmem:[#allocation9 + $0xa8] sm:$0xff]
    %v2443 = vld [vmem:[#allocation9 + $0xb0] sm:$0xff]
    %v2444 = vld [vmem:[#allocation9 + $0xb8] sm:$0xff]
    %v2445 = vld [vmem:[#allocation9 + $0xc0] sm:$0xff]
    %v2446 = vld [vmem:[#allocation9 + $0xc8] sm:$0xff]
    %v2447 = vld [vmem:[#allocation9 + $0xd0] sm:$0xff]
    %v2448 = vld [vmem:[#allocation9 + $0xd8] sm:$0xff]
    %v2449 = vld [vmem:[#allocation9 + $0xe0] sm:$0xff]
    %v2450 = vld [vmem:[#allocation9 + $0xe8] sm:$0xff]
    %v2451 = vld [vmem:[#allocation9 + $0xf0] sm:$0xff]
    %v2452 = vld [vmem:[#allocation9 + $0xf8] sm:$0xff]
    %v2453 = vld [vmem:[#allocation9 + $0x100] sm:$0xff]
    %v2454 = vld [vmem:[#allocation9 + $0x108] sm:$0xff]
    %v2455 = vld [vmem:[#allocation9 + $0x110] sm:$0xff]
    %v2456 = vld [vmem:[#allocation9 + $0x118] sm:$0xff]
    %v2457 = vld [vmem:[#allocation9 + $0x120] sm:$0xff]
    %v2458 = vld [vmem:[#allocation9 + $0x128] sm:$0xff]
    %v2459 = vld [vmem:[#allocation9 + $0x130] sm:$0xff]
    %v2460 = vld [vmem:[#allocation9 + $0x138] sm:$0xff]
    %v2461 = vld [vmem:[#allocation9 + $0x140] sm:$0xff]
    %v2462 = vld [vmem:[#allocation9 + $0x148] sm:$0xff]
    %v2463 = vld [vmem:[#allocation9 + $0x150] sm:$0xff]
    %v2464 = vld [vmem:[#allocation9 + $0x158] sm:$0xff]
    %v2465 = vld [vmem:[#allocation9 + $0x160] sm:$0xff]
    %v2466 = vld [vmem:[#allocation9 + $0x168] sm:$0xff]
    %v2467 = vld [vmem:[#allocation9 + $0x170] sm:$0xff]
    %v2468 = vld [vmem:[#allocation9 + $0x178] sm:$0xff]
    %v2469 = vld [vmem:[#allocation9 + $0x180] sm:$0xff]
    %v2470 = vld [vmem:[#allocation9 + $0x188] sm:$0xff]
    %v2471 = vld [vmem:[#allocation9 + $0x190] sm:$0xff]
    %v2472 = vld [vmem:[#allocation9 + $0x198] sm:$0xff]
    %v2473 = vld [vmem:[#allocation9 + $0x1a0] sm:$0xff]
    %v2474 = vld [vmem:[#allocation9 + $0x1a8] sm:$0xff]
    %v2475 = vld [vmem:[#allocation9 + $0x1b0] sm:$0xff]
    %v2476 = vld [vmem:[#allocation9 + $0x1b8] sm:$0xff]
    %v2477 = vld [vmem:[#allocation9 + $0x1c0] sm:$0xff]
    %v2478 = vld [vmem:[#allocation9 + $0x1c8] sm:$0xff]
    %v2479 = vld [vmem:[#allocation9 + $0x1d0] sm:$0xff]
    %v2480 = vld [vmem:[#allocation9 + $0x1d8] sm:$0xff]
    %v2481 = vld [vmem:[#allocation9 + $0x1e0] sm:$0xff]
    %v2482 = vld [vmem:[#allocation9 + $0x1e8] sm:$0xff]
    %v2483 = vld [vmem:[#allocation9 + $0x1f0] sm:$0xff]
    %v2484 = vld [vmem:[#allocation9 + $0x1f8] sm:$0xff]
    %v2485 = vld [vmem:[#allocation9 + $0x200] sm:$0xff]
    %v2486 = vld [vmem:[#allocation9 + $0x208] sm:$0xff]
    %v2487 = vld [vmem:[#allocation9 + $0x210] sm:$0xff]
    %v2488 = vld [vmem:[#allocation9 + $0x218] sm:$0xff]
    %v2489 = vld [vmem:[#allocation9 + $0x220] sm:$0xff]
    %v2490 = vld [vmem:[#allocation9 + $0x228] sm:$0xff]
    %v2491 = vld [vmem:[#allocation9 + $0x230] sm:$0xff]
    %v2492 = vld [vmem:[#allocation9 + $0x238] sm:$0xff]
    %v2493 = vld [vmem:[#allocation9 + $0x240] sm:$0xff]
    %v2494 = vld [vmem:[#allocation9 + $0x248] sm:$0xff]
    %v2495 = vld [vmem:[#allocation9 + $0x250] sm:$0xff]
    %v2496 = vld [vmem:[#allocation9 + $0x258] sm:$0xff]
    %v2497 = vld [vmem:[#allocation9 + $0x260] sm:$0xff]
    %v2498 = vld [vmem:[#allocation9 + $0x268] sm:$0xff]
    %v2499 = vld [vmem:[#allocation9 + $0x270] sm:$0xff]
    %v2500 = vld [vmem:[#allocation9 + $0x278] sm:$0xff]
    %v2501 = vld [vmem:[#allocation9 + $0x280] sm:$0xff]
    %v2502 = vld [vmem:[#allocation9 + $0x288] sm:$0xff]
    %v2503 = vld [vmem:[#allocation9 + $0x290] sm:$0xff]
    %v2504 = vld [vmem:[#allocation9 + $0x298] sm:$0xff]
    %v2505 = vld [vmem:[#allocation9 + $0x2a0] sm:$0xff]
    %v2506 = vld [vmem:[#allocation9 + $0x2a8] sm:$0xff]
    %v2507 = vld [vmem:[#allocation9 + $0x2b0] sm:$0xff]
    %v2508 = vld [vmem:[#allocation9 + $0x2b8] sm:$0xff]
    %v2509 = vld [vmem:[#allocation9 + $0x2c0] sm:$0xff]
    %v2510 = vld [vmem:[#allocation9 + $0x2c8] sm:$0xff]
    %v2511 = vld [vmem:[#allocation9 + $0x2d0] sm:$0xff]
    %v2512 = vld [vmem:[#allocation9 + $0x2d8] sm:$0xff]
    %v2513 = vld [vmem:[#allocation9 + $0x2e0] sm:$0xff]
    %v2514 = vld [vmem:[#allocation9 + $0x2e8] sm:$0xff]
    %v2515 = vld [vmem:[#allocation9 + $0x2f0] sm:$0xff]
    %v2516 = vld [vmem:[#allocation9 + $0x2f8] sm:$0xff]
    %v2517 = vld [vmem:[#allocation9 + $0x300] sm:$0xff]
    %v2518 = vld [vmem:[#allocation9 + $0x308] sm:$0xff]
    %v2519 = vld [vmem:[#allocation9 + $0x310] sm:$0xff]
    %v2520 = vld [vmem:[#allocation9 + $0x318] sm:$0xff]
    %v2521 = vld [vmem:[#allocation9 + $0x320] sm:$0xff]
    %v2522 = vld [vmem:[#allocation9 + $0x328] sm:$0xff]
    %v2523 = vld [vmem:[#allocation9 + $0x330] sm:$0xff]
    %v2524 = vld [vmem:[#allocation9 + $0x338] sm:$0xff]
    %v2525 = vld [vmem:[#allocation9 + $0x340] sm:$0xff]
    %v2526 = vld [vmem:[#allocation9 + $0x348] sm:$0xff]
    %v2527 = vld [vmem:[#allocation9 + $0x350] sm:$0xff]
    %v2528 = vld [vmem:[#allocation9 + $0x358] sm:$0xff]
    %v2529 = vld [vmem:[#allocation9 + $0x360] sm:$0xff]
    %v2530 = vld [vmem:[#allocation9 + $0x368] sm:$0xff]
    %v2531 = vld [vmem:[#allocation9 + $0x370] sm:$0xff]
    %v2532 = vld [vmem:[#allocation9 + $0x378] sm:$0xff]
    %v2533 = vld [vmem:[#allocation9 + $0x380] sm:$0xff]
    %v2534 = vld [vmem:[#allocation9 + $0x388] sm:$0xff]
    %v2535 = vld [vmem:[#allocation9 + $0x390] sm:$0xff]
    %v2536 = vld [vmem:[#allocation9 + $0x398] sm:$0xff]
    %v2537 = vld [vmem:[#allocation9 + $0x3a0] sm:$0xff]
    %v2538 = vld [vmem:[#allocation9 + $0x3a8] sm:$0xff]
    %v2539 = vld [vmem:[#allocation9 + $0x3b0] sm:$0xff]
    %v2540 = vld [vmem:[#allocation9 + $0x3b8] sm:$0xff]
    %v2541 = vld [vmem:[#allocation9 + $0x3c0] sm:$0xff]
    %v2542 = vld [vmem:[#allocation9 + $0x3c8] sm:$0xff]
    %v2543 = vld [vmem:[#allocation9 + $0x3d0] sm:$0xff]
    %v2544 = vld [vmem:[#allocation9 + $0x3d8] sm:$0xff]
    %v2545 = vld [vmem:[#allocation9 + $0x3e0] sm:$0xff]
    %v2546 = vld [vmem:[#allocation9 + $0x3e8] sm:$0xff]
    %v2547 = vld [vmem:[#allocation9 + $0x3f0] sm:$0xff]
    %v2548 = vld [vmem:[#allocation9 + $0x3f8] sm:$0xff]
    %v2677 = vunpack.c.l.b16 %v2421
    %v2678 = vunpack.c.h.b16 %v2421
    %v2679 = vunpack.c.l.b16 %v2422
    %v2680 = vunpack.c.h.b16 %v2422
    %v2681 = vunpack.c.l.b16 %v2423
    %v2682 = vunpack.c.h.b16 %v2423
    %v2683 = vunpack.c.l.b16 %v2424
    %v2684 = vunpack.c.h.b16 %v2424
    %v2685 = vunpack.c.l.b16 %v2425
    %v2686 = vunpack.c.h.b16 %v2425
    %v2687 = vunpack.c.l.b16 %v2426
    %v2688 = vunpack.c.h.b16 %v2426
    %v2689 = vunpack.c.l.b16 %v2427
    %v2690 = vunpack.c.h.b16 %v2427
    %v2691 = vunpack.c.l.b16 %v2428
    %v2692 = vunpack.c.h.b16 %v2428
    %v2693 = vunpack.c.l.b16 %v2429
    %v2694 = vunpack.c.h.b16 %v2429
    %v2695 = vunpack.c.l.b16 %v2430
    %v2696 = vunpack.c.h.b16 %v2430
    %v2697 = vunpack.c.l.b16 %v2431
    %v2698 = vunpack.c.h.b16 %v2431
    %v2699 = vunpack.c.l.b16 %v2432
    %v2700 = vunpack.c.h.b16 %v2432
    %v2701 = vunpack.c.l.b16 %v2433
    %v2702 = vunpack.c.h.b16 %v2433
    %v2703 = vunpack.c.l.b16 %v2434
    %v2704 = vunpack.c.h.b16 %v2434
    %v2705 = vunpack.c.l.b16 %v2435
    %v2706 = vunpack.c.h.b16 %v2435
    %v2707 = vunpack.c.l.b16 %v2436
    %v2708 = vunpack.c.h.b16 %v2436
    %v2709 = vunpack.c.l.b16 %v2437
    %v2710 = vunpack.c.h.b16 %v2437
    %v2711 = vunpack.c.l.b16 %v2438
    %v2712 = vunpack.c.h.b16 %v2438
    %v2713 = vunpack.c.l.b16 %v2439
    %v2714 = vunpack.c.h.b16 %v2439
    %v2715 = vunpack.c.l.b16 %v2440
    %v2716 = vunpack.c.h.b16 %v2440
    %v2717 = vunpack.c.l.b16 %v2441
    %v2718 = vunpack.c.h.b16 %v2441
    %v2719 = vunpack.c.l.b16 %v2442
    %v2720 = vunpack.c.h.b16 %v2442
    %v2721 = vunpack.c.l.b16 %v2443
    %v2722 = vunpack.c.h.b16 %v2443
    %v2723 = vunpack.c.l.b16 %v2444
    %v2724 = vunpack.c.h.b16 %v2444
    %v2725 = vunpack.c.l.b16 %v2445
    %v2726 = vunpack.c.h.b16 %v2445
    %v2727 = vunpack.c.l.b16 %v2446
    %v2728 = vunpack.c.h.b16 %v2446
    %v2729 = vunpack.c.l.b16 %v2447
    %v2730 = vunpack.c.h.b16 %v2447
    %v2731 = vunpack.c.l.b16 %v2448
    %v2732 = vunpack.c.h.b16 %v2448
    %v2733 = vunpack.c.l.b16 %v2449
    %v2734 = vunpack.c.h.b16 %v2449
    %v2735 = vunpack.c.l.b16 %v2450
    %v2736 = vunpack.c.h.b16 %v2450
    %v2737 = vunpack.c.l.b16 %v2451
    %v2738 = vunpack.c.h.b16 %v2451
    %v2739 = vunpack.c.l.b16 %v2452
    %v2740 = vunpack.c.h.b16 %v2452
    %v2741 = vunpack.c.l.b16 %v2453
    %v2742 = vunpack.c.h.b16 %v2453
    %v2743 = vunpack.c.l.b16 %v2454
    %v2744 = vunpack.c.h.b16 %v2454
    %v2745 = vunpack.c.l.b16 %v2455
    %v2746 = vunpack.c.h.b16 %v2455
    %v2747 = vunpack.c.l.b16 %v2456
    %v2748 = vunpack.c.h.b16 %v2456
    %v2749 = vunpack.c.l.b16 %v2457
    %v2750 = vunpack.c.h.b16 %v2457
    %v2751 = vunpack.c.l.b16 %v2458
    %v2752 = vunpack.c.h.b16 %v2458
    %v2753 = vunpack.c.l.b16 %v2459
    %v2754 = vunpack.c.h.b16 %v2459
    %v2755 = vunpack.c.l.b16 %v2460
    %v2756 = vunpack.c.h.b16 %v2460
    %v2757 = vunpack.c.l.b16 %v2461
    %v2758 = vunpack.c.h.b16 %v2461
    %v2759 = vunpack.c.l.b16 %v2462
    %v2760 = vunpack.c.h.b16 %v2462
    %v2761 = vunpack.c.l.b16 %v2463
    %v2762 = vunpack.c.h.b16 %v2463
    %v2763 = vunpack.c.l.b16 %v2464
    %v2764 = vunpack.c.h.b16 %v2464
    %v2765 = vunpack.c.l.b16 %v2465
    %v2766 = vunpack.c.h.b16 %v2465
    %v2767 = vunpack.c.l.b16 %v2466
    %v2768 = vunpack.c.h.b16 %v2466
    %v2769 = vunpack.c.l.b16 %v2467
    %v2770 = vunpack.c.h.b16 %v2467
    %v2771 = vunpack.c.l.b16 %v2468
    %v2772 = vunpack.c.h.b16 %v2468
    %v2773 = vunpack.c.l.b16 %v2469
    %v2774 = vunpack.c.h.b16 %v2469
    %v2775 = vunpack.c.l.b16 %v2470
    %v2776 = vunpack.c.h.b16 %v2470
    %v2777 = vunpack.c.l.b16 %v2471
    %v2778 = vunpack.c.h.b16 %v2471
    %v2779 = vunpack.c.l.b16 %v2472
    %v2780 = vunpack.c.h.b16 %v2472
    %v2781 = vunpack.c.l.b16 %v2473
    %v2782 = vunpack.c.h.b16 %v2473
    %v2783 = vunpack.c.l.b16 %v2474
    %v2784 = vunpack.c.h.b16 %v2474
    %v2785 = vunpack.c.l.b16 %v2475
    %v2786 = vunpack.c.h.b16 %v2475
    %v2787 = vunpack.c.l.b16 %v2476
    %v2788 = vunpack.c.h.b16 %v2476
    %v2789 = vunpack.c.l.b16 %v2477
    %v2790 = vunpack.c.h.b16 %v2477
    %v2791 = vunpack.c.l.b16 %v2478
    %v2792 = vunpack.c.h.b16 %v2478
    %v2793 = vunpack.c.l.b16 %v2479
    %v2794 = vunpack.c.h.b16 %v2479
    %v2795 = vunpack.c.l.b16 %v2480
    %v2796 = vunpack.c.h.b16 %v2480
    %v2797 = vunpack.c.l.b16 %v2481
    %v2798 = vunpack.c.h.b16 %v2481
    %v2799 = vunpack.c.l.b16 %v2482
    %v2800 = vunpack.c.h.b16 %v2482
    %v2801 = vunpack.c.l.b16 %v2483
    %v2802 = vunpack.c.h.b16 %v2483
    %v2803 = vunpack.c.l.b16 %v2484
    %v2804 = vunpack.c.h.b16 %v2484
    %v2805 = vunpack.c.l.b16 %v2485
    %v2806 = vunpack.c.h.b16 %v2485
    %v2807 = vunpack.c.l.b16 %v2486
    %v2808 = vunpack.c.h.b16 %v2486
    %v2809 = vunpack.c.l.b16 %v2487
    %v2810 = vunpack.c.h.b16 %v2487
    %v2811 = vunpack.c.l.b16 %v2488
    %v2812 = vunpack.c.h.b16 %v2488
    %v2813 = vunpack.c.l.b16 %v2489
    %v2814 = vunpack.c.h.b16 %v2489
    %v2815 = vunpack.c.l.b16 %v2490
    %v2816 = vunpack.c.h.b16 %v2490
    %v2817 = vunpack.c.l.b16 %v2491
    %v2818 = vunpack.c.h.b16 %v2491
    %v2819 = vunpack.c.l.b16 %v2492
    %v2820 = vunpack.c.h.b16 %v2492
    %v2821 = vunpack.c.l.b16 %v2493
    %v2822 = vunpack.c.h.b16 %v2493
    %v2823 = vunpack.c.l.b16 %v2494
    %v2824 = vunpack.c.h.b16 %v2494
    %v2825 = vunpack.c.l.b16 %v2495
    %v2826 = vunpack.c.h.b16 %v2495
    %v2827 = vunpack.c.l.b16 %v2496
    %v2828 = vunpack.c.h.b16 %v2496
    %v2829 = vunpack.c.l.b16 %v2497
    %v2830 = vunpack.c.h.b16 %v2497
    %v2831 = vunpack.c.l.b16 %v2498
    %v2832 = vunpack.c.h.b16 %v2498
    %v2833 = vunpack.c.l.b16 %v2499
    %v2834 = vunpack.c.h.b16 %v2499
    %v2835 = vunpack.c.l.b16 %v2500
    %v2836 = vunpack.c.h.b16 %v2500
    %v2837 = vunpack.c.l.b16 %v2501
    %v2838 = vunpack.c.h.b16 %v2501
    %v2839 = vunpack.c.l.b16 %v2502
    %v2840 = vunpack.c.h.b16 %v2502
    %v2841 = vunpack.c.l.b16 %v2503
    %v2842 = vunpack.c.h.b16 %v2503
    %v2843 = vunpack.c.l.b16 %v2504
    %v2844 = vunpack.c.h.b16 %v2504
    %v2845 = vunpack.c.l.b16 %v2505
    %v2846 = vunpack.c.h.b16 %v2505
    %v2847 = vunpack.c.l.b16 %v2506
    %v2848 = vunpack.c.h.b16 %v2506
    %v2849 = vunpack.c.l.b16 %v2507
    %v2850 = vunpack.c.h.b16 %v2507
    %v2851 = vunpack.c.l.b16 %v2508
    %v2852 = vunpack.c.h.b16 %v2508
    %v2853 = vunpack.c.l.b16 %v2509
    %v2854 = vunpack.c.h.b16 %v2509
    %v2855 = vunpack.c.l.b16 %v2510
    %v2856 = vunpack.c.h.b16 %v2510
    %v2857 = vunpack.c.l.b16 %v2511
    %v2858 = vunpack.c.h.b16 %v2511
    %v2859 = vunpack.c.l.b16 %v2512
    %v2860 = vunpack.c.h.b16 %v2512
    %v2861 = vunpack.c.l.b16 %v2513
    %v2862 = vunpack.c.h.b16 %v2513
    %v2863 = vunpack.c.l.b16 %v2514
    %v2864 = vunpack.c.h.b16 %v2514
    %v2865 = vunpack.c.l.b16 %v2515
    %v2866 = vunpack.c.h.b16 %v2515
    %v2867 = vunpack.c.l.b16 %v2516
    %v2868 = vunpack.c.h.b16 %v2516
    %v2869 = vunpack.c.l.b16 %v2517
    %v2870 = vunpack.c.h.b16 %v2517
    %v2871 = vunpack.c.l.b16 %v2518
    %v2872 = vunpack.c.h.b16 %v2518
    %v2873 = vunpack.c.l.b16 %v2519
    %v2874 = vunpack.c.h.b16 %v2519
    %v2875 = vunpack.c.l.b16 %v2520
    %v2876 = vunpack.c.h.b16 %v2520
    %v2877 = vunpack.c.l.b16 %v2521
    %v2878 = vunpack.c.h.b16 %v2521
    %v2879 = vunpack.c.l.b16 %v2522
    %v2880 = vunpack.c.h.b16 %v2522
    %v2881 = vunpack.c.l.b16 %v2523
    %v2882 = vunpack.c.h.b16 %v2523
    %v2883 = vunpack.c.l.b16 %v2524
    %v2884 = vunpack.c.h.b16 %v2524
    %v2885 = vunpack.c.l.b16 %v2525
    %v2886 = vunpack.c.h.b16 %v2525
    %v2887 = vunpack.c.l.b16 %v2526
    %v2888 = vunpack.c.h.b16 %v2526
    %v2889 = vunpack.c.l.b16 %v2527
    %v2890 = vunpack.c.h.b16 %v2527
    %v2891 = vunpack.c.l.b16 %v2528
    %v2892 = vunpack.c.h.b16 %v2528
    %v2893 = vunpack.c.l.b16 %v2529
    %v2894 = vunpack.c.h.b16 %v2529
    %v2895 = vunpack.c.l.b16 %v2530
    %v2896 = vunpack.c.h.b16 %v2530
    %v2897 = vunpack.c.l.b16 %v2531
    %v2898 = vunpack.c.h.b16 %v2531
    %v2899 = vunpack.c.l.b16 %v2532
    %v2900 = vunpack.c.h.b16 %v2532
    %v2901 = vunpack.c.l.b16 %v2533
    %v2902 = vunpack.c.h.b16 %v2533
    %v2903 = vunpack.c.l.b16 %v2534
    %v2904 = vunpack.c.h.b16 %v2534
    %v2905 = vunpack.c.l.b16 %v2535
    %v2906 = vunpack.c.h.b16 %v2535
    %v2907 = vunpack.c.l.b16 %v2536
    %v2908 = vunpack.c.h.b16 %v2536
    %v2909 = vunpack.c.l.b16 %v2537
    %v2910 = vunpack.c.h.b16 %v2537
    %v2911 = vunpack.c.l.b16 %v2538
    %v2912 = vunpack.c.h.b16 %v2538
    %v2913 = vunpack.c.l.b16 %v2539
    %v2914 = vunpack.c.h.b16 %v2539
    %v2915 = vunpack.c.l.b16 %v2540
    %v2916 = vunpack.c.h.b16 %v2540
    %v2917 = vunpack.c.l.b16 %v2541
    %v2918 = vunpack.c.h.b16 %v2541
    %v2919 = vunpack.c.l.b16 %v2542
    %v2920 = vunpack.c.h.b16 %v2542
    %v2921 = vunpack.c.l.b16 %v2543
    %v2922 = vunpack.c.h.b16 %v2543
    %v2923 = vunpack.c.l.b16 %v2544
    %v2924 = vunpack.c.h.b16 %v2544
    %v2925 = vunpack.c.l.b16 %v2545
    %v2926 = vunpack.c.h.b16 %v2545
    %v2927 = vunpack.c.l.b16 %v2546
    %v2928 = vunpack.c.h.b16 %v2546
    %v2929 = vunpack.c.l.b16 %v2547
    %v2930 = vunpack.c.h.b16 %v2547
    %v2931 = vunpack.c.l.b16 %v2548
    %v2932 = vunpack.c.h.b16 %v2548
    %v2933 = vpack.c.b16 %v2685, %v2677
    %v2934 = vpack.c.b16 %v2686, %v2678
    %v2935 = vpack.c.b16 %v2687, %v2679
    %v2936 = vpack.c.b16 %v2688, %v2680
    %v2937 = vpack.c.b16 %v2689, %v2681
    %v2938 = vpack.c.b16 %v2690, %v2682
    %v2939 = vpack.c.b16 %v2691, %v2683
    %v2940 = vpack.c.b16 %v2692, %v2684
    %v2941 = vpack.c.b16 %v2701, %v2693
    %v2942 = vpack.c.b16 %v2702, %v2694
    %v2943 = vpack.c.b16 %v2703, %v2695
    %v2944 = vpack.c.b16 %v2704, %v2696
    %v2945 = vpack.c.b16 %v2705, %v2697
    %v2946 = vpack.c.b16 %v2706, %v2698
    %v2947 = vpack.c.b16 %v2707, %v2699
    %v2948 = vpack.c.b16 %v2708, %v2700
    %v2949 = vpack.c.b16 %v2717, %v2709
    %v2950 = vpack.c.b16 %v2718, %v2710
    %v2951 = vpack.c.b16 %v2719, %v2711
    %v2952 = vpack.c.b16 %v2720, %v2712
    %v2953 = vpack.c.b16 %v2721, %v2713
    %v2954 = vpack.c.b16 %v2722, %v2714
    %v2955 = vpack.c.b16 %v2723, %v2715
    %v2956 = vpack.c.b16 %v2724, %v2716
    %v2957 = vpack.c.b16 %v2733, %v2725
    %v2958 = vpack.c.b16 %v2734, %v2726
    %v2959 = vpack.c.b16 %v2735, %v2727
    %v2960 = vpack.c.b16 %v2736, %v2728
    %v2961 = vpack.c.b16 %v2737, %v2729
    %v2962 = vpack.c.b16 %v2738, %v2730
    %v2963 = vpack.c.b16 %v2739, %v2731
    %v2964 = vpack.c.b16 %v2740, %v2732
    %v2965 = vpack.c.b16 %v2749, %v2741
    %v2966 = vpack.c.b16 %v2750, %v2742
    %v2967 = vpack.c.b16 %v2751, %v2743
    %v2968 = vpack.c.b16 %v2752, %v2744
    %v2969 = vpack.c.b16 %v2753, %v2745
    %v2970 = vpack.c.b16 %v2754, %v2746
    %v2971 = vpack.c.b16 %v2755, %v2747
    %v2972 = vpack.c.b16 %v2756, %v2748
    %v2973 = vpack.c.b16 %v2765, %v2757
    %v2974 = vpack.c.b16 %v2766, %v2758
    %v2975 = vpack.c.b16 %v2767, %v2759
    %v2976 = vpack.c.b16 %v2768, %v2760
    %v2977 = vpack.c.b16 %v2769, %v2761
    %v2978 = vpack.c.b16 %v2770, %v2762
    %v2979 = vpack.c.b16 %v2771, %v2763
    %v2980 = vpack.c.b16 %v2772, %v2764
    %v2981 = vpack.c.b16 %v2781, %v2773
    %v2982 = vpack.c.b16 %v2782, %v2774
    %v2983 = vpack.c.b16 %v2783, %v2775
    %v2984 = vpack.c.b16 %v2784, %v2776
    %v2985 = vpack.c.b16 %v2785, %v2777
    %v2986 = vpack.c.b16 %v2786, %v2778
    %v2987 = vpack.c.b16 %v2787, %v2779
    %v2988 = vpack.c.b16 %v2788, %v2780
    %v2989 = vpack.c.b16 %v2797, %v2789
    %v2990 = vpack.c.b16 %v2798, %v2790
    %v2991 = vpack.c.b16 %v2799, %v2791
    %v2992 = vpack.c.b16 %v2800, %v2792
    %v2993 = vpack.c.b16 %v2801, %v2793
    %v2994 = vpack.c.b16 %v2802, %v2794
    %v2995 = vpack.c.b16 %v2803, %v2795
    %v2996 = vpack.c.b16 %v2804, %v2796
    %v2997 = vpack.c.b16 %v2813, %v2805
    %v2998 = vpack.c.b16 %v2814, %v2806
    %v2999 = vpack.c.b16 %v2815, %v2807
    %v3000 = vpack.c.b16 %v2816, %v2808
    %v3001 = vpack.c.b16 %v2817, %v2809
    %v3002 = vpack.c.b16 %v2818, %v2810
    %v3003 = vpack.c.b16 %v2819, %v2811
    %v3004 = vpack.c.b16 %v2820, %v2812
    %v3005 = vpack.c.b16 %v2829, %v2821
    %v3006 = vpack.c.b16 %v2830, %v2822
    %v3007 = vpack.c.b16 %v2831, %v2823
    %v3008 = vpack.c.b16 %v2832, %v2824
    %v3009 = vpack.c.b16 %v2833, %v2825
    %v3010 = vpack.c.b16 %v2834, %v2826
    %v3011 = vpack.c.b16 %v2835, %v2827
    %v3012 = vpack.c.b16 %v2836, %v2828
    %v3013 = vpack.c.b16 %v2845, %v2837
    %v3014 = vpack.c.b16 %v2846, %v2838
    %v3015 = vpack.c.b16 %v2847, %v2839
    %v3016 = vpack.c.b16 %v2848, %v2840
    %v3017 = vpack.c.b16 %v2849, %v2841
    %v3018 = vpack.c.b16 %v2850, %v2842
    %v3019 = vpack.c.b16 %v2851, %v2843
    %v3020 = vpack.c.b16 %v2852, %v2844
    %v3021 = vpack.c.b16 %v2861, %v2853
    %v3022 = vpack.c.b16 %v2862, %v2854
    %v3023 = vpack.c.b16 %v2863, %v2855
    %v3024 = vpack.c.b16 %v2864, %v2856
    %v3025 = vpack.c.b16 %v2865, %v2857
    %v3026 = vpack.c.b16 %v2866, %v2858
    %v3027 = vpack.c.b16 %v2867, %v2859
    %v3028 = vpack.c.b16 %v2868, %v2860
    %v3029 = vpack.c.b16 %v2877, %v2869
    %v3030 = vpack.c.b16 %v2878, %v2870
    %v3031 = vpack.c.b16 %v2879, %v2871
    %v3032 = vpack.c.b16 %v2880, %v2872
    %v3033 = vpack.c.b16 %v2881, %v2873
    %v3034 = vpack.c.b16 %v2882, %v2874
    %v3035 = vpack.c.b16 %v2883, %v2875
    %v3036 = vpack.c.b16 %v2884, %v2876
    %v3037 = vpack.c.b16 %v2893, %v2885
    %v3038 = vpack.c.b16 %v2894, %v2886
    %v3039 = vpack.c.b16 %v2895, %v2887
    %v3040 = vpack.c.b16 %v2896, %v2888
    %v3041 = vpack.c.b16 %v2897, %v2889
    %v3042 = vpack.c.b16 %v2898, %v2890
    %v3043 = vpack.c.b16 %v2899, %v2891
    %v3044 = vpack.c.b16 %v2900, %v2892
    %v3045 = vpack.c.b16 %v2909, %v2901
    %v3046 = vpack.c.b16 %v2910, %v2902
    %v3047 = vpack.c.b16 %v2911, %v2903
    %v3048 = vpack.c.b16 %v2912, %v2904
    %v3049 = vpack.c.b16 %v2913, %v2905
    %v3050 = vpack.c.b16 %v2914, %v2906
    %v3051 = vpack.c.b16 %v2915, %v2907
    %v3052 = vpack.c.b16 %v2916, %v2908
    %v3053 = vpack.c.b16 %v2925, %v2917
    %v3054 = vpack.c.b16 %v2926, %v2918
    %v3055 = vpack.c.b16 %v2927, %v2919
    %v3056 = vpack.c.b16 %v2928, %v2920
    %v3057 = vpack.c.b16 %v2929, %v2921
    %v3058 = vpack.c.b16 %v2930, %v2922
    %v3059 = vpack.c.b16 %v2931, %v2923
    %v3060 = vpack.c.b16 %v2932, %v2924
    %3189 = vmatprep.subr.bf16.mxu0 %v2990
    %3190 = vmatpush1.bf16.msra.mxu0 %v2989
    %3191 = vmatprep.subr.bf16.mxu0 %v2982
    %3192 = vmatpush1.bf16.msra.mxu0 %v2981
    %3193 = vmatprep.subr.bf16.mxu0 %v2974
    %3194 = vmatpush1.bf16.msra.mxu0 %v2973
    %3195 = vmatprep.subr.bf16.mxu0 %v2966
    %3196 = vmatpush1.bf16.msra.mxu0 %v2965
    %3197 = vmatprep.subr.bf16.mxu0 %v2958
    %3198 = vmatpush1.bf16.msra.mxu0 %v2957
    %3199 = vmatprep.subr.bf16.mxu0 %v2950
    %3200 = vmatpush1.bf16.msra.mxu0 %v2949
    %3201 = vmatprep.subr.bf16.mxu0 %v2942
    %3202 = vmatpush1.bf16.msra.mxu0 %v2941
    %3203 = vmatprep.subr.bf16.mxu0 %v2934
    %3204 = vmatpush1.bf16.msra.mxu0 %v2933
    %3205 = vmatprep.subr.bf16.mxu0 %v3054
    %3206 = vmatpush2.bf16.msra.mxu0 %v3053
    %3207 = vmatprep.subr.bf16.mxu0 %v3046
    %3208 = vmatpush2.bf16.msra.mxu0 %v3045
    %3209 = vmatprep.subr.bf16.mxu0 %v3038
    %3210 = vmatpush2.bf16.msra.mxu0 %v3037
    %3211 = vmatprep.subr.bf16.mxu0 %v3030
    %3212 = vmatpush2.bf16.msra.mxu0 %v3029
    %3213 = vmatprep.subr.bf16.mxu0 %v3022
    %3214 = vmatpush2.bf16.msra.mxu0 %v3021
    %3215 = vmatprep.subr.bf16.mxu0 %v3014
    %3216 = vmatpush2.bf16.msra.mxu0 %v3013
    %3217 = vmatprep.subr.bf16.mxu0 %v3006
    %3218 = vmatpush2.bf16.msra.mxu0 %v3005
    %3219 = vmatprep.subr.bf16.mxu0 %v2998
    %3220 = vmatpush2.bf16.msra.mxu0 %v2997
    %3221 = vmatprep.mubr.bf16.mxu0 0
    %3222 = vmatmul.mubr.bf16.gmra.mxu0 0
    %v3223 = vpop.f32.mrf.mxu0
    %v3224 = vadd.f32 0.0, %v3223
    %v3225 = vpop.f32.mrf.mxu0
    %v3226 = vadd.f32 0.0, %v3225
    %v3227 = vpop.f32.mrf.mxu0
    %v3228 = vpop.f32.mrf.mxu0
    %3229 = vdwg.mxu0
    %3230 = vmatprep.subr.bf16.mxu0 %v2992
    %3231 = vmatpush1.bf16.msra.mxu0 %v2991
    %3232 = vmatprep.subr.bf16.mxu0 %v2984
    %3233 = vmatpush1.bf16.msra.mxu0 %v2983
    %3234 = vmatprep.subr.bf16.mxu0 %v2976
    %3235 = vmatpush1.bf16.msra.mxu0 %v2975
    %3236 = vmatprep.subr.bf16.mxu0 %v2968
    %3237 = vmatpush1.bf16.msra.mxu0 %v2967
    %3238 = vmatprep.subr.bf16.mxu0 %v2960
    %3239 = vmatpush1.bf16.msra.mxu0 %v2959
    %3240 = vmatprep.subr.bf16.mxu0 %v2952
    %3241 = vmatpush1.bf16.msra.mxu0 %v2951
    %3242 = vmatprep.subr.bf16.mxu0 %v2944
    %3243 = vmatpush1.bf16.msra.mxu0 %v2943
    %3244 = vmatprep.subr.bf16.mxu0 %v2936
    %3245 = vmatpush1.bf16.msra.mxu0 %v2935
    %3246 = vmatprep.subr.bf16.mxu0 %v3056
    %3247 = vmatpush2.bf16.msra.mxu0 %v3055
    %3248 = vmatprep.subr.bf16.mxu0 %v3048
    %3249 = vmatpush2.bf16.msra.mxu0 %v3047
    %3250 = vmatprep.subr.bf16.mxu0 %v3040
    %3251 = vmatpush2.bf16.msra.mxu0 %v3039
    %3252 = vmatprep.subr.bf16.mxu0 %v3032
    %3253 = vmatpush2.bf16.msra.mxu0 %v3031
    %3254 = vmatprep.subr.bf16.mxu0 %v3024
    %3255 = vmatpush2.bf16.msra.mxu0 %v3023
    %3256 = vmatprep.subr.bf16.mxu0 %v3016
    %3257 = vmatpush2.bf16.msra.mxu0 %v3015
    %3258 = vmatprep.subr.bf16.mxu0 %v3008
    %3259 = vmatpush2.bf16.msra.mxu0 %v3007
    %3260 = vmatprep.subr.bf16.mxu0 %v3000
    %3261 = vmatpush2.bf16.msra.mxu0 %v2999
    %3262 = vmatprep.mubr.bf16.mxu0 0
    %3263 = vmatmul.mubr.bf16.gmra.mxu0 0
    %v3264 = vpop.f32.mrf.mxu0
    %v3265 = vadd.f32 0.0, %v3264
    %v3266 = vpop.f32.mrf.mxu0
    %v3267 = vadd.f32 0.0, %v3266
    %v3268 = vpop.f32.mrf.mxu0
    %v3269 = vpop.f32.mrf.mxu0
    %3270 = vdwg.mxu0
    %3271 = vmatprep.subr.bf16.mxu0 %v2994
    %3272 = vmatpush1.bf16.msra.mxu0 %v2993
    %3273 = vmatprep.subr.bf16.mxu0 %v2986
    %3274 = vmatpush1.bf16.msra.mxu0 %v2985
    %3275 = vmatprep.subr.bf16.mxu0 %v2978
    %3276 = vmatpush1.bf16.msra.mxu0 %v2977
    %3277 = vmatprep.subr.bf16.mxu0 %v2970
    %3278 = vmatpush1.bf16.msra.mxu0 %v2969
    %3279 = vmatprep.subr.bf16.mxu0 %v2962
    %3280 = vmatpush1.bf16.msra.mxu0 %v2961
    %3281 = vmatprep.subr.bf16.mxu0 %v2954
    %3282 = vmatpush1.bf16.msra.mxu0 %v2953
    %3283 = vmatprep.subr.bf16.mxu0 %v2946
    %3284 = vmatpush1.bf16.msra.mxu0 %v2945
    %3285 = vmatprep.subr.bf16.mxu0 %v2938
    %3286 = vmatpush1.bf16.msra.mxu0 %v2937
    %3287 = vmatprep.subr.bf16.mxu0 %v3058
    %3288 = vmatpush2.bf16.msra.mxu0 %v3057
    %3289 = vmatprep.subr.bf16.mxu0 %v3050
    %3290 = vmatpush2.bf16.msra.mxu0 %v3049
    %3291 = vmatprep.subr.bf16.mxu0 %v3042
    %3292 = vmatpush2.bf16.msra.mxu0 %v3041
    %3293 = vmatprep.subr.bf16.mxu0 %v3034
    %3294 = vmatpush2.bf16.msra.mxu0 %v3033
    %3295 = vmatprep.subr.bf16.mxu0 %v3026
    %3296 = vmatpush2.bf16.msra.mxu0 %v3025
    %3297 = vmatprep.subr.bf16.mxu0 %v3018
    %3298 = vmatpush2.bf16.msra.mxu0 %v3017
    %3299 = vmatprep.subr.bf16.mxu0 %v3010
    %3300 = vmatpush2.bf16.msra.mxu0 %v3009
    %3301 = vmatprep.subr.bf16.mxu0 %v3002
    %3302 = vmatpush2.bf16.msra.mxu0 %v3001
    %3303 = vmatprep.mubr.bf16.mxu0 0
    %3304 = vmatmul.mubr.bf16.gmra.mxu0 0
    %v3305 = vpop.f32.mrf.mxu0
    %v3306 = vadd.f32 0.0, %v3305
    %v3307 = vpop.f32.mrf.mxu0
    %v3308 = vadd.f32 0.0, %v3307
    %v3309 = vpop.f32.mrf.mxu0
    %v3310 = vpop.f32.mrf.mxu0
    %3311 = vdwg.mxu0
    %3312 = vmatprep.subr.bf16.mxu0 %v2996
    %3313 = vmatpush1.bf16.msra.mxu0 %v2995
    %3314 = vmatprep.subr.bf16.mxu0 %v2988
    %3315 = vmatpush1.bf16.msra.mxu0 %v2987
    %3316 = vmatprep.subr.bf16.mxu0 %v2980
    %3317 = vmatpush1.bf16.msra.mxu0 %v2979
    %3318 = vmatprep.subr.bf16.mxu0 %v2972
    %3319 = vmatpush1.bf16.msra.mxu0 %v2971
    %3320 = vmatprep.subr.bf16.mxu0 %v2964
    %3321 = vmatpush1.bf16.msra.mxu0 %v2963
    %3322 = vmatprep.subr.bf16.mxu0 %v2956
    %3323 = vmatpush1.bf16.msra.mxu0 %v2955
    %3324 = vmatprep.subr.bf16.mxu0 %v2948
    %3325 = vmatpush1.bf16.msra.mxu0 %v2947
    %3326 = vmatprep.subr.bf16.mxu0 %v2940
    %3327 = vmatpush1.bf16.msra.mxu0 %v2939
    %3328 = vmatprep.subr.bf16.mxu0 %v3060
    %3329 = vmatpush2.bf16.msra.mxu0 %v3059
    %3330 = vmatprep.subr.bf16.mxu0 %v3052
    %3331 = vmatpush2.bf16.msra.mxu0 %v3051
    %3332 = vmatprep.subr.bf16.mxu0 %v3044
    %3333 = vmatpush2.bf16.msra.mxu0 %v3043
    %3334 = vmatprep.subr.bf16.mxu0 %v3036
    %3335 = vmatpush2.bf16.msra.mxu0 %v3035
    %3336 = vmatprep.subr.bf16.mxu0 %v3028
    %3337 = vmatpush2.bf16.msra.mxu0 %v3027
    %3338 = vmatprep.subr.bf16.mxu0 %v3020
    %3339 = vmatpush2.bf16.msra.mxu0 %v3019
    %3340 = vmatprep.subr.bf16.mxu0 %v3012
    %3341 = vmatpush2.bf16.msra.mxu0 %v3011
    %3342 = vmatprep.subr.bf16.mxu0 %v3004
    %3343 = vmatpush2.bf16.msra.mxu0 %v3003
    %3344 = vmatprep.mubr.bf16.mxu0 0
    %3345 = vmatmul.mubr.bf16.gmra.mxu0 0
    %v3346 = vpop.f32.mrf.mxu0
    %v3347 = vadd.f32 0.0, %v3346
    %v3348 = vpop.f32.mrf.mxu0
    %v3349 = vadd.f32 0.0, %v3348
    %v3350 = vpop.f32.mrf.mxu0
    %v3351 = vpop.f32.mrf.mxu0
    %3352 = vdwg.mxu0
    %v3353 = vadd.f32 %v2413, %v3224
    %v3354 = vadd.f32 %v2414, %v3226
    %v3355 = vadd.f32 %v2415, %v3265
    %v3356 = vadd.f32 %v2416, %v3267
    %v3357 = vadd.f32 %v2417, %v3306
    %v3358 = vadd.f32 %v2418, %v3308
    %v3359 = vadd.f32 %v2419, %v3347
    %v3360 = vadd.f32 %v2420, %v3349
    %v3361 = vxor.u32 %v3353, 2147483648
    %v3362 = vxor.u32 %v3354, 2147483648
    %v3363 = vxor.u32 %v3355, 2147483648
    %v3364 = vxor.u32 %v3356, 2147483648
    %v3365 = vxor.u32 %v3357, 2147483648
    %v3366 = vxor.u32 %v3358, 2147483648
    %v3367 = vmul.f32 %v3361, 1.442695
    %v3368 = vpow.pop %v3367
    %v3369 = vmul.f32 %v3362, 1.442695
    %v3370 = vpow.pop %v3369
    %v3371 = vmul.f32 %v3363, 1.442695
    %v3372 = vpow.pop %v3371
    %v3373 = vmul.f32 %v3364, 1.442695
    %v3374 = vpow.pop %v3373
    %v3375 = vmul.f32 %v3365, 1.442695
    %v3376 = vpow.pop %v3375
    %v3377 = vmul.f32 %v3366, 1.442695
    %v3378 = vpow.pop %v3377
    %v3379 = vadd.f32 %v3368, 1.0
    %v3380 = vadd.f32 %v3370, 1.0
    %v3381 = vadd.f32 %v3372, 1.0
    %v3382 = vadd.f32 %v3374, 1.0
    %v3383 = vadd.f32 %v3376, 1.0
    %v3384 = vadd.f32 %v3378, 1.0
    %v3385 = vrcp.pop %v3379
    %v3386 = vmul.f32 1.0, %v3385
    %v3387 = vrcp.pop %v3380
    %v3388 = vmul.f32 1.0, %v3387
    %v3389 = vrcp.pop %v3381
    %v3390 = vmul.f32 1.0, %v3389
    %v3391 = vrcp.pop %v3382
    %v3392 = vmul.f32 1.0, %v3391
    %v3393 = vrcp.pop %v3383
    %v3394 = vmul.f32 1.0, %v3393
    %v3395 = vrcp.pop %v3384
    %v3396 = vmul.f32 1.0, %v3395
    %v3397 = vtanh.pop %v3359
    %v3398 = vtanh.pop %v3360
    %v3399 = vmul.f32 %v3390, 0.0
    %v3400 = vmul.f32 %v3392, 0.0
    %v3401 = vmul.f32 %v3386, %v3397
    %v3402 = vmul.f32 %v3388, %v3398
    %v3403 = vadd.f32 %v3399, %v3401
    %v3404 = vadd.f32 %v3400, %v3402
    %v3405 = vtanh.pop %v3403
    %v3406 = vtanh.pop %v3404
    %v3407 = vmul.f32 %v3394, %v3405
    %v3408 = vmul.f32 %v3396, %v3406
    %3409 = vst [vmem:[#allocation3] sm:$0xff] %v3407
    %3410 = vst [vmem:[#allocation3 + $0x8] sm:$0xff] %v3408
    %v3411 = vld [vmem:[#allocation2 + $0x40] sm:$0xff]
    %v3412 = vld [vmem:[#allocation2 + $0x48] sm:$0xff]
    %v3413 = vld [vmem:[#allocation2 + $0x50] sm:$0xff]
    %v3414 = vld [vmem:[#allocation2 + $0x58] sm:$0xff]
    %v3415 = vld [vmem:[#allocation2 + $0x60] sm:$0xff]
    %v3416 = vld [vmem:[#allocation2 + $0x68] sm:$0xff]
    %v3417 = vld [vmem:[#allocation2 + $0x70] sm:$0xff]
    %v3418 = vld [vmem:[#allocation2 + $0x78] sm:$0xff]
    %v3419 = vpack.c.bf16 %v3407, %v3407
    %v3420 = vpack.c.bf16 %v3408, %v3408
    %v3421 = vld [vmem:[#allocation9] sm:$0xff]
    %v3422 = vld [vmem:[#allocation9 + $0x8] sm:$0xff]
    %v3423 = vld [vmem:[#allocation9 + $0x10] sm:$0xff]
    %v3424 = vld [vmem:[#allocation9 + $0x18] sm:$0xff]
    %v3425 = vld [vmem:[#allocation9 + $0x20] sm:$0xff]
    %v3426 = vld [vmem:[#allocation9 + $0x28] sm:$0xff]
    %v3427 = vld [vmem:[#allocation9 + $0x30] sm:$0xff]
    %v3428 = vld [vmem:[#allocation9 + $0x38] sm:$0xff]
    %v3429 = vld [vmem:[#allocation9 + $0x40] sm:$0xff]
    %v3430 = vld [vmem:[#allocation9 + $0x48] sm:$0xff]
    %v3431 = vld [vmem:[#allocation9 + $0x50] sm:$0xff]
    %v3432 = vld [vmem:[#allocation9 + $0x58] sm:$0xff]
    %v3433 = vld [vmem:[#allocation9 + $0x60] sm:$0xff]
    %v3434 = vld [vmem:[#allocation9 + $0x68] sm:$0xff]
    %v3435 = vld [vmem:[#allocation9 + $0x70] sm:$0xff]
    %v3436 = vld [vmem:[#allocation9 + $0x78] sm:$0xff]
    %v3437 = vld [vmem:[#allocation9 + $0x80] sm:$0xff]
    %v3438 = vld [vmem:[#allocation9 + $0x88] sm:$0xff]
    %v3439 = vld [vmem:[#allocation9 + $0x90] sm:$0xff]
    %v3440 = vld [vmem:[#allocation9 + $0x98] sm:$0xff]
    %v3441 = vld [vmem:[#allocation9 + $0xa0] sm:$0xff]
    %v3442 = vld [vmem:[#allocation9 + $0xa8] sm:$0xff]
    %v3443 = vld [vmem:[#allocation9 + $0xb0] sm:$0xff]
    %v3444 = vld [vmem:[#allocation9 + $0xb8] sm:$0xff]
    %v3445 = vld [vmem:[#allocation9 + $0xc0] sm:$0xff]
    %v3446 = vld [vmem:[#allocation9 + $0xc8] sm:$0xff]
    %v3447 = vld [vmem:[#allocation9 + $0xd0] sm:$0xff]
    %v3448 = vld [vmem:[#allocation9 + $0xd8] sm:$0xff]
    %v3449 = vld [vmem:[#allocation9 + $0xe0] sm:$0xff]
    %v3450 = vld [vmem:[#allocation9 + $0xe8] sm:$0xff]
    %v3451 = vld [vmem:[#allocation9 + $0xf0] sm:$0xff]
    %v3452 = vld [vmem:[#allocation9 + $0xf8] sm:$0xff]
    %v3453 = vld [vmem:[#allocation9 + $0x100] sm:$0xff]
    %v3454 = vld [vmem:[#allocation9 + $0x108] sm:$0xff]
    %v3455 = vld [vmem:[#allocation9 + $0x110] sm:$0xff]
    %v3456 = vld [vmem:[#allocation9 + $0x118] sm:$0xff]
    %v3457 = vld [vmem:[#allocation9 + $0x120] sm:$0xff]
    %v3458 = vld [vmem:[#allocation9 + $0x128] sm:$0xff]
    %v3459 = vld [vmem:[#allocation9 + $0x130] sm:$0xff]
    %v3460 = vld [vmem:[#allocation9 + $0x138] sm:$0xff]
    %v3461 = vld [vmem:[#allocation9 + $0x140] sm:$0xff]
    %v3462 = vld [vmem:[#allocation9 + $0x148] sm:$0xff]
    %v3463 = vld [vmem:[#allocation9 + $0x150] sm:$0xff]
    %v3464 = vld [vmem:[#allocation9 + $0x158] sm:$0xff]
    %v3465 = vld [vmem:[#allocation9 + $0x160] sm:$0xff]
    %v3466 = vld [vmem:[#allocation9 + $0x168] sm:$0xff]
    %v3467 = vld [vmem:[#allocation9 + $0x170] sm:$0xff]
    %v3468 = vld [vmem:[#allocation9 + $0x178] sm:$0xff]
    %v3469 = vld [vmem:[#allocation9 + $0x180] sm:$0xff]
    %v3470 = vld [vmem:[#allocation9 + $0x188] sm:$0xff]
    %v3471 = vld [vmem:[#allocation9 + $0x190] sm:$0xff]
    %v3472 = vld [vmem:[#allocation9 + $0x198] sm:$0xff]
    %v3473 = vld [vmem:[#allocation9 + $0x1a0] sm:$0xff]
    %v3474 = vld [vmem:[#allocation9 + $0x1a8] sm:$0xff]
    %v3475 = vld [vmem:[#allocation9 + $0x1b0] sm:$0xff]
    %v3476 = vld [vmem:[#allocation9 + $0x1b8] sm:$0xff]
    %v3477 = vld [vmem:[#allocation9 + $0x1c0] sm:$0xff]
    %v3478 = vld [vmem:[#allocation9 + $0x1c8] sm:$0xff]
    %v3479 = vld [vmem:[#allocation9 + $0x1d0] sm:$0xff]
    %v3480 = vld [vmem:[#allocation9 + $0x1d8] sm:$0xff]
    %v3481 = vld [vmem:[#allocation9 + $0x1e0] sm:$0xff]
    %v3482 = vld [vmem:[#allocation9 + $0x1e8] sm:$0xff]
    %v3483 = vld [vmem:[#allocation9 + $0x1f0] sm:$0xff]
    %v3484 = vld [vmem:[#allocation9 + $0x1f8] sm:$0xff]
    %v3485 = vld [vmem:[#allocation9 + $0x200] sm:$0xff]
    %v3486 = vld [vmem:[#allocation9 + $0x208] sm:$0xff]
    %v3487 = vld [vmem:[#allocation9 + $0x210] sm:$0xff]
    %v3488 = vld [vmem:[#allocation9 + $0x218] sm:$0xff]
    %v3489 = vld [vmem:[#allocation9 + $0x220] sm:$0xff]
    %v3490 = vld [vmem:[#allocation9 + $0x228] sm:$0xff]
    %v3491 = vld [vmem:[#allocation9 + $0x230] sm:$0xff]
    %v3492 = vld [vmem:[#allocation9 + $0x238] sm:$0xff]
    %v3493 = vld [vmem:[#allocation9 + $0x240] sm:$0xff]
    %v3494 = vld [vmem:[#allocation9 + $0x248] sm:$0xff]
    %v3495 = vld [vmem:[#allocation9 + $0x250] sm:$0xff]
    %v3496 = vld [vmem:[#allocation9 + $0x258] sm:$0xff]
    %v3497 = vld [vmem:[#allocation9 + $0x260] sm:$0xff]
    %v3498 = vld [vmem:[#allocation9 + $0x268] sm:$0xff]
    %v3499 = vld [vmem:[#allocation9 + $0x270] sm:$0xff]
    %v3500 = vld [vmem:[#allocation9 + $0x278] sm:$0xff]
    %v3501 = vld [vmem:[#allocation9 + $0x280] sm:$0xff]
    %v3502 = vld [vmem:[#allocation9 + $0x288] sm:$0xff]
    %v3503 = vld [vmem:[#allocation9 + $0x290] sm:$0xff]
    %v3504 = vld [vmem:[#allocation9 + $0x298] sm:$0xff]
    %v3505 = vld [vmem:[#allocation9 + $0x2a0] sm:$0xff]
    %v3506 = vld [vmem:[#allocation9 + $0x2a8] sm:$0xff]
    %v3507 = vld [vmem:[#allocation9 + $0x2b0] sm:$0xff]
    %v3508 = vld [vmem:[#allocation9 + $0x2b8] sm:$0xff]
    %v3509 = vld [vmem:[#allocation9 + $0x2c0] sm:$0xff]
    %v3510 = vld [vmem:[#allocation9 + $0x2c8] sm:$0xff]
    %v3511 = vld [vmem:[#allocation9 + $0x2d0] sm:$0xff]
    %v3512 = vld [vmem:[#allocation9 + $0x2d8] sm:$0xff]
    %v3513 = vld [vmem:[#allocation9 + $0x2e0] sm:$0xff]
    %v3514 = vld [vmem:[#allocation9 + $0x2e8] sm:$0xff]
    %v3515 = vld [vmem:[#allocation9 + $0x2f0] sm:$0xff]
    %v3516 = vld [vmem:[#allocation9 + $0x2f8] sm:$0xff]
    %v3517 = vld [vmem:[#allocation9 + $0x300] sm:$0xff]
    %v3518 = vld [vmem:[#allocation9 + $0x308] sm:$0xff]
    %v3519 = vld [vmem:[#allocation9 + $0x310] sm:$0xff]
    %v3520 = vld [vmem:[#allocation9 + $0x318] sm:$0xff]
    %v3521 = vld [vmem:[#allocation9 + $0x320] sm:$0xff]
    %v3522 = vld [vmem:[#allocation9 + $0x328] sm:$0xff]
    %v3523 = vld [vmem:[#allocation9 + $0x330] sm:$0xff]
    %v3524 = vld [vmem:[#allocation9 + $0x338] sm:$0xff]
    %v3525 = vld [vmem:[#allocation9 + $0x340] sm:$0xff]
    %v3526 = vld [vmem:[#allocation9 + $0x348] sm:$0xff]
    %v3527 = vld [vmem:[#allocation9 + $0x350] sm:$0xff]
    %v3528 = vld [vmem:[#allocation9 + $0x358] sm:$0xff]
    %v3529 = vld [vmem:[#allocation9 + $0x360] sm:$0xff]
    %v3530 = vld [vmem:[#allocation9 + $0x368] sm:$0xff]
    %v3531 = vld [vmem:[#allocation9 + $0x370] sm:$0xff]
    %v3532 = vld [vmem:[#allocation9 + $0x378] sm:$0xff]
    %v3533 = vld [vmem:[#allocation9 + $0x380] sm:$0xff]
    %v3534 = vld [vmem:[#allocation9 + $0x388] sm:$0xff]
    %v3535 = vld [vmem:[#allocation9 + $0x390] sm:$0xff]
    %v3536 = vld [vmem:[#allocation9 + $0x398] sm:$0xff]
    %v3537 = vld [vmem:[#allocation9 + $0x3a0] sm:$0xff]
    %v3538 = vld [vmem:[#allocation9 + $0x3a8] sm:$0xff]
    %v3539 = vld [vmem:[#allocation9 + $0x3b0] sm:$0xff]
    %v3540 = vld [vmem:[#allocation9 + $0x3b8] sm:$0xff]
    %v3541 = vld [vmem:[#allocation9 + $0x3c0] sm:$0xff]
    %v3542 = vld [vmem:[#allocation9 + $0x3c8] sm:$0xff]
    %v3543 = vld [vmem:[#allocation9 + $0x3d0] sm:$0xff]
    %v3544 = vld [vmem:[#allocation9 + $0x3d8] sm:$0xff]
    %v3545 = vld [vmem:[#allocation9 + $0x3e0] sm:$0xff]
    %v3546 = vld [vmem:[#allocation9 + $0x3e8] sm:$0xff]
    %v3547 = vld [vmem:[#allocation9 + $0x3f0] sm:$0xff]
    %v3548 = vld [vmem:[#allocation9 + $0x3f8] sm:$0xff]
    %v3677 = vunpack.c.l.b16 %v3421
    %v3678 = vunpack.c.h.b16 %v3421
    %v3679 = vunpack.c.l.b16 %v3422
    %v3680 = vunpack.c.h.b16 %v3422
    %v3681 = vunpack.c.l.b16 %v3423
    %v3682 = vunpack.c.h.b16 %v3423
    %v3683 = vunpack.c.l.b16 %v3424
    %v3684 = vunpack.c.h.b16 %v3424
    %v3685 = vunpack.c.l.b16 %v3425
    %v3686 = vunpack.c.h.b16 %v3425
    %v3687 = vunpack.c.l.b16 %v3426
    %v3688 = vunpack.c.h.b16 %v3426
    %v3689 = vunpack.c.l.b16 %v3427
    %v3690 = vunpack.c.h.b16 %v3427
    %v3691 = vunpack.c.l.b16 %v3428
    %v3692 = vunpack.c.h.b16 %v3428
    %v3693 = vunpack.c.l.b16 %v3429
    %v3694 = vunpack.c.h.b16 %v3429
    %v3695 = vunpack.c.l.b16 %v3430
    %v3696 = vunpack.c.h.b16 %v3430
    %v3697 = vunpack.c.l.b16 %v3431
    %v3698 = vunpack.c.h.b16 %v3431
    %v3699 = vunpack.c.l.b16 %v3432
    %v3700 = vunpack.c.h.b16 %v3432
    %v3701 = vunpack.c.l.b16 %v3433
    %v3702 = vunpack.c.h.b16 %v3433
    %v3703 = vunpack.c.l.b16 %v3434
    %v3704 = vunpack.c.h.b16 %v3434
    %v3705 = vunpack.c.l.b16 %v3435
    %v3706 = vunpack.c.h.b16 %v3435
    %v3707 = vunpack.c.l.b16 %v3436
    %v3708 = vunpack.c.h.b16 %v3436
    %v3709 = vunpack.c.l.b16 %v3437
    %v3710 = vunpack.c.h.b16 %v3437
    %v3711 = vunpack.c.l.b16 %v3438
    %v3712 = vunpack.c.h.b16 %v3438
    %v3713 = vunpack.c.l.b16 %v3439
    %v3714 = vunpack.c.h.b16 %v3439
    %v3715 = vunpack.c.l.b16 %v3440
    %v3716 = vunpack.c.h.b16 %v3440
    %v3717 = vunpack.c.l.b16 %v3441
    %v3718 = vunpack.c.h.b16 %v3441
    %v3719 = vunpack.c.l.b16 %v3442
    %v3720 = vunpack.c.h.b16 %v3442
    %v3721 = vunpack.c.l.b16 %v3443
    %v3722 = vunpack.c.h.b16 %v3443
    %v3723 = vunpack.c.l.b16 %v3444
    %v3724 = vunpack.c.h.b16 %v3444
    %v3725 = vunpack.c.l.b16 %v3445
    %v3726 = vunpack.c.h.b16 %v3445
    %v3727 = vunpack.c.l.b16 %v3446
    %v3728 = vunpack.c.h.b16 %v3446
    %v3729 = vunpack.c.l.b16 %v3447
    %v3730 = vunpack.c.h.b16 %v3447
    %v3731 = vunpack.c.l.b16 %v3448
    %v3732 = vunpack.c.h.b16 %v3448
    %v3733 = vunpack.c.l.b16 %v3449
    %v3734 = vunpack.c.h.b16 %v3449
    %v3735 = vunpack.c.l.b16 %v3450
    %v3736 = vunpack.c.h.b16 %v3450
    %v3737 = vunpack.c.l.b16 %v3451
    %v3738 = vunpack.c.h.b16 %v3451
    %v3739 = vunpack.c.l.b16 %v3452
    %v3740 = vunpack.c.h.b16 %v3452
    %v3741 = vunpack.c.l.b16 %v3453
    %v3742 = vunpack.c.h.b16 %v3453
    %v3743 = vunpack.c.l.b16 %v3454
    %v3744 = vunpack.c.h.b16 %v3454
    %v3745 = vunpack.c.l.b16 %v3455
    %v3746 = vunpack.c.h.b16 %v3455
    %v3747 = vunpack.c.l.b16 %v3456
    %v3748 = vunpack.c.h.b16 %v3456
    %v3749 = vunpack.c.l.b16 %v3457
    %v3750 = vunpack.c.h.b16 %v3457
    %v3751 = vunpack.c.l.b16 %v3458
    %v3752 = vunpack.c.h.b16 %v3458
    %v3753 = vunpack.c.l.b16 %v3459
    %v3754 = vunpack.c.h.b16 %v3459
    %v3755 = vunpack.c.l.b16 %v3460
    %v3756 = vunpack.c.h.b16 %v3460
    %v3757 = vunpack.c.l.b16 %v3461
    %v3758 = vunpack.c.h.b16 %v3461
    %v3759 = vunpack.c.l.b16 %v3462
    %v3760 = vunpack.c.h.b16 %v3462
    %v3761 = vunpack.c.l.b16 %v3463
    %v3762 = vunpack.c.h.b16 %v3463
    %v3763 = vunpack.c.l.b16 %v3464
    %v3764 = vunpack.c.h.b16 %v3464
    %v3765 = vunpack.c.l.b16 %v3465
    %v3766 = vunpack.c.h.b16 %v3465
    %v3767 = vunpack.c.l.b16 %v3466
    %v3768 = vunpack.c.h.b16 %v3466
    %v3769 = vunpack.c.l.b16 %v3467
    %v3770 = vunpack.c.h.b16 %v3467
    %v3771 = vunpack.c.l.b16 %v3468
    %v3772 = vunpack.c.h.b16 %v3468
    %v3773 = vunpack.c.l.b16 %v3469
    %v3774 = vunpack.c.h.b16 %v3469
    %v3775 = vunpack.c.l.b16 %v3470
    %v3776 = vunpack.c.h.b16 %v3470
    %v3777 = vunpack.c.l.b16 %v3471
    %v3778 = vunpack.c.h.b16 %v3471
    %v3779 = vunpack.c.l.b16 %v3472
    %v3780 = vunpack.c.h.b16 %v3472
    %v3781 = vunpack.c.l.b16 %v3473
    %v3782 = vunpack.c.h.b16 %v3473
    %v3783 = vunpack.c.l.b16 %v3474
    %v3784 = vunpack.c.h.b16 %v3474
    %v3785 = vunpack.c.l.b16 %v3475
    %v3786 = vunpack.c.h.b16 %v3475
    %v3787 = vunpack.c.l.b16 %v3476
    %v3788 = vunpack.c.h.b16 %v3476
    %v3789 = vunpack.c.l.b16 %v3477
    %v3790 = vunpack.c.h.b16 %v3477
    %v3791 = vunpack.c.l.b16 %v3478
    %v3792 = vunpack.c.h.b16 %v3478
    %v3793 = vunpack.c.l.b16 %v3479
    %v3794 = vunpack.c.h.b16 %v3479
    %v3795 = vunpack.c.l.b16 %v3480
    %v3796 = vunpack.c.h.b16 %v3480
    %v3797 = vunpack.c.l.b16 %v3481
    %v3798 = vunpack.c.h.b16 %v3481
    %v3799 = vunpack.c.l.b16 %v3482
    %v3800 = vunpack.c.h.b16 %v3482
    %v3801 = vunpack.c.l.b16 %v3483
    %v3802 = vunpack.c.h.b16 %v3483
    %v3803 = vunpack.c.l.b16 %v3484
    %v3804 = vunpack.c.h.b16 %v3484
    %v3805 = vunpack.c.l.b16 %v3485
    %v3806 = vunpack.c.h.b16 %v3485
    %v3807 = vunpack.c.l.b16 %v3486
    %v3808 = vunpack.c.h.b16 %v3486
    %v3809 = vunpack.c.l.b16 %v3487
    %v3810 = vunpack.c.h.b16 %v3487
    %v3811 = vunpack.c.l.b16 %v3488
    %v3812 = vunpack.c.h.b16 %v3488
    %v3813 = vunpack.c.l.b16 %v3489
    %v3814 = vunpack.c.h.b16 %v3489
    %v3815 = vunpack.c.l.b16 %v3490
    %v3816 = vunpack.c.h.b16 %v3490
    %v3817 = vunpack.c.l.b16 %v3491
    %v3818 = vunpack.c.h.b16 %v3491
    %v3819 = vunpack.c.l.b16 %v3492
    %v3820 = vunpack.c.h.b16 %v3492
    %v3821 = vunpack.c.l.b16 %v3493
    %v3822 = vunpack.c.h.b16 %v3493
    %v3823 = vunpack.c.l.b16 %v3494
    %v3824 = vunpack.c.h.b16 %v3494
    %v3825 = vunpack.c.l.b16 %v3495
    %v3826 = vunpack.c.h.b16 %v3495
    %v3827 = vunpack.c.l.b16 %v3496
    %v3828 = vunpack.c.h.b16 %v3496
    %v3829 = vunpack.c.l.b16 %v3497
    %v3830 = vunpack.c.h.b16 %v3497
    %v3831 = vunpack.c.l.b16 %v3498
    %v3832 = vunpack.c.h.b16 %v3498
    %v3833 = vunpack.c.l.b16 %v3499
    %v3834 = vunpack.c.h.b16 %v3499
    %v3835 = vunpack.c.l.b16 %v3500
    %v3836 = vunpack.c.h.b16 %v3500
    %v3837 = vunpack.c.l.b16 %v3501
    %v3838 = vunpack.c.h.b16 %v3501
    %v3839 = vunpack.c.l.b16 %v3502
    %v3840 = vunpack.c.h.b16 %v3502
    %v3841 = vunpack.c.l.b16 %v3503
    %v3842 = vunpack.c.h.b16 %v3503
    %v3843 = vunpack.c.l.b16 %v3504
    %v3844 = vunpack.c.h.b16 %v3504
    %v3845 = vunpack.c.l.b16 %v3505
    %v3846 = vunpack.c.h.b16 %v3505
    %v3847 = vunpack.c.l.b16 %v3506
    %v3848 = vunpack.c.h.b16 %v3506
    %v3849 = vunpack.c.l.b16 %v3507
    %v3850 = vunpack.c.h.b16 %v3507
    %v3851 = vunpack.c.l.b16 %v3508
    %v3852 = vunpack.c.h.b16 %v3508
    %v3853 = vunpack.c.l.b16 %v3509
    %v3854 = vunpack.c.h.b16 %v3509
    %v3855 = vunpack.c.l.b16 %v3510
    %v3856 = vunpack.c.h.b16 %v3510
    %v3857 = vunpack.c.l.b16 %v3511
    %v3858 = vunpack.c.h.b16 %v3511
    %v3859 = vunpack.c.l.b16 %v3512
    %v3860 = vunpack.c.h.b16 %v3512
    %v3861 = vunpack.c.l.b16 %v3513
    %v3862 = vunpack.c.h.b16 %v3513
    %v3863 = vunpack.c.l.b16 %v3514
    %v3864 = vunpack.c.h.b16 %v3514
    %v3865 = vunpack.c.l.b16 %v3515
    %v3866 = vunpack.c.h.b16 %v3515
    %v3867 = vunpack.c.l.b16 %v3516
    %v3868 = vunpack.c.h.b16 %v3516
    %v3869 = vunpack.c.l.b16 %v3517
    %v3870 = vunpack.c.h.b16 %v3517
    %v3871 = vunpack.c.l.b16 %v3518
    %v3872 = vunpack.c.h.b16 %v3518
    %v3873 = vunpack.c.l.b16 %v3519
    %v3874 = vunpack.c.h.b16 %v3519
    %v3875 = vunpack.c.l.b16 %v3520
    %v3876 = vunpack.c.h.b16 %v3520
    %v3877 = vunpack.c.l.b16 %v3521
    %v3878 = vunpack.c.h.b16 %v3521
    %v3879 = vunpack.c.l.b16 %v3522
    %v3880 = vunpack.c.h.b16 %v3522
    %v3881 = vunpack.c.l.b16 %v3523
    %v3882 = vunpack.c.h.b16 %v3523
    %v3883 = vunpack.c.l.b16 %v3524
    %v3884 = vunpack.c.h.b16 %v3524
    %v3885 = vunpack.c.l.b16 %v3525
    %v3886 = vunpack.c.h.b16 %v3525
    %v3887 = vunpack.c.l.b16 %v3526
    %v3888 = vunpack.c.h.b16 %v3526
    %v3889 = vunpack.c.l.b16 %v3527
    %v3890 = vunpack.c.h.b16 %v3527
    %v3891 = vunpack.c.l.b16 %v3528
    %v3892 = vunpack.c.h.b16 %v3528
    %v3893 = vunpack.c.l.b16 %v3529
    %v3894 = vunpack.c.h.b16 %v3529
    %v3895 = vunpack.c.l.b16 %v3530
    %v3896 = vunpack.c.h.b16 %v3530
    %v3897 = vunpack.c.l.b16 %v3531
    %v3898 = vunpack.c.h.b16 %v3531
    %v3899 = vunpack.c.l.b16 %v3532
    %v3900 = vunpack.c.h.b16 %v3532
    %v3901 = vunpack.c.l.b16 %v3533
    %v3902 = vunpack.c.h.b16 %v3533
    %v3903 = vunpack.c.l.b16 %v3534
    %v3904 = vunpack.c.h.b16 %v3534
    %v3905 = vunpack.c.l.b16 %v3535
    %v3906 = vunpack.c.h.b16 %v3535
    %v3907 = vunpack.c.l.b16 %v3536
    %v3908 = vunpack.c.h.b16 %v3536
    %v3909 = vunpack.c.l.b16 %v3537
    %v3910 = vunpack.c.h.b16 %v3537
    %v3911 = vunpack.c.l.b16 %v3538
    %v3912 = vunpack.c.h.b16 %v3538
    %v3913 = vunpack.c.l.b16 %v3539
    %v3914 = vunpack.c.h.b16 %v3539
    %v3915 = vunpack.c.l.b16 %v3540
    %v3916 = vunpack.c.h.b16 %v3540
    %v3917 = vunpack.c.l.b16 %v3541
    %v3918 = vunpack.c.h.b16 %v3541
    %v3919 = vunpack.c.l.b16 %v3542
    %v3920 = vunpack.c.h.b16 %v3542
    %v3921 = vunpack.c.l.b16 %v3543
    %v3922 = vunpack.c.h.b16 %v3543
    %v3923 = vunpack.c.l.b16 %v3544
    %v3924 = vunpack.c.h.b16 %v3544
    %v3925 = vunpack.c.l.b16 %v3545
    %v3926 = vunpack.c.h.b16 %v3545
    %v3927 = vunpack.c.l.b16 %v3546
    %v3928 = vunpack.c.h.b16 %v3546
    %v3929 = vunpack.c.l.b16 %v3547
    %v3930 = vunpack.c.h.b16 %v3547
    %v3931 = vunpack.c.l.b16 %v3548
    %v3932 = vunpack.c.h.b16 %v3548
    %v3933 = vpack.c.b16 %v3685, %v3677
    %v3934 = vpack.c.b16 %v3686, %v3678
    %v3935 = vpack.c.b16 %v3687, %v3679
    %v3936 = vpack.c.b16 %v3688, %v3680
    %v3937 = vpack.c.b16 %v3689, %v3681
    %v3938 = vpack.c.b16 %v3690, %v3682
    %v3939 = vpack.c.b16 %v3691, %v3683
    %v3940 = vpack.c.b16 %v3692, %v3684
    %v3941 = vpack.c.b16 %v3701, %v3693
    %v3942 = vpack.c.b16 %v3702, %v3694
    %v3943 = vpack.c.b16 %v3703, %v3695
    %v3944 = vpack.c.b16 %v3704, %v3696
    %v3945 = vpack.c.b16 %v3705, %v3697
    %v3946 = vpack.c.b16 %v3706, %v3698
    %v3947 = vpack.c.b16 %v3707, %v3699
    %v3948 = vpack.c.b16 %v3708, %v3700
    %v3949 = vpack.c.b16 %v3717, %v3709
    %v3950 = vpack.c.b16 %v3718, %v3710
    %v3951 = vpack.c.b16 %v3719, %v3711
    %v3952 = vpack.c.b16 %v3720, %v3712
    %v3953 = vpack.c.b16 %v3721, %v3713
    %v3954 = vpack.c.b16 %v3722, %v3714
    %v3955 = vpack.c.b16 %v3723, %v3715
    %v3956 = vpack.c.b16 %v3724, %v3716
    %v3957 = vpack.c.b16 %v3733, %v3725
    %v3958 = vpack.c.b16 %v3734, %v3726
    %v3959 = vpack.c.b16 %v3735, %v3727
    %v3960 = vpack.c.b16 %v3736, %v3728
    %v3961 = vpack.c.b16 %v3737, %v3729
    %v3962 = vpack.c.b16 %v3738, %v3730
    %v3963 = vpack.c.b16 %v3739, %v3731
    %v3964 = vpack.c.b16 %v3740, %v3732
    %v3965 = vpack.c.b16 %v3749, %v3741
    %v3966 = vpack.c.b16 %v3750, %v3742
    %v3967 = vpack.c.b16 %v3751, %v3743
    %v3968 = vpack.c.b16 %v3752, %v3744
    %v3969 = vpack.c.b16 %v3753, %v3745
    %v3970 = vpack.c.b16 %v3754, %v3746
    %v3971 = vpack.c.b16 %v3755, %v3747
    %v3972 = vpack.c.b16 %v3756, %v3748
    %v3973 = vpack.c.b16 %v3765, %v3757
    %v3974 = vpack.c.b16 %v3766, %v3758
    %v3975 = vpack.c.b16 %v3767, %v3759
    %v3976 = vpack.c.b16 %v3768, %v3760
    %v3977 = vpack.c.b16 %v3769, %v3761
    %v3978 = vpack.c.b16 %v3770, %v3762
    %v3979 = vpack.c.b16 %v3771, %v3763
    %v3980 = vpack.c.b16 %v3772, %v3764
    %v3981 = vpack.c.b16 %v3781, %v3773
    %v3982 = vpack.c.b16 %v3782, %v3774
    %v3983 = vpack.c.b16 %v3783, %v3775
    %v3984 = vpack.c.b16 %v3784, %v3776
    %v3985 = vpack.c.b16 %v3785, %v3777
    %v3986 = vpack.c.b16 %v3786, %v3778
    %v3987 = vpack.c.b16 %v3787, %v3779
    %v3988 = vpack.c.b16 %v3788, %v3780
    %v3989 = vpack.c.b16 %v3797, %v3789
    %v3990 = vpack.c.b16 %v3798, %v3790
    %v3991 = vpack.c.b16 %v3799, %v3791
    %v3992 = vpack.c.b16 %v3800, %v3792
    %v3993 = vpack.c.b16 %v3801, %v3793
    %v3994 = vpack.c.b16 %v3802, %v3794
    %v3995 = vpack.c.b16 %v3803, %v3795
    %v3996 = vpack.c.b16 %v3804, %v3796
    %v3997 = vpack.c.b16 %v3813, %v3805
    %v3998 = vpack.c.b16 %v3814, %v3806
    %v3999 = vpack.c.b16 %v3815, %v3807
    %v4000 = vpack.c.b16 %v3816, %v3808
    %v4001 = vpack.c.b16 %v3817, %v3809
    %v4002 = vpack.c.b16 %v3818, %v3810
    %v4003 = vpack.c.b16 %v3819, %v3811
    %v4004 = vpack.c.b16 %v3820, %v3812
    %v4005 = vpack.c.b16 %v3829, %v3821
    %v4006 = vpack.c.b16 %v3830, %v3822
    %v4007 = vpack.c.b16 %v3831, %v3823
    %v4008 = vpack.c.b16 %v3832, %v3824
    %v4009 = vpack.c.b16 %v3833, %v3825
    %v4010 = vpack.c.b16 %v3834, %v3826
    %v4011 = vpack.c.b16 %v3835, %v3827
    %v4012 = vpack.c.b16 %v3836, %v3828
    %v4013 = vpack.c.b16 %v3845, %v3837
    %v4014 = vpack.c.b16 %v3846, %v3838
    %v4015 = vpack.c.b16 %v3847, %v3839
    %v4016 = vpack.c.b16 %v3848, %v3840
    %v4017 = vpack.c.b16 %v3849, %v3841
    %v4018 = vpack.c.b16 %v3850, %v3842
    %v4019 = vpack.c.b16 %v3851, %v3843
    %v4020 = vpack.c.b16 %v3852, %v3844
    %v4021 = vpack.c.b16 %v3861, %v3853
    %v4022 = vpack.c.b16 %v3862, %v3854
    %v4023 = vpack.c.b16 %v3863, %v3855
    %v4024 = vpack.c.b16 %v3864, %v3856
    %v4025 = vpack.c.b16 %v3865, %v3857
    %v4026 = vpack.c.b16 %v3866, %v3858
    %v4027 = vpack.c.b16 %v3867, %v3859
    %v4028 = vpack.c.b16 %v3868, %v3860
    %v4029 = vpack.c.b16 %v3877, %v3869
    %v4030 = vpack.c.b16 %v3878, %v3870
    %v4031 = vpack.c.b16 %v3879, %v3871
    %v4032 = vpack.c.b16 %v3880, %v3872
    %v4033 = vpack.c.b16 %v3881, %v3873
    %v4034 = vpack.c.b16 %v3882, %v3874
    %v4035 = vpack.c.b16 %v3883, %v3875
    %v4036 = vpack.c.b16 %v3884, %v3876
    %v4037 = vpack.c.b16 %v3893, %v3885
    %v4038 = vpack.c.b16 %v3894, %v3886
    %v4039 = vpack.c.b16 %v3895, %v3887
    %v4040 = vpack.c.b16 %v3896, %v3888
    %v4041 = vpack.c.b16 %v3897, %v3889
    %v4042 = vpack.c.b16 %v3898, %v3890
    %v4043 = vpack.c.b16 %v3899, %v3891
    %v4044 = vpack.c.b16 %v3900, %v3892
    %v4045 = vpack.c.b16 %v3909, %v3901
    %v4046 = vpack.c.b16 %v3910, %v3902
    %v4047 = vpack.c.b16 %v3911, %v3903
    %v4048 = vpack.c.b16 %v3912, %v3904
    %v4049 = vpack.c.b16 %v3913, %v3905
    %v4050 = vpack.c.b16 %v3914, %v3906
    %v4051 = vpack.c.b16 %v3915, %v3907
    %v4052 = vpack.c.b16 %v3916, %v3908
    %v4053 = vpack.c.b16 %v3925, %v3917
    %v4054 = vpack.c.b16 %v3926, %v3918
    %v4055 = vpack.c.b16 %v3927, %v3919
    %v4056 = vpack.c.b16 %v3928, %v3920
    %v4057 = vpack.c.b16 %v3929, %v3921
    %v4058 = vpack.c.b16 %v3930, %v3922
    %v4059 = vpack.c.b16 %v3931, %v3923
    %v4060 = vpack.c.b16 %v3932, %v3924
    %4189 = vmatprep.subr.bf16.mxu0 %v3990
    %4190 = vmatpush1.bf16.msra.mxu0 %v3989
    %4191 = vmatprep.subr.bf16.mxu0 %v3982
    %4192 = vmatpush1.bf16.msra.mxu0 %v3981
    %4193 = vmatprep.subr.bf16.mxu0 %v3974
    %4194 = vmatpush1.bf16.msra.mxu0 %v3973
    %4195 = vmatprep.subr.bf16.mxu0 %v3966
    %4196 = vmatpush1.bf16.msra.mxu0 %v3965
    %4197 = vmatprep.subr.bf16.mxu0 %v3958
    %4198 = vmatpush1.bf16.msra.mxu0 %v3957
    %4199 = vmatprep.subr.bf16.mxu0 %v3950
    %4200 = vmatpush1.bf16.msra.mxu0 %v3949
    %4201 = vmatprep.subr.bf16.mxu0 %v3942
    %4202 = vmatpush1.bf16.msra.mxu0 %v3941
    %4203 = vmatprep.subr.bf16.mxu0 %v3934
    %4204 = vmatpush1.bf16.msra.mxu0 %v3933
    %4205 = vmatprep.subr.bf16.mxu0 %v4054
    %4206 = vmatpush2.bf16.msra.mxu0 %v4053
    %4207 = vmatprep.subr.bf16.mxu0 %v4046
    %4208 = vmatpush2.bf16.msra.mxu0 %v4045
    %4209 = vmatprep.subr.bf16.mxu0 %v4038
    %4210 = vmatpush2.bf16.msra.mxu0 %v4037
    %4211 = vmatprep.subr.bf16.mxu0 %v4030
    %4212 = vmatpush2.bf16.msra.mxu0 %v4029
    %4213 = vmatprep.subr.bf16.mxu0 %v4022
    %4214 = vmatpush2.bf16.msra.mxu0 %v4021
    %4215 = vmatprep.subr.bf16.mxu0 %v4014
    %4216 = vmatpush2.bf16.msra.mxu0 %v4013
    %4217 = vmatprep.subr.bf16.mxu0 %v4006
    %4218 = vmatpush2.bf16.msra.mxu0 %v4005
    %4219 = vmatprep.subr.bf16.mxu0 %v3998
    %4220 = vmatpush2.bf16.msra.mxu0 %v3997
    %4221 = vmatprep.mubr.bf16.mxu0 %v3420
    %4222 = vmatmul.mubr.bf16.gmra.mxu0 %v3419
    %v4223 = vpop.f32.mrf.mxu0
    %v4224 = vadd.f32 0.0, %v4223
    %v4225 = vpop.f32.mrf.mxu0
    %v4226 = vadd.f32 0.0, %v4225
    %v4227 = vpop.f32.mrf.mxu0
    %v4228 = vpop.f32.mrf.mxu0
    %4229 = vdwg.mxu0
    %4230 = vmatprep.subr.bf16.mxu0 %v3992
    %4231 = vmatpush1.bf16.msra.mxu0 %v3991
    %4232 = vmatprep.subr.bf16.mxu0 %v3984
    %4233 = vmatpush1.bf16.msra.mxu0 %v3983
    %4234 = vmatprep.subr.bf16.mxu0 %v3976
    %4235 = vmatpush1.bf16.msra.mxu0 %v3975
    %4236 = vmatprep.subr.bf16.mxu0 %v3968
    %4237 = vmatpush1.bf16.msra.mxu0 %v3967
    %4238 = vmatprep.subr.bf16.mxu0 %v3960
    %4239 = vmatpush1.bf16.msra.mxu0 %v3959
    %4240 = vmatprep.subr.bf16.mxu0 %v3952
    %4241 = vmatpush1.bf16.msra.mxu0 %v3951
    %4242 = vmatprep.subr.bf16.mxu0 %v3944
    %4243 = vmatpush1.bf16.msra.mxu0 %v3943
    %4244 = vmatprep.subr.bf16.mxu0 %v3936
    %4245 = vmatpush1.bf16.msra.mxu0 %v3935
    %4246 = vmatprep.subr.bf16.mxu0 %v4056
    %4247 = vmatpush2.bf16.msra.mxu0 %v4055
    %4248 = vmatprep.subr.bf16.mxu0 %v4048
    %4249 = vmatpush2.bf16.msra.mxu0 %v4047
    %4250 = vmatprep.subr.bf16.mxu0 %v4040
    %4251 = vmatpush2.bf16.msra.mxu0 %v4039
    %4252 = vmatprep.subr.bf16.mxu0 %v4032
    %4253 = vmatpush2.bf16.msra.mxu0 %v4031
    %4254 = vmatprep.subr.bf16.mxu0 %v4024
    %4255 = vmatpush2.bf16.msra.mxu0 %v4023
    %4256 = vmatprep.subr.bf16.mxu0 %v4016
    %4257 = vmatpush2.bf16.msra.mxu0 %v4015
    %4258 = vmatprep.subr.bf16.mxu0 %v4008
    %4259 = vmatpush2.bf16.msra.mxu0 %v4007
    %4260 = vmatprep.subr.bf16.mxu0 %v4000
    %4261 = vmatpush2.bf16.msra.mxu0 %v3999
    %4262 = vmatprep.mubr.bf16.mxu0 %v3420
    %4263 = vmatmul.mubr.bf16.gmra.mxu0 %v3419
    %v4264 = vpop.f32.mrf.mxu0
    %v4265 = vadd.f32 0.0, %v4264
    %v4266 = vpop.f32.mrf.mxu0
    %v4267 = vadd.f32 0.0, %v4266
    %v4268 = vpop.f32.mrf.mxu0
    %v4269 = vpop.f32.mrf.mxu0
    %4270 = vdwg.mxu0
    %4271 = vmatprep.subr.bf16.mxu0 %v3994
    %4272 = vmatpush1.bf16.msra.mxu0 %v3993
    %4273 = vmatprep.subr.bf16.mxu0 %v3986
    %4274 = vmatpush1.bf16.msra.mxu0 %v3985
    %4275 = vmatprep.subr.bf16.mxu0 %v3978
    %4276 = vmatpush1.bf16.msra.mxu0 %v3977
    %4277 = vmatprep.subr.bf16.mxu0 %v3970
    %4278 = vmatpush1.bf16.msra.mxu0 %v3969
    %4279 = vmatprep.subr.bf16.mxu0 %v3962
    %4280 = vmatpush1.bf16.msra.mxu0 %v3961
    %4281 = vmatprep.subr.bf16.mxu0 %v3954
    %4282 = vmatpush1.bf16.msra.mxu0 %v3953
    %4283 = vmatprep.subr.bf16.mxu0 %v3946
    %4284 = vmatpush1.bf16.msra.mxu0 %v3945
    %4285 = vmatprep.subr.bf16.mxu0 %v3938
    %4286 = vmatpush1.bf16.msra.mxu0 %v3937
    %4287 = vmatprep.subr.bf16.mxu0 %v4058
    %4288 = vmatpush2.bf16.msra.mxu0 %v4057
    %4289 = vmatprep.subr.bf16.mxu0 %v4050
    %4290 = vmatpush2.bf16.msra.mxu0 %v4049
    %4291 = vmatprep.subr.bf16.mxu0 %v4042
    %4292 = vmatpush2.bf16.msra.mxu0 %v4041
    %4293 = vmatprep.subr.bf16.mxu0 %v4034
    %4294 = vmatpush2.bf16.msra.mxu0 %v4033
    %4295 = vmatprep.subr.bf16.mxu0 %v4026
    %4296 = vmatpush2.bf16.msra.mxu0 %v4025
    %4297 = vmatprep.subr.bf16.mxu0 %v4018
    %4298 = vmatpush2.bf16.msra.mxu0 %v4017
    %4299 = vmatprep.subr.bf16.mxu0 %v4010
    %4300 = vmatpush2.bf16.msra.mxu0 %v4009
    %4301 = vmatprep.subr.bf16.mxu0 %v4002
    %4302 = vmatpush2.bf16.msra.mxu0 %v4001
    %4303 = vmatprep.mubr.bf16.mxu0 %v3420
    %4304 = vmatmul.mubr.bf16.gmra.mxu0 %v3419
    %v4305 = vpop.f32.mrf.mxu0
    %v4306 = vadd.f32 0.0, %v4305
    %v4307 = vpop.f32.mrf.mxu0
    %v4308 = vadd.f32 0.0, %v4307
    %v4309 = vpop.f32.mrf.mxu0
    %v4310 = vpop.f32.mrf.mxu0
    %4311 = vdwg.mxu0
    %4312 = vmatprep.subr.bf16.mxu0 %v3996
    %4313 = vmatpush1.bf16.msra.mxu0 %v3995
    %4314 = vmatprep.subr.bf16.mxu0 %v3988
    %4315 = vmatpush1.bf16.msra.mxu0 %v3987
    %4316 = vmatprep.subr.bf16.mxu0 %v3980
    %4317 = vmatpush1.bf16.msra.mxu0 %v3979
    %4318 = vmatprep.subr.bf16.mxu0 %v3972
    %4319 = vmatpush1.bf16.msra.mxu0 %v3971
    %4320 = vmatprep.subr.bf16.mxu0 %v3964
    %4321 = vmatpush1.bf16.msra.mxu0 %v3963
    %4322 = vmatprep.subr.bf16.mxu0 %v3956
    %4323 = vmatpush1.bf16.msra.mxu0 %v3955
    %4324 = vmatprep.subr.bf16.mxu0 %v3948
    %4325 = vmatpush1.bf16.msra.mxu0 %v3947
    %4326 = vmatprep.subr.bf16.mxu0 %v3940
    %4327 = vmatpush1.bf16.msra.mxu0 %v3939
    %4328 = vmatprep.subr.bf16.mxu0 %v4060
    %4329 = vmatpush2.bf16.msra.mxu0 %v4059
    %4330 = vmatprep.subr.bf16.mxu0 %v4052
    %4331 = vmatpush2.bf16.msra.mxu0 %v4051
    %4332 = vmatprep.subr.bf16.mxu0 %v4044
    %4333 = vmatpush2.bf16.msra.mxu0 %v4043
    %4334 = vmatprep.subr.bf16.mxu0 %v4036
    %4335 = vmatpush2.bf16.msra.mxu0 %v4035
    %4336 = vmatprep.subr.bf16.mxu0 %v4028
    %4337 = vmatpush2.bf16.msra.mxu0 %v4027
    %4338 = vmatprep.subr.bf16.mxu0 %v4020
    %4339 = vmatpush2.bf16.msra.mxu0 %v4019
    %4340 = vmatprep.subr.bf16.mxu0 %v4012
    %4341 = vmatpush2.bf16.msra.mxu0 %v4011
    %4342 = vmatprep.subr.bf16.mxu0 %v4004
    %4343 = vmatpush2.bf16.msra.mxu0 %v4003
    %4344 = vmatprep.mubr.bf16.mxu0 %v3420
    %4345 = vmatmul.mubr.bf16.gmra.mxu0 %v3419
    %v4346 = vpop.f32.mrf.mxu0
    %v4347 = vadd.f32 0.0, %v4346
    %v4348 = vpop.f32.mrf.mxu0
    %v4349 = vadd.f32 0.0, %v4348
    %v4350 = vpop.f32.mrf.mxu0
    %v4351 = vpop.f32.mrf.mxu0
    %4352 = vdwg.mxu0
    %v4353 = vadd.f32 %v3411, %v4224
    %v4354 = vadd.f32 %v3412, %v4226
    %v4355 = vadd.f32 %v3413, %v4265
    %v4356 = vadd.f32 %v3414, %v4267
    %v4357 = vadd.f32 %v3415, %v4306
    %v4358 = vadd.f32 %v3416, %v4308
    %v4359 = vadd.f32 %v3417, %v4347
    %v4360 = vadd.f32 %v3418, %v4349
    %v4361 = vxor.u32 %v4353, 2147483648
    %v4362 = vxor.u32 %v4354, 2147483648
    %v4363 = vxor.u32 %v4355, 2147483648
    %v4364 = vxor.u32 %v4356, 2147483648
    %v4365 = vxor.u32 %v4357, 2147483648
    %v4366 = vxor.u32 %v4358, 2147483648
    %v4367 = vmul.f32 %v4361, 1.442695
    %v4368 = vpow.pop %v4367
    %v4369 = vmul.f32 %v4362, 1.442695
    %v4370 = vpow.pop %v4369
    %v4371 = vmul.f32 %v4363, 1.442695
    %v4372 = vpow.pop %v4371
    %v4373 = vmul.f32 %v4364, 1.442695
    %v4374 = vpow.pop %v4373
    %v4375 = vmul.f32 %v4365, 1.442695
    %v4376 = vpow.pop %v4375
    %v4377 = vmul.f32 %v4366, 1.442695
    %v4378 = vpow.pop %v4377
    %v4379 = vadd.f32 %v4368, 1.0
    %v4380 = vadd.f32 %v4370, 1.0
    %v4381 = vadd.f32 %v4372, 1.0
    %v4382 = vadd.f32 %v4374, 1.0
    %v4383 = vadd.f32 %v4376, 1.0
    %v4384 = vadd.f32 %v4378, 1.0
    %v4385 = vrcp.pop %v4379
    %v4386 = vmul.f32 1.0, %v4385
    %v4387 = vrcp.pop %v4380
    %v4388 = vmul.f32 1.0, %v4387
    %v4389 = vrcp.pop %v4381
    %v4390 = vmul.f32 1.0, %v4389
    %v4391 = vrcp.pop %v4382
    %v4392 = vmul.f32 1.0, %v4391
    %v4393 = vrcp.pop %v4383
    %v4394 = vmul.f32 1.0, %v4393
    %v4395 = vrcp.pop %v4384
    %v4396 = vmul.f32 1.0, %v4395
    %v4397 = vtanh.pop %v4359
    %v4398 = vtanh.pop %v4360
    %v4399 = vmul.f32 %v4390, %v3403
    %v4400 = vmul.f32 %v4392, %v3404
    %v4401 = vmul.f32 %v4386, %v4397
    %v4402 = vmul.f32 %v4388, %v4398
    %v4403 = vadd.f32 %v4399, %v4401
    %v4404 = vadd.f32 %v4400, %v4402
    %v4405 = vtanh.pop %v4403
    %v4406 = vtanh.pop %v4404
    %v4407 = vmul.f32 %v4394, %v4405
    %v4408 = vmul.f32 %v4396, %v4406
    %4409 = vst [vmem:[#allocation3 + $0x10] sm:$0xff] %v4407
    %4410 = vst [vmem:[#allocation3 + $0x18] sm:$0xff] %v4408
    %v4411 = vld [vmem:[#allocation2 + $0x80] sm:$0xff]
    %v4412 = vld [vmem:[#allocation2 + $0x88] sm:$0xff]
    %v4413 = vld [vmem:[#allocation2 + $0x90] sm:$0xff]
    %v4414 = vld [vmem:[#allocation2 + $0x98] sm:$0xff]
    %v4415 = vld [vmem:[#allocation2 + $0xa0] sm:$0xff]
    %v4416 = vld [vmem:[#allocation2 + $0xa8] sm:$0xff]
    %v4417 = vld [vmem:[#allocation2 + $0xb0] sm:$0xff]
    %v4418 = vld [vmem:[#allocation2 + $0xb8] sm:$0xff]
    %v4419 = vpack.c.bf16 %v4407, %v4407
    %v4420 = vpack.c.bf16 %v4408, %v4408
    %v4421 = vld [vmem:[#allocation9] sm:$0xff]
    %v4422 = vld [vmem:[#allocation9 + $0x8] sm:$0xff]
    %v4423 = vld [vmem:[#allocation9 + $0x10] sm:$0xff]
    %v4424 = vld [vmem:[#allocation9 + $0x18] sm:$0xff]
    %v4425 = vld [vmem:[#allocation9 + $0x20] sm:$0xff]
    %v4426 = vld [vmem:[#allocation9 + $0x28] sm:$0xff]
    %v4427 = vld [vmem:[#allocation9 + $0x30] sm:$0xff]
    %v4428 = vld [vmem:[#allocation9 + $0x38] sm:$0xff]
    %v4429 = vld [vmem:[#allocation9 + $0x40] sm:$0xff]
    %v4430 = vld [vmem:[#allocation9 + $0x48] sm:$0xff]
    %v4431 = vld [vmem:[#allocation9 + $0x50] sm:$0xff]
    %v4432 = vld [vmem:[#allocation9 + $0x58] sm:$0xff]
    %v4433 = vld [vmem:[#allocation9 + $0x60] sm:$0xff]
    %v4434 = vld [vmem:[#allocation9 + $0x68] sm:$0xff]
    %v4435 = vld [vmem:[#allocation9 + $0x70] sm:$0xff]
    %v4436 = vld [vmem:[#allocation9 + $0x78] sm:$0xff]
    %v4437 = vld [vmem:[#allocation9 + $0x80] sm:$0xff]
    %v4438 = vld [vmem:[#allocation9 + $0x88] sm:$0xff]
    %v4439 = vld [vmem:[#allocation9 + $0x90] sm:$0xff]
    %v4440 = vld [vmem:[#allocation9 + $0x98] sm:$0xff]
    %v4441 = vld [vmem:[#allocation9 + $0xa0] sm:$0xff]
    %v4442 = vld [vmem:[#allocation9 + $0xa8] sm:$0xff]
    %v4443 = vld [vmem:[#allocation9 + $0xb0] sm:$0xff]
    %v4444 = vld [vmem:[#allocation9 + $0xb8] sm:$0xff]
    %v4445 = vld [vmem:[#allocation9 + $0xc0] sm:$0xff]
    %v4446 = vld [vmem:[#allocation9 + $0xc8] sm:$0xff]
    %v4447 = vld [vmem:[#allocation9 + $0xd0] sm:$0xff]
    %v4448 = vld [vmem:[#allocation9 + $0xd8] sm:$0xff]
    %v4449 = vld [vmem:[#allocation9 + $0xe0] sm:$0xff]
    %v4450 = vld [vmem:[#allocation9 + $0xe8] sm:$0xff]
    %v4451 = vld [vmem:[#allocation9 + $0xf0] sm:$0xff]
    %v4452 = vld [vmem:[#allocation9 + $0xf8] sm:$0xff]
    %v4453 = vld [vmem:[#allocation9 + $0x100] sm:$0xff]
    %v4454 = vld [vmem:[#allocation9 + $0x108] sm:$0xff]
    %v4455 = vld [vmem:[#allocation9 + $0x110] sm:$0xff]
    %v4456 = vld [vmem:[#allocation9 + $0x118] sm:$0xff]
    %v4457 = vld [vmem:[#allocation9 + $0x120] sm:$0xff]
    %v4458 = vld [vmem:[#allocation9 + $0x128] sm:$0xff]
    %v4459 = vld [vmem:[#allocation9 + $0x130] sm:$0xff]
    %v4460 = vld [vmem:[#allocation9 + $0x138] sm:$0xff]
    %v4461 = vld [vmem:[#allocation9 + $0x140] sm:$0xff]
    %v4462 = vld [vmem:[#allocation9 + $0x148] sm:$0xff]
    %v4463 = vld [vmem:[#allocation9 + $0x150] sm:$0xff]
    %v4464 = vld [vmem:[#allocation9 + $0x158] sm:$0xff]
    %v4465 = vld [vmem:[#allocation9 + $0x160] sm:$0xff]
    %v4466 = vld [vmem:[#allocation9 + $0x168] sm:$0xff]
    %v4467 = vld [vmem:[#allocation9 + $0x170] sm:$0xff]
    %v4468 = vld [vmem:[#allocation9 + $0x178] sm:$0xff]
    %v4469 = vld [vmem:[#allocation9 + $0x180] sm:$0xff]
    %v4470 = vld [vmem:[#allocation9 + $0x188] sm:$0xff]
    %v4471 = vld [vmem:[#allocation9 + $0x190] sm:$0xff]
    %v4472 = vld [vmem:[#allocation9 + $0x198] sm:$0xff]
    %v4473 = vld [vmem:[#allocation9 + $0x1a0] sm:$0xff]
    %v4474 = vld [vmem:[#allocation9 + $0x1a8] sm:$0xff]
    %v4475 = vld [vmem:[#allocation9 + $0x1b0] sm:$0xff]
    %v4476 = vld [vmem:[#allocation9 + $0x1b8] sm:$0xff]
    %v4477 = vld [vmem:[#allocation9 + $0x1c0] sm:$0xff]
    %v4478 = vld [vmem:[#allocation9 + $0x1c8] sm:$0xff]
    %v4479 = vld [vmem:[#allocation9 + $0x1d0] sm:$0xff]
    %v4480 = vld [vmem:[#allocation9 + $0x1d8] sm:$0xff]
    %v4481 = vld [vmem:[#allocation9 + $0x1e0] sm:$0xff]
    %v4482 = vld [vmem:[#allocation9 + $0x1e8] sm:$0xff]
    %v4483 = vld [vmem:[#allocation9 + $0x1f0] sm:$0xff]
    %v4484 = vld [vmem:[#allocation9 + $0x1f8] sm:$0xff]
    %v4485 = vld [vmem:[#allocation9 + $0x200] sm:$0xff]
    %v4486 = vld [vmem:[#allocation9 + $0x208] sm:$0xff]
    %v4487 = vld [vmem:[#allocation9 + $0x210] sm:$0xff]
    %v4488 = vld [vmem:[#allocation9 + $0x218] sm:$0xff]
    %v4489 = vld [vmem:[#allocation9 + $0x220] sm:$0xff]
    %v4490 = vld [vmem:[#allocation9 + $0x228] sm:$0xff]
    %v4491 = vld [vmem:[#allocation9 + $0x230] sm:$0xff]
    %v4492 = vld [vmem:[#allocation9 + $0x238] sm:$0xff]
    %v4493 = vld [vmem:[#allocation9 + $0x240] sm:$0xff]
    %v4494 = vld [vmem:[#allocation9 + $0x248] sm:$0xff]
    %v4495 = vld [vmem:[#allocation9 + $0x250] sm:$0xff]
    %v4496 = vld [vmem:[#allocation9 + $0x258] sm:$0xff]
    %v4497 = vld [vmem:[#allocation9 + $0x260] sm:$0xff]
    %v4498 = vld [vmem:[#allocation9 + $0x268] sm:$0xff]
    %v4499 = vld [vmem:[#allocation9 + $0x270] sm:$0xff]
    %v4500 = vld [vmem:[#allocation9 + $0x278] sm:$0xff]
    %v4501 = vld [vmem:[#allocation9 + $0x280] sm:$0xff]
    %v4502 = vld [vmem:[#allocation9 + $0x288] sm:$0xff]
    %v4503 = vld [vmem:[#allocation9 + $0x290] sm:$0xff]
    %v4504 = vld [vmem:[#allocation9 + $0x298] sm:$0xff]
    %v4505 = vld [vmem:[#allocation9 + $0x2a0] sm:$0xff]
    %v4506 = vld [vmem:[#allocation9 + $0x2a8] sm:$0xff]
    %v4507 = vld [vmem:[#allocation9 + $0x2b0] sm:$0xff]
    %v4508 = vld [vmem:[#allocation9 + $0x2b8] sm:$0xff]
    %v4509 = vld [vmem:[#allocation9 + $0x2c0] sm:$0xff]
    %v4510 = vld [vmem:[#allocation9 + $0x2c8] sm:$0xff]
    %v4511 = vld [vmem:[#allocation9 + $0x2d0] sm:$0xff]
    %v4512 = vld [vmem:[#allocation9 + $0x2d8] sm:$0xff]
    %v4513 = vld [vmem:[#allocation9 + $0x2e0] sm:$0xff]
    %v4514 = vld [vmem:[#allocation9 + $0x2e8] sm:$0xff]
    %v4515 = vld [vmem:[#allocation9 + $0x2f0] sm:$0xff]
    %v4516 = vld [vmem:[#allocation9 + $0x2f8] sm:$0xff]
    %v4517 = vld [vmem:[#allocation9 + $0x300] sm:$0xff]
    %v4518 = vld [vmem:[#allocation9 + $0x308] sm:$0xff]
    %v4519 = vld [vmem:[#allocation9 + $0x310] sm:$0xff]
    %v4520 = vld [vmem:[#allocation9 + $0x318] sm:$0xff]
    %v4521 = vld [vmem:[#allocation9 + $0x320] sm:$0xff]
    %v4522 = vld [vmem:[#allocation9 + $0x328] sm:$0xff]
    %v4523 = vld [vmem:[#allocation9 + $0x330] sm:$0xff]
    %v4524 = vld [vmem:[#allocation9 + $0x338] sm:$0xff]
    %v4525 = vld [vmem:[#allocation9 + $0x340] sm:$0xff]
    %v4526 = vld [vmem:[#allocation9 + $0x348] sm:$0xff]
    %v4527 = vld [vmem:[#allocation9 + $0x350] sm:$0xff]
    %v4528 = vld [vmem:[#allocation9 + $0x358] sm:$0xff]
    %v4529 = vld [vmem:[#allocation9 + $0x360] sm:$0xff]
    %v4530 = vld [vmem:[#allocation9 + $0x368] sm:$0xff]
    %v4531 = vld [vmem:[#allocation9 + $0x370] sm:$0xff]
    %v4532 = vld [vmem:[#allocation9 + $0x378] sm:$0xff]
    %v4533 = vld [vmem:[#allocation9 + $0x380] sm:$0xff]
    %v4534 = vld [vmem:[#allocation9 + $0x388] sm:$0xff]
    %v4535 = vld [vmem:[#allocation9 + $0x390] sm:$0xff]
    %v4536 = vld [vmem:[#allocation9 + $0x398] sm:$0xff]
    %v4537 = vld [vmem:[#allocation9 + $0x3a0] sm:$0xff]
    %v4538 = vld [vmem:[#allocation9 + $0x3a8] sm:$0xff]
    %v4539 = vld [vmem:[#allocation9 + $0x3b0] sm:$0xff]
    %v4540 = vld [vmem:[#allocation9 + $0x3b8] sm:$0xff]
    %v4541 = vld [vmem:[#allocation9 + $0x3c0] sm:$0xff]
    %v4542 = vld [vmem:[#allocation9 + $0x3c8] sm:$0xff]
    %v4543 = vld [vmem:[#allocation9 + $0x3d0] sm:$0xff]
    %v4544 = vld [vmem:[#allocation9 + $0x3d8] sm:$0xff]
    %v4545 = vld [vmem:[#allocation9 + $0x3e0] sm:$0xff]
    %v4546 = vld [vmem:[#allocation9 + $0x3e8] sm:$0xff]
    %v4547 = vld [vmem:[#allocation9 + $0x3f0] sm:$0xff]
    %v4548 = vld [vmem:[#allocation9 + $0x3f8] sm:$0xff]
    %v4677 = vunpack.c.l.b16 %v4421
    %v4678 = vunpack.c.h.b16 %v4421
    %v4679 = vunpack.c.l.b16 %v4422
    %v4680 = vunpack.c.h.b16 %v4422
    %v4681 = vunpack.c.l.b16 %v4423
    %v4682 = vunpack.c.h.b16 %v4423
    %v4683 = vunpack.c.l.b16 %v4424
    %v4684 = vunpack.c.h.b16 %v4424
    %v4685 = vunpack.c.l.b16 %v4425
    %v4686 = vunpack.c.h.b16 %v4425
    %v4687 = vunpack.c.l.b16 %v4426
    %v4688 = vunpack.c.h.b16 %v4426
    %v4689 = vunpack.c.l.b16 %v4427
    %v4690 = vunpack.c.h.b16 %v4427
    %v4691 = vunpack.c.l.b16 %v4428
    %v4692 = vunpack.c.h.b16 %v4428
    %v4693 = vunpack.c.l.b16 %v4429
    %v4694 = vunpack.c.h.b16 %v4429
    %v4695 = vunpack.c.l.b16 %v4430
    %v4696 = vunpack.c.h.b16 %v4430
    %v4697 = vunpack.c.l.b16 %v4431
    %v4698 = vunpack.c.h.b16 %v4431
    %v4699 = vunpack.c.l.b16 %v4432
    %v4700 = vunpack.c.h.b16 %v4432
    %v4701 = vunpack.c.l.b16 %v4433
    %v4702 = vunpack.c.h.b16 %v4433
    %v4703 = vunpack.c.l.b16 %v4434
    %v4704 = vunpack.c.h.b16 %v4434
    %v4705 = vunpack.c.l.b16 %v4435
    %v4706 = vunpack.c.h.b16 %v4435
    %v4707 = vunpack.c.l.b16 %v4436
    %v4708 = vunpack.c.h.b16 %v4436
    %v4709 = vunpack.c.l.b16 %v4437
    %v4710 = vunpack.c.h.b16 %v4437
    %v4711 = vunpack.c.l.b16 %v4438
    %v4712 = vunpack.c.h.b16 %v4438
    %v4713 = vunpack.c.l.b16 %v4439
    %v4714 = vunpack.c.h.b16 %v4439
    %v4715 = vunpack.c.l.b16 %v4440
    %v4716 = vunpack.c.h.b16 %v4440
    %v4717 = vunpack.c.l.b16 %v4441
    %v4718 = vunpack.c.h.b16 %v4441
    %v4719 = vunpack.c.l.b16 %v4442
    %v4720 = vunpack.c.h.b16 %v4442
    %v4721 = vunpack.c.l.b16 %v4443
    %v4722 = vunpack.c.h.b16 %v4443
    %v4723 = vunpack.c.l.b16 %v4444
    %v4724 = vunpack.c.h.b16 %v4444
    %v4725 = vunpack.c.l.b16 %v4445
    %v4726 = vunpack.c.h.b16 %v4445
    %v4727 = vunpack.c.l.b16 %v4446
    %v4728 = vunpack.c.h.b16 %v4446
    %v4729 = vunpack.c.l.b16 %v4447
    %v4730 = vunpack.c.h.b16 %v4447
    %v4731 = vunpack.c.l.b16 %v4448
    %v4732 = vunpack.c.h.b16 %v4448
    %v4733 = vunpack.c.l.b16 %v4449
    %v4734 = vunpack.c.h.b16 %v4449
    %v4735 = vunpack.c.l.b16 %v4450
    %v4736 = vunpack.c.h.b16 %v4450
    %v4737 = vunpack.c.l.b16 %v4451
    %v4738 = vunpack.c.h.b16 %v4451
    %v4739 = vunpack.c.l.b16 %v4452
    %v4740 = vunpack.c.h.b16 %v4452
    %v4741 = vunpack.c.l.b16 %v4453
    %v4742 = vunpack.c.h.b16 %v4453
    %v4743 = vunpack.c.l.b16 %v4454
    %v4744 = vunpack.c.h.b16 %v4454
    %v4745 = vunpack.c.l.b16 %v4455
    %v4746 = vunpack.c.h.b16 %v4455
    %v4747 = vunpack.c.l.b16 %v4456
    %v4748 = vunpack.c.h.b16 %v4456
    %v4749 = vunpack.c.l.b16 %v4457
    %v4750 = vunpack.c.h.b16 %v4457
    %v4751 = vunpack.c.l.b16 %v4458
    %v4752 = vunpack.c.h.b16 %v4458
    %v4753 = vunpack.c.l.b16 %v4459
    %v4754 = vunpack.c.h.b16 %v4459
    %v4755 = vunpack.c.l.b16 %v4460
    %v4756 = vunpack.c.h.b16 %v4460
    %v4757 = vunpack.c.l.b16 %v4461
    %v4758 = vunpack.c.h.b16 %v4461
    %v4759 = vunpack.c.l.b16 %v4462
    %v4760 = vunpack.c.h.b16 %v4462
    %v4761 = vunpack.c.l.b16 %v4463
    %v4762 = vunpack.c.h.b16 %v4463
    %v4763 = vunpack.c.l.b16 %v4464
    %v4764 = vunpack.c.h.b16 %v4464
    %v4765 = vunpack.c.l.b16 %v4465
    %v4766 = vunpack.c.h.b16 %v4465
    %v4767 = vunpack.c.l.b16 %v4466
    %v4768 = vunpack.c.h.b16 %v4466
    %v4769 = vunpack.c.l.b16 %v4467
    %v4770 = vunpack.c.h.b16 %v4467
    %v4771 = vunpack.c.l.b16 %v4468
    %v4772 = vunpack.c.h.b16 %v4468
    %v4773 = vunpack.c.l.b16 %v4469
    %v4774 = vunpack.c.h.b16 %v4469
    %v4775 = vunpack.c.l.b16 %v4470
    %v4776 = vunpack.c.h.b16 %v4470
    %v4777 = vunpack.c.l.b16 %v4471
    %v4778 = vunpack.c.h.b16 %v4471
    %v4779 = vunpack.c.l.b16 %v4472
    %v4780 = vunpack.c.h.b16 %v4472
    %v4781 = vunpack.c.l.b16 %v4473
    %v4782 = vunpack.c.h.b16 %v4473
    %v4783 = vunpack.c.l.b16 %v4474
    %v4784 = vunpack.c.h.b16 %v4474
    %v4785 = vunpack.c.l.b16 %v4475
    %v4786 = vunpack.c.h.b16 %v4475
    %v4787 = vunpack.c.l.b16 %v4476
    %v4788 = vunpack.c.h.b16 %v4476
    %v4789 = vunpack.c.l.b16 %v4477
    %v4790 = vunpack.c.h.b16 %v4477
    %v4791 = vunpack.c.l.b16 %v4478
    %v4792 = vunpack.c.h.b16 %v4478
    %v4793 = vunpack.c.l.b16 %v4479
    %v4794 = vunpack.c.h.b16 %v4479
    %v4795 = vunpack.c.l.b16 %v4480
    %v4796 = vunpack.c.h.b16 %v4480
    %v4797 = vunpack.c.l.b16 %v4481
    %v4798 = vunpack.c.h.b16 %v4481
    %v4799 = vunpack.c.l.b16 %v4482
    %v4800 = vunpack.c.h.b16 %v4482
    %v4801 = vunpack.c.l.b16 %v4483
    %v4802 = vunpack.c.h.b16 %v4483
    %v4803 = vunpack.c.l.b16 %v4484
    %v4804 = vunpack.c.h.b16 %v4484
    %v4805 = vunpack.c.l.b16 %v4485
    %v4806 = vunpack.c.h.b16 %v4485
    %v4807 = vunpack.c.l.b16 %v4486
    %v4808 = vunpack.c.h.b16 %v4486
    %v4809 = vunpack.c.l.b16 %v4487
    %v4810 = vunpack.c.h.b16 %v4487
    %v4811 = vunpack.c.l.b16 %v4488
    %v4812 = vunpack.c.h.b16 %v4488
    %v4813 = vunpack.c.l.b16 %v4489
    %v4814 = vunpack.c.h.b16 %v4489
    %v4815 = vunpack.c.l.b16 %v4490
    %v4816 = vunpack.c.h.b16 %v4490
    %v4817 = vunpack.c.l.b16 %v4491
    %v4818 = vunpack.c.h.b16 %v4491
    %v4819 = vunpack.c.l.b16 %v4492
    %v4820 = vunpack.c.h.b16 %v4492
    %v4821 = vunpack.c.l.b16 %v4493
    %v4822 = vunpack.c.h.b16 %v4493
    %v4823 = vunpack.c.l.b16 %v4494
    %v4824 = vunpack.c.h.b16 %v4494
    %v4825 = vunpack.c.l.b16 %v4495
    %v4826 = vunpack.c.h.b16 %v4495
    %v4827 = vunpack.c.l.b16 %v4496
    %v4828 = vunpack.c.h.b16 %v4496
    %v4829 = vunpack.c.l.b16 %v4497
    %v4830 = vunpack.c.h.b16 %v4497
    %v4831 = vunpack.c.l.b16 %v4498
    %v4832 = vunpack.c.h.b16 %v4498
    %v4833 = vunpack.c.l.b16 %v4499
    %v4834 = vunpack.c.h.b16 %v4499
    %v4835 = vunpack.c.l.b16 %v4500
    %v4836 = vunpack.c.h.b16 %v4500
    %v4837 = vunpack.c.l.b16 %v4501
    %v4838 = vunpack.c.h.b16 %v4501
    %v4839 = vunpack.c.l.b16 %v4502
    %v4840 = vunpack.c.h.b16 %v4502
    %v4841 = vunpack.c.l.b16 %v4503
    %v4842 = vunpack.c.h.b16 %v4503
    %v4843 = vunpack.c.l.b16 %v4504
    %v4844 = vunpack.c.h.b16 %v4504
    %v4845 = vunpack.c.l.b16 %v4505
    %v4846 = vunpack.c.h.b16 %v4505
    %v4847 = vunpack.c.l.b16 %v4506
    %v4848 = vunpack.c.h.b16 %v4506
    %v4849 = vunpack.c.l.b16 %v4507
    %v4850 = vunpack.c.h.b16 %v4507
    %v4851 = vunpack.c.l.b16 %v4508
    %v4852 = vunpack.c.h.b16 %v4508
    %v4853 = vunpack.c.l.b16 %v4509
    %v4854 = vunpack.c.h.b16 %v4509
    %v4855 = vunpack.c.l.b16 %v4510
    %v4856 = vunpack.c.h.b16 %v4510
    %v4857 = vunpack.c.l.b16 %v4511
    %v4858 = vunpack.c.h.b16 %v4511
    %v4859 = vunpack.c.l.b16 %v4512
    %v4860 = vunpack.c.h.b16 %v4512
    %v4861 = vunpack.c.l.b16 %v4513
    %v4862 = vunpack.c.h.b16 %v4513
    %v4863 = vunpack.c.l.b16 %v4514
    %v4864 = vunpack.c.h.b16 %v4514
    %v4865 = vunpack.c.l.b16 %v4515
    %v4866 = vunpack.c.h.b16 %v4515
    %v4867 = vunpack.c.l.b16 %v4516
    %v4868 = vunpack.c.h.b16 %v4516
    %v4869 = vunpack.c.l.b16 %v4517
    %v4870 = vunpack.c.h.b16 %v4517
    %v4871 = vunpack.c.l.b16 %v4518
    %v4872 = vunpack.c.h.b16 %v4518
    %v4873 = vunpack.c.l.b16 %v4519
    %v4874 = vunpack.c.h.b16 %v4519
    %v4875 = vunpack.c.l.b16 %v4520
    %v4876 = vunpack.c.h.b16 %v4520
    %v4877 = vunpack.c.l.b16 %v4521
    %v4878 = vunpack.c.h.b16 %v4521
    %v4879 = vunpack.c.l.b16 %v4522
    %v4880 = vunpack.c.h.b16 %v4522
    %v4881 = vunpack.c.l.b16 %v4523
    %v4882 = vunpack.c.h.b16 %v4523
    %v4883 = vunpack.c.l.b16 %v4524
    %v4884 = vunpack.c.h.b16 %v4524
    %v4885 = vunpack.c.l.b16 %v4525
    %v4886 = vunpack.c.h.b16 %v4525
    %v4887 = vunpack.c.l.b16 %v4526
    %v4888 = vunpack.c.h.b16 %v4526
    %v4889 = vunpack.c.l.b16 %v4527
    %v4890 = vunpack.c.h.b16 %v4527
    %v4891 = vunpack.c.l.b16 %v4528
    %v4892 = vunpack.c.h.b16 %v4528
    %v4893 = vunpack.c.l.b16 %v4529
    %v4894 = vunpack.c.h.b16 %v4529
    %v4895 = vunpack.c.l.b16 %v4530
    %v4896 = vunpack.c.h.b16 %v4530
    %v4897 = vunpack.c.l.b16 %v4531
    %v4898 = vunpack.c.h.b16 %v4531
    %v4899 = vunpack.c.l.b16 %v4532
    %v4900 = vunpack.c.h.b16 %v4532
    %v4901 = vunpack.c.l.b16 %v4533
    %v4902 = vunpack.c.h.b16 %v4533
    %v4903 = vunpack.c.l.b16 %v4534
    %v4904 = vunpack.c.h.b16 %v4534
    %v4905 = vunpack.c.l.b16 %v4535
    %v4906 = vunpack.c.h.b16 %v4535
    %v4907 = vunpack.c.l.b16 %v4536
    %v4908 = vunpack.c.h.b16 %v4536
    %v4909 = vunpack.c.l.b16 %v4537
    %v4910 = vunpack.c.h.b16 %v4537
    %v4911 = vunpack.c.l.b16 %v4538
    %v4912 = vunpack.c.h.b16 %v4538
    %v4913 = vunpack.c.l.b16 %v4539
    %v4914 = vunpack.c.h.b16 %v4539
    %v4915 = vunpack.c.l.b16 %v4540
    %v4916 = vunpack.c.h.b16 %v4540
    %v4917 = vunpack.c.l.b16 %v4541
    %v4918 = vunpack.c.h.b16 %v4541
    %v4919 = vunpack.c.l.b16 %v4542
    %v4920 = vunpack.c.h.b16 %v4542
    %v4921 = vunpack.c.l.b16 %v4543
    %v4922 = vunpack.c.h.b16 %v4543
    %v4923 = vunpack.c.l.b16 %v4544
    %v4924 = vunpack.c.h.b16 %v4544
    %v4925 = vunpack.c.l.b16 %v4545
    %v4926 = vunpack.c.h.b16 %v4545
    %v4927 = vunpack.c.l.b16 %v4546
    %v4928 = vunpack.c.h.b16 %v4546
    %v4929 = vunpack.c.l.b16 %v4547
    %v4930 = vunpack.c.h.b16 %v4547
    %v4931 = vunpack.c.l.b16 %v4548
    %v4932 = vunpack.c.h.b16 %v4548
    %v4933 = vpack.c.b16 %v4685, %v4677
    %v4934 = vpack.c.b16 %v4686, %v4678
    %v4935 = vpack.c.b16 %v4687, %v4679
    %v4936 = vpack.c.b16 %v4688, %v4680
    %v4937 = vpack.c.b16 %v4689, %v4681
    %v4938 = vpack.c.b16 %v4690, %v4682
    %v4939 = vpack.c.b16 %v4691, %v4683
    %v4940 = vpack.c.b16 %v4692, %v4684
    %v4941 = vpack.c.b16 %v4701, %v4693
    %v4942 = vpack.c.b16 %v4702, %v4694
    %v4943 = vpack.c.b16 %v4703, %v4695
    %v4944 = vpack.c.b16 %v4704, %v4696
    %v4945 = vpack.c.b16 %v4705, %v4697
    %v4946 = vpack.c.b16 %v4706, %v4698
    %v4947 = vpack.c.b16 %v4707, %v4699
    %v4948 = vpack.c.b16 %v4708, %v4700
    %v4949 = vpack.c.b16 %v4717, %v4709
    %v4950 = vpack.c.b16 %v4718, %v4710
    %v4951 = vpack.c.b16 %v4719, %v4711
    %v4952 = vpack.c.b16 %v4720, %v4712
    %v4953 = vpack.c.b16 %v4721, %v4713
    %v4954 = vpack.c.b16 %v4722, %v4714
    %v4955 = vpack.c.b16 %v4723, %v4715
    %v4956 = vpack.c.b16 %v4724, %v4716
    %v4957 = vpack.c.b16 %v4733, %v4725
    %v4958 = vpack.c.b16 %v4734, %v4726
    %v4959 = vpack.c.b16 %v4735, %v4727
    %v4960 = vpack.c.b16 %v4736, %v4728
    %v4961 = vpack.c.b16 %v4737, %v4729
    %v4962 = vpack.c.b16 %v4738, %v4730
    %v4963 = vpack.c.b16 %v4739, %v4731
    %v4964 = vpack.c.b16 %v4740, %v4732
    %v4965 = vpack.c.b16 %v4749, %v4741
    %v4966 = vpack.c.b16 %v4750, %v4742
    %v4967 = vpack.c.b16 %v4751, %v4743
    %v4968 = vpack.c.b16 %v4752, %v4744
    %v4969 = vpack.c.b16 %v4753, %v4745
    %v4970 = vpack.c.b16 %v4754, %v4746
    %v4971 = vpack.c.b16 %v4755, %v4747
    %v4972 = vpack.c.b16 %v4756, %v4748
    %v4973 = vpack.c.b16 %v4765, %v4757
    %v4974 = vpack.c.b16 %v4766, %v4758
    %v4975 = vpack.c.b16 %v4767, %v4759
    %v4976 = vpack.c.b16 %v4768, %v4760
    %v4977 = vpack.c.b16 %v4769, %v4761
    %v4978 = vpack.c.b16 %v4770, %v4762
    %v4979 = vpack.c.b16 %v4771, %v4763
    %v4980 = vpack.c.b16 %v4772, %v4764
    %v4981 = vpack.c.b16 %v4781, %v4773
    %v4982 = vpack.c.b16 %v4782, %v4774
    %v4983 = vpack.c.b16 %v4783, %v4775
    %v4984 = vpack.c.b16 %v4784, %v4776
    %v4985 = vpack.c.b16 %v4785, %v4777
    %v4986 = vpack.c.b16 %v4786, %v4778
    %v4987 = vpack.c.b16 %v4787, %v4779
    %v4988 = vpack.c.b16 %v4788, %v4780
    %v4989 = vpack.c.b16 %v4797, %v4789
    %v4990 = vpack.c.b16 %v4798, %v4790
    %v4991 = vpack.c.b16 %v4799, %v4791
    %v4992 = vpack.c.b16 %v4800, %v4792
    %v4993 = vpack.c.b16 %v4801, %v4793
    %v4994 = vpack.c.b16 %v4802, %v4794
    %v4995 = vpack.c.b16 %v4803, %v4795
    %v4996 = vpack.c.b16 %v4804, %v4796
    %v4997 = vpack.c.b16 %v4813, %v4805
    %v4998 = vpack.c.b16 %v4814, %v4806
    %v4999 = vpack.c.b16 %v4815, %v4807
    %v5000 = vpack.c.b16 %v4816, %v4808
    %v5001 = vpack.c.b16 %v4817, %v4809
    %v5002 = vpack.c.b16 %v4818, %v4810
    %v5003 = vpack.c.b16 %v4819, %v4811
    %v5004 = vpack.c.b16 %v4820, %v4812
    %v5005 = vpack.c.b16 %v4829, %v4821
    %v5006 = vpack.c.b16 %v4830, %v4822
    %v5007 = vpack.c.b16 %v4831, %v4823
    %v5008 = vpack.c.b16 %v4832, %v4824
    %v5009 = vpack.c.b16 %v4833, %v4825
    %v5010 = vpack.c.b16 %v4834, %v4826
    %v5011 = vpack.c.b16 %v4835, %v4827
    %v5012 = vpack.c.b16 %v4836, %v4828
    %v5013 = vpack.c.b16 %v4845, %v4837
    %v5014 = vpack.c.b16 %v4846, %v4838
    %v5015 = vpack.c.b16 %v4847, %v4839
    %v5016 = vpack.c.b16 %v4848, %v4840
    %v5017 = vpack.c.b16 %v4849, %v4841
    %v5018 = vpack.c.b16 %v4850, %v4842
    %v5019 = vpack.c.b16 %v4851, %v4843
    %v5020 = vpack.c.b16 %v4852, %v4844
    %v5021 = vpack.c.b16 %v4861, %v4853
    %v5022 = vpack.c.b16 %v4862, %v4854
    %v5023 = vpack.c.b16 %v4863, %v4855
    %v5024 = vpack.c.b16 %v4864, %v4856
    %v5025 = vpack.c.b16 %v4865, %v4857
    %v5026 = vpack.c.b16 %v4866, %v4858
    %v5027 = vpack.c.b16 %v4867, %v4859
    %v5028 = vpack.c.b16 %v4868, %v4860
    %v5029 = vpack.c.b16 %v4877, %v4869
    %v5030 = vpack.c.b16 %v4878, %v4870
    %v5031 = vpack.c.b16 %v4879, %v4871
    %v5032 = vpack.c.b16 %v4880, %v4872
    %v5033 = vpack.c.b16 %v4881, %v4873
    %v5034 = vpack.c.b16 %v4882, %v4874
    %v5035 = vpack.c.b16 %v4883, %v4875
    %v5036 = vpack.c.b16 %v4884, %v4876
    %v5037 = vpack.c.b16 %v4893, %v4885
    %v5038 = vpack.c.b16 %v4894, %v4886
    %v5039 = vpack.c.b16 %v4895, %v4887
    %v5040 = vpack.c.b16 %v4896, %v4888
    %v5041 = vpack.c.b16 %v4897, %v4889
    %v5042 = vpack.c.b16 %v4898, %v4890
    %v5043 = vpack.c.b16 %v4899, %v4891
    %v5044 = vpack.c.b16 %v4900, %v4892
    %v5045 = vpack.c.b16 %v4909, %v4901
    %v5046 = vpack.c.b16 %v4910, %v4902
    %v5047 = vpack.c.b16 %v4911, %v4903
    %v5048 = vpack.c.b16 %v4912, %v4904
    %v5049 = vpack.c.b16 %v4913, %v4905
    %v5050 = vpack.c.b16 %v4914, %v4906
    %v5051 = vpack.c.b16 %v4915, %v4907
    %v5052 = vpack.c.b16 %v4916, %v4908
    %v5053 = vpack.c.b16 %v4925, %v4917
    %v5054 = vpack.c.b16 %v4926, %v4918
    %v5055 = vpack.c.b16 %v4927, %v4919
    %v5056 = vpack.c.b16 %v4928, %v4920
    %v5057 = vpack.c.b16 %v4929, %v4921
    %v5058 = vpack.c.b16 %v4930, %v4922
    %v5059 = vpack.c.b16 %v4931, %v4923
    %v5060 = vpack.c.b16 %v4932, %v4924
    %5189 = vmatprep.subr.bf16.mxu0 %v4990
    %5190 = vmatpush1.bf16.msra.mxu0 %v4989
    %5191 = vmatprep.subr.bf16.mxu0 %v4982
    %5192 = vmatpush1.bf16.msra.mxu0 %v4981
    %5193 = vmatprep.subr.bf16.mxu0 %v4974
    %5194 = vmatpush1.bf16.msra.mxu0 %v4973
    %5195 = vmatprep.subr.bf16.mxu0 %v4966
    %5196 = vmatpush1.bf16.msra.mxu0 %v4965
    %5197 = vmatprep.subr.bf16.mxu0 %v4958
    %5198 = vmatpush1.bf16.msra.mxu0 %v4957
    %5199 = vmatprep.subr.bf16.mxu0 %v4950
    %5200 = vmatpush1.bf16.msra.mxu0 %v4949
    %5201 = vmatprep.subr.bf16.mxu0 %v4942
    %5202 = vmatpush1.bf16.msra.mxu0 %v4941
    %5203 = vmatprep.subr.bf16.mxu0 %v4934
    %5204 = vmatpush1.bf16.msra.mxu0 %v4933
    %5205 = vmatprep.subr.bf16.mxu0 %v5054
    %5206 = vmatpush2.bf16.msra.mxu0 %v5053
    %5207 = vmatprep.subr.bf16.mxu0 %v5046
    %5208 = vmatpush2.bf16.msra.mxu0 %v5045
    %5209 = vmatprep.subr.bf16.mxu0 %v5038
    %5210 = vmatpush2.bf16.msra.mxu0 %v5037
    %5211 = vmatprep.subr.bf16.mxu0 %v5030
    %5212 = vmatpush2.bf16.msra.mxu0 %v5029
    %5213 = vmatprep.subr.bf16.mxu0 %v5022
    %5214 = vmatpush2.bf16.msra.mxu0 %v5021
    %5215 = vmatprep.subr.bf16.mxu0 %v5014
    %5216 = vmatpush2.bf16.msra.mxu0 %v5013
    %5217 = vmatprep.subr.bf16.mxu0 %v5006
    %5218 = vmatpush2.bf16.msra.mxu0 %v5005
    %5219 = vmatprep.subr.bf16.mxu0 %v4998
    %5220 = vmatpush2.bf16.msra.mxu0 %v4997
    %5221 = vmatprep.mubr.bf16.mxu0 %v4420
    %5222 = vmatmul.mubr.bf16.gmra.mxu0 %v4419
    %v5223 = vpop.f32.mrf.mxu0
    %v5224 = vadd.f32 0.0, %v5223
    %v5225 = vpop.f32.mrf.mxu0
    %v5226 = vadd.f32 0.0, %v5225
    %v5227 = vpop.f32.mrf.mxu0
    %v5228 = vpop.f32.mrf.mxu0
    %5229 = vdwg.mxu0
    %5230 = vmatprep.subr.bf16.mxu0 %v4992
    %5231 = vmatpush1.bf16.msra.mxu0 %v4991
    %5232 = vmatprep.subr.bf16.mxu0 %v4984
    %5233 = vmatpush1.bf16.msra.mxu0 %v4983
    %5234 = vmatprep.subr.bf16.mxu0 %v4976
    %5235 = vmatpush1.bf16.msra.mxu0 %v4975
    %5236 = vmatprep.subr.bf16.mxu0 %v4968
    %5237 = vmatpush1.bf16.msra.mxu0 %v4967
    %5238 = vmatprep.subr.bf16.mxu0 %v4960
    %5239 = vmatpush1.bf16.msra.mxu0 %v4959
    %5240 = vmatprep.subr.bf16.mxu0 %v4952
    %5241 = vmatpush1.bf16.msra.mxu0 %v4951
    %5242 = vmatprep.subr.bf16.mxu0 %v4944
    %5243 = vmatpush1.bf16.msra.mxu0 %v4943
    %5244 = vmatprep.subr.bf16.mxu0 %v4936
    %5245 = vmatpush1.bf16.msra.mxu0 %v4935
    %5246 = vmatprep.subr.bf16.mxu0 %v5056
    %5247 = vmatpush2.bf16.msra.mxu0 %v5055
    %5248 = vmatprep.subr.bf16.mxu0 %v5048
    %5249 = vmatpush2.bf16.msra.mxu0 %v5047
    %5250 = vmatprep.subr.bf16.mxu0 %v5040
    %5251 = vmatpush2.bf16.msra.mxu0 %v5039
    %5252 = vmatprep.subr.bf16.mxu0 %v5032
    %5253 = vmatpush2.bf16.msra.mxu0 %v5031
    %5254 = vmatprep.subr.bf16.mxu0 %v5024
    %5255 = vmatpush2.bf16.msra.mxu0 %v5023
    %5256 = vmatprep.subr.bf16.mxu0 %v5016
    %5257 = vmatpush2.bf16.msra.mxu0 %v5015
    %5258 = vmatprep.subr.bf16.mxu0 %v5008
    %5259 = vmatpush2.bf16.msra.mxu0 %v5007
    %5260 = vmatprep.subr.bf16.mxu0 %v5000
    %5261 = vmatpush2.bf16.msra.mxu0 %v4999
    %5262 = vmatprep.mubr.bf16.mxu0 %v4420
    %5263 = vmatmul.mubr.bf16.gmra.mxu0 %v4419
    %v5264 = vpop.f32.mrf.mxu0
    %v5265 = vadd.f32 0.0, %v5264
    %v5266 = vpop.f32.mrf.mxu0
    %v5267 = vadd.f32 0.0, %v5266
    %v5268 = vpop.f32.mrf.mxu0
    %v5269 = vpop.f32.mrf.mxu0
    %5270 = vdwg.mxu0
    %5271 = vmatprep.subr.bf16.mxu0 %v4994
    %5272 = vmatpush1.bf16.msra.mxu0 %v4993
    %5273 = vmatprep.subr.bf16.mxu0 %v4986
    %5274 = vmatpush1.bf16.msra.mxu0 %v4985
    %5275 = vmatprep.subr.bf16.mxu0 %v4978
    %5276 = vmatpush1.bf16.msra.mxu0 %v4977
    %5277 = vmatprep.subr.bf16.mxu0 %v4970
    %5278 = vmatpush1.bf16.msra.mxu0 %v4969
    %5279 = vmatprep.subr.bf16.mxu0 %v4962
    %5280 = vmatpush1.bf16.msra.mxu0 %v4961
    %5281 = vmatprep.subr.bf16.mxu0 %v4954
    %5282 = vmatpush1.bf16.msra.mxu0 %v4953
    %5283 = vmatprep.subr.bf16.mxu0 %v4946
    %5284 = vmatpush1.bf16.msra.mxu0 %v4945
    %5285 = vmatprep.subr.bf16.mxu0 %v4938
    %5286 = vmatpush1.bf16.msra.mxu0 %v4937
    %5287 = vmatprep.subr.bf16.mxu0 %v5058
    %5288 = vmatpush2.bf16.msra.mxu0 %v5057
    %5289 = vmatprep.subr.bf16.mxu0 %v5050
    %5290 = vmatpush2.bf16.msra.mxu0 %v5049
    %5291 = vmatprep.subr.bf16.mxu0 %v5042
    %5292 = vmatpush2.bf16.msra.mxu0 %v5041
    %5293 = vmatprep.subr.bf16.mxu0 %v5034
    %5294 = vmatpush2.bf16.msra.mxu0 %v5033
    %5295 = vmatprep.subr.bf16.mxu0 %v5026
    %5296 = vmatpush2.bf16.msra.mxu0 %v5025
    %5297 = vmatprep.subr.bf16.mxu0 %v5018
    %5298 = vmatpush2.bf16.msra.mxu0 %v5017
    %5299 = vmatprep.subr.bf16.mxu0 %v5010
    %5300 = vmatpush2.bf16.msra.mxu0 %v5009
    %5301 = vmatprep.subr.bf16.mxu0 %v5002
    %5302 = vmatpush2.bf16.msra.mxu0 %v5001
    %5303 = vmatprep.mubr.bf16.mxu0 %v4420
    %5304 = vmatmul.mubr.bf16.gmra.mxu0 %v4419
    %v5305 = vpop.f32.mrf.mxu0
    %v5306 = vadd.f32 0.0, %v5305
    %v5307 = vpop.f32.mrf.mxu0
    %v5308 = vadd.f32 0.0, %v5307
    %v5309 = vpop.f32.mrf.mxu0
    %v5310 = vpop.f32.mrf.mxu0
    %5311 = vdwg.mxu0
    %5312 = vmatprep.subr.bf16.mxu0 %v4996
    %5313 = vmatpush1.bf16.msra.mxu0 %v4995
    %5314 = vmatprep.subr.bf16.mxu0 %v4988
    %5315 = vmatpush1.bf16.msra.mxu0 %v4987
    %5316 = vmatprep.subr.bf16.mxu0 %v4980
    %5317 = vmatpush1.bf16.msra.mxu0 %v4979
    %5318 = vmatprep.subr.bf16.mxu0 %v4972
    %5319 = vmatpush1.bf16.msra.mxu0 %v4971
    %5320 = vmatprep.subr.bf16.mxu0 %v4964
    %5321 = vmatpush1.bf16.msra.mxu0 %v4963
    %5322 = vmatprep.subr.bf16.mxu0 %v4956
    %5323 = vmatpush1.bf16.msra.mxu0 %v4955
    %5324 = vmatprep.subr.bf16.mxu0 %v4948
    %5325 = vmatpush1.bf16.msra.mxu0 %v4947
    %5326 = vmatprep.subr.bf16.mxu0 %v4940
    %5327 = vmatpush1.bf16.msra.mxu0 %v4939
    %5328 = vmatprep.subr.bf16.mxu0 %v5060
    %5329 = vmatpush2.bf16.msra.mxu0 %v5059
    %5330 = vmatprep.subr.bf16.mxu0 %v5052
    %5331 = vmatpush2.bf16.msra.mxu0 %v5051
    %5332 = vmatprep.subr.bf16.mxu0 %v5044
    %5333 = vmatpush2.bf16.msra.mxu0 %v5043
    %5334 = vmatprep.subr.bf16.mxu0 %v5036
    %5335 = vmatpush2.bf16.msra.mxu0 %v5035
    %5336 = vmatprep.subr.bf16.mxu0 %v5028
    %5337 = vmatpush2.bf16.msra.mxu0 %v5027
    %5338 = vmatprep.subr.bf16.mxu0 %v5020
    %5339 = vmatpush2.bf16.msra.mxu0 %v5019
    %5340 = vmatprep.subr.bf16.mxu0 %v5012
    %5341 = vmatpush2.bf16.msra.mxu0 %v5011
    %5342 = vmatprep.subr.bf16.mxu0 %v5004
    %5343 = vmatpush2.bf16.msra.mxu0 %v5003
    %5344 = vmatprep.mubr.bf16.mxu0 %v4420
    %5345 = vmatmul.mubr.bf16.gmra.mxu0 %v4419
    %v5346 = vpop.f32.mrf.mxu0
    %v5347 = vadd.f32 0.0, %v5346
    %v5348 = vpop.f32.mrf.mxu0
    %v5349 = vadd.f32 0.0, %v5348
    %v5350 = vpop.f32.mrf.mxu0
    %v5351 = vpop.f32.mrf.mxu0
    %5352 = vdwg.mxu0
    %v5353 = vadd.f32 %v4411, %v5224
    %v5354 = vadd.f32 %v4412, %v5226
    %v5355 = vadd.f32 %v4413, %v5265
    %v5356 = vadd.f32 %v4414, %v5267
    %v5357 = vadd.f32 %v4415, %v5306
    %v5358 = vadd.f32 %v4416, %v5308
    %v5359 = vadd.f32 %v4417, %v5347
    %v5360 = vadd.f32 %v4418, %v5349
    %v5361 = vxor.u32 %v5353, 2147483648
    %v5362 = vxor.u32 %v5354, 2147483648
    %v5363 = vxor.u32 %v5355, 2147483648
    %v5364 = vxor.u32 %v5356, 2147483648
    %v5365 = vxor.u32 %v5357, 2147483648
    %v5366 = vxor.u32 %v5358, 2147483648
    %v5367 = vmul.f32 %v5361, 1.442695
    %v5368 = vpow.pop %v5367
    %v5369 = vmul.f32 %v5362, 1.442695
    %v5370 = vpow.pop %v5369
    %v5371 = vmul.f32 %v5363, 1.442695
    %v5372 = vpow.pop %v5371
    %v5373 = vmul.f32 %v5364, 1.442695
    %v5374 = vpow.pop %v5373
    %v5375 = vmul.f32 %v5365, 1.442695
    %v5376 = vpow.pop %v5375
    %v5377 = vmul.f32 %v5366, 1.442695
    %v5378 = vpow.pop %v5377
    %v5379 = vadd.f32 %v5368, 1.0
    %v5380 = vadd.f32 %v5370, 1.0
    %v5381 = vadd.f32 %v5372, 1.0
    %v5382 = vadd.f32 %v5374, 1.0
    %v5383 = vadd.f32 %v5376, 1.0
    %v5384 = vadd.f32 %v5378, 1.0
    %v5385 = vrcp.pop %v5379
    %v5386 = vmul.f32 1.0, %v5385
    %v5387 = vrcp.pop %v5380
    %v5388 = vmul.f32 1.0, %v5387
    %v5389 = vrcp.pop %v5381
    %v5390 = vmul.f32 1.0, %v5389
    %v5391 = vrcp.pop %v5382
    %v5392 = vmul.f32 1.0, %v5391
    %v5393 = vrcp.pop %v5383
    %v5394 = vmul.f32 1.0, %v5393
    %v5395 = vrcp.pop %v5384
    %v5396 = vmul.f32 1.0, %v5395
    %v5397 = vtanh.pop %v5359
    %v5398 = vtanh.pop %v5360
    %v5399 = vmul.f32 %v5390, %v4403
    %v5400 = vmul.f32 %v5392, %v4404
    %v5401 = vmul.f32 %v5386, %v5397
    %v5402 = vmul.f32 %v5388, %v5398
    %v5403 = vadd.f32 %v5399, %v5401
    %v5404 = vadd.f32 %v5400, %v5402
    %v5405 = vtanh.pop %v5403
    %v5406 = vtanh.pop %v5404
    %v5407 = vmul.f32 %v5394, %v5405
    %v5408 = vmul.f32 %v5396, %v5406
    %5409 = vst [vmem:[#allocation3 + $0x20] sm:$0xff] %v5407
    %5410 = vst [vmem:[#allocation3 + $0x28] sm:$0xff] %v5408
    %v5411 = vld [vmem:[#allocation2 + $0xc0] sm:$0xff]
    %v5412 = vld [vmem:[#allocation2 + $0xc8] sm:$0xff]
    %v5413 = vld [vmem:[#allocation2 + $0xd0] sm:$0xff]
    %v5414 = vld [vmem:[#allocation2 + $0xd8] sm:$0xff]
    %v5415 = vld [vmem:[#allocation2 + $0xe0] sm:$0xff]
    %v5416 = vld [vmem:[#allocation2 + $0xe8] sm:$0xff]
    %v5417 = vld [vmem:[#allocation2 + $0xf0] sm:$0xff]
    %v5418 = vld [vmem:[#allocation2 + $0xf8] sm:$0xff]
    %v5419 = vpack.c.bf16 %v5407, %v5407
    %v5420 = vpack.c.bf16 %v5408, %v5408
    %v5421 = vld [vmem:[#allocation9] sm:$0xff]
    %v5422 = vld [vmem:[#allocation9 + $0x8] sm:$0xff]
    %v5423 = vld [vmem:[#allocation9 + $0x10] sm:$0xff]
    %v5424 = vld [vmem:[#allocation9 + $0x18] sm:$0xff]
    %v5425 = vld [vmem:[#allocation9 + $0x20] sm:$0xff]
    %v5426 = vld [vmem:[#allocation9 + $0x28] sm:$0xff]
    %v5427 = vld [vmem:[#allocation9 + $0x30] sm:$0xff]
    %v5428 = vld [vmem:[#allocation9 + $0x38] sm:$0xff]
    %v5429 = vld [vmem:[#allocation9 + $0x40] sm:$0xff]
    %v5430 = vld [vmem:[#allocation9 + $0x48] sm:$0xff]
    %v5431 = vld [vmem:[#allocation9 + $0x50] sm:$0xff]
    %v5432 = vld [vmem:[#allocation9 + $0x58] sm:$0xff]
    %v5433 = vld [vmem:[#allocation9 + $0x60] sm:$0xff]
    %v5434 = vld [vmem:[#allocation9 + $0x68] sm:$0xff]
    %v5435 = vld [vmem:[#allocation9 + $0x70] sm:$0xff]
    %v5436 = vld [vmem:[#allocation9 + $0x78] sm:$0xff]
    %v5437 = vld [vmem:[#allocation9 + $0x80] sm:$0xff]
    %v5438 = vld [vmem:[#allocation9 + $0x88] sm:$0xff]
    %v5439 = vld [vmem:[#allocation9 + $0x90] sm:$0xff]
    %v5440 = vld [vmem:[#allocation9 + $0x98] sm:$0xff]
    %v5441 = vld [vmem:[#allocation9 + $0xa0] sm:$0xff]
    %v5442 = vld [vmem:[#allocation9 + $0xa8] sm:$0xff]
    %v5443 = vld [vmem:[#allocation9 + $0xb0] sm:$0xff]
    %v5444 = vld [vmem:[#allocation9 + $0xb8] sm:$0xff]
    %v5445 = vld [vmem:[#allocation9 + $0xc0] sm:$0xff]
    %v5446 = vld [vmem:[#allocation9 + $0xc8] sm:$0xff]
    %v5447 = vld [vmem:[#allocation9 + $0xd0] sm:$0xff]
    %v5448 = vld [vmem:[#allocation9 + $0xd8] sm:$0xff]
    %v5449 = vld [vmem:[#allocation9 + $0xe0] sm:$0xff]
    %v5450 = vld [vmem:[#allocation9 + $0xe8] sm:$0xff]
    %v5451 = vld [vmem:[#allocation9 + $0xf0] sm:$0xff]
    %v5452 = vld [vmem:[#allocation9 + $0xf8] sm:$0xff]
    %v5453 = vld [vmem:[#allocation9 + $0x100] sm:$0xff]
    %v5454 = vld [vmem:[#allocation9 + $0x108] sm:$0xff]
    %v5455 = vld [vmem:[#allocation9 + $0x110] sm:$0xff]
    %v5456 = vld [vmem:[#allocation9 + $0x118] sm:$0xff]
    %v5457 = vld [vmem:[#allocation9 + $0x120] sm:$0xff]
    %v5458 = vld [vmem:[#allocation9 + $0x128] sm:$0xff]
    %v5459 = vld [vmem:[#allocation9 + $0x130] sm:$0xff]
    %v5460 = vld [vmem:[#allocation9 + $0x138] sm:$0xff]
    %v5461 = vld [vmem:[#allocation9 + $0x140] sm:$0xff]
    %v5462 = vld [vmem:[#allocation9 + $0x148] sm:$0xff]
    %v5463 = vld [vmem:[#allocation9 + $0x150] sm:$0xff]
    %v5464 = vld [vmem:[#allocation9 + $0x158] sm:$0xff]
    %v5465 = vld [vmem:[#allocation9 + $0x160] sm:$0xff]
    %v5466 = vld [vmem:[#allocation9 + $0x168] sm:$0xff]
    %v5467 = vld [vmem:[#allocation9 + $0x170] sm:$0xff]
    %v5468 = vld [vmem:[#allocation9 + $0x178] sm:$0xff]
    %v5469 = vld [vmem:[#allocation9 + $0x180] sm:$0xff]
    %v5470 = vld [vmem:[#allocation9 + $0x188] sm:$0xff]
    %v5471 = vld [vmem:[#allocation9 + $0x190] sm:$0xff]
    %v5472 = vld [vmem:[#allocation9 + $0x198] sm:$0xff]
    %v5473 = vld [vmem:[#allocation9 + $0x1a0] sm:$0xff]
    %v5474 = vld [vmem:[#allocation9 + $0x1a8] sm:$0xff]
    %v5475 = vld [vmem:[#allocation9 + $0x1b0] sm:$0xff]
    %v5476 = vld [vmem:[#allocation9 + $0x1b8] sm:$0xff]
    %v5477 = vld [vmem:[#allocation9 + $0x1c0] sm:$0xff]
    %v5478 = vld [vmem:[#allocation9 + $0x1c8] sm:$0xff]
    %v5479 = vld [vmem:[#allocation9 + $0x1d0] sm:$0xff]
    %v5480 = vld [vmem:[#allocation9 + $0x1d8] sm:$0xff]
    %v5481 = vld [vmem:[#allocation9 + $0x1e0] sm:$0xff]
    %v5482 = vld [vmem:[#allocation9 + $0x1e8] sm:$0xff]
    %v5483 = vld [vmem:[#allocation9 + $0x1f0] sm:$0xff]
    %v5484 = vld [vmem:[#allocation9 + $0x1f8] sm:$0xff]
    %v5485 = vld [vmem:[#allocation9 + $0x200] sm:$0xff]
    %v5486 = vld [vmem:[#allocation9 + $0x208] sm:$0xff]
    %v5487 = vld [vmem:[#allocation9 + $0x210] sm:$0xff]
    %v5488 = vld [vmem:[#allocation9 + $0x218] sm:$0xff]
    %v5489 = vld [vmem:[#allocation9 + $0x220] sm:$0xff]
    %v5490 = vld [vmem:[#allocation9 + $0x228] sm:$0xff]
    %v5491 = vld [vmem:[#allocation9 + $0x230] sm:$0xff]
    %v5492 = vld [vmem:[#allocation9 + $0x238] sm:$0xff]
    %v5493 = vld [vmem:[#allocation9 + $0x240] sm:$0xff]
    %v5494 = vld [vmem:[#allocation9 + $0x248] sm:$0xff]
    %v5495 = vld [vmem:[#allocation9 + $0x250] sm:$0xff]
    %v5496 = vld [vmem:[#allocation9 + $0x258] sm:$0xff]
    %v5497 = vld [vmem:[#allocation9 + $0x260] sm:$0xff]
    %v5498 = vld [vmem:[#allocation9 + $0x268] sm:$0xff]
    %v5499 = vld [vmem:[#allocation9 + $0x270] sm:$0xff]
    %v5500 = vld [vmem:[#allocation9 + $0x278] sm:$0xff]
    %v5501 = vld [vmem:[#allocation9 + $0x280] sm:$0xff]
    %v5502 = vld [vmem:[#allocation9 + $0x288] sm:$0xff]
    %v5503 = vld [vmem:[#allocation9 + $0x290] sm:$0xff]
    %v5504 = vld [vmem:[#allocation9 + $0x298] sm:$0xff]
    %v5505 = vld [vmem:[#allocation9 + $0x2a0] sm:$0xff]
    %v5506 = vld [vmem:[#allocation9 + $0x2a8] sm:$0xff]
    %v5507 = vld [vmem:[#allocation9 + $0x2b0] sm:$0xff]
    %v5508 = vld [vmem:[#allocation9 + $0x2b8] sm:$0xff]
    %v5509 = vld [vmem:[#allocation9 + $0x2c0] sm:$0xff]
    %v5510 = vld [vmem:[#allocation9 + $0x2c8] sm:$0xff]
    %v5511 = vld [vmem:[#allocation9 + $0x2d0] sm:$0xff]
    %v5512 = vld [vmem:[#allocation9 + $0x2d8] sm:$0xff]
    %v5513 = vld [vmem:[#allocation9 + $0x2e0] sm:$0xff]
    %v5514 = vld [vmem:[#allocation9 + $0x2e8] sm:$0xff]
    %v5515 = vld [vmem:[#allocation9 + $0x2f0] sm:$0xff]
    %v5516 = vld [vmem:[#allocation9 + $0x2f8] sm:$0xff]
    %v5517 = vld [vmem:[#allocation9 + $0x300] sm:$0xff]
    %v5518 = vld [vmem:[#allocation9 + $0x308] sm:$0xff]
    %v5519 = vld [vmem:[#allocation9 + $0x310] sm:$0xff]
    %v5520 = vld [vmem:[#allocation9 + $0x318] sm:$0xff]
    %v5521 = vld [vmem:[#allocation9 + $0x320] sm:$0xff]
    %v5522 = vld [vmem:[#allocation9 + $0x328] sm:$0xff]
    %v5523 = vld [vmem:[#allocation9 + $0x330] sm:$0xff]
    %v5524 = vld [vmem:[#allocation9 + $0x338] sm:$0xff]
    %v5525 = vld [vmem:[#allocation9 + $0x340] sm:$0xff]
    %v5526 = vld [vmem:[#allocation9 + $0x348] sm:$0xff]
    %v5527 = vld [vmem:[#allocation9 + $0x350] sm:$0xff]
    %v5528 = vld [vmem:[#allocation9 + $0x358] sm:$0xff]
    %v5529 = vld [vmem:[#allocation9 + $0x360] sm:$0xff]
    %v5530 = vld [vmem:[#allocation9 + $0x368] sm:$0xff]
    %v5531 = vld [vmem:[#allocation9 + $0x370] sm:$0xff]
    %v5532 = vld [vmem:[#allocation9 + $0x378] sm:$0xff]
    %v5533 = vld [vmem:[#allocation9 + $0x380] sm:$0xff]
    %v5534 = vld [vmem:[#allocation9 + $0x388] sm:$0xff]
    %v5535 = vld [vmem:[#allocation9 + $0x390] sm:$0xff]
    %v5536 = vld [vmem:[#allocation9 + $0x398] sm:$0xff]
    %v5537 = vld [vmem:[#allocation9 + $0x3a0] sm:$0xff]
    %v5538 = vld [vmem:[#allocation9 + $0x3a8] sm:$0xff]
    %v5539 = vld [vmem:[#allocation9 + $0x3b0] sm:$0xff]
    %v5540 = vld [vmem:[#allocation9 + $0x3b8] sm:$0xff]
    %v5541 = vld [vmem:[#allocation9 + $0x3c0] sm:$0xff]
    %v5542 = vld [vmem:[#allocation9 + $0x3c8] sm:$0xff]
    %v5543 = vld [vmem:[#allocation9 + $0x3d0] sm:$0xff]
    %v5544 = vld [vmem:[#allocation9 + $0x3d8] sm:$0xff]
    %v5545 = vld [vmem:[#allocation9 + $0x3e0] sm:$0xff]
    %v5546 = vld [vmem:[#allocation9 + $0x3e8] sm:$0xff]
    %v5547 = vld [vmem:[#allocation9 + $0x3f0] sm:$0xff]
    %v5548 = vld [vmem:[#allocation9 + $0x3f8] sm:$0xff]
    %v5677 = vunpack.c.l.b16 %v5421
    %v5678 = vunpack.c.h.b16 %v5421
    %v5679 = vunpack.c.l.b16 %v5422
    %v5680 = vunpack.c.h.b16 %v5422
    %v5681 = vunpack.c.l.b16 %v5423
    %v5682 = vunpack.c.h.b16 %v5423
    %v5683 = vunpack.c.l.b16 %v5424
    %v5684 = vunpack.c.h.b16 %v5424
    %v5685 = vunpack.c.l.b16 %v5425
    %v5686 = vunpack.c.h.b16 %v5425
    %v5687 = vunpack.c.l.b16 %v5426
    %v5688 = vunpack.c.h.b16 %v5426
    %v5689 = vunpack.c.l.b16 %v5427
    %v5690 = vunpack.c.h.b16 %v5427
    %v5691 = vunpack.c.l.b16 %v5428
    %v5692 = vunpack.c.h.b16 %v5428
    %v5693 = vunpack.c.l.b16 %v5429
    %v5694 = vunpack.c.h.b16 %v5429
    %v5695 = vunpack.c.l.b16 %v5430
    %v5696 = vunpack.c.h.b16 %v5430
    %v5697 = vunpack.c.l.b16 %v5431
    %v5698 = vunpack.c.h.b16 %v5431
    %v5699 = vunpack.c.l.b16 %v5432
    %v5700 = vunpack.c.h.b16 %v5432
    %v5701 = vunpack.c.l.b16 %v5433
    %v5702 = vunpack.c.h.b16 %v5433
    %v5703 = vunpack.c.l.b16 %v5434
    %v5704 = vunpack.c.h.b16 %v5434
    %v5705 = vunpack.c.l.b16 %v5435
    %v5706 = vunpack.c.h.b16 %v5435
    %v5707 = vunpack.c.l.b16 %v5436
    %v5708 = vunpack.c.h.b16 %v5436
    %v5709 = vunpack.c.l.b16 %v5437
    %v5710 = vunpack.c.h.b16 %v5437
    %v5711 = vunpack.c.l.b16 %v5438
    %v5712 = vunpack.c.h.b16 %v5438
    %v5713 = vunpack.c.l.b16 %v5439
    %v5714 = vunpack.c.h.b16 %v5439
    %v5715 = vunpack.c.l.b16 %v5440
    %v5716 = vunpack.c.h.b16 %v5440
    %v5717 = vunpack.c.l.b16 %v5441
    %v5718 = vunpack.c.h.b16 %v5441
    %v5719 = vunpack.c.l.b16 %v5442
    %v5720 = vunpack.c.h.b16 %v5442
    %v5721 = vunpack.c.l.b16 %v5443
    %v5722 = vunpack.c.h.b16 %v5443
    %v5723 = vunpack.c.l.b16 %v5444
    %v5724 = vunpack.c.h.b16 %v5444
    %v5725 = vunpack.c.l.b16 %v5445
    %v5726 = vunpack.c.h.b16 %v5445
    %v5727 = vunpack.c.l.b16 %v5446
    %v5728 = vunpack.c.h.b16 %v5446
    %v5729 = vunpack.c.l.b16 %v5447
    %v5730 = vunpack.c.h.b16 %v5447
    %v5731 = vunpack.c.l.b16 %v5448
    %v5732 = vunpack.c.h.b16 %v5448
    %v5733 = vunpack.c.l.b16 %v5449
    %v5734 = vunpack.c.h.b16 %v5449
    %v5735 = vunpack.c.l.b16 %v5450
    %v5736 = vunpack.c.h.b16 %v5450
    %v5737 = vunpack.c.l.b16 %v5451
    %v5738 = vunpack.c.h.b16 %v5451
    %v5739 = vunpack.c.l.b16 %v5452
    %v5740 = vunpack.c.h.b16 %v5452
    %v5741 = vunpack.c.l.b16 %v5453
    %v5742 = vunpack.c.h.b16 %v5453
    %v5743 = vunpack.c.l.b16 %v5454
    %v5744 = vunpack.c.h.b16 %v5454
    %v5745 = vunpack.c.l.b16 %v5455
    %v5746 = vunpack.c.h.b16 %v5455
    %v5747 = vunpack.c.l.b16 %v5456
    %v5748 = vunpack.c.h.b16 %v5456
    %v5749 = vunpack.c.l.b16 %v5457
    %v5750 = vunpack.c.h.b16 %v5457
    %v5751 = vunpack.c.l.b16 %v5458
    %v5752 = vunpack.c.h.b16 %v5458
    %v5753 = vunpack.c.l.b16 %v5459
    %v5754 = vunpack.c.h.b16 %v5459
    %v5755 = vunpack.c.l.b16 %v5460
    %v5756 = vunpack.c.h.b16 %v5460
    %v5757 = vunpack.c.l.b16 %v5461
    %v5758 = vunpack.c.h.b16 %v5461
    %v5759 = vunpack.c.l.b16 %v5462
    %v5760 = vunpack.c.h.b16 %v5462
    %v5761 = vunpack.c.l.b16 %v5463
    %v5762 = vunpack.c.h.b16 %v5463
    %v5763 = vunpack.c.l.b16 %v5464
    %v5764 = vunpack.c.h.b16 %v5464
    %v5765 = vunpack.c.l.b16 %v5465
    %v5766 = vunpack.c.h.b16 %v5465
    %v5767 = vunpack.c.l.b16 %v5466
    %v5768 = vunpack.c.h.b16 %v5466
    %v5769 = vunpack.c.l.b16 %v5467
    %v5770 = vunpack.c.h.b16 %v5467
    %v5771 = vunpack.c.l.b16 %v5468
    %v5772 = vunpack.c.h.b16 %v5468
    %v5773 = vunpack.c.l.b16 %v5469
    %v5774 = vunpack.c.h.b16 %v5469
    %v5775 = vunpack.c.l.b16 %v5470
    %v5776 = vunpack.c.h.b16 %v5470
    %v5777 = vunpack.c.l.b16 %v5471
    %v5778 = vunpack.c.h.b16 %v5471
    %v5779 = vunpack.c.l.b16 %v5472
    %v5780 = vunpack.c.h.b16 %v5472
    %v5781 = vunpack.c.l.b16 %v5473
    %v5782 = vunpack.c.h.b16 %v5473
    %v5783 = vunpack.c.l.b16 %v5474
    %v5784 = vunpack.c.h.b16 %v5474
    %v5785 = vunpack.c.l.b16 %v5475
    %v5786 = vunpack.c.h.b16 %v5475
    %v5787 = vunpack.c.l.b16 %v5476
    %v5788 = vunpack.c.h.b16 %v5476
    %v5789 = vunpack.c.l.b16 %v5477
    %v5790 = vunpack.c.h.b16 %v5477
    %v5791 = vunpack.c.l.b16 %v5478
    %v5792 = vunpack.c.h.b16 %v5478
    %v5793 = vunpack.c.l.b16 %v5479
    %v5794 = vunpack.c.h.b16 %v5479
    %v5795 = vunpack.c.l.b16 %v5480
    %v5796 = vunpack.c.h.b16 %v5480
    %v5797 = vunpack.c.l.b16 %v5481
    %v5798 = vunpack.c.h.b16 %v5481
    %v5799 = vunpack.c.l.b16 %v5482
    %v5800 = vunpack.c.h.b16 %v5482
    %v5801 = vunpack.c.l.b16 %v5483
    %v5802 = vunpack.c.h.b16 %v5483
    %v5803 = vunpack.c.l.b16 %v5484
    %v5804 = vunpack.c.h.b16 %v5484
    %v5805 = vunpack.c.l.b16 %v5485
    %v5806 = vunpack.c.h.b16 %v5485
    %v5807 = vunpack.c.l.b16 %v5486
    %v5808 = vunpack.c.h.b16 %v5486
    %v5809 = vunpack.c.l.b16 %v5487
    %v5810 = vunpack.c.h.b16 %v5487
    %v5811 = vunpack.c.l.b16 %v5488
    %v5812 = vunpack.c.h.b16 %v5488
    %v5813 = vunpack.c.l.b16 %v5489
    %v5814 = vunpack.c.h.b16 %v5489
    %v5815 = vunpack.c.l.b16 %v5490
    %v5816 = vunpack.c.h.b16 %v5490
    %v5817 = vunpack.c.l.b16 %v5491
    %v5818 = vunpack.c.h.b16 %v5491
    %v5819 = vunpack.c.l.b16 %v5492
    %v5820 = vunpack.c.h.b16 %v5492
    %v5821 = vunpack.c.l.b16 %v5493
    %v5822 = vunpack.c.h.b16 %v5493
    %v5823 = vunpack.c.l.b16 %v5494
    %v5824 = vunpack.c.h.b16 %v5494
    %v5825 = vunpack.c.l.b16 %v5495
    %v5826 = vunpack.c.h.b16 %v5495
    %v5827 = vunpack.c.l.b16 %v5496
    %v5828 = vunpack.c.h.b16 %v5496
    %v5829 = vunpack.c.l.b16 %v5497
    %v5830 = vunpack.c.h.b16 %v5497
    %v5831 = vunpack.c.l.b16 %v5498
    %v5832 = vunpack.c.h.b16 %v5498
    %v5833 = vunpack.c.l.b16 %v5499
    %v5834 = vunpack.c.h.b16 %v5499
    %v5835 = vunpack.c.l.b16 %v5500
    %v5836 = vunpack.c.h.b16 %v5500
    %v5837 = vunpack.c.l.b16 %v5501
    %v5838 = vunpack.c.h.b16 %v5501
    %v5839 = vunpack.c.l.b16 %v5502
    %v5840 = vunpack.c.h.b16 %v5502
    %v5841 = vunpack.c.l.b16 %v5503
    %v5842 = vunpack.c.h.b16 %v5503
    %v5843 = vunpack.c.l.b16 %v5504
    %v5844 = vunpack.c.h.b16 %v5504
    %v5845 = vunpack.c.l.b16 %v5505
    %v5846 = vunpack.c.h.b16 %v5505
    %v5847 = vunpack.c.l.b16 %v5506
    %v5848 = vunpack.c.h.b16 %v5506
    %v5849 = vunpack.c.l.b16 %v5507
    %v5850 = vunpack.c.h.b16 %v5507
    %v5851 = vunpack.c.l.b16 %v5508
    %v5852 = vunpack.c.h.b16 %v5508
    %v5853 = vunpack.c.l.b16 %v5509
    %v5854 = vunpack.c.h.b16 %v5509
    %v5855 = vunpack.c.l.b16 %v5510
    %v5856 = vunpack.c.h.b16 %v5510
    %v5857 = vunpack.c.l.b16 %v5511
    %v5858 = vunpack.c.h.b16 %v5511
    %v5859 = vunpack.c.l.b16 %v5512
    %v5860 = vunpack.c.h.b16 %v5512
    %v5861 = vunpack.c.l.b16 %v5513
    %v5862 = vunpack.c.h.b16 %v5513
    %v5863 = vunpack.c.l.b16 %v5514
    %v5864 = vunpack.c.h.b16 %v5514
    %v5865 = vunpack.c.l.b16 %v5515
    %v5866 = vunpack.c.h.b16 %v5515
    %v5867 = vunpack.c.l.b16 %v5516
    %v5868 = vunpack.c.h.b16 %v5516
    %v5869 = vunpack.c.l.b16 %v5517
    %v5870 = vunpack.c.h.b16 %v5517
    %v5871 = vunpack.c.l.b16 %v5518
    %v5872 = vunpack.c.h.b16 %v5518
    %v5873 = vunpack.c.l.b16 %v5519
    %v5874 = vunpack.c.h.b16 %v5519
    %v5875 = vunpack.c.l.b16 %v5520
    %v5876 = vunpack.c.h.b16 %v5520
    %v5877 = vunpack.c.l.b16 %v5521
    %v5878 = vunpack.c.h.b16 %v5521
    %v5879 = vunpack.c.l.b16 %v5522
    %v5880 = vunpack.c.h.b16 %v5522
    %v5881 = vunpack.c.l.b16 %v5523
    %v5882 = vunpack.c.h.b16 %v5523
    %v5883 = vunpack.c.l.b16 %v5524
    %v5884 = vunpack.c.h.b16 %v5524
    %v5885 = vunpack.c.l.b16 %v5525
    %v5886 = vunpack.c.h.b16 %v5525
    %v5887 = vunpack.c.l.b16 %v5526
    %v5888 = vunpack.c.h.b16 %v5526
    %v5889 = vunpack.c.l.b16 %v5527
    %v5890 = vunpack.c.h.b16 %v5527
    %v5891 = vunpack.c.l.b16 %v5528
    %v5892 = vunpack.c.h.b16 %v5528
    %v5893 = vunpack.c.l.b16 %v5529
    %v5894 = vunpack.c.h.b16 %v5529
    %v5895 = vunpack.c.l.b16 %v5530
    %v5896 = vunpack.c.h.b16 %v5530
    %v5897 = vunpack.c.l.b16 %v5531
    %v5898 = vunpack.c.h.b16 %v5531
    %v5899 = vunpack.c.l.b16 %v5532
    %v5900 = vunpack.c.h.b16 %v5532
    %v5901 = vunpack.c.l.b16 %v5533
    %v5902 = vunpack.c.h.b16 %v5533
    %v5903 = vunpack.c.l.b16 %v5534
    %v5904 = vunpack.c.h.b16 %v5534
    %v5905 = vunpack.c.l.b16 %v5535
    %v5906 = vunpack.c.h.b16 %v5535
    %v5907 = vunpack.c.l.b16 %v5536
    %v5908 = vunpack.c.h.b16 %v5536
    %v5909 = vunpack.c.l.b16 %v5537
    %v5910 = vunpack.c.h.b16 %v5537
    %v5911 = vunpack.c.l.b16 %v5538
    %v5912 = vunpack.c.h.b16 %v5538
    %v5913 = vunpack.c.l.b16 %v5539
    %v5914 = vunpack.c.h.b16 %v5539
    %v5915 = vunpack.c.l.b16 %v5540
    %v5916 = vunpack.c.h.b16 %v5540
    %v5917 = vunpack.c.l.b16 %v5541
    %v5918 = vunpack.c.h.b16 %v5541
    %v5919 = vunpack.c.l.b16 %v5542
    %v5920 = vunpack.c.h.b16 %v5542
    %v5921 = vunpack.c.l.b16 %v5543
    %v5922 = vunpack.c.h.b16 %v5543
    %v5923 = vunpack.c.l.b16 %v5544
    %v5924 = vunpack.c.h.b16 %v5544
    %v5925 = vunpack.c.l.b16 %v5545
    %v5926 = vunpack.c.h.b16 %v5545
    %v5927 = vunpack.c.l.b16 %v5546
    %v5928 = vunpack.c.h.b16 %v5546
    %v5929 = vunpack.c.l.b16 %v5547
    %v5930 = vunpack.c.h.b16 %v5547
    %v5931 = vunpack.c.l.b16 %v5548
    %v5932 = vunpack.c.h.b16 %v5548
    %v5933 = vpack.c.b16 %v5685, %v5677
    %v5934 = vpack.c.b16 %v5686, %v5678
    %v5935 = vpack.c.b16 %v5687, %v5679
    %v5936 = vpack.c.b16 %v5688, %v5680
    %v5937 = vpack.c.b16 %v5689, %v5681
    %v5938 = vpack.c.b16 %v5690, %v5682
    %v5939 = vpack.c.b16 %v5691, %v5683
    %v5940 = vpack.c.b16 %v5692, %v5684
    %v5941 = vpack.c.b16 %v5701, %v5693
    %v5942 = vpack.c.b16 %v5702, %v5694
    %v5943 = vpack.c.b16 %v5703, %v5695
    %v5944 = vpack.c.b16 %v5704, %v5696
    %v5945 = vpack.c.b16 %v5705, %v5697
    %v5946 = vpack.c.b16 %v5706, %v5698
    %v5947 = vpack.c.b16 %v5707, %v5699
    %v5948 = vpack.c.b16 %v5708, %v5700
    %v5949 = vpack.c.b16 %v5717, %v5709
    %v5950 = vpack.c.b16 %v5718, %v5710
    %v5951 = vpack.c.b16 %v5719, %v5711
    %v5952 = vpack.c.b16 %v5720, %v5712
    %v5953 = vpack.c.b16 %v5721, %v5713
    %v5954 = vpack.c.b16 %v5722, %v5714
    %v5955 = vpack.c.b16 %v5723, %v5715
    %v5956 = vpack.c.b16 %v5724, %v5716
    %v5957 = vpack.c.b16 %v5733, %v5725
    %v5958 = vpack.c.b16 %v5734, %v5726
    %v5959 = vpack.c.b16 %v5735, %v5727
    %v5960 = vpack.c.b16 %v5736, %v5728
    %v5961 = vpack.c.b16 %v5737, %v5729
    %v5962 = vpack.c.b16 %v5738, %v5730
    %v5963 = vpack.c.b16 %v5739, %v5731
    %v5964 = vpack.c.b16 %v5740, %v5732
    %v5965 = vpack.c.b16 %v5749, %v5741
    %v5966 = vpack.c.b16 %v5750, %v5742
    %v5967 = vpack.c.b16 %v5751, %v5743
    %v5968 = vpack.c.b16 %v5752, %v5744
    %v5969 = vpack.c.b16 %v5753, %v5745
    %v5970 = vpack.c.b16 %v5754, %v5746
    %v5971 = vpack.c.b16 %v5755, %v5747
    %v5972 = vpack.c.b16 %v5756, %v5748
    %v5973 = vpack.c.b16 %v5765, %v5757
    %v5974 = vpack.c.b16 %v5766, %v5758
    %v5975 = vpack.c.b16 %v5767, %v5759
    %v5976 = vpack.c.b16 %v5768, %v5760
    %v5977 = vpack.c.b16 %v5769, %v5761
    %v5978 = vpack.c.b16 %v5770, %v5762
    %v5979 = vpack.c.b16 %v5771, %v5763
    %v5980 = vpack.c.b16 %v5772, %v5764
    %v5981 = vpack.c.b16 %v5781, %v5773
    %v5982 = vpack.c.b16 %v5782, %v5774
    %v5983 = vpack.c.b16 %v5783, %v5775
    %v5984 = vpack.c.b16 %v5784, %v5776
    %v5985 = vpack.c.b16 %v5785, %v5777
    %v5986 = vpack.c.b16 %v5786, %v5778
    %v5987 = vpack.c.b16 %v5787, %v5779
    %v5988 = vpack.c.b16 %v5788, %v5780
    %v5989 = vpack.c.b16 %v5797, %v5789
    %v5990 = vpack.c.b16 %v5798, %v5790
    %v5991 = vpack.c.b16 %v5799, %v5791
    %v5992 = vpack.c.b16 %v5800, %v5792
    %v5993 = vpack.c.b16 %v5801, %v5793
    %v5994 = vpack.c.b16 %v5802, %v5794
    %v5995 = vpack.c.b16 %v5803, %v5795
    %v5996 = vpack.c.b16 %v5804, %v5796
    %v5997 = vpack.c.b16 %v5813, %v5805
    %v5998 = vpack.c.b16 %v5814, %v5806
    %v5999 = vpack.c.b16 %v5815, %v5807
    %v6000 = vpack.c.b16 %v5816, %v5808
    %v6001 = vpack.c.b16 %v5817, %v5809
    %v6002 = vpack.c.b16 %v5818, %v5810
    %v6003 = vpack.c.b16 %v5819, %v5811
    %v6004 = vpack.c.b16 %v5820, %v5812
    %v6005 = vpack.c.b16 %v5829, %v5821
    %v6006 = vpack.c.b16 %v5830, %v5822
    %v6007 = vpack.c.b16 %v5831, %v5823
    %v6008 = vpack.c.b16 %v5832, %v5824
    %v6009 = vpack.c.b16 %v5833, %v5825
    %v6010 = vpack.c.b16 %v5834, %v5826
    %v6011 = vpack.c.b16 %v5835, %v5827
    %v6012 = vpack.c.b16 %v5836, %v5828
    %v6013 = vpack.c.b16 %v5845, %v5837
    %v6014 = vpack.c.b16 %v5846, %v5838
    %v6015 = vpack.c.b16 %v5847, %v5839
    %v6016 = vpack.c.b16 %v5848, %v5840
    %v6017 = vpack.c.b16 %v5849, %v5841
    %v6018 = vpack.c.b16 %v5850, %v5842
    %v6019 = vpack.c.b16 %v5851, %v5843
    %v6020 = vpack.c.b16 %v5852, %v5844
    %v6021 = vpack.c.b16 %v5861, %v5853
    %v6022 = vpack.c.b16 %v5862, %v5854
    %v6023 = vpack.c.b16 %v5863, %v5855
    %v6024 = vpack.c.b16 %v5864, %v5856
    %v6025 = vpack.c.b16 %v5865, %v5857
    %v6026 = vpack.c.b16 %v5866, %v5858
    %v6027 = vpack.c.b16 %v5867, %v5859
    %v6028 = vpack.c.b16 %v5868, %v5860
    %v6029 = vpack.c.b16 %v5877, %v5869
    %v6030 = vpack.c.b16 %v5878, %v5870
    %v6031 = vpack.c.b16 %v5879, %v5871
    %v6032 = vpack.c.b16 %v5880, %v5872
    %v6033 = vpack.c.b16 %v5881, %v5873
    %v6034 = vpack.c.b16 %v5882, %v5874
    %v6035 = vpack.c.b16 %v5883, %v5875
    %v6036 = vpack.c.b16 %v5884, %v5876
    %v6037 = vpack.c.b16 %v5893, %v5885
    %v6038 = vpack.c.b16 %v5894, %v5886
    %v6039 = vpack.c.b16 %v5895, %v5887
    %v6040 = vpack.c.b16 %v5896, %v5888
    %v6041 = vpack.c.b16 %v5897, %v5889
    %v6042 = vpack.c.b16 %v5898, %v5890
    %v6043 = vpack.c.b16 %v5899, %v5891
    %v6044 = vpack.c.b16 %v5900, %v5892
    %v6045 = vpack.c.b16 %v5909, %v5901
    %v6046 = vpack.c.b16 %v5910, %v5902
    %v6047 = vpack.c.b16 %v5911, %v5903
    %v6048 = vpack.c.b16 %v5912, %v5904
    %v6049 = vpack.c.b16 %v5913, %v5905
    %v6050 = vpack.c.b16 %v5914, %v5906
    %v6051 = vpack.c.b16 %v5915, %v5907
    %v6052 = vpack.c.b16 %v5916, %v5908
    %v6053 = vpack.c.b16 %v5925, %v5917
    %v6054 = vpack.c.b16 %v5926, %v5918
    %v6055 = vpack.c.b16 %v5927, %v5919
    %v6056 = vpack.c.b16 %v5928, %v5920
    %v6057 = vpack.c.b16 %v5929, %v5921
    %v6058 = vpack.c.b16 %v5930, %v5922
    %v6059 = vpack.c.b16 %v5931, %v5923
    %v6060 = vpack.c.b16 %v5932, %v5924
    %6189 = vmatprep.subr.bf16.mxu0 %v5990
    %6190 = vmatpush1.bf16.msra.mxu0 %v5989
    %6191 = vmatprep.subr.bf16.mxu0 %v5982
    %6192 = vmatpush1.bf16.msra.mxu0 %v5981
    %6193 = vmatprep.subr.bf16.mxu0 %v5974
    %6194 = vmatpush1.bf16.msra.mxu0 %v5973
    %6195 = vmatprep.subr.bf16.mxu0 %v5966
    %6196 = vmatpush1.bf16.msra.mxu0 %v5965
    %6197 = vmatprep.subr.bf16.mxu0 %v5958
    %6198 = vmatpush1.bf16.msra.mxu0 %v5957
    %6199 = vmatprep.subr.bf16.mxu0 %v5950
    %6200 = vmatpush1.bf16.msra.mxu0 %v5949
    %6201 = vmatprep.subr.bf16.mxu0 %v5942
    %6202 = vmatpush1.bf16.msra.mxu0 %v5941
    %6203 = vmatprep.subr.bf16.mxu0 %v5934
    %6204 = vmatpush1.bf16.msra.mxu0 %v5933
    %6205 = vmatprep.subr.bf16.mxu0 %v6054
    %6206 = vmatpush2.bf16.msra.mxu0 %v6053
    %6207 = vmatprep.subr.bf16.mxu0 %v6046
    %6208 = vmatpush2.bf16.msra.mxu0 %v6045
    %6209 = vmatprep.subr.bf16.mxu0 %v6038
    %6210 = vmatpush2.bf16.msra.mxu0 %v6037
    %6211 = vmatprep.subr.bf16.mxu0 %v6030
    %6212 = vmatpush2.bf16.msra.mxu0 %v6029
    %6213 = vmatprep.subr.bf16.mxu0 %v6022
    %6214 = vmatpush2.bf16.msra.mxu0 %v6021
    %6215 = vmatprep.subr.bf16.mxu0 %v6014
    %6216 = vmatpush2.bf16.msra.mxu0 %v6013
    %6217 = vmatprep.subr.bf16.mxu0 %v6006
    %6218 = vmatpush2.bf16.msra.mxu0 %v6005
    %6219 = vmatprep.subr.bf16.mxu0 %v5998
    %6220 = vmatpush2.bf16.msra.mxu0 %v5997
    %6221 = vmatprep.mubr.bf16.mxu0 %v5420
    %6222 = vmatmul.mubr.bf16.gmra.mxu0 %v5419
    %v6223 = vpop.f32.mrf.mxu0
    %v6224 = vadd.f32 0.0, %v6223
    %v6225 = vpop.f32.mrf.mxu0
    %v6226 = vadd.f32 0.0, %v6225
    %v6227 = vpop.f32.mrf.mxu0
    %v6228 = vpop.f32.mrf.mxu0
    %6229 = vdwg.mxu0
    %6230 = vmatprep.subr.bf16.mxu0 %v5992
    %6231 = vmatpush1.bf16.msra.mxu0 %v5991
    %6232 = vmatprep.subr.bf16.mxu0 %v5984
    %6233 = vmatpush1.bf16.msra.mxu0 %v5983
    %6234 = vmatprep.subr.bf16.mxu0 %v5976
    %6235 = vmatpush1.bf16.msra.mxu0 %v5975
    %6236 = vmatprep.subr.bf16.mxu0 %v5968
    %6237 = vmatpush1.bf16.msra.mxu0 %v5967
    %6238 = vmatprep.subr.bf16.mxu0 %v5960
    %6239 = vmatpush1.bf16.msra.mxu0 %v5959
    %6240 = vmatprep.subr.bf16.mxu0 %v5952
    %6241 = vmatpush1.bf16.msra.mxu0 %v5951
    %6242 = vmatprep.subr.bf16.mxu0 %v5944
    %6243 = vmatpush1.bf16.msra.mxu0 %v5943
    %6244 = vmatprep.subr.bf16.mxu0 %v5936
    %6245 = vmatpush1.bf16.msra.mxu0 %v5935
    %6246 = vmatprep.subr.bf16.mxu0 %v6056
    %6247 = vmatpush2.bf16.msra.mxu0 %v6055
    %6248 = vmatprep.subr.bf16.mxu0 %v6048
    %6249 = vmatpush2.bf16.msra.mxu0 %v6047
    %6250 = vmatprep.subr.bf16.mxu0 %v6040
    %6251 = vmatpush2.bf16.msra.mxu0 %v6039
    %6252 = vmatprep.subr.bf16.mxu0 %v6032
    %6253 = vmatpush2.bf16.msra.mxu0 %v6031
    %6254 = vmatprep.subr.bf16.mxu0 %v6024
    %6255 = vmatpush2.bf16.msra.mxu0 %v6023
    %6256 = vmatprep.subr.bf16.mxu0 %v6016
    %6257 = vmatpush2.bf16.msra.mxu0 %v6015
    %6258 = vmatprep.subr.bf16.mxu0 %v6008
    %6259 = vmatpush2.bf16.msra.mxu0 %v6007
    %6260 = vmatprep.subr.bf16.mxu0 %v6000
    %6261 = vmatpush2.bf16.msra.mxu0 %v5999
    %6262 = vmatprep.mubr.bf16.mxu0 %v5420
    %6263 = vmatmul.mubr.bf16.gmra.mxu0 %v5419
    %v6264 = vpop.f32.mrf.mxu0
    %v6265 = vadd.f32 0.0, %v6264
    %v6266 = vpop.f32.mrf.mxu0
    %v6267 = vadd.f32 0.0, %v6266
    %v6268 = vpop.f32.mrf.mxu0
    %v6269 = vpop.f32.mrf.mxu0
    %6270 = vdwg.mxu0
    %6271 = vmatprep.subr.bf16.mxu0 %v5994
    %6272 = vmatpush1.bf16.msra.mxu0 %v5993
    %6273 = vmatprep.subr.bf16.mxu0 %v5986
    %6274 = vmatpush1.bf16.msra.mxu0 %v5985
    %6275 = vmatprep.subr.bf16.mxu0 %v5978
    %6276 = vmatpush1.bf16.msra.mxu0 %v5977
    %6277 = vmatprep.subr.bf16.mxu0 %v5970
    %6278 = vmatpush1.bf16.msra.mxu0 %v5969
    %6279 = vmatprep.subr.bf16.mxu0 %v5962
    %6280 = vmatpush1.bf16.msra.mxu0 %v5961
    %6281 = vmatprep.subr.bf16.mxu0 %v5954
    %6282 = vmatpush1.bf16.msra.mxu0 %v5953
    %6283 = vmatprep.subr.bf16.mxu0 %v5946
    %6284 = vmatpush1.bf16.msra.mxu0 %v5945
    %6285 = vmatprep.subr.bf16.mxu0 %v5938
    %6286 = vmatpush1.bf16.msra.mxu0 %v5937
    %6287 = vmatprep.subr.bf16.mxu0 %v6058
    %6288 = vmatpush2.bf16.msra.mxu0 %v6057
    %6289 = vmatprep.subr.bf16.mxu0 %v6050
    %6290 = vmatpush2.bf16.msra.mxu0 %v6049
    %6291 = vmatprep.subr.bf16.mxu0 %v6042
    %6292 = vmatpush2.bf16.msra.mxu0 %v6041
    %6293 = vmatprep.subr.bf16.mxu0 %v6034
    %6294 = vmatpush2.bf16.msra.mxu0 %v6033
    %6295 = vmatprep.subr.bf16.mxu0 %v6026
    %6296 = vmatpush2.bf16.msra.mxu0 %v6025
    %6297 = vmatprep.subr.bf16.mxu0 %v6018
    %6298 = vmatpush2.bf16.msra.mxu0 %v6017
    %6299 = vmatprep.subr.bf16.mxu0 %v6010
    %6300 = vmatpush2.bf16.msra.mxu0 %v6009
    %6301 = vmatprep.subr.bf16.mxu0 %v6002
    %6302 = vmatpush2.bf16.msra.mxu0 %v6001
    %6303 = vmatprep.mubr.bf16.mxu0 %v5420
    %6304 = vmatmul.mubr.bf16.gmra.mxu0 %v5419
    %v6305 = vpop.f32.mrf.mxu0
    %v6306 = vadd.f32 0.0, %v6305
    %v6307 = vpop.f32.mrf.mxu0
    %v6308 = vadd.f32 0.0, %v6307
    %v6309 = vpop.f32.mrf.mxu0
    %v6310 = vpop.f32.mrf.mxu0
    %6311 = vdwg.mxu0
    %6312 = vmatprep.subr.bf16.mxu0 %v5996
    %6313 = vmatpush1.bf16.msra.mxu0 %v5995
    %6314 = vmatprep.subr.bf16.mxu0 %v5988
    %6315 = vmatpush1.bf16.msra.mxu0 %v5987
    %6316 = vmatprep.subr.bf16.mxu0 %v5980
    %6317 = vmatpush1.bf16.msra.mxu0 %v5979
    %6318 = vmatprep.subr.bf16.mxu0 %v5972
    %6319 = vmatpush1.bf16.msra.mxu0 %v5971
    %6320 = vmatprep.subr.bf16.mxu0 %v5964
    %6321 = vmatpush1.bf16.msra.mxu0 %v5963
    %6322 = vmatprep.subr.bf16.mxu0 %v5956
    %6323 = vmatpush1.bf16.msra.mxu0 %v5955
    %6324 = vmatprep.subr.bf16.mxu0 %v5948
    %6325 = vmatpush1.bf16.msra.mxu0 %v5947
    %6326 = vmatprep.subr.bf16.mxu0 %v5940
    %6327 = vmatpush1.bf16.msra.mxu0 %v5939
    %6328 = vmatprep.subr.bf16.mxu0 %v6060
    %6329 = vmatpush2.bf16.msra.mxu0 %v6059
    %6330 = vmatprep.subr.bf16.mxu0 %v6052
    %6331 = vmatpush2.bf16.msra.mxu0 %v6051
    %6332 = vmatprep.subr.bf16.mxu0 %v6044
    %6333 = vmatpush2.bf16.msra.mxu0 %v6043
    %6334 = vmatprep.subr.bf16.mxu0 %v6036
    %6335 = vmatpush2.bf16.msra.mxu0 %v6035
    %6336 = vmatprep.subr.bf16.mxu0 %v6028
    %6337 = vmatpush2.bf16.msra.mxu0 %v6027
    %6338 = vmatprep.subr.bf16.mxu0 %v6020
    %6339 = vmatpush2.bf16.msra.mxu0 %v6019
    %6340 = vmatprep.subr.bf16.mxu0 %v6012
    %6341 = vmatpush2.bf16.msra.mxu0 %v6011
    %6342 = vmatprep.subr.bf16.mxu0 %v6004
    %6343 = vmatpush2.bf16.msra.mxu0 %v6003
    %6344 = vmatprep.mubr.bf16.mxu0 %v5420
    %6345 = vmatmul.mubr.bf16.gmra.mxu0 %v5419
    %v6346 = vpop.f32.mrf.mxu0
    %v6347 = vadd.f32 0.0, %v6346
    %v6348 = vpop.f32.mrf.mxu0
    %v6349 = vadd.f32 0.0, %v6348
    %v6350 = vpop.f32.mrf.mxu0
    %v6351 = vpop.f32.mrf.mxu0
    %6352 = vdwg.mxu0
    %v6353 = vadd.f32 %v5411, %v6224
    %v6354 = vadd.f32 %v5412, %v6226
    %v6355 = vadd.f32 %v5413, %v6265
    %v6356 = vadd.f32 %v5414, %v6267
    %v6357 = vadd.f32 %v5415, %v6306
    %v6358 = vadd.f32 %v5416, %v6308
    %v6359 = vadd.f32 %v5417, %v6347
    %v6360 = vadd.f32 %v5418, %v6349
    %v6361 = vxor.u32 %v6353, 2147483648
    %v6362 = vxor.u32 %v6354, 2147483648
    %v6363 = vxor.u32 %v6355, 2147483648
    %v6364 = vxor.u32 %v6356, 2147483648
    %v6365 = vxor.u32 %v6357, 2147483648
    %v6366 = vxor.u32 %v6358, 2147483648
    %v6367 = vmul.f32 %v6361, 1.442695
    %v6368 = vpow.pop %v6367
    %v6369 = vmul.f32 %v6362, 1.442695
    %v6370 = vpow.pop %v6369
    %v6371 = vmul.f32 %v6363, 1.442695
    %v6372 = vpow.pop %v6371
    %v6373 = vmul.f32 %v6364, 1.442695
    %v6374 = vpow.pop %v6373
    %v6375 = vmul.f32 %v6365, 1.442695
    %v6376 = vpow.pop %v6375
    %v6377 = vmul.f32 %v6366, 1.442695
    %v6378 = vpow.pop %v6377
    %v6379 = vadd.f32 %v6368, 1.0
    %v6380 = vadd.f32 %v6370, 1.0
    %v6381 = vadd.f32 %v6372, 1.0
    %v6382 = vadd.f32 %v6374, 1.0
    %v6383 = vadd.f32 %v6376, 1.0
    %v6384 = vadd.f32 %v6378, 1.0
    %v6385 = vrcp.pop %v6379
    %v6386 = vmul.f32 1.0, %v6385
    %v6387 = vrcp.pop %v6380
    %v6388 = vmul.f32 1.0, %v6387
    %v6389 = vrcp.pop %v6381
    %v6390 = vmul.f32 1.0, %v6389
    %v6391 = vrcp.pop %v6382
    %v6392 = vmul.f32 1.0, %v6391
    %v6393 = vrcp.pop %v6383
    %v6394 = vmul.f32 1.0, %v6393
    %v6395 = vrcp.pop %v6384
    %v6396 = vmul.f32 1.0, %v6395
    %v6397 = vtanh.pop %v6359
    %v6398 = vtanh.pop %v6360
    %v6399 = vmul.f32 %v6390, %v5403
    %v6400 = vmul.f32 %v6392, %v5404
    %v6401 = vmul.f32 %v6386, %v6397
    %v6402 = vmul.f32 %v6388, %v6398
    %v6403 = vadd.f32 %v6399, %v6401
    %v6404 = vadd.f32 %v6400, %v6402
    %v6405 = vtanh.pop %v6403
    %v6406 = vtanh.pop %v6404
    %v6407 = vmul.f32 %v6394, %v6405
    %v6408 = vmul.f32 %v6396, %v6406
    %6409 = vst [vmem:[#allocation3 + $0x30] sm:$0xff] %v6407
    %6410 = vst [vmem:[#allocation3 + $0x38] sm:$0xff] %v6408
    %v6411 = vld [vmem:[#allocation2 + $0x100] sm:$0xff]
    %v6412 = vld [vmem:[#allocation2 + $0x108] sm:$0xff]
    %v6413 = vld [vmem:[#allocation2 + $0x110] sm:$0xff]
    %v6414 = vld [vmem:[#allocation2 + $0x118] sm:$0xff]
    %v6415 = vld [vmem:[#allocation2 + $0x120] sm:$0xff]
    %v6416 = vld [vmem:[#allocation2 + $0x128] sm:$0xff]
    %v6417 = vld [vmem:[#allocation2 + $0x130] sm:$0xff]
    %v6418 = vld [vmem:[#allocation2 + $0x138] sm:$0xff]
    %v6419 = vpack.c.bf16 %v6407, %v6407
    %v6420 = vpack.c.bf16 %v6408, %v6408
    %v6421 = vld [vmem:[#allocation9] sm:$0xff]
    %v6422 = vld [vmem:[#allocation9 + $0x8] sm:$0xff]
    %v6423 = vld [vmem:[#allocation9 + $0x10] sm:$0xff]
    %v6424 = vld [vmem:[#allocation9 + $0x18] sm:$0xff]
    %v6425 = vld [vmem:[#allocation9 + $0x20] sm:$0xff]
    %v6426 = vld [vmem:[#allocation9 + $0x28] sm:$0xff]
    %v6427 = vld [vmem:[#allocation9 + $0x30] sm:$0xff]
    %v6428 = vld [vmem:[#allocation9 + $0x38] sm:$0xff]
    %v6429 = vld [vmem:[#allocation9 + $0x40] sm:$0xff]
    %v6430 = vld [vmem:[#allocation9 + $0x48] sm:$0xff]
    %v6431 = vld [vmem:[#allocation9 + $0x50] sm:$0xff]
    %v6432 = vld [vmem:[#allocation9 + $0x58] sm:$0xff]
    %v6433 = vld [vmem:[#allocation9 + $0x60] sm:$0xff]
    %v6434 = vld [vmem:[#allocation9 + $0x68] sm:$0xff]
    %v6435 = vld [vmem:[#allocation9 + $0x70] sm:$0xff]
    %v6436 = vld [vmem:[#allocation9 + $0x78] sm:$0xff]
    %v6437 = vld [vmem:[#allocation9 + $0x80] sm:$0xff]
    %v6438 = vld [vmem:[#allocation9 + $0x88] sm:$0xff]
    %v6439 = vld [vmem:[#allocation9 + $0x90] sm:$0xff]
    %v6440 = vld [vmem:[#allocation9 + $0x98] sm:$0xff]
    %v6441 = vld [vmem:[#allocation9 + $0xa0] sm:$0xff]
    %v6442 = vld [vmem:[#allocation9 + $0xa8] sm:$0xff]
    %v6443 = vld [vmem:[#allocation9 + $0xb0] sm:$0xff]
    %v6444 = vld [vmem:[#allocation9 + $0xb8] sm:$0xff]
    %v6445 = vld [vmem:[#allocation9 + $0xc0] sm:$0xff]
    %v6446 = vld [vmem:[#allocation9 + $0xc8] sm:$0xff]
    %v6447 = vld [vmem:[#allocation9 + $0xd0] sm:$0xff]
    %v6448 = vld [vmem:[#allocation9 + $0xd8] sm:$0xff]
    %v6449 = vld [vmem:[#allocation9 + $0xe0] sm:$0xff]
    %v6450 = vld [vmem:[#allocation9 + $0xe8] sm:$0xff]
    %v6451 = vld [vmem:[#allocation9 + $0xf0] sm:$0xff]
    %v6452 = vld [vmem:[#allocation9 + $0xf8] sm:$0xff]
    %v6453 = vld [vmem:[#allocation9 + $0x100] sm:$0xff]
    %v6454 = vld [vmem:[#allocation9 + $0x108] sm:$0xff]
    %v6455 = vld [vmem:[#allocation9 + $0x110] sm:$0xff]
    %v6456 = vld [vmem:[#allocation9 + $0x118] sm:$0xff]
    %v6457 = vld [vmem:[#allocation9 + $0x120] sm:$0xff]
    %v6458 = vld [vmem:[#allocation9 + $0x128] sm:$0xff]
    %v6459 = vld [vmem:[#allocation9 + $0x130] sm:$0xff]
    %v6460 = vld [vmem:[#allocation9 + $0x138] sm:$0xff]
    %v6461 = vld [vmem:[#allocation9 + $0x140] sm:$0xff]
    %v6462 = vld [vmem:[#allocation9 + $0x148] sm:$0xff]
    %v6463 = vld [vmem:[#allocation9 + $0x150] sm:$0xff]
    %v6464 = vld [vmem:[#allocation9 + $0x158] sm:$0xff]
    %v6465 = vld [vmem:[#allocation9 + $0x160] sm:$0xff]
    %v6466 = vld [vmem:[#allocation9 + $0x168] sm:$0xff]
    %v6467 = vld [vmem:[#allocation9 + $0x170] sm:$0xff]
    %v6468 = vld [vmem:[#allocation9 + $0x178] sm:$0xff]
    %v6469 = vld [vmem:[#allocation9 + $0x180] sm:$0xff]
    %v6470 = vld [vmem:[#allocation9 + $0x188] sm:$0xff]
    %v6471 = vld [vmem:[#allocation9 + $0x190] sm:$0xff]
    %v6472 = vld [vmem:[#allocation9 + $0x198] sm:$0xff]
    %v6473 = vld [vmem:[#allocation9 + $0x1a0] sm:$0xff]
    %v6474 = vld [vmem:[#allocation9 + $0x1a8] sm:$0xff]
    %v6475 = vld [vmem:[#allocation9 + $0x1b0] sm:$0xff]
    %v6476 = vld [vmem:[#allocation9 + $0x1b8] sm:$0xff]
    %v6477 = vld [vmem:[#allocation9 + $0x1c0] sm:$0xff]
    %v6478 = vld [vmem:[#allocation9 + $0x1c8] sm:$0xff]
    %v6479 = vld [vmem:[#allocation9 + $0x1d0] sm:$0xff]
    %v6480 = vld [vmem:[#allocation9 + $0x1d8] sm:$0xff]
    %v6481 = vld [vmem:[#allocation9 + $0x1e0] sm:$0xff]
    %v6482 = vld [vmem:[#allocation9 + $0x1e8] sm:$0xff]
    %v6483 = vld [vmem:[#allocation9 + $0x1f0] sm:$0xff]
    %v6484 = vld [vmem:[#allocation9 + $0x1f8] sm:$0xff]
    %v6485 = vld [vmem:[#allocation9 + $0x200] sm:$0xff]
    %v6486 = vld [vmem:[#allocation9 + $0x208] sm:$0xff]
    %v6487 = vld [vmem:[#allocation9 + $0x210] sm:$0xff]
    %v6488 = vld [vmem:[#allocation9 + $0x218] sm:$0xff]
    %v6489 = vld [vmem:[#allocation9 + $0x220] sm:$0xff]
    %v6490 = vld [vmem:[#allocation9 + $0x228] sm:$0xff]
    %v6491 = vld [vmem:[#allocation9 + $0x230] sm:$0xff]
    %v6492 = vld [vmem:[#allocation9 + $0x238] sm:$0xff]
    %v6493 = vld [vmem:[#allocation9 + $0x240] sm:$0xff]
    %v6494 = vld [vmem:[#allocation9 + $0x248] sm:$0xff]
    %v6495 = vld [vmem:[#allocation9 + $0x250] sm:$0xff]
    %v6496 = vld [vmem:[#allocation9 + $0x258] sm:$0xff]
    %v6497 = vld [vmem:[#allocation9 + $0x260] sm:$0xff]
    %v6498 = vld [vmem:[#allocation9 + $0x268] sm:$0xff]
    %v6499 = vld [vmem:[#allocation9 + $0x270] sm:$0xff]
    %v6500 = vld [vmem:[#allocation9 + $0x278] sm:$0xff]
    %v6501 = vld [vmem:[#allocation9 + $0x280] sm:$0xff]
    %v6502 = vld [vmem:[#allocation9 + $0x288] sm:$0xff]
    %v6503 = vld [vmem:[#allocation9 + $0x290] sm:$0xff]
    %v6504 = vld [vmem:[#allocation9 + $0x298] sm:$0xff]
    %v6505 = vld [vmem:[#allocation9 + $0x2a0] sm:$0xff]
    %v6506 = vld [vmem:[#allocation9 + $0x2a8] sm:$0xff]
    %v6507 = vld [vmem:[#allocation9 + $0x2b0] sm:$0xff]
    %v6508 = vld [vmem:[#allocation9 + $0x2b8] sm:$0xff]
    %v6509 = vld [vmem:[#allocation9 + $0x2c0] sm:$0xff]
    %v6510 = vld [vmem:[#allocation9 + $0x2c8] sm:$0xff]
    %v6511 = vld [vmem:[#allocation9 + $0x2d0] sm:$0xff]
    %v6512 = vld [vmem:[#allocation9 + $0x2d8] sm:$0xff]
    %v6513 = vld [vmem:[#allocation9 + $0x2e0] sm:$0xff]
    %v6514 = vld [vmem:[#allocation9 + $0x2e8] sm:$0xff]
    %v6515 = vld [vmem:[#allocation9 + $0x2f0] sm:$0xff]
    %v6516 = vld [vmem:[#allocation9 + $0x2f8] sm:$0xff]
    %v6517 = vld [vmem:[#allocation9 + $0x300] sm:$0xff]
    %v6518 = vld [vmem:[#allocation9 + $0x308] sm:$0xff]
    %v6519 = vld [vmem:[#allocation9 + $0x310] sm:$0xff]
    %v6520 = vld [vmem:[#allocation9 + $0x318] sm:$0xff]
    %v6521 = vld [vmem:[#allocation9 + $0x320] sm:$0xff]
    %v6522 = vld [vmem:[#allocation9 + $0x328] sm:$0xff]
    %v6523 = vld [vmem:[#allocation9 + $0x330] sm:$0xff]
    %v6524 = vld [vmem:[#allocation9 + $0x338] sm:$0xff]
    %v6525 = vld [vmem:[#allocation9 + $0x340] sm:$0xff]
    %v6526 = vld [vmem:[#allocation9 + $0x348] sm:$0xff]
    %v6527 = vld [vmem:[#allocation9 + $0x350] sm:$0xff]
    %v6528 = vld [vmem:[#allocation9 + $0x358] sm:$0xff]
    %v6529 = vld [vmem:[#allocation9 + $0x360] sm:$0xff]
    %v6530 = vld [vmem:[#allocation9 + $0x368] sm:$0xff]
    %v6531 = vld [vmem:[#allocation9 + $0x370] sm:$0xff]
    %v6532 = vld [vmem:[#allocation9 + $0x378] sm:$0xff]
    %v6533 = vld [vmem:[#allocation9 + $0x380] sm:$0xff]
    %v6534 = vld [vmem:[#allocation9 + $0x388] sm:$0xff]
    %v6535 = vld [vmem:[#allocation9 + $0x390] sm:$0xff]
    %v6536 = vld [vmem:[#allocation9 + $0x398] sm:$0xff]
    %v6537 = vld [vmem:[#allocation9 + $0x3a0] sm:$0xff]
    %v6538 = vld [vmem:[#allocation9 + $0x3a8] sm:$0xff]
    %v6539 = vld [vmem:[#allocation9 + $0x3b0] sm:$0xff]
    %v6540 = vld [vmem:[#allocation9 + $0x3b8] sm:$0xff]
    %v6541 = vld [vmem:[#allocation9 + $0x3c0] sm:$0xff]
    %v6542 = vld [vmem:[#allocation9 + $0x3c8] sm:$0xff]
    %v6543 = vld [vmem:[#allocation9 + $0x3d0] sm:$0xff]
    %v6544 = vld [vmem:[#allocation9 + $0x3d8] sm:$0xff]
    %v6545 = vld [vmem:[#allocation9 + $0x3e0] sm:$0xff]
    %v6546 = vld [vmem:[#allocation9 + $0x3e8] sm:$0xff]
    %v6547 = vld [vmem:[#allocation9 + $0x3f0] sm:$0xff]
    %v6548 = vld [vmem:[#allocation9 + $0x3f8] sm:$0xff]
    %v6677 = vunpack.c.l.b16 %v6421
    %v6678 = vunpack.c.h.b16 %v6421
    %v6679 = vunpack.c.l.b16 %v6422
    %v6680 = vunpack.c.h.b16 %v6422
    %v6681 = vunpack.c.l.b16 %v6423
    %v6682 = vunpack.c.h.b16 %v6423
    %v6683 = vunpack.c.l.b16 %v6424
    %v6684 = vunpack.c.h.b16 %v6424
    %v6685 = vunpack.c.l.b16 %v6425
    %v6686 = vunpack.c.h.b16 %v6425
    %v6687 = vunpack.c.l.b16 %v6426
    %v6688 = vunpack.c.h.b16 %v6426
    %v6689 = vunpack.c.l.b16 %v6427
    %v6690 = vunpack.c.h.b16 %v6427
    %v6691 = vunpack.c.l.b16 %v6428
    %v6692 = vunpack.c.h.b16 %v6428
    %v6693 = vunpack.c.l.b16 %v6429
    %v6694 = vunpack.c.h.b16 %v6429
    %v6695 = vunpack.c.l.b16 %v6430
    %v6696 = vunpack.c.h.b16 %v6430
    %v6697 = vunpack.c.l.b16 %v6431
    %v6698 = vunpack.c.h.b16 %v6431
    %v6699 = vunpack.c.l.b16 %v6432
    %v6700 = vunpack.c.h.b16 %v6432
    %v6701 = vunpack.c.l.b16 %v6433
    %v6702 = vunpack.c.h.b16 %v6433
    %v6703 = vunpack.c.l.b16 %v6434
    %v6704 = vunpack.c.h.b16 %v6434
    %v6705 = vunpack.c.l.b16 %v6435
    %v6706 = vunpack.c.h.b16 %v6435
    %v6707 = vunpack.c.l.b16 %v6436
    %v6708 = vunpack.c.h.b16 %v6436
    %v6709 = vunpack.c.l.b16 %v6437
    %v6710 = vunpack.c.h.b16 %v6437
    %v6711 = vunpack.c.l.b16 %v6438
    %v6712 = vunpack.c.h.b16 %v6438
    %v6713 = vunpack.c.l.b16 %v6439
    %v6714 = vunpack.c.h.b16 %v6439
    %v6715 = vunpack.c.l.b16 %v6440
    %v6716 = vunpack.c.h.b16 %v6440
    %v6717 = vunpack.c.l.b16 %v6441
    %v6718 = vunpack.c.h.b16 %v6441
    %v6719 = vunpack.c.l.b16 %v6442
    %v6720 = vunpack.c.h.b16 %v6442
    %v6721 = vunpack.c.l.b16 %v6443
    %v6722 = vunpack.c.h.b16 %v6443
    %v6723 = vunpack.c.l.b16 %v6444
    %v6724 = vunpack.c.h.b16 %v6444
    %v6725 = vunpack.c.l.b16 %v6445
    %v6726 = vunpack.c.h.b16 %v6445
    %v6727 = vunpack.c.l.b16 %v6446
    %v6728 = vunpack.c.h.b16 %v6446
    %v6729 = vunpack.c.l.b16 %v6447
    %v6730 = vunpack.c.h.b16 %v6447
    %v6731 = vunpack.c.l.b16 %v6448
    %v6732 = vunpack.c.h.b16 %v6448
    %v6733 = vunpack.c.l.b16 %v6449
    %v6734 = vunpack.c.h.b16 %v6449
    %v6735 = vunpack.c.l.b16 %v6450
    %v6736 = vunpack.c.h.b16 %v6450
    %v6737 = vunpack.c.l.b16 %v6451
    %v6738 = vunpack.c.h.b16 %v6451
    %v6739 = vunpack.c.l.b16 %v6452
    %v6740 = vunpack.c.h.b16 %v6452
    %v6741 = vunpack.c.l.b16 %v6453
    %v6742 = vunpack.c.h.b16 %v6453
    %v6743 = vunpack.c.l.b16 %v6454
    %v6744 = vunpack.c.h.b16 %v6454
    %v6745 = vunpack.c.l.b16 %v6455
    %v6746 = vunpack.c.h.b16 %v6455
    %v6747 = vunpack.c.l.b16 %v6456
    %v6748 = vunpack.c.h.b16 %v6456
    %v6749 = vunpack.c.l.b16 %v6457
    %v6750 = vunpack.c.h.b16 %v6457
    %v6751 = vunpack.c.l.b16 %v6458
    %v6752 = vunpack.c.h.b16 %v6458
    %v6753 = vunpack.c.l.b16 %v6459
    %v6754 = vunpack.c.h.b16 %v6459
    %v6755 = vunpack.c.l.b16 %v6460
    %v6756 = vunpack.c.h.b16 %v6460
    %v6757 = vunpack.c.l.b16 %v6461
    %v6758 = vunpack.c.h.b16 %v6461
    %v6759 = vunpack.c.l.b16 %v6462
    %v6760 = vunpack.c.h.b16 %v6462
    %v6761 = vunpack.c.l.b16 %v6463
    %v6762 = vunpack.c.h.b16 %v6463
    %v6763 = vunpack.c.l.b16 %v6464
    %v6764 = vunpack.c.h.b16 %v6464
    %v6765 = vunpack.c.l.b16 %v6465
    %v6766 = vunpack.c.h.b16 %v6465
    %v6767 = vunpack.c.l.b16 %v6466
    %v6768 = vunpack.c.h.b16 %v6466
    %v6769 = vunpack.c.l.b16 %v6467
    %v6770 = vunpack.c.h.b16 %v6467
    %v6771 = vunpack.c.l.b16 %v6468
    %v6772 = vunpack.c.h.b16 %v6468
    %v6773 = vunpack.c.l.b16 %v6469
    %v6774 = vunpack.c.h.b16 %v6469
    %v6775 = vunpack.c.l.b16 %v6470
    %v6776 = vunpack.c.h.b16 %v6470
    %v6777 = vunpack.c.l.b16 %v6471
    %v6778 = vunpack.c.h.b16 %v6471
    %v6779 = vunpack.c.l.b16 %v6472
    %v6780 = vunpack.c.h.b16 %v6472
    %v6781 = vunpack.c.l.b16 %v6473
    %v6782 = vunpack.c.h.b16 %v6473
    %v6783 = vunpack.c.l.b16 %v6474
    %v6784 = vunpack.c.h.b16 %v6474
    %v6785 = vunpack.c.l.b16 %v6475
    %v6786 = vunpack.c.h.b16 %v6475
    %v6787 = vunpack.c.l.b16 %v6476
    %v6788 = vunpack.c.h.b16 %v6476
    %v6789 = vunpack.c.l.b16 %v6477
    %v6790 = vunpack.c.h.b16 %v6477
    %v6791 = vunpack.c.l.b16 %v6478
    %v6792 = vunpack.c.h.b16 %v6478
    %v6793 = vunpack.c.l.b16 %v6479
    %v6794 = vunpack.c.h.b16 %v6479
    %v6795 = vunpack.c.l.b16 %v6480
    %v6796 = vunpack.c.h.b16 %v6480
    %v6797 = vunpack.c.l.b16 %v6481
    %v6798 = vunpack.c.h.b16 %v6481
    %v6799 = vunpack.c.l.b16 %v6482
    %v6800 = vunpack.c.h.b16 %v6482
    %v6801 = vunpack.c.l.b16 %v6483
    %v6802 = vunpack.c.h.b16 %v6483
    %v6803 = vunpack.c.l.b16 %v6484
    %v6804 = vunpack.c.h.b16 %v6484
    %v6805 = vunpack.c.l.b16 %v6485
    %v6806 = vunpack.c.h.b16 %v6485
    %v6807 = vunpack.c.l.b16 %v6486
    %v6808 = vunpack.c.h.b16 %v6486
    %v6809 = vunpack.c.l.b16 %v6487
    %v6810 = vunpack.c.h.b16 %v6487
    %v6811 = vunpack.c.l.b16 %v6488
    %v6812 = vunpack.c.h.b16 %v6488
    %v6813 = vunpack.c.l.b16 %v6489
    %v6814 = vunpack.c.h.b16 %v6489
    %v6815 = vunpack.c.l.b16 %v6490
    %v6816 = vunpack.c.h.b16 %v6490
    %v6817 = vunpack.c.l.b16 %v6491
    %v6818 = vunpack.c.h.b16 %v6491
    %v6819 = vunpack.c.l.b16 %v6492
    %v6820 = vunpack.c.h.b16 %v6492
    %v6821 = vunpack.c.l.b16 %v6493
    %v6822 = vunpack.c.h.b16 %v6493
    %v6823 = vunpack.c.l.b16 %v6494
    %v6824 = vunpack.c.h.b16 %v6494
    %v6825 = vunpack.c.l.b16 %v6495
    %v6826 = vunpack.c.h.b16 %v6495
    %v6827 = vunpack.c.l.b16 %v6496
    %v6828 = vunpack.c.h.b16 %v6496
    %v6829 = vunpack.c.l.b16 %v6497
    %v6830 = vunpack.c.h.b16 %v6497
    %v6831 = vunpack.c.l.b16 %v6498
    %v6832 = vunpack.c.h.b16 %v6498
    %v6833 = vunpack.c.l.b16 %v6499
    %v6834 = vunpack.c.h.b16 %v6499
    %v6835 = vunpack.c.l.b16 %v6500
    %v6836 = vunpack.c.h.b16 %v6500
    %v6837 = vunpack.c.l.b16 %v6501
    %v6838 = vunpack.c.h.b16 %v6501
    %v6839 = vunpack.c.l.b16 %v6502
    %v6840 = vunpack.c.h.b16 %v6502
    %v6841 = vunpack.c.l.b16 %v6503
    %v6842 = vunpack.c.h.b16 %v6503
    %v6843 = vunpack.c.l.b16 %v6504
    %v6844 = vunpack.c.h.b16 %v6504
    %v6845 = vunpack.c.l.b16 %v6505
    %v6846 = vunpack.c.h.b16 %v6505
    %v6847 = vunpack.c.l.b16 %v6506
    %v6848 = vunpack.c.h.b16 %v6506
    %v6849 = vunpack.c.l.b16 %v6507
    %v6850 = vunpack.c.h.b16 %v6507
    %v6851 = vunpack.c.l.b16 %v6508
    %v6852 = vunpack.c.h.b16 %v6508
    %v6853 = vunpack.c.l.b16 %v6509
    %v6854 = vunpack.c.h.b16 %v6509
    %v6855 = vunpack.c.l.b16 %v6510
    %v6856 = vunpack.c.h.b16 %v6510
    %v6857 = vunpack.c.l.b16 %v6511
    %v6858 = vunpack.c.h.b16 %v6511
    %v6859 = vunpack.c.l.b16 %v6512
    %v6860 = vunpack.c.h.b16 %v6512
    %v6861 = vunpack.c.l.b16 %v6513
    %v6862 = vunpack.c.h.b16 %v6513
    %v6863 = vunpack.c.l.b16 %v6514
    %v6864 = vunpack.c.h.b16 %v6514
    %v6865 = vunpack.c.l.b16 %v6515
    %v6866 = vunpack.c.h.b16 %v6515
    %v6867 = vunpack.c.l.b16 %v6516
    %v6868 = vunpack.c.h.b16 %v6516
    %v6869 = vunpack.c.l.b16 %v6517
    %v6870 = vunpack.c.h.b16 %v6517
    %v6871 = vunpack.c.l.b16 %v6518
    %v6872 = vunpack.c.h.b16 %v6518
    %v6873 = vunpack.c.l.b16 %v6519
    %v6874 = vunpack.c.h.b16 %v6519
    %v6875 = vunpack.c.l.b16 %v6520
    %v6876 = vunpack.c.h.b16 %v6520
    %v6877 = vunpack.c.l.b16 %v6521
    %v6878 = vunpack.c.h.b16 %v6521
    %v6879 = vunpack.c.l.b16 %v6522
    %v6880 = vunpack.c.h.b16 %v6522
    %v6881 = vunpack.c.l.b16 %v6523
    %v6882 = vunpack.c.h.b16 %v6523
    %v6883 = vunpack.c.l.b16 %v6524
    %v6884 = vunpack.c.h.b16 %v6524
    %v6885 = vunpack.c.l.b16 %v6525
    %v6886 = vunpack.c.h.b16 %v6525
    %v6887 = vunpack.c.l.b16 %v6526
    %v6888 = vunpack.c.h.b16 %v6526
    %v6889 = vunpack.c.l.b16 %v6527
    %v6890 = vunpack.c.h.b16 %v6527
    %v6891 = vunpack.c.l.b16 %v6528
    %v6892 = vunpack.c.h.b16 %v6528
    %v6893 = vunpack.c.l.b16 %v6529
    %v6894 = vunpack.c.h.b16 %v6529
    %v6895 = vunpack.c.l.b16 %v6530
    %v6896 = vunpack.c.h.b16 %v6530
    %v6897 = vunpack.c.l.b16 %v6531
    %v6898 = vunpack.c.h.b16 %v6531
    %v6899 = vunpack.c.l.b16 %v6532
    %v6900 = vunpack.c.h.b16 %v6532
    %v6901 = vunpack.c.l.b16 %v6533
    %v6902 = vunpack.c.h.b16 %v6533
    %v6903 = vunpack.c.l.b16 %v6534
    %v6904 = vunpack.c.h.b16 %v6534
    %v6905 = vunpack.c.l.b16 %v6535
    %v6906 = vunpack.c.h.b16 %v6535
    %v6907 = vunpack.c.l.b16 %v6536
    %v6908 = vunpack.c.h.b16 %v6536
    %v6909 = vunpack.c.l.b16 %v6537
    %v6910 = vunpack.c.h.b16 %v6537
    %v6911 = vunpack.c.l.b16 %v6538
    %v6912 = vunpack.c.h.b16 %v6538
    %v6913 = vunpack.c.l.b16 %v6539
    %v6914 = vunpack.c.h.b16 %v6539
    %v6915 = vunpack.c.l.b16 %v6540
    %v6916 = vunpack.c.h.b16 %v6540
    %v6917 = vunpack.c.l.b16 %v6541
    %v6918 = vunpack.c.h.b16 %v6541
    %v6919 = vunpack.c.l.b16 %v6542
    %v6920 = vunpack.c.h.b16 %v6542
    %v6921 = vunpack.c.l.b16 %v6543
    %v6922 = vunpack.c.h.b16 %v6543
    %v6923 = vunpack.c.l.b16 %v6544
    %v6924 = vunpack.c.h.b16 %v6544
    %v6925 = vunpack.c.l.b16 %v6545
    %v6926 = vunpack.c.h.b16 %v6545
    %v6927 = vunpack.c.l.b16 %v6546
    %v6928 = vunpack.c.h.b16 %v6546
    %v6929 = vunpack.c.l.b16 %v6547
    %v6930 = vunpack.c.h.b16 %v6547
    %v6931 = vunpack.c.l.b16 %v6548
    %v6932 = vunpack.c.h.b16 %v6548
    %v6933 = vpack.c.b16 %v6685, %v6677
    %v6934 = vpack.c.b16 %v6686, %v6678
    %v6935 = vpack.c.b16 %v6687, %v6679
    %v6936 = vpack.c.b16 %v6688, %v6680
    %v6937 = vpack.c.b16 %v6689, %v6681
    %v6938 = vpack.c.b16 %v6690, %v6682
    %v6939 = vpack.c.b16 %v6691, %v6683
    %v6940 = vpack.c.b16 %v6692, %v6684
    %v6941 = vpack.c.b16 %v6701, %v6693
    %v6942 = vpack.c.b16 %v6702, %v6694
    %v6943 = vpack.c.b16 %v6703, %v6695
    %v6944 = vpack.c.b16 %v6704, %v6696
    %v6945 = vpack.c.b16 %v6705, %v6697
    %v6946 = vpack.c.b16 %v6706, %v6698
    %v6947 = vpack.c.b16 %v6707, %v6699
    %v6948 = vpack.c.b16 %v6708, %v6700
    %v6949 = vpack.c.b16 %v6717, %v6709
    %v6950 = vpack.c.b16 %v6718, %v6710
    %v6951 = vpack.c.b16 %v6719, %v6711
    %v6952 = vpack.c.b16 %v6720, %v6712
    %v6953 = vpack.c.b16 %v6721, %v6713
    %v6954 = vpack.c.b16 %v6722, %v6714
    %v6955 = vpack.c.b16 %v6723, %v6715
    %v6956 = vpack.c.b16 %v6724, %v6716
    %v6957 = vpack.c.b16 %v6733, %v6725
    %v6958 = vpack.c.b16 %v6734, %v6726
    %v6959 = vpack.c.b16 %v6735, %v6727
    %v6960 = vpack.c.b16 %v6736, %v6728
    %v6961 = vpack.c.b16 %v6737, %v6729
    %v6962 = vpack.c.b16 %v6738, %v6730
    %v6963 = vpack.c.b16 %v6739, %v6731
    %v6964 = vpack.c.b16 %v6740, %v6732
    %v6965 = vpack.c.b16 %v6749, %v6741
    %v6966 = vpack.c.b16 %v6750, %v6742
    %v6967 = vpack.c.b16 %v6751, %v6743
    %v6968 = vpack.c.b16 %v6752, %v6744
    %v6969 = vpack.c.b16 %v6753, %v6745
    %v6970 = vpack.c.b16 %v6754, %v6746
    %v6971 = vpack.c.b16 %v6755, %v6747
    %v6972 = vpack.c.b16 %v6756, %v6748
    %v6973 = vpack.c.b16 %v6765, %v6757
    %v6974 = vpack.c.b16 %v6766, %v6758
    %v6975 = vpack.c.b16 %v6767, %v6759
    %v6976 = vpack.c.b16 %v6768, %v6760
    %v6977 = vpack.c.b16 %v6769, %v6761
    %v6978 = vpack.c.b16 %v6770, %v6762
    %v6979 = vpack.c.b16 %v6771, %v6763
    %v6980 = vpack.c.b16 %v6772, %v6764
    %v6981 = vpack.c.b16 %v6781, %v6773
    %v6982 = vpack.c.b16 %v6782, %v6774
    %v6983 = vpack.c.b16 %v6783, %v6775
    %v6984 = vpack.c.b16 %v6784, %v6776
    %v6985 = vpack.c.b16 %v6785, %v6777
    %v6986 = vpack.c.b16 %v6786, %v6778
    %v6987 = vpack.c.b16 %v6787, %v6779
    %v6988 = vpack.c.b16 %v6788, %v6780
    %v6989 = vpack.c.b16 %v6797, %v6789
    %v6990 = vpack.c.b16 %v6798, %v6790
    %v6991 = vpack.c.b16 %v6799, %v6791
    %v6992 = vpack.c.b16 %v6800, %v6792
    %v6993 = vpack.c.b16 %v6801, %v6793
    %v6994 = vpack.c.b16 %v6802, %v6794
    %v6995 = vpack.c.b16 %v6803, %v6795
    %v6996 = vpack.c.b16 %v6804, %v6796
    %v6997 = vpack.c.b16 %v6813, %v6805
    %v6998 = vpack.c.b16 %v6814, %v6806
    %v6999 = vpack.c.b16 %v6815, %v6807
    %v7000 = vpack.c.b16 %v6816, %v6808
    %v7001 = vpack.c.b16 %v6817, %v6809
    %v7002 = vpack.c.b16 %v6818, %v6810
    %v7003 = vpack.c.b16 %v6819, %v6811
    %v7004 = vpack.c.b16 %v6820, %v6812
    %v7005 = vpack.c.b16 %v6829, %v6821
    %v7006 = vpack.c.b16 %v6830, %v6822
    %v7007 = vpack.c.b16 %v6831, %v6823
    %v7008 = vpack.c.b16 %v6832, %v6824
    %v7009 = vpack.c.b16 %v6833, %v6825
    %v7010 = vpack.c.b16 %v6834, %v6826
    %v7011 = vpack.c.b16 %v6835, %v6827
    %v7012 = vpack.c.b16 %v6836, %v6828
    %v7013 = vpack.c.b16 %v6845, %v6837
    %v7014 = vpack.c.b16 %v6846, %v6838
    %v7015 = vpack.c.b16 %v6847, %v6839
    %v7016 = vpack.c.b16 %v6848, %v6840
    %v7017 = vpack.c.b16 %v6849, %v6841
    %v7018 = vpack.c.b16 %v6850, %v6842
    %v7019 = vpack.c.b16 %v6851, %v6843
    %v7020 = vpack.c.b16 %v6852, %v6844
    %v7021 = vpack.c.b16 %v6861, %v6853
    %v7022 = vpack.c.b16 %v6862, %v6854
    %v7023 = vpack.c.b16 %v6863, %v6855
    %v7024 = vpack.c.b16 %v6864, %v6856
    %v7025 = vpack.c.b16 %v6865, %v6857
    %v7026 = vpack.c.b16 %v6866, %v6858
    %v7027 = vpack.c.b16 %v6867, %v6859
    %v7028 = vpack.c.b16 %v6868, %v6860
    %v7029 = vpack.c.b16 %v6877, %v6869
    %v7030 = vpack.c.b16 %v6878, %v6870
    %v7031 = vpack.c.b16 %v6879, %v6871
    %v7032 = vpack.c.b16 %v6880, %v6872
    %v7033 = vpack.c.b16 %v6881, %v6873
    %v7034 = vpack.c.b16 %v6882, %v6874
    %v7035 = vpack.c.b16 %v6883, %v6875
    %v7036 = vpack.c.b16 %v6884, %v6876
    %v7037 = vpack.c.b16 %v6893, %v6885
    %v7038 = vpack.c.b16 %v6894, %v6886
    %v7039 = vpack.c.b16 %v6895, %v6887
    %v7040 = vpack.c.b16 %v6896, %v6888
    %v7041 = vpack.c.b16 %v6897, %v6889
    %v7042 = vpack.c.b16 %v6898, %v6890
    %v7043 = vpack.c.b16 %v6899, %v6891
    %v7044 = vpack.c.b16 %v6900, %v6892
    %v7045 = vpack.c.b16 %v6909, %v6901
    %v7046 = vpack.c.b16 %v6910, %v6902
    %v7047 = vpack.c.b16 %v6911, %v6903
    %v7048 = vpack.c.b16 %v6912, %v6904
    %v7049 = vpack.c.b16 %v6913, %v6905
    %v7050 = vpack.c.b16 %v6914, %v6906
    %v7051 = vpack.c.b16 %v6915, %v6907
    %v7052 = vpack.c.b16 %v6916, %v6908
    %v7053 = vpack.c.b16 %v6925, %v6917
    %v7054 = vpack.c.b16 %v6926, %v6918
    %v7055 = vpack.c.b16 %v6927, %v6919
    %v7056 = vpack.c.b16 %v6928, %v6920
    %v7057 = vpack.c.b16 %v6929, %v6921
    %v7058 = vpack.c.b16 %v6930, %v6922
    %v7059 = vpack.c.b16 %v6931, %v6923
    %v7060 = vpack.c.b16 %v6932, %v6924
    %7189 = vmatprep.subr.bf16.mxu0 %v6990
    %7190 = vmatpush1.bf16.msra.mxu0 %v6989
    %7191 = vmatprep.subr.bf16.mxu0 %v6982
    %7192 = vmatpush1.bf16.msra.mxu0 %v6981
    %7193 = vmatprep.subr.bf16.mxu0 %v6974
    %7194 = vmatpush1.bf16.msra.mxu0 %v6973
    %7195 = vmatprep.subr.bf16.mxu0 %v6966
    %7196 = vmatpush1.bf16.msra.mxu0 %v6965
    %7197 = vmatprep.subr.bf16.mxu0 %v6958
    %7198 = vmatpush1.bf16.msra.mxu0 %v6957
    %7199 = vmatprep.subr.bf16.mxu0 %v6950
    %7200 = vmatpush1.bf16.msra.mxu0 %v6949
    %7201 = vmatprep.subr.bf16.mxu0 %v6942
    %7202 = vmatpush1.bf16.msra.mxu0 %v6941
    %7203 = vmatprep.subr.bf16.mxu0 %v6934
    %7204 = vmatpush1.bf16.msra.mxu0 %v6933
    %7205 = vmatprep.subr.bf16.mxu0 %v7054
    %7206 = vmatpush2.bf16.msra.mxu0 %v7053
    %7207 = vmatprep.subr.bf16.mxu0 %v7046
    %7208 = vmatpush2.bf16.msra.mxu0 %v7045
    %7209 = vmatprep.subr.bf16.mxu0 %v7038
    %7210 = vmatpush2.bf16.msra.mxu0 %v7037
    %7211 = vmatprep.subr.bf16.mxu0 %v7030
    %7212 = vmatpush2.bf16.msra.mxu0 %v7029
    %7213 = vmatprep.subr.bf16.mxu0 %v7022
    %7214 = vmatpush2.bf16.msra.mxu0 %v7021
    %7215 = vmatprep.subr.bf16.mxu0 %v7014
    %7216 = vmatpush2.bf16.msra.mxu0 %v7013
    %7217 = vmatprep.subr.bf16.mxu0 %v7006
    %7218 = vmatpush2.bf16.msra.mxu0 %v7005
    %7219 = vmatprep.subr.bf16.mxu0 %v6998
    %7220 = vmatpush2.bf16.msra.mxu0 %v6997
    %7221 = vmatprep.mubr.bf16.mxu0 %v6420
    %7222 = vmatmul.mubr.bf16.gmra.mxu0 %v6419
    %v7223 = vpop.f32.mrf.mxu0
    %v7224 = vadd.f32 0.0, %v7223
    %v7225 = vpop.f32.mrf.mxu0
    %v7226 = vadd.f32 0.0, %v7225
    %v7227 = vpop.f32.mrf.mxu0
    %v7228 = vpop.f32.mrf.mxu0
    %7229 = vdwg.mxu0
    %7230 = vmatprep.subr.bf16.mxu0 %v6992
    %7231 = vmatpush1.bf16.msra.mxu0 %v6991
    %7232 = vmatprep.subr.bf16.mxu0 %v6984
    %7233 = vmatpush1.bf16.msra.mxu0 %v6983
    %7234 = vmatprep.subr.bf16.mxu0 %v6976
    %7235 = vmatpush1.bf16.msra.mxu0 %v6975
    %7236 = vmatprep.subr.bf16.mxu0 %v6968
    %7237 = vmatpush1.bf16.msra.mxu0 %v6967
    %7238 = vmatprep.subr.bf16.mxu0 %v6960
    %7239 = vmatpush1.bf16.msra.mxu0 %v6959
    %7240 = vmatprep.subr.bf16.mxu0 %v6952
    %7241 = vmatpush1.bf16.msra.mxu0 %v6951
    %7242 = vmatprep.subr.bf16.mxu0 %v6944
    %7243 = vmatpush1.bf16.msra.mxu0 %v6943
    %7244 = vmatprep.subr.bf16.mxu0 %v6936
    %7245 = vmatpush1.bf16.msra.mxu0 %v6935
    %7246 = vmatprep.subr.bf16.mxu0 %v7056
    %7247 = vmatpush2.bf16.msra.mxu0 %v7055
    %7248 = vmatprep.subr.bf16.mxu0 %v7048
    %7249 = vmatpush2.bf16.msra.mxu0 %v7047
    %7250 = vmatprep.subr.bf16.mxu0 %v7040
    %7251 = vmatpush2.bf16.msra.mxu0 %v7039
    %7252 = vmatprep.subr.bf16.mxu0 %v7032
    %7253 = vmatpush2.bf16.msra.mxu0 %v7031
    %7254 = vmatprep.subr.bf16.mxu0 %v7024
    %7255 = vmatpush2.bf16.msra.mxu0 %v7023
    %7256 = vmatprep.subr.bf16.mxu0 %v7016
    %7257 = vmatpush2.bf16.msra.mxu0 %v7015
    %7258 = vmatprep.subr.bf16.mxu0 %v7008
    %7259 = vmatpush2.bf16.msra.mxu0 %v7007
    %7260 = vmatprep.subr.bf16.mxu0 %v7000
    %7261 = vmatpush2.bf16.msra.mxu0 %v6999
    %7262 = vmatprep.mubr.bf16.mxu0 %v6420
    %7263 = vmatmul.mubr.bf16.gmra.mxu0 %v6419
    %v7264 = vpop.f32.mrf.mxu0
    %v7265 = vadd.f32 0.0, %v7264
    %v7266 = vpop.f32.mrf.mxu0
    %v7267 = vadd.f32 0.0, %v7266
    %v7268 = vpop.f32.mrf.mxu0
    %v7269 = vpop.f32.mrf.mxu0
    %7270 = vdwg.mxu0
    %7271 = vmatprep.subr.bf16.mxu0 %v6994
    %7272 = vmatpush1.bf16.msra.mxu0 %v6993
    %7273 = vmatprep.subr.bf16.mxu0 %v6986
    %7274 = vmatpush1.bf16.msra.mxu0 %v6985
    %7275 = vmatprep.subr.bf16.mxu0 %v6978
    %7276 = vmatpush1.bf16.msra.mxu0 %v6977
    %7277 = vmatprep.subr.bf16.mxu0 %v6970
    %7278 = vmatpush1.bf16.msra.mxu0 %v6969
    %7279 = vmatprep.subr.bf16.mxu0 %v6962
    %7280 = vmatpush1.bf16.msra.mxu0 %v6961
    %7281 = vmatprep.subr.bf16.mxu0 %v6954
    %7282 = vmatpush1.bf16.msra.mxu0 %v6953
    %7283 = vmatprep.subr.bf16.mxu0 %v6946
    %7284 = vmatpush1.bf16.msra.mxu0 %v6945
    %7285 = vmatprep.subr.bf16.mxu0 %v6938
    %7286 = vmatpush1.bf16.msra.mxu0 %v6937
    %7287 = vmatprep.subr.bf16.mxu0 %v7058
    %7288 = vmatpush2.bf16.msra.mxu0 %v7057
    %7289 = vmatprep.subr.bf16.mxu0 %v7050
    %7290 = vmatpush2.bf16.msra.mxu0 %v7049
    %7291 = vmatprep.subr.bf16.mxu0 %v7042
    %7292 = vmatpush2.bf16.msra.mxu0 %v7041
    %7293 = vmatprep.subr.bf16.mxu0 %v7034
    %7294 = vmatpush2.bf16.msra.mxu0 %v7033
    %7295 = vmatprep.subr.bf16.mxu0 %v7026
    %7296 = vmatpush2.bf16.msra.mxu0 %v7025
    %7297 = vmatprep.subr.bf16.mxu0 %v7018
    %7298 = vmatpush2.bf16.msra.mxu0 %v7017
    %7299 = vmatprep.subr.bf16.mxu0 %v7010
    %7300 = vmatpush2.bf16.msra.mxu0 %v7009
    %7301 = vmatprep.subr.bf16.mxu0 %v7002
    %7302 = vmatpush2.bf16.msra.mxu0 %v7001
    %7303 = vmatprep.mubr.bf16.mxu0 %v6420
    %7304 = vmatmul.mubr.bf16.gmra.mxu0 %v6419
    %v7305 = vpop.f32.mrf.mxu0
    %v7306 = vadd.f32 0.0, %v7305
    %v7307 = vpop.f32.mrf.mxu0
    %v7308 = vadd.f32 0.0, %v7307
    %v7309 = vpop.f32.mrf.mxu0
    %v7310 = vpop.f32.mrf.mxu0
    %7311 = vdwg.mxu0
    %7312 = vmatprep.subr.bf16.mxu0 %v6996
    %7313 = vmatpush1.bf16.msra.mxu0 %v6995
    %7314 = vmatprep.subr.bf16.mxu0 %v6988
    %7315 = vmatpush1.bf16.msra.mxu0 %v6987
    %7316 = vmatprep.subr.bf16.mxu0 %v6980
    %7317 = vmatpush1.bf16.msra.mxu0 %v6979
    %7318 = vmatprep.subr.bf16.mxu0 %v6972
    %7319 = vmatpush1.bf16.msra.mxu0 %v6971
    %7320 = vmatprep.subr.bf16.mxu0 %v6964
    %7321 = vmatpush1.bf16.msra.mxu0 %v6963
    %7322 = vmatprep.subr.bf16.mxu0 %v6956
    %7323 = vmatpush1.bf16.msra.mxu0 %v6955
    %7324 = vmatprep.subr.bf16.mxu0 %v6948
    %7325 = vmatpush1.bf16.msra.mxu0 %v6947
    %7326 = vmatprep.subr.bf16.mxu0 %v6940
    %7327 = vmatpush1.bf16.msra.mxu0 %v6939
    %7328 = vmatprep.subr.bf16.mxu0 %v7060
    %7329 = vmatpush2.bf16.msra.mxu0 %v7059
    %7330 = vmatprep.subr.bf16.mxu0 %v7052
    %7331 = vmatpush2.bf16.msra.mxu0 %v7051
    %7332 = vmatprep.subr.bf16.mxu0 %v7044
    %7333 = vmatpush2.bf16.msra.mxu0 %v7043
    %7334 = vmatprep.subr.bf16.mxu0 %v7036
    %7335 = vmatpush2.bf16.msra.mxu0 %v7035
    %7336 = vmatprep.subr.bf16.mxu0 %v7028
    %7337 = vmatpush2.bf16.msra.mxu0 %v7027
    %7338 = vmatprep.subr.bf16.mxu0 %v7020
    %7339 = vmatpush2.bf16.msra.mxu0 %v7019
    %7340 = vmatprep.subr.bf16.mxu0 %v7012
    %7341 = vmatpush2.bf16.msra.mxu0 %v7011
    %7342 = vmatprep.subr.bf16.mxu0 %v7004
    %7343 = vmatpush2.bf16.msra.mxu0 %v7003
    %7344 = vmatprep.mubr.bf16.mxu0 %v6420
    %7345 = vmatmul.mubr.bf16.gmra.mxu0 %v6419
    %v7346 = vpop.f32.mrf.mxu0
    %v7347 = vadd.f32 0.0, %v7346
    %v7348 = vpop.f32.mrf.mxu0
    %v7349 = vadd.f32 0.0, %v7348
    %v7350 = vpop.f32.mrf.mxu0
    %v7351 = vpop.f32.mrf.mxu0
    %7352 = vdwg.mxu0
    %v7353 = vadd.f32 %v6411, %v7224
    %v7354 = vadd.f32 %v6412, %v7226
    %v7355 = vadd.f32 %v6413, %v7265
    %v7356 = vadd.f32 %v6414, %v7267
    %v7357 = vadd.f32 %v6415, %v7306
    %v7358 = vadd.f32 %v6416, %v7308
    %v7359 = vadd.f32 %v6417, %v7347
    %v7360 = vadd.f32 %v6418, %v7349
    %v7361 = vxor.u32 %v7353, 2147483648
    %v7362 = vxor.u32 %v7354, 2147483648
    %v7363 = vxor.u32 %v7355, 2147483648
    %v7364 = vxor.u32 %v7356, 2147483648
    %v7365 = vxor.u32 %v7357, 2147483648
    %v7366 = vxor.u32 %v7358, 2147483648
    %v7367 = vmul.f32 %v7361, 1.442695
    %v7368 = vpow.pop %v7367
    %v7369 = vmul.f32 %v7362, 1.442695
    %v7370 = vpow.pop %v7369
    %v7371 = vmul.f32 %v7363, 1.442695
    %v7372 = vpow.pop %v7371
    %v7373 = vmul.f32 %v7364, 1.442695
    %v7374 = vpow.pop %v7373
    %v7375 = vmul.f32 %v7365, 1.442695
    %v7376 = vpow.pop %v7375
    %v7377 = vmul.f32 %v7366, 1.442695
    %v7378 = vpow.pop %v7377
    %v7379 = vadd.f32 %v7368, 1.0
    %v7380 = vadd.f32 %v7370, 1.0
    %v7381 = vadd.f32 %v7372, 1.0
    %v7382 = vadd.f32 %v7374, 1.0
    %v7383 = vadd.f32 %v7376, 1.0
    %v7384 = vadd.f32 %v7378, 1.0
    %v7385 = vrcp.pop %v7379
    %v7386 = vmul.f32 1.0, %v7385
    %v7387 = vrcp.pop %v7380
    %v7388 = vmul.f32 1.0, %v7387
    %v7389 = vrcp.pop %v7381
    %v7390 = vmul.f32 1.0, %v7389
    %v7391 = vrcp.pop %v7382
    %v7392 = vmul.f32 1.0, %v7391
    %v7393 = vrcp.pop %v7383
    %v7394 = vmul.f32 1.0, %v7393
    %v7395 = vrcp.pop %v7384
    %v7396 = vmul.f32 1.0, %v7395
    %v7397 = vtanh.pop %v7359
    %v7398 = vtanh.pop %v7360
    %v7399 = vmul.f32 %v7390, %v6403
    %v7400 = vmul.f32 %v7392, %v6404
    %v7401 = vmul.f32 %v7386, %v7397
    %v7402 = vmul.f32 %v7388, %v7398
    %v7403 = vadd.f32 %v7399, %v7401
    %v7404 = vadd.f32 %v7400, %v7402
    %v7405 = vtanh.pop %v7403
    %v7406 = vtanh.pop %v7404
    %v7407 = vmul.f32 %v7394, %v7405
    %v7408 = vmul.f32 %v7396, %v7406
    %7409 = vst [vmem:[#allocation3 + $0x40] sm:$0xff] %v7407
    %7410 = vst [vmem:[#allocation3 + $0x48] sm:$0xff] %v7408
    %v7411 = vld [vmem:[#allocation2 + $0x140] sm:$0xff]
    %v7412 = vld [vmem:[#allocation2 + $0x148] sm:$0xff]
    %v7413 = vld [vmem:[#allocation2 + $0x150] sm:$0xff]
    %v7414 = vld [vmem:[#allocation2 + $0x158] sm:$0xff]
    %v7415 = vld [vmem:[#allocation2 + $0x160] sm:$0xff]
    %v7416 = vld [vmem:[#allocation2 + $0x168] sm:$0xff]
    %v7417 = vld [vmem:[#allocation2 + $0x170] sm:$0xff]
    %v7418 = vld [vmem:[#allocation2 + $0x178] sm:$0xff]
    %v7419 = vpack.c.bf16 %v7407, %v7407
    %v7420 = vpack.c.bf16 %v7408, %v7408
    %v7421 = vld [vmem:[#allocation9] sm:$0xff]
    %v7422 = vld [vmem:[#allocation9 + $0x8] sm:$0xff]
    %v7423 = vld [vmem:[#allocation9 + $0x10] sm:$0xff]
    %v7424 = vld [vmem:[#allocation9 + $0x18] sm:$0xff]
    %v7425 = vld [vmem:[#allocation9 + $0x20] sm:$0xff]
    %v7426 = vld [vmem:[#allocation9 + $0x28] sm:$0xff]
    %v7427 = vld [vmem:[#allocation9 + $0x30] sm:$0xff]
    %v7428 = vld [vmem:[#allocation9 + $0x38] sm:$0xff]
    %v7429 = vld [vmem:[#allocation9 + $0x40] sm:$0xff]
    %v7430 = vld [vmem:[#allocation9 + $0x48] sm:$0xff]
    %v7431 = vld [vmem:[#allocation9 + $0x50] sm:$0xff]
    %v7432 = vld [vmem:[#allocation9 + $0x58] sm:$0xff]
    %v7433 = vld [vmem:[#allocation9 + $0x60] sm:$0xff]
    %v7434 = vld [vmem:[#allocation9 + $0x68] sm:$0xff]
    %v7435 = vld [vmem:[#allocation9 + $0x70] sm:$0xff]
    %v7436 = vld [vmem:[#allocation9 + $0x78] sm:$0xff]
    %v7437 = vld [vmem:[#allocation9 + $0x80] sm:$0xff]
    %v7438 = vld [vmem:[#allocation9 + $0x88] sm:$0xff]
    %v7439 = vld [vmem:[#allocation9 + $0x90] sm:$0xff]
    %v7440 = vld [vmem:[#allocation9 + $0x98] sm:$0xff]
    %v7441 = vld [vmem:[#allocation9 + $0xa0] sm:$0xff]
    %v7442 = vld [vmem:[#allocation9 + $0xa8] sm:$0xff]
    %v7443 = vld [vmem:[#allocation9 + $0xb0] sm:$0xff]
    %v7444 = vld [vmem:[#allocation9 + $0xb8] sm:$0xff]
    %v7445 = vld [vmem:[#allocation9 + $0xc0] sm:$0xff]
    %v7446 = vld [vmem:[#allocation9 + $0xc8] sm:$0xff]
    %v7447 = vld [vmem:[#allocation9 + $0xd0] sm:$0xff]
    %v7448 = vld [vmem:[#allocation9 + $0xd8] sm:$0xff]
    %v7449 = vld [vmem:[#allocation9 + $0xe0] sm:$0xff]
    %v7450 = vld [vmem:[#allocation9 + $0xe8] sm:$0xff]
    %v7451 = vld [vmem:[#allocation9 + $0xf0] sm:$0xff]
    %v7452 = vld [vmem:[#allocation9 + $0xf8] sm:$0xff]
    %v7453 = vld [vmem:[#allocation9 + $0x100] sm:$0xff]
    %v7454 = vld [vmem:[#allocation9 + $0x108] sm:$0xff]
    %v7455 = vld [vmem:[#allocation9 + $0x110] sm:$0xff]
    %v7456 = vld [vmem:[#allocation9 + $0x118] sm:$0xff]
    %v7457 = vld [vmem:[#allocation9 + $0x120] sm:$0xff]
    %v7458 = vld [vmem:[#allocation9 + $0x128] sm:$0xff]
    %v7459 = vld [vmem:[#allocation9 + $0x130] sm:$0xff]
    %v7460 = vld [vmem:[#allocation9 + $0x138] sm:$0xff]
    %v7461 = vld [vmem:[#allocation9 + $0x140] sm:$0xff]
    %v7462 = vld [vmem:[#allocation9 + $0x148] sm:$0xff]
    %v7463 = vld [vmem:[#allocation9 + $0x150] sm:$0xff]
    %v7464 = vld [vmem:[#allocation9 + $0x158] sm:$0xff]
    %v7465 = vld [vmem:[#allocation9 + $0x160] sm:$0xff]
    %v7466 = vld [vmem:[#allocation9 + $0x168] sm:$0xff]
    %v7467 = vld [vmem:[#allocation9 + $0x170] sm:$0xff]
    %v7468 = vld [vmem:[#allocation9 + $0x178] sm:$0xff]
    %v7469 = vld [vmem:[#allocation9 + $0x180] sm:$0xff]
    %v7470 = vld [vmem:[#allocation9 + $0x188] sm:$0xff]
    %v7471 = vld [vmem:[#allocation9 + $0x190] sm:$0xff]
    %v7472 = vld [vmem:[#allocation9 + $0x198] sm:$0xff]
    %v7473 = vld [vmem:[#allocation9 + $0x1a0] sm:$0xff]
    %v7474 = vld [vmem:[#allocation9 + $0x1a8] sm:$0xff]
    %v7475 = vld [vmem:[#allocation9 + $0x1b0] sm:$0xff]
    %v7476 = vld [vmem:[#allocation9 + $0x1b8] sm:$0xff]
    %v7477 = vld [vmem:[#allocation9 + $0x1c0] sm:$0xff]
    %v7478 = vld [vmem:[#allocation9 + $0x1c8] sm:$0xff]
    %v7479 = vld [vmem:[#allocation9 + $0x1d0] sm:$0xff]
    %v7480 = vld [vmem:[#allocation9 + $0x1d8] sm:$0xff]
    %v7481 = vld [vmem:[#allocation9 + $0x1e0] sm:$0xff]
    %v7482 = vld [vmem:[#allocation9 + $0x1e8] sm:$0xff]
    %v7483 = vld [vmem:[#allocation9 + $0x1f0] sm:$0xff]
    %v7484 = vld [vmem:[#allocation9 + $0x1f8] sm:$0xff]
    %v7485 = vld [vmem:[#allocation9 + $0x200] sm:$0xff]
    %v7486 = vld [vmem:[#allocation9 + $0x208] sm:$0xff]
    %v7487 = vld [vmem:[#allocation9 + $0x210] sm:$0xff]
    %v7488 = vld [vmem:[#allocation9 + $0x218] sm:$0xff]
    %v7489 = vld [vmem:[#allocation9 + $0x220] sm:$0xff]
    %v7490 = vld [vmem:[#allocation9 + $0x228] sm:$0xff]
    %v7491 = vld [vmem:[#allocation9 + $0x230] sm:$0xff]
    %v7492 = vld [vmem:[#allocation9 + $0x238] sm:$0xff]
    %v7493 = vld [vmem:[#allocation9 + $0x240] sm:$0xff]
    %v7494 = vld [vmem:[#allocation9 + $0x248] sm:$0xff]
    %v7495 = vld [vmem:[#allocation9 + $0x250] sm:$0xff]
    %v7496 = vld [vmem:[#allocation9 + $0x258] sm:$0xff]
    %v7497 = vld [vmem:[#allocation9 + $0x260] sm:$0xff]
    %v7498 = vld [vmem:[#allocation9 + $0x268] sm:$0xff]
    %v7499 = vld [vmem:[#allocation9 + $0x270] sm:$0xff]
    %v7500 = vld [vmem:[#allocation9 + $0x278] sm:$0xff]
    %v7501 = vld [vmem:[#allocation9 + $0x280] sm:$0xff]
    %v7502 = vld [vmem:[#allocation9 + $0x288] sm:$0xff]
    %v7503 = vld [vmem:[#allocation9 + $0x290] sm:$0xff]
    %v7504 = vld [vmem:[#allocation9 + $0x298] sm:$0xff]
    %v7505 = vld [vmem:[#allocation9 + $0x2a0] sm:$0xff]
    %v7506 = vld [vmem:[#allocation9 + $0x2a8] sm:$0xff]
    %v7507 = vld [vmem:[#allocation9 + $0x2b0] sm:$0xff]
    %v7508 = vld [vmem:[#allocation9 + $0x2b8] sm:$0xff]
    %v7509 = vld [vmem:[#allocation9 + $0x2c0] sm:$0xff]
    %v7510 = vld [vmem:[#allocation9 + $0x2c8] sm:$0xff]
    %v7511 = vld [vmem:[#allocation9 + $0x2d0] sm:$0xff]
    %v7512 = vld [vmem:[#allocation9 + $0x2d8] sm:$0xff]
    %v7513 = vld [vmem:[#allocation9 + $0x2e0] sm:$0xff]
    %v7514 = vld [vmem:[#allocation9 + $0x2e8] sm:$0xff]
    %v7515 = vld [vmem:[#allocation9 + $0x2f0] sm:$0xff]
    %v7516 = vld [vmem:[#allocation9 + $0x2f8] sm:$0xff]
    %v7517 = vld [vmem:[#allocation9 + $0x300] sm:$0xff]
    %v7518 = vld [vmem:[#allocation9 + $0x308] sm:$0xff]
    %v7519 = vld [vmem:[#allocation9 + $0x310] sm:$0xff]
    %v7520 = vld [vmem:[#allocation9 + $0x318] sm:$0xff]
    %v7521 = vld [vmem:[#allocation9 + $0x320] sm:$0xff]
    %v7522 = vld [vmem:[#allocation9 + $0x328] sm:$0xff]
    %v7523 = vld [vmem:[#allocation9 + $0x330] sm:$0xff]
    %v7524 = vld [vmem:[#allocation9 + $0x338] sm:$0xff]
    %v7525 = vld [vmem:[#allocation9 + $0x340] sm:$0xff]
    %v7526 = vld [vmem:[#allocation9 + $0x348] sm:$0xff]
    %v7527 = vld [vmem:[#allocation9 + $0x350] sm:$0xff]
    %v7528 = vld [vmem:[#allocation9 + $0x358] sm:$0xff]
    %v7529 = vld [vmem:[#allocation9 + $0x360] sm:$0xff]
    %v7530 = vld [vmem:[#allocation9 + $0x368] sm:$0xff]
    %v7531 = vld [vmem:[#allocation9 + $0x370] sm:$0xff]
    %v7532 = vld [vmem:[#allocation9 + $0x378] sm:$0xff]
    %v7533 = vld [vmem:[#allocation9 + $0x380] sm:$0xff]
    %v7534 = vld [vmem:[#allocation9 + $0x388] sm:$0xff]
    %v7535 = vld [vmem:[#allocation9 + $0x390] sm:$0xff]
    %v7536 = vld [vmem:[#allocation9 + $0x398] sm:$0xff]
    %v7537 = vld [vmem:[#allocation9 + $0x3a0] sm:$0xff]
    %v7538 = vld [vmem:[#allocation9 + $0x3a8] sm:$0xff]
    %v7539 = vld [vmem:[#allocation9 + $0x3b0] sm:$0xff]
    %v7540 = vld [vmem:[#allocation9 + $0x3b8] sm:$0xff]
    %v7541 = vld [vmem:[#allocation9 + $0x3c0] sm:$0xff]
    %v7542 = vld [vmem:[#allocation9 + $0x3c8] sm:$0xff]
    %v7543 = vld [vmem:[#allocation9 + $0x3d0] sm:$0xff]
    %v7544 = vld [vmem:[#allocation9 + $0x3d8] sm:$0xff]
    %v7545 = vld [vmem:[#allocation9 + $0x3e0] sm:$0xff]
    %v7546 = vld [vmem:[#allocation9 + $0x3e8] sm:$0xff]
    %v7547 = vld [vmem:[#allocation9 + $0x3f0] sm:$0xff]
    %v7548 = vld [vmem:[#allocation9 + $0x3f8] sm:$0xff]
    %v7677 = vunpack.c.l.b16 %v7421
    %v7678 = vunpack.c.h.b16 %v7421
    %v7679 = vunpack.c.l.b16 %v7422
    %v7680 = vunpack.c.h.b16 %v7422
    %v7681 = vunpack.c.l.b16 %v7423
    %v7682 = vunpack.c.h.b16 %v7423
    %v7683 = vunpack.c.l.b16 %v7424
    %v7684 = vunpack.c.h.b16 %v7424
    %v7685 = vunpack.c.l.b16 %v7425
    %v7686 = vunpack.c.h.b16 %v7425
    %v7687 = vunpack.c.l.b16 %v7426
    %v7688 = vunpack.c.h.b16 %v7426
    %v7689 = vunpack.c.l.b16 %v7427
    %v7690 = vunpack.c.h.b16 %v7427
    %v7691 = vunpack.c.l.b16 %v7428
    %v7692 = vunpack.c.h.b16 %v7428
    %v7693 = vunpack.c.l.b16 %v7429
    %v7694 = vunpack.c.h.b16 %v7429
    %v7695 = vunpack.c.l.b16 %v7430
    %v7696 = vunpack.c.h.b16 %v7430
    %v7697 = vunpack.c.l.b16 %v7431
    %v7698 = vunpack.c.h.b16 %v7431
    %v7699 = vunpack.c.l.b16 %v7432
    %v7700 = vunpack.c.h.b16 %v7432
    %v7701 = vunpack.c.l.b16 %v7433
    %v7702 = vunpack.c.h.b16 %v7433
    %v7703 = vunpack.c.l.b16 %v7434
    %v7704 = vunpack.c.h.b16 %v7434
    %v7705 = vunpack.c.l.b16 %v7435
    %v7706 = vunpack.c.h.b16 %v7435
    %v7707 = vunpack.c.l.b16 %v7436
    %v7708 = vunpack.c.h.b16 %v7436
    %v7709 = vunpack.c.l.b16 %v7437
    %v7710 = vunpack.c.h.b16 %v7437
    %v7711 = vunpack.c.l.b16 %v7438
    %v7712 = vunpack.c.h.b16 %v7438
    %v7713 = vunpack.c.l.b16 %v7439
    %v7714 = vunpack.c.h.b16 %v7439
    %v7715 = vunpack.c.l.b16 %v7440
    %v7716 = vunpack.c.h.b16 %v7440
    %v7717 = vunpack.c.l.b16 %v7441
    %v7718 = vunpack.c.h.b16 %v7441
    %v7719 = vunpack.c.l.b16 %v7442
    %v7720 = vunpack.c.h.b16 %v7442
    %v7721 = vunpack.c.l.b16 %v7443
    %v7722 = vunpack.c.h.b16 %v7443
    %v7723 = vunpack.c.l.b16 %v7444
    %v7724 = vunpack.c.h.b16 %v7444
    %v7725 = vunpack.c.l.b16 %v7445
    %v7726 = vunpack.c.h.b16 %v7445
    %v7727 = vunpack.c.l.b16 %v7446
    %v7728 = vunpack.c.h.b16 %v7446
    %v7729 = vunpack.c.l.b16 %v7447
    %v7730 = vunpack.c.h.b16 %v7447
    %v7731 = vunpack.c.l.b16 %v7448
    %v7732 = vunpack.c.h.b16 %v7448
    %v7733 = vunpack.c.l.b16 %v7449
    %v7734 = vunpack.c.h.b16 %v7449
    %v7735 = vunpack.c.l.b16 %v7450
    %v7736 = vunpack.c.h.b16 %v7450
    %v7737 = vunpack.c.l.b16 %v7451
    %v7738 = vunpack.c.h.b16 %v7451
    %v7739 = vunpack.c.l.b16 %v7452
    %v7740 = vunpack.c.h.b16 %v7452
    %v7741 = vunpack.c.l.b16 %v7453
    %v7742 = vunpack.c.h.b16 %v7453
    %v7743 = vunpack.c.l.b16 %v7454
    %v7744 = vunpack.c.h.b16 %v7454
    %v7745 = vunpack.c.l.b16 %v7455
    %v7746 = vunpack.c.h.b16 %v7455
    %v7747 = vunpack.c.l.b16 %v7456
    %v7748 = vunpack.c.h.b16 %v7456
    %v7749 = vunpack.c.l.b16 %v7457
    %v7750 = vunpack.c.h.b16 %v7457
    %v7751 = vunpack.c.l.b16 %v7458
    %v7752 = vunpack.c.h.b16 %v7458
    %v7753 = vunpack.c.l.b16 %v7459
    %v7754 = vunpack.c.h.b16 %v7459
    %v7755 = vunpack.c.l.b16 %v7460
    %v7756 = vunpack.c.h.b16 %v7460
    %v7757 = vunpack.c.l.b16 %v7461
    %v7758 = vunpack.c.h.b16 %v7461
    %v7759 = vunpack.c.l.b16 %v7462
    %v7760 = vunpack.c.h.b16 %v7462
    %v7761 = vunpack.c.l.b16 %v7463
    %v7762 = vunpack.c.h.b16 %v7463
    %v7763 = vunpack.c.l.b16 %v7464
    %v7764 = vunpack.c.h.b16 %v7464
    %v7765 = vunpack.c.l.b16 %v7465
    %v7766 = vunpack.c.h.b16 %v7465
    %v7767 = vunpack.c.l.b16 %v7466
    %v7768 = vunpack.c.h.b16 %v7466
    %v7769 = vunpack.c.l.b16 %v7467
    %v7770 = vunpack.c.h.b16 %v7467
    %v7771 = vunpack.c.l.b16 %v7468
    %v7772 = vunpack.c.h.b16 %v7468
    %v7773 = vunpack.c.l.b16 %v7469
    %v7774 = vunpack.c.h.b16 %v7469
    %v7775 = vunpack.c.l.b16 %v7470
    %v7776 = vunpack.c.h.b16 %v7470
    %v7777 = vunpack.c.l.b16 %v7471
    %v7778 = vunpack.c.h.b16 %v7471
    %v7779 = vunpack.c.l.b16 %v7472
    %v7780 = vunpack.c.h.b16 %v7472
    %v7781 = vunpack.c.l.b16 %v7473
    %v7782 = vunpack.c.h.b16 %v7473
    %v7783 = vunpack.c.l.b16 %v7474
    %v7784 = vunpack.c.h.b16 %v7474
    %v7785 = vunpack.c.l.b16 %v7475
    %v7786 = vunpack.c.h.b16 %v7475
    %v7787 = vunpack.c.l.b16 %v7476
    %v7788 = vunpack.c.h.b16 %v7476
    %v7789 = vunpack.c.l.b16 %v7477
    %v7790 = vunpack.c.h.b16 %v7477
    %v7791 = vunpack.c.l.b16 %v7478
    %v7792 = vunpack.c.h.b16 %v7478
    %v7793 = vunpack.c.l.b16 %v7479
    %v7794 = vunpack.c.h.b16 %v7479
    %v7795 = vunpack.c.l.b16 %v7480
    %v7796 = vunpack.c.h.b16 %v7480
    %v7797 = vunpack.c.l.b16 %v7481
    %v7798 = vunpack.c.h.b16 %v7481
    %v7799 = vunpack.c.l.b16 %v7482
    %v7800 = vunpack.c.h.b16 %v7482
    %v7801 = vunpack.c.l.b16 %v7483
    %v7802 = vunpack.c.h.b16 %v7483
    %v7803 = vunpack.c.l.b16 %v7484
    %v7804 = vunpack.c.h.b16 %v7484
    %v7805 = vunpack.c.l.b16 %v7485
    %v7806 = vunpack.c.h.b16 %v7485
    %v7807 = vunpack.c.l.b16 %v7486
    %v7808 = vunpack.c.h.b16 %v7486
    %v7809 = vunpack.c.l.b16 %v7487
    %v7810 = vunpack.c.h.b16 %v7487
    %v7811 = vunpack.c.l.b16 %v7488
    %v7812 = vunpack.c.h.b16 %v7488
    %v7813 = vunpack.c.l.b16 %v7489
    %v7814 = vunpack.c.h.b16 %v7489
    %v7815 = vunpack.c.l.b16 %v7490
    %v7816 = vunpack.c.h.b16 %v7490
    %v7817 = vunpack.c.l.b16 %v7491
    %v7818 = vunpack.c.h.b16 %v7491
    %v7819 = vunpack.c.l.b16 %v7492
    %v7820 = vunpack.c.h.b16 %v7492
    %v7821 = vunpack.c.l.b16 %v7493
    %v7822 = vunpack.c.h.b16 %v7493
    %v7823 = vunpack.c.l.b16 %v7494
    %v7824 = vunpack.c.h.b16 %v7494
    %v7825 = vunpack.c.l.b16 %v7495
    %v7826 = vunpack.c.h.b16 %v7495
    %v7827 = vunpack.c.l.b16 %v7496
    %v7828 = vunpack.c.h.b16 %v7496
    %v7829 = vunpack.c.l.b16 %v7497
    %v7830 = vunpack.c.h.b16 %v7497
    %v7831 = vunpack.c.l.b16 %v7498
    %v7832 = vunpack.c.h.b16 %v7498
    %v7833 = vunpack.c.l.b16 %v7499
    %v7834 = vunpack.c.h.b16 %v7499
    %v7835 = vunpack.c.l.b16 %v7500
    %v7836 = vunpack.c.h.b16 %v7500
    %v7837 = vunpack.c.l.b16 %v7501
    %v7838 = vunpack.c.h.b16 %v7501
    %v7839 = vunpack.c.l.b16 %v7502
    %v7840 = vunpack.c.h.b16 %v7502
    %v7841 = vunpack.c.l.b16 %v7503
    %v7842 = vunpack.c.h.b16 %v7503
    %v7843 = vunpack.c.l.b16 %v7504
    %v7844 = vunpack.c.h.b16 %v7504
    %v7845 = vunpack.c.l.b16 %v7505
    %v7846 = vunpack.c.h.b16 %v7505
    %v7847 = vunpack.c.l.b16 %v7506
    %v7848 = vunpack.c.h.b16 %v7506
    %v7849 = vunpack.c.l.b16 %v7507
    %v7850 = vunpack.c.h.b16 %v7507
    %v7851 = vunpack.c.l.b16 %v7508
    %v7852 = vunpack.c.h.b16 %v7508
    %v7853 = vunpack.c.l.b16 %v7509
    %v7854 = vunpack.c.h.b16 %v7509
    %v7855 = vunpack.c.l.b16 %v7510
    %v7856 = vunpack.c.h.b16 %v7510
    %v7857 = vunpack.c.l.b16 %v7511
    %v7858 = vunpack.c.h.b16 %v7511
    %v7859 = vunpack.c.l.b16 %v7512
    %v7860 = vunpack.c.h.b16 %v7512
    %v7861 = vunpack.c.l.b16 %v7513
    %v7862 = vunpack.c.h.b16 %v7513
    %v7863 = vunpack.c.l.b16 %v7514
    %v7864 = vunpack.c.h.b16 %v7514
    %v7865 = vunpack.c.l.b16 %v7515
    %v7866 = vunpack.c.h.b16 %v7515
    %v7867 = vunpack.c.l.b16 %v7516
    %v7868 = vunpack.c.h.b16 %v7516
    %v7869 = vunpack.c.l.b16 %v7517
    %v7870 = vunpack.c.h.b16 %v7517
    %v7871 = vunpack.c.l.b16 %v7518
    %v7872 = vunpack.c.h.b16 %v7518
    %v7873 = vunpack.c.l.b16 %v7519
    %v7874 = vunpack.c.h.b16 %v7519
    %v7875 = vunpack.c.l.b16 %v7520
    %v7876 = vunpack.c.h.b16 %v7520
    %v7877 = vunpack.c.l.b16 %v7521
    %v7878 = vunpack.c.h.b16 %v7521
    %v7879 = vunpack.c.l.b16 %v7522
    %v7880 = vunpack.c.h.b16 %v7522
    %v7881 = vunpack.c.l.b16 %v7523
    %v7882 = vunpack.c.h.b16 %v7523
    %v7883 = vunpack.c.l.b16 %v7524
    %v7884 = vunpack.c.h.b16 %v7524
    %v7885 = vunpack.c.l.b16 %v7525
    %v7886 = vunpack.c.h.b16 %v7525
    %v7887 = vunpack.c.l.b16 %v7526
    %v7888 = vunpack.c.h.b16 %v7526
    %v7889 = vunpack.c.l.b16 %v7527
    %v7890 = vunpack.c.h.b16 %v7527
    %v7891 = vunpack.c.l.b16 %v7528
    %v7892 = vunpack.c.h.b16 %v7528
    %v7893 = vunpack.c.l.b16 %v7529
    %v7894 = vunpack.c.h.b16 %v7529
    %v7895 = vunpack.c.l.b16 %v7530
    %v7896 = vunpack.c.h.b16 %v7530
    %v7897 = vunpack.c.l.b16 %v7531
    %v7898 = vunpack.c.h.b16 %v7531
    %v7899 = vunpack.c.l.b16 %v7532
    %v7900 = vunpack.c.h.b16 %v7532
    %v7901 = vunpack.c.l.b16 %v7533
    %v7902 = vunpack.c.h.b16 %v7533
    %v7903 = vunpack.c.l.b16 %v7534
    %v7904 = vunpack.c.h.b16 %v7534
    %v7905 = vunpack.c.l.b16 %v7535
    %v7906 = vunpack.c.h.b16 %v7535
    %v7907 = vunpack.c.l.b16 %v7536
    %v7908 = vunpack.c.h.b16 %v7536
    %v7909 = vunpack.c.l.b16 %v7537
    %v7910 = vunpack.c.h.b16 %v7537
    %v7911 = vunpack.c.l.b16 %v7538
    %v7912 = vunpack.c.h.b16 %v7538
    %v7913 = vunpack.c.l.b16 %v7539
    %v7914 = vunpack.c.h.b16 %v7539
    %v7915 = vunpack.c.l.b16 %v7540
    %v7916 = vunpack.c.h.b16 %v7540
    %v7917 = vunpack.c.l.b16 %v7541
    %v7918 = vunpack.c.h.b16 %v7541
    %v7919 = vunpack.c.l.b16 %v7542
    %v7920 = vunpack.c.h.b16 %v7542
    %v7921 = vunpack.c.l.b16 %v7543
    %v7922 = vunpack.c.h.b16 %v7543
    %v7923 = vunpack.c.l.b16 %v7544
    %v7924 = vunpack.c.h.b16 %v7544
    %v7925 = vunpack.c.l.b16 %v7545
    %v7926 = vunpack.c.h.b16 %v7545
    %v7927 = vunpack.c.l.b16 %v7546
    %v7928 = vunpack.c.h.b16 %v7546
    %v7929 = vunpack.c.l.b16 %v7547
    %v7930 = vunpack.c.h.b16 %v7547
    %v7931 = vunpack.c.l.b16 %v7548
    %v7932 = vunpack.c.h.b16 %v7548
    %v7933 = vpack.c.b16 %v7685, %v7677
    %v7934 = vpack.c.b16 %v7686, %v7678
    %v7935 = vpack.c.b16 %v7687, %v7679
    %v7936 = vpack.c.b16 %v7688, %v7680
    %v7937 = vpack.c.b16 %v7689, %v7681
    %v7938 = vpack.c.b16 %v7690, %v7682
    %v7939 = vpack.c.b16 %v7691, %v7683
    %v7940 = vpack.c.b16 %v7692, %v7684
    %v7941 = vpack.c.b16 %v7701, %v7693
    %v7942 = vpack.c.b16 %v7702, %v7694
    %v7943 = vpack.c.b16 %v7703, %v7695
    %v7944 = vpack.c.b16 %v7704, %v7696
    %v7945 = vpack.c.b16 %v7705, %v7697
    %v7946 = vpack.c.b16 %v7706, %v7698
    %v7947 = vpack.c.b16 %v7707, %v7699
    %v7948 = vpack.c.b16 %v7708, %v7700
    %v7949 = vpack.c.b16 %v7717, %v7709
    %v7950 = vpack.c.b16 %v7718, %v7710
    %v7951 = vpack.c.b16 %v7719, %v7711
    %v7952 = vpack.c.b16 %v7720, %v7712
    %v7953 = vpack.c.b16 %v7721, %v7713
    %v7954 = vpack.c.b16 %v7722, %v7714
    %v7955 = vpack.c.b16 %v7723, %v7715
    %v7956 = vpack.c.b16 %v7724, %v7716
    %v7957 = vpack.c.b16 %v7733, %v7725
    %v7958 = vpack.c.b16 %v7734, %v7726
    %v7959 = vpack.c.b16 %v7735, %v7727
    %v7960 = vpack.c.b16 %v7736, %v7728
    %v7961 = vpack.c.b16 %v7737, %v7729
    %v7962 = vpack.c.b16 %v7738, %v7730
    %v7963 = vpack.c.b16 %v7739, %v7731
    %v7964 = vpack.c.b16 %v7740, %v7732
    %v7965 = vpack.c.b16 %v7749, %v7741
    %v7966 = vpack.c.b16 %v7750, %v7742
    %v7967 = vpack.c.b16 %v7751, %v7743
    %v7968 = vpack.c.b16 %v7752, %v7744
    %v7969 = vpack.c.b16 %v7753, %v7745
    %v7970 = vpack.c.b16 %v7754, %v7746
    %v7971 = vpack.c.b16 %v7755, %v7747
    %v7972 = vpack.c.b16 %v7756, %v7748
    %v7973 = vpack.c.b16 %v7765, %v7757
    %v7974 = vpack.c.b16 %v7766, %v7758
    %v7975 = vpack.c.b16 %v7767, %v7759
    %v7976 = vpack.c.b16 %v7768, %v7760
    %v7977 = vpack.c.b16 %v7769, %v7761
    %v7978 = vpack.c.b16 %v7770, %v7762
    %v7979 = vpack.c.b16 %v7771, %v7763
    %v7980 = vpack.c.b16 %v7772, %v7764
    %v7981 = vpack.c.b16 %v7781, %v7773
    %v7982 = vpack.c.b16 %v7782, %v7774
    %v7983 = vpack.c.b16 %v7783, %v7775
    %v7984 = vpack.c.b16 %v7784, %v7776
    %v7985 = vpack.c.b16 %v7785, %v7777
    %v7986 = vpack.c.b16 %v7786, %v7778
    %v7987 = vpack.c.b16 %v7787, %v7779
    %v7988 = vpack.c.b16 %v7788, %v7780
    %v7989 = vpack.c.b16 %v7797, %v7789
    %v7990 = vpack.c.b16 %v7798, %v7790
    %v7991 = vpack.c.b16 %v7799, %v7791
    %v7992 = vpack.c.b16 %v7800, %v7792
    %v7993 = vpack.c.b16 %v7801, %v7793
    %v7994 = vpack.c.b16 %v7802, %v7794
    %v7995 = vpack.c.b16 %v7803, %v7795
    %v7996 = vpack.c.b16 %v7804, %v7796
    %v7997 = vpack.c.b16 %v7813, %v7805
    %v7998 = vpack.c.b16 %v7814, %v7806
    %v7999 = vpack.c.b16 %v7815, %v7807
    %v8000 = vpack.c.b16 %v7816, %v7808
    %v8001 = vpack.c.b16 %v7817, %v7809
    %v8002 = vpack.c.b16 %v7818, %v7810
    %v8003 = vpack.c.b16 %v7819, %v7811
    %v8004 = vpack.c.b16 %v7820, %v7812
    %v8005 = vpack.c.b16 %v7829, %v7821
    %v8006 = vpack.c.b16 %v7830, %v7822
    %v8007 = vpack.c.b16 %v7831, %v7823
    %v8008 = vpack.c.b16 %v7832, %v7824
    %v8009 = vpack.c.b16 %v7833, %v7825
    %v8010 = vpack.c.b16 %v7834, %v7826
    %v8011 = vpack.c.b16 %v7835, %v7827
    %v8012 = vpack.c.b16 %v7836, %v7828
    %v8013 = vpack.c.b16 %v7845, %v7837
    %v8014 = vpack.c.b16 %v7846, %v7838
    %v8015 = vpack.c.b16 %v7847, %v7839
    %v8016 = vpack.c.b16 %v7848, %v7840
    %v8017 = vpack.c.b16 %v7849, %v7841
    %v8018 = vpack.c.b16 %v7850, %v7842
    %v8019 = vpack.c.b16 %v7851, %v7843
    %v8020 = vpack.c.b16 %v7852, %v7844
    %v8021 = vpack.c.b16 %v7861, %v7853
    %v8022 = vpack.c.b16 %v7862, %v7854
    %v8023 = vpack.c.b16 %v7863, %v7855
    %v8024 = vpack.c.b16 %v7864, %v7856
    %v8025 = vpack.c.b16 %v7865, %v7857
    %v8026 = vpack.c.b16 %v7866, %v7858
    %v8027 = vpack.c.b16 %v7867, %v7859
    %v8028 = vpack.c.b16 %v7868, %v7860
    %v8029 = vpack.c.b16 %v7877, %v7869
    %v8030 = vpack.c.b16 %v7878, %v7870
    %v8031 = vpack.c.b16 %v7879, %v7871
    %v8032 = vpack.c.b16 %v7880, %v7872
    %v8033 = vpack.c.b16 %v7881, %v7873
    %v8034 = vpack.c.b16 %v7882, %v7874
    %v8035 = vpack.c.b16 %v7883, %v7875
    %v8036 = vpack.c.b16 %v7884, %v7876
    %v8037 = vpack.c.b16 %v7893, %v7885
    %v8038 = vpack.c.b16 %v7894, %v7886
    %v8039 = vpack.c.b16 %v7895, %v7887
    %v8040 = vpack.c.b16 %v7896, %v7888
    %v8041 = vpack.c.b16 %v7897, %v7889
    %v8042 = vpack.c.b16 %v7898, %v7890
    %v8043 = vpack.c.b16 %v7899, %v7891
    %v8044 = vpack.c.b16 %v7900, %v7892
    %v8045 = vpack.c.b16 %v7909, %v7901
    %v8046 = vpack.c.b16 %v7910, %v7902
    %v8047 = vpack.c.b16 %v7911, %v7903
    %v8048 = vpack.c.b16 %v7912, %v7904
    %v8049 = vpack.c.b16 %v7913, %v7905
    %v8050 = vpack.c.b16 %v7914, %v7906
    %v8051 = vpack.c.b16 %v7915, %v7907
    %v8052 = vpack.c.b16 %v7916, %v7908
    %v8053 = vpack.c.b16 %v7925, %v7917
    %v8054 = vpack.c.b16 %v7926, %v7918
    %v8055 = vpack.c.b16 %v7927, %v7919
    %v8056 = vpack.c.b16 %v7928, %v7920
    %v8057 = vpack.c.b16 %v7929, %v7921
    %v8058 = vpack.c.b16 %v7930, %v7922
    %v8059 = vpack.c.b16 %v7931, %v7923
    %v8060 = vpack.c.b16 %v7932, %v7924
    %8189 = vmatprep.subr.bf16.mxu0 %v7990
    %8190 = vmatpush1.bf16.msra.mxu0 %v7989
    %8191 = vmatprep.subr.bf16.mxu0 %v7982
    %8192 = vmatpush1.bf16.msra.mxu0 %v7981
    %8193 = vmatprep.subr.bf16.mxu0 %v7974
    %8194 = vmatpush1.bf16.msra.mxu0 %v7973
    %8195 = vmatprep.subr.bf16.mxu0 %v7966
    %8196 = vmatpush1.bf16.msra.mxu0 %v7965
    %8197 = vmatprep.subr.bf16.mxu0 %v7958
    %8198 = vmatpush1.bf16.msra.mxu0 %v7957
    %8199 = vmatprep.subr.bf16.mxu0 %v7950
    %8200 = vmatpush1.bf16.msra.mxu0 %v7949
    %8201 = vmatprep.subr.bf16.mxu0 %v7942
    %8202 = vmatpush1.bf16.msra.mxu0 %v7941
    %8203 = vmatprep.subr.bf16.mxu0 %v7934
    %8204 = vmatpush1.bf16.msra.mxu0 %v7933
    %8205 = vmatprep.subr.bf16.mxu0 %v8054
    %8206 = vmatpush2.bf16.msra.mxu0 %v8053
    %8207 = vmatprep.subr.bf16.mxu0 %v8046
    %8208 = vmatpush2.bf16.msra.mxu0 %v8045
    %8209 = vmatprep.subr.bf16.mxu0 %v8038
    %8210 = vmatpush2.bf16.msra.mxu0 %v8037
    %8211 = vmatprep.subr.bf16.mxu0 %v8030
    %8212 = vmatpush2.bf16.msra.mxu0 %v8029
    %8213 = vmatprep.subr.bf16.mxu0 %v8022
    %8214 = vmatpush2.bf16.msra.mxu0 %v8021
    %8215 = vmatprep.subr.bf16.mxu0 %v8014
    %8216 = vmatpush2.bf16.msra.mxu0 %v8013
    %8217 = vmatprep.subr.bf16.mxu0 %v8006
    %8218 = vmatpush2.bf16.msra.mxu0 %v8005
    %8219 = vmatprep.subr.bf16.mxu0 %v7998
    %8220 = vmatpush2.bf16.msra.mxu0 %v7997
    %8221 = vmatprep.mubr.bf16.mxu0 %v7420
    %8222 = vmatmul.mubr.bf16.gmra.mxu0 %v7419
    %v8223 = vpop.f32.mrf.mxu0
    %v8224 = vadd.f32 0.0, %v8223
    %v8225 = vpop.f32.mrf.mxu0
    %v8226 = vadd.f32 0.0, %v8225
    %v8227 = vpop.f32.mrf.mxu0
    %v8228 = vpop.f32.mrf.mxu0
    %8229 = vdwg.mxu0
    %8230 = vmatprep.subr.bf16.mxu0 %v7992
    %8231 = vmatpush1.bf16.msra.mxu0 %v7991
    %8232 = vmatprep.subr.bf16.mxu0 %v7984
    %8233 = vmatpush1.bf16.msra.mxu0 %v7983
    %8234 = vmatprep.subr.bf16.mxu0 %v7976
    %8235 = vmatpush1.bf16.msra.mxu0 %v7975
    %8236 = vmatprep.subr.bf16.mxu0 %v7968
    %8237 = vmatpush1.bf16.msra.mxu0 %v7967
    %8238 = vmatprep.subr.bf16.mxu0 %v7960
    %8239 = vmatpush1.bf16.msra.mxu0 %v7959
    %8240 = vmatprep.subr.bf16.mxu0 %v7952
    %8241 = vmatpush1.bf16.msra.mxu0 %v7951
    %8242 = vmatprep.subr.bf16.mxu0 %v7944
    %8243 = vmatpush1.bf16.msra.mxu0 %v7943
    %8244 = vmatprep.subr.bf16.mxu0 %v7936
    %8245 = vmatpush1.bf16.msra.mxu0 %v7935
    %8246 = vmatprep.subr.bf16.mxu0 %v8056
    %8247 = vmatpush2.bf16.msra.mxu0 %v8055
    %8248 = vmatprep.subr.bf16.mxu0 %v8048
    %8249 = vmatpush2.bf16.msra.mxu0 %v8047
    %8250 = vmatprep.subr.bf16.mxu0 %v8040
    %8251 = vmatpush2.bf16.msra.mxu0 %v8039
    %8252 = vmatprep.subr.bf16.mxu0 %v8032
    %8253 = vmatpush2.bf16.msra.mxu0 %v8031
    %8254 = vmatprep.subr.bf16.mxu0 %v8024
    %8255 = vmatpush2.bf16.msra.mxu0 %v8023
    %8256 = vmatprep.subr.bf16.mxu0 %v8016
    %8257 = vmatpush2.bf16.msra.mxu0 %v8015
    %8258 = vmatprep.subr.bf16.mxu0 %v8008
    %8259 = vmatpush2.bf16.msra.mxu0 %v8007
    %8260 = vmatprep.subr.bf16.mxu0 %v8000
    %8261 = vmatpush2.bf16.msra.mxu0 %v7999
    %8262 = vmatprep.mubr.bf16.mxu0 %v7420
    %8263 = vmatmul.mubr.bf16.gmra.mxu0 %v7419
    %v8264 = vpop.f32.mrf.mxu0
    %v8265 = vadd.f32 0.0, %v8264
    %v8266 = vpop.f32.mrf.mxu0
    %v8267 = vadd.f32 0.0, %v8266
    %v8268 = vpop.f32.mrf.mxu0
    %v8269 = vpop.f32.mrf.mxu0
    %8270 = vdwg.mxu0
    %8271 = vmatprep.subr.bf16.mxu0 %v7994
    %8272 = vmatpush1.bf16.msra.mxu0 %v7993
    %8273 = vmatprep.subr.bf16.mxu0 %v7986
    %8274 = vmatpush1.bf16.msra.mxu0 %v7985
    %8275 = vmatprep.subr.bf16.mxu0 %v7978
    %8276 = vmatpush1.bf16.msra.mxu0 %v7977
    %8277 = vmatprep.subr.bf16.mxu0 %v7970
    %8278 = vmatpush1.bf16.msra.mxu0 %v7969
    %8279 = vmatprep.subr.bf16.mxu0 %v7962
    %8280 = vmatpush1.bf16.msra.mxu0 %v7961
    %8281 = vmatprep.subr.bf16.mxu0 %v7954
    %8282 = vmatpush1.bf16.msra.mxu0 %v7953
    %8283 = vmatprep.subr.bf16.mxu0 %v7946
    %8284 = vmatpush1.bf16.msra.mxu0 %v7945
    %8285 = vmatprep.subr.bf16.mxu0 %v7938
    %8286 = vmatpush1.bf16.msra.mxu0 %v7937
    %8287 = vmatprep.subr.bf16.mxu0 %v8058
    %8288 = vmatpush2.bf16.msra.mxu0 %v8057
    %8289 = vmatprep.subr.bf16.mxu0 %v8050
    %8290 = vmatpush2.bf16.msra.mxu0 %v8049
    %8291 = vmatprep.subr.bf16.mxu0 %v8042
    %8292 = vmatpush2.bf16.msra.mxu0 %v8041
    %8293 = vmatprep.subr.bf16.mxu0 %v8034
    %8294 = vmatpush2.bf16.msra.mxu0 %v8033
    %8295 = vmatprep.subr.bf16.mxu0 %v8026
    %8296 = vmatpush2.bf16.msra.mxu0 %v8025
    %8297 = vmatprep.subr.bf16.mxu0 %v8018
    %8298 = vmatpush2.bf16.msra.mxu0 %v8017
    %8299 = vmatprep.subr.bf16.mxu0 %v8010
    %8300 = vmatpush2.bf16.msra.mxu0 %v8009
    %8301 = vmatprep.subr.bf16.mxu0 %v8002
    %8302 = vmatpush2.bf16.msra.mxu0 %v8001
    %8303 = vmatprep.mubr.bf16.mxu0 %v7420
    %8304 = vmatmul.mubr.bf16.gmra.mxu0 %v7419
    %v8305 = vpop.f32.mrf.mxu0
    %v8306 = vadd.f32 0.0, %v8305
    %v8307 = vpop.f32.mrf.mxu0
    %v8308 = vadd.f32 0.0, %v8307
    %v8309 = vpop.f32.mrf.mxu0
    %v8310 = vpop.f32.mrf.mxu0
    %8311 = vdwg.mxu0
    %8312 = vmatprep.subr.bf16.mxu0 %v7996
    %8313 = vmatpush1.bf16.msra.mxu0 %v7995
    %8314 = vmatprep.subr.bf16.mxu0 %v7988
    %8315 = vmatpush1.bf16.msra.mxu0 %v7987
    %8316 = vmatprep.subr.bf16.mxu0 %v7980
    %8317 = vmatpush1.bf16.msra.mxu0 %v7979
    %8318 = vmatprep.subr.bf16.mxu0 %v7972
    %8319 = vmatpush1.bf16.msra.mxu0 %v7971
    %8320 = vmatprep.subr.bf16.mxu0 %v7964
    %8321 = vmatpush1.bf16.msra.mxu0 %v7963
    %8322 = vmatprep.subr.bf16.mxu0 %v7956
    %8323 = vmatpush1.bf16.msra.mxu0 %v7955
    %8324 = vmatprep.subr.bf16.mxu0 %v7948
    %8325 = vmatpush1.bf16.msra.mxu0 %v7947
    %8326 = vmatprep.subr.bf16.mxu0 %v7940
    %8327 = vmatpush1.bf16.msra.mxu0 %v7939
    %8328 = vmatprep.subr.bf16.mxu0 %v8060
    %8329 = vmatpush2.bf16.msra.mxu0 %v8059
    %8330 = vmatprep.subr.bf16.mxu0 %v8052
    %8331 = vmatpush2.bf16.msra.mxu0 %v8051
    %8332 = vmatprep.subr.bf16.mxu0 %v8044
    %8333 = vmatpush2.bf16.msra.mxu0 %v8043
    %8334 = vmatprep.subr.bf16.mxu0 %v8036
    %8335 = vmatpush2.bf16.msra.mxu0 %v8035
    %8336 = vmatprep.subr.bf16.mxu0 %v8028
    %8337 = vmatpush2.bf16.msra.mxu0 %v8027
    %8338 = vmatprep.subr.bf16.mxu0 %v8020
    %8339 = vmatpush2.bf16.msra.mxu0 %v8019
    %8340 = vmatprep.subr.bf16.mxu0 %v8012
    %8341 = vmatpush2.bf16.msra.mxu0 %v8011
    %8342 = vmatprep.subr.bf16.mxu0 %v8004
    %8343 = vmatpush2.bf16.msra.mxu0 %v8003
    %8344 = vmatprep.mubr.bf16.mxu0 %v7420
    %8345 = vmatmul.mubr.bf16.gmra.mxu0 %v7419
    %v8346 = vpop.f32.mrf.mxu0
    %v8347 = vadd.f32 0.0, %v8346
    %v8348 = vpop.f32.mrf.mxu0
    %v8349 = vadd.f32 0.0, %v8348
    %v8350 = vpop.f32.mrf.mxu0
    %v8351 = vpop.f32.mrf.mxu0
    %8352 = vdwg.mxu0
    %v8353 = vadd.f32 %v7411, %v8224
    %v8354 = vadd.f32 %v7412, %v8226
    %v8355 = vadd.f32 %v7413, %v8265
    %v8356 = vadd.f32 %v7414, %v8267
    %v8357 = vadd.f32 %v7415, %v8306
    %v8358 = vadd.f32 %v7416, %v8308
    %v8359 = vadd.f32 %v7417, %v8347
    %v8360 = vadd.f32 %v7418, %v8349
    %v8361 = vxor.u32 %v8353, 2147483648
    %v8362 = vxor.u32 %v8354, 2147483648
    %v8363 = vxor.u32 %v8355, 2147483648
    %v8364 = vxor.u32 %v8356, 2147483648
    %v8365 = vxor.u32 %v8357, 2147483648
    %v8366 = vxor.u32 %v8358, 2147483648
    %v8367 = vmul.f32 %v8361, 1.442695
    %v8368 = vpow.pop %v8367
    %v8369 = vmul.f32 %v8362, 1.442695
    %v8370 = vpow.pop %v8369
    %v8371 = vmul.f32 %v8363, 1.442695
    %v8372 = vpow.pop %v8371
    %v8373 = vmul.f32 %v8364, 1.442695
    %v8374 = vpow.pop %v8373
    %v8375 = vmul.f32 %v8365, 1.442695
    %v8376 = vpow.pop %v8375
    %v8377 = vmul.f32 %v8366, 1.442695
    %v8378 = vpow.pop %v8377
    %v8379 = vadd.f32 %v8368, 1.0
    %v8380 = vadd.f32 %v8370, 1.0
    %v8381 = vadd.f32 %v8372, 1.0
    %v8382 = vadd.f32 %v8374, 1.0
    %v8383 = vadd.f32 %v8376, 1.0
    %v8384 = vadd.f32 %v8378, 1.0
    %v8385 = vrcp.pop %v8379
    %v8386 = vmul.f32 1.0, %v8385
    %v8387 = vrcp.pop %v8380
    %v8388 = vmul.f32 1.0, %v8387
    %v8389 = vrcp.pop %v8381
    %v8390 = vmul.f32 1.0, %v8389
    %v8391 = vrcp.pop %v8382
    %v8392 = vmul.f32 1.0, %v8391
    %v8393 = vrcp.pop %v8383
    %v8394 = vmul.f32 1.0, %v8393
    %v8395 = vrcp.pop %v8384
    %v8396 = vmul.f32 1.0, %v8395
    %v8397 = vtanh.pop %v8359
    %v8398 = vtanh.pop %v8360
    %v8399 = vmul.f32 %v8390, %v7403
    %v8400 = vmul.f32 %v8392, %v7404
    %v8401 = vmul.f32 %v8386, %v8397
    %v8402 = vmul.f32 %v8388, %v8398
    %v8403 = vadd.f32 %v8399, %v8401
    %v8404 = vadd.f32 %v8400, %v8402
    %v8405 = vtanh.pop %v8403
    %v8406 = vtanh.pop %v8404
    %v8407 = vmul.f32 %v8394, %v8405
    %v8408 = vmul.f32 %v8396, %v8406
    %8409 = vst [vmem:[#allocation3 + $0x50] sm:$0xff] %v8407
    %8410 = vst [vmem:[#allocation3 + $0x58] sm:$0xff] %v8408
    %v8411 = vld [vmem:[#allocation2 + $0x180] sm:$0xff]
    %v8412 = vld [vmem:[#allocation2 + $0x188] sm:$0xff]
    %v8413 = vld [vmem:[#allocation2 + $0x190] sm:$0xff]
    %v8414 = vld [vmem:[#allocation2 + $0x198] sm:$0xff]
    %v8415 = vld [vmem:[#allocation2 + $0x1a0] sm:$0xff]
    %v8416 = vld [vmem:[#allocation2 + $0x1a8] sm:$0xff]
    %v8417 = vld [vmem:[#allocation2 + $0x1b0] sm:$0xff]
    %v8418 = vld [vmem:[#allocation2 + $0x1b8] sm:$0xff]
    %v8419 = vpack.c.bf16 %v8407, %v8407
    %v8420 = vpack.c.bf16 %v8408, %v8408
    %v8421 = vld [vmem:[#allocation9] sm:$0xff]
    %v8422 = vld [vmem:[#allocation9 + $0x8] sm:$0xff]
    %v8423 = vld [vmem:[#allocation9 + $0x10] sm:$0xff]
    %v8424 = vld [vmem:[#allocation9 + $0x18] sm:$0xff]
    %v8425 = vld [vmem:[#allocation9 + $0x20] sm:$0xff]
    %v8426 = vld [vmem:[#allocation9 + $0x28] sm:$0xff]
    %v8427 = vld [vmem:[#allocation9 + $0x30] sm:$0xff]
    %v8428 = vld [vmem:[#allocation9 + $0x38] sm:$0xff]
    %v8429 = vld [vmem:[#allocation9 + $0x40] sm:$0xff]
    %v8430 = vld [vmem:[#allocation9 + $0x48] sm:$0xff]
    %v8431 = vld [vmem:[#allocation9 + $0x50] sm:$0xff]
    %v8432 = vld [vmem:[#allocation9 + $0x58] sm:$0xff]
    %v8433 = vld [vmem:[#allocation9 + $0x60] sm:$0xff]
    %v8434 = vld [vmem:[#allocation9 + $0x68] sm:$0xff]
    %v8435 = vld [vmem:[#allocation9 + $0x70] sm:$0xff]
    %v8436 = vld [vmem:[#allocation9 + $0x78] sm:$0xff]
    %v8437 = vld [vmem:[#allocation9 + $0x80] sm:$0xff]
    %v8438 = vld [vmem:[#allocation9 + $0x88] sm:$0xff]
    %v8439 = vld [vmem:[#allocation9 + $0x90] sm:$0xff]
    %v8440 = vld [vmem:[#allocation9 + $0x98] sm:$0xff]
    %v8441 = vld [vmem:[#allocation9 + $0xa0] sm:$0xff]
    %v8442 = vld [vmem:[#allocation9 + $0xa8] sm:$0xff]
    %v8443 = vld [vmem:[#allocation9 + $0xb0] sm:$0xff]
    %v8444 = vld [vmem:[#allocation9 + $0xb8] sm:$0xff]
    %v8445 = vld [vmem:[#allocation9 + $0xc0] sm:$0xff]
    %v8446 = vld [vmem:[#allocation9 + $0xc8] sm:$0xff]
    %v8447 = vld [vmem:[#allocation9 + $0xd0] sm:$0xff]
    %v8448 = vld [vmem:[#allocation9 + $0xd8] sm:$0xff]
    %v8449 = vld [vmem:[#allocation9 + $0xe0] sm:$0xff]
    %v8450 = vld [vmem:[#allocation9 + $0xe8] sm:$0xff]
    %v8451 = vld [vmem:[#allocation9 + $0xf0] sm:$0xff]
    %v8452 = vld [vmem:[#allocation9 + $0xf8] sm:$0xff]
    %v8453 = vld [vmem:[#allocation9 + $0x100] sm:$0xff]
    %v8454 = vld [vmem:[#allocation9 + $0x108] sm:$0xff]
    %v8455 = vld [vmem:[#allocation9 + $0x110] sm:$0xff]
    %v8456 = vld [vmem:[#allocation9 + $0x118] sm:$0xff]
    %v8457 = vld [vmem:[#allocation9 + $0x120] sm:$0xff]
    %v8458 = vld [vmem:[#allocation9 + $0x128] sm:$0xff]
    %v8459 = vld [vmem:[#allocation9 + $0x130] sm:$0xff]
    %v8460 = vld [vmem:[#allocation9 + $0x138] sm:$0xff]
    %v8461 = vld [vmem:[#allocation9 + $0x140] sm:$0xff]
    %v8462 = vld [vmem:[#allocation9 + $0x148] sm:$0xff]
    %v8463 = vld [vmem:[#allocation9 + $0x150] sm:$0xff]
    %v8464 = vld [vmem:[#allocation9 + $0x158] sm:$0xff]
    %v8465 = vld [vmem:[#allocation9 + $0x160] sm:$0xff]
    %v8466 = vld [vmem:[#allocation9 + $0x168] sm:$0xff]
    %v8467 = vld [vmem:[#allocation9 + $0x170] sm:$0xff]
    %v8468 = vld [vmem:[#allocation9 + $0x178] sm:$0xff]
    %v8469 = vld [vmem:[#allocation9 + $0x180] sm:$0xff]
    %v8470 = vld [vmem:[#allocation9 + $0x188] sm:$0xff]
    %v8471 = vld [vmem:[#allocation9 + $0x190] sm:$0xff]
    %v8472 = vld [vmem:[#allocation9 + $0x198] sm:$0xff]
    %v8473 = vld [vmem:[#allocation9 + $0x1a0] sm:$0xff]
    %v8474 = vld [vmem:[#allocation9 + $0x1a8] sm:$0xff]
    %v8475 = vld [vmem:[#allocation9 + $0x1b0] sm:$0xff]
    %v8476 = vld [vmem:[#allocation9 + $0x1b8] sm:$0xff]
    %v8477 = vld [vmem:[#allocation9 + $0x1c0] sm:$0xff]
    %v8478 = vld [vmem:[#allocation9 + $0x1c8] sm:$0xff]
    %v8479 = vld [vmem:[#allocation9 + $0x1d0] sm:$0xff]
    %v8480 = vld [vmem:[#allocation9 + $0x1d8] sm:$0xff]
    %v8481 = vld [vmem:[#allocation9 + $0x1e0] sm:$0xff]
    %v8482 = vld [vmem:[#allocation9 + $0x1e8] sm:$0xff]
    %v8483 = vld [vmem:[#allocation9 + $0x1f0] sm:$0xff]
    %v8484 = vld [vmem:[#allocation9 + $0x1f8] sm:$0xff]
    %v8485 = vld [vmem:[#allocation9 + $0x200] sm:$0xff]
    %v8486 = vld [vmem:[#allocation9 + $0x208] sm:$0xff]
    %v8487 = vld [vmem:[#allocation9 + $0x210] sm:$0xff]
    %v8488 = vld [vmem:[#allocation9 + $0x218] sm:$0xff]
    %v8489 = vld [vmem:[#allocation9 + $0x220] sm:$0xff]
    %v8490 = vld [vmem:[#allocation9 + $0x228] sm:$0xff]
    %v8491 = vld [vmem:[#allocation9 + $0x230] sm:$0xff]
    %v8492 = vld [vmem:[#allocation9 + $0x238] sm:$0xff]
    %v8493 = vld [vmem:[#allocation9 + $0x240] sm:$0xff]
    %v8494 = vld [vmem:[#allocation9 + $0x248] sm:$0xff]
    %v8495 = vld [vmem:[#allocation9 + $0x250] sm:$0xff]
    %v8496 = vld [vmem:[#allocation9 + $0x258] sm:$0xff]
    %v8497 = vld [vmem:[#allocation9 + $0x260] sm:$0xff]
    %v8498 = vld [vmem:[#allocation9 + $0x268] sm:$0xff]
    %v8499 = vld [vmem:[#allocation9 + $0x270] sm:$0xff]
    %v8500 = vld [vmem:[#allocation9 + $0x278] sm:$0xff]
    %v8501 = vld [vmem:[#allocation9 + $0x280] sm:$0xff]
    %v8502 = vld [vmem:[#allocation9 + $0x288] sm:$0xff]
    %v8503 = vld [vmem:[#allocation9 + $0x290] sm:$0xff]
    %v8504 = vld [vmem:[#allocation9 + $0x298] sm:$0xff]
    %v8505 = vld [vmem:[#allocation9 + $0x2a0] sm:$0xff]
    %v8506 = vld [vmem:[#allocation9 + $0x2a8] sm:$0xff]
    %v8507 = vld [vmem:[#allocation9 + $0x2b0] sm:$0xff]
    %v8508 = vld [vmem:[#allocation9 + $0x2b8] sm:$0xff]
    %v8509 = vld [vmem:[#allocation9 + $0x2c0] sm:$0xff]
    %v8510 = vld [vmem:[#allocation9 + $0x2c8] sm:$0xff]
    %v8511 = vld [vmem:[#allocation9 + $0x2d0] sm:$0xff]
    %v8512 = vld [vmem:[#allocation9 + $0x2d8] sm:$0xff]
    %v8513 = vld [vmem:[#allocation9 + $0x2e0] sm:$0xff]
    %v8514 = vld [vmem:[#allocation9 + $0x2e8] sm:$0xff]
    %v8515 = vld [vmem:[#allocation9 + $0x2f0] sm:$0xff]
    %v8516 = vld [vmem:[#allocation9 + $0x2f8] sm:$0xff]
    %v8517 = vld [vmem:[#allocation9 + $0x300] sm:$0xff]
    %v8518 = vld [vmem:[#allocation9 + $0x308] sm:$0xff]
    %v8519 = vld [vmem:[#allocation9 + $0x310] sm:$0xff]
    %v8520 = vld [vmem:[#allocation9 + $0x318] sm:$0xff]
    %v8521 = vld [vmem:[#allocation9 + $0x320] sm:$0xff]
    %v8522 = vld [vmem:[#allocation9 + $0x328] sm:$0xff]
    %v8523 = vld [vmem:[#allocation9 + $0x330] sm:$0xff]
    %v8524 = vld [vmem:[#allocation9 + $0x338] sm:$0xff]
    %v8525 = vld [vmem:[#allocation9 + $0x340] sm:$0xff]
    %v8526 = vld [vmem:[#allocation9 + $0x348] sm:$0xff]
    %v8527 = vld [vmem:[#allocation9 + $0x350] sm:$0xff]
    %v8528 = vld [vmem:[#allocation9 + $0x358] sm:$0xff]
    %v8529 = vld [vmem:[#allocation9 + $0x360] sm:$0xff]
    %v8530 = vld [vmem:[#allocation9 + $0x368] sm:$0xff]
    %v8531 = vld [vmem:[#allocation9 + $0x370] sm:$0xff]
    %v8532 = vld [vmem:[#allocation9 + $0x378] sm:$0xff]
    %v8533 = vld [vmem:[#allocation9 + $0x380] sm:$0xff]
    %v8534 = vld [vmem:[#allocation9 + $0x388] sm:$0xff]
    %v8535 = vld [vmem:[#allocation9 + $0x390] sm:$0xff]
    %v8536 = vld [vmem:[#allocation9 + $0x398] sm:$0xff]
    %v8537 = vld [vmem:[#allocation9 + $0x3a0] sm:$0xff]
    %v8538 = vld [vmem:[#allocation9 + $0x3a8] sm:$0xff]
    %v8539 = vld [vmem:[#allocation9 + $0x3b0] sm:$0xff]
    %v8540 = vld [vmem:[#allocation9 + $0x3b8] sm:$0xff]
    %v8541 = vld [vmem:[#allocation9 + $0x3c0] sm:$0xff]
    %v8542 = vld [vmem:[#allocation9 + $0x3c8] sm:$0xff]
    %v8543 = vld [vmem:[#allocation9 + $0x3d0] sm:$0xff]
    %v8544 = vld [vmem:[#allocation9 + $0x3d8] sm:$0xff]
    %v8545 = vld [vmem:[#allocation9 + $0x3e0] sm:$0xff]
    %v8546 = vld [vmem:[#allocation9 + $0x3e8] sm:$0xff]
    %v8547 = vld [vmem:[#allocation9 + $0x3f0] sm:$0xff]
    %v8548 = vld [vmem:[#allocation9 + $0x3f8] sm:$0xff]
    %v8677 = vunpack.c.l.b16 %v8421
    %v8678 = vunpack.c.h.b16 %v8421
    %v8679 = vunpack.c.l.b16 %v8422
    %v8680 = vunpack.c.h.b16 %v8422
    %v8681 = vunpack.c.l.b16 %v8423
    %v8682 = vunpack.c.h.b16 %v8423
    %v8683 = vunpack.c.l.b16 %v8424
    %v8684 = vunpack.c.h.b16 %v8424
    %v8685 = vunpack.c.l.b16 %v8425
    %v8686 = vunpack.c.h.b16 %v8425
    %v8687 = vunpack.c.l.b16 %v8426
    %v8688 = vunpack.c.h.b16 %v8426
    %v8689 = vunpack.c.l.b16 %v8427
    %v8690 = vunpack.c.h.b16 %v8427
    %v8691 = vunpack.c.l.b16 %v8428
    %v8692 = vunpack.c.h.b16 %v8428
    %v8693 = vunpack.c.l.b16 %v8429
    %v8694 = vunpack.c.h.b16 %v8429
    %v8695 = vunpack.c.l.b16 %v8430
    %v8696 = vunpack.c.h.b16 %v8430
    %v8697 = vunpack.c.l.b16 %v8431
    %v8698 = vunpack.c.h.b16 %v8431
    %v8699 = vunpack.c.l.b16 %v8432
    %v8700 = vunpack.c.h.b16 %v8432
    %v8701 = vunpack.c.l.b16 %v8433
    %v8702 = vunpack.c.h.b16 %v8433
    %v8703 = vunpack.c.l.b16 %v8434
    %v8704 = vunpack.c.h.b16 %v8434
    %v8705 = vunpack.c.l.b16 %v8435
    %v8706 = vunpack.c.h.b16 %v8435
    %v8707 = vunpack.c.l.b16 %v8436
    %v8708 = vunpack.c.h.b16 %v8436
    %v8709 = vunpack.c.l.b16 %v8437
    %v8710 = vunpack.c.h.b16 %v8437
    %v8711 = vunpack.c.l.b16 %v8438
    %v8712 = vunpack.c.h.b16 %v8438
    %v8713 = vunpack.c.l.b16 %v8439
    %v8714 = vunpack.c.h.b16 %v8439
    %v8715 = vunpack.c.l.b16 %v8440
    %v8716 = vunpack.c.h.b16 %v8440
    %v8717 = vunpack.c.l.b16 %v8441
    %v8718 = vunpack.c.h.b16 %v8441
    %v8719 = vunpack.c.l.b16 %v8442
    %v8720 = vunpack.c.h.b16 %v8442
    %v8721 = vunpack.c.l.b16 %v8443
    %v8722 = vunpack.c.h.b16 %v8443
    %v8723 = vunpack.c.l.b16 %v8444
    %v8724 = vunpack.c.h.b16 %v8444
    %v8725 = vunpack.c.l.b16 %v8445
    %v8726 = vunpack.c.h.b16 %v8445
    %v8727 = vunpack.c.l.b16 %v8446
    %v8728 = vunpack.c.h.b16 %v8446
    %v8729 = vunpack.c.l.b16 %v8447
    %v8730 = vunpack.c.h.b16 %v8447
    %v8731 = vunpack.c.l.b16 %v8448
    %v8732 = vunpack.c.h.b16 %v8448
    %v8733 = vunpack.c.l.b16 %v8449
    %v8734 = vunpack.c.h.b16 %v8449
    %v8735 = vunpack.c.l.b16 %v8450
    %v8736 = vunpack.c.h.b16 %v8450
    %v8737 = vunpack.c.l.b16 %v8451
    %v8738 = vunpack.c.h.b16 %v8451
    %v8739 = vunpack.c.l.b16 %v8452
    %v8740 = vunpack.c.h.b16 %v8452
    %v8741 = vunpack.c.l.b16 %v8453
    %v8742 = vunpack.c.h.b16 %v8453
    %v8743 = vunpack.c.l.b16 %v8454
    %v8744 = vunpack.c.h.b16 %v8454
    %v8745 = vunpack.c.l.b16 %v8455
    %v8746 = vunpack.c.h.b16 %v8455
    %v8747 = vunpack.c.l.b16 %v8456
    %v8748 = vunpack.c.h.b16 %v8456
    %v8749 = vunpack.c.l.b16 %v8457
    %v8750 = vunpack.c.h.b16 %v8457
    %v8751 = vunpack.c.l.b16 %v8458
    %v8752 = vunpack.c.h.b16 %v8458
    %v8753 = vunpack.c.l.b16 %v8459
    %v8754 = vunpack.c.h.b16 %v8459
    %v8755 = vunpack.c.l.b16 %v8460
    %v8756 = vunpack.c.h.b16 %v8460
    %v8757 = vunpack.c.l.b16 %v8461
    %v8758 = vunpack.c.h.b16 %v8461
    %v8759 = vunpack.c.l.b16 %v8462
    %v8760 = vunpack.c.h.b16 %v8462
    %v8761 = vunpack.c.l.b16 %v8463
    %v8762 = vunpack.c.h.b16 %v8463
    %v8763 = vunpack.c.l.b16 %v8464
    %v8764 = vunpack.c.h.b16 %v8464
    %v8765 = vunpack.c.l.b16 %v8465
    %v8766 = vunpack.c.h.b16 %v8465
    %v8767 = vunpack.c.l.b16 %v8466
    %v8768 = vunpack.c.h.b16 %v8466
    %v8769 = vunpack.c.l.b16 %v8467
    %v8770 = vunpack.c.h.b16 %v8467
    %v8771 = vunpack.c.l.b16 %v8468
    %v8772 = vunpack.c.h.b16 %v8468
    %v8773 = vunpack.c.l.b16 %v8469
    %v8774 = vunpack.c.h.b16 %v8469
    %v8775 = vunpack.c.l.b16 %v8470
    %v8776 = vunpack.c.h.b16 %v8470
    %v8777 = vunpack.c.l.b16 %v8471
    %v8778 = vunpack.c.h.b16 %v8471
    %v8779 = vunpack.c.l.b16 %v8472
    %v8780 = vunpack.c.h.b16 %v8472
    %v8781 = vunpack.c.l.b16 %v8473
    %v8782 = vunpack.c.h.b16 %v8473
    %v8783 = vunpack.c.l.b16 %v8474
    %v8784 = vunpack.c.h.b16 %v8474
    %v8785 = vunpack.c.l.b16 %v8475
    %v8786 = vunpack.c.h.b16 %v8475
    %v8787 = vunpack.c.l.b16 %v8476
    %v8788 = vunpack.c.h.b16 %v8476
    %v8789 = vunpack.c.l.b16 %v8477
    %v8790 = vunpack.c.h.b16 %v8477
    %v8791 = vunpack.c.l.b16 %v8478
    %v8792 = vunpack.c.h.b16 %v8478
    %v8793 = vunpack.c.l.b16 %v8479
    %v8794 = vunpack.c.h.b16 %v8479
    %v8795 = vunpack.c.l.b16 %v8480
    %v8796 = vunpack.c.h.b16 %v8480
    %v8797 = vunpack.c.l.b16 %v8481
    %v8798 = vunpack.c.h.b16 %v8481
    %v8799 = vunpack.c.l.b16 %v8482
    %v8800 = vunpack.c.h.b16 %v8482
    %v8801 = vunpack.c.l.b16 %v8483
    %v8802 = vunpack.c.h.b16 %v8483
    %v8803 = vunpack.c.l.b16 %v8484
    %v8804 = vunpack.c.h.b16 %v8484
    %v8805 = vunpack.c.l.b16 %v8485
    %v8806 = vunpack.c.h.b16 %v8485
    %v8807 = vunpack.c.l.b16 %v8486
    %v8808 = vunpack.c.h.b16 %v8486
    %v8809 = vunpack.c.l.b16 %v8487
    %v8810 = vunpack.c.h.b16 %v8487
    %v8811 = vunpack.c.l.b16 %v8488
    %v8812 = vunpack.c.h.b16 %v8488
    %v8813 = vunpack.c.l.b16 %v8489
    %v8814 = vunpack.c.h.b16 %v8489
    %v8815 = vunpack.c.l.b16 %v8490
    %v8816 = vunpack.c.h.b16 %v8490
    %v8817 = vunpack.c.l.b16 %v8491
    %v8818 = vunpack.c.h.b16 %v8491
    %v8819 = vunpack.c.l.b16 %v8492
    %v8820 = vunpack.c.h.b16 %v8492
    %v8821 = vunpack.c.l.b16 %v8493
    %v8822 = vunpack.c.h.b16 %v8493
    %v8823 = vunpack.c.l.b16 %v8494
    %v8824 = vunpack.c.h.b16 %v8494
    %v8825 = vunpack.c.l.b16 %v8495
    %v8826 = vunpack.c.h.b16 %v8495
    %v8827 = vunpack.c.l.b16 %v8496
    %v8828 = vunpack.c.h.b16 %v8496
    %v8829 = vunpack.c.l.b16 %v8497
    %v8830 = vunpack.c.h.b16 %v8497
    %v8831 = vunpack.c.l.b16 %v8498
    %v8832 = vunpack.c.h.b16 %v8498
    %v8833 = vunpack.c.l.b16 %v8499
    %v8834 = vunpack.c.h.b16 %v8499
    %v8835 = vunpack.c.l.b16 %v8500
    %v8836 = vunpack.c.h.b16 %v8500
    %v8837 = vunpack.c.l.b16 %v8501
    %v8838 = vunpack.c.h.b16 %v8501
    %v8839 = vunpack.c.l.b16 %v8502
    %v8840 = vunpack.c.h.b16 %v8502
    %v8841 = vunpack.c.l.b16 %v8503
    %v8842 = vunpack.c.h.b16 %v8503
    %v8843 = vunpack.c.l.b16 %v8504
    %v8844 = vunpack.c.h.b16 %v8504
    %v8845 = vunpack.c.l.b16 %v8505
    %v8846 = vunpack.c.h.b16 %v8505
    %v8847 = vunpack.c.l.b16 %v8506
    %v8848 = vunpack.c.h.b16 %v8506
    %v8849 = vunpack.c.l.b16 %v8507
    %v8850 = vunpack.c.h.b16 %v8507
    %v8851 = vunpack.c.l.b16 %v8508
    %v8852 = vunpack.c.h.b16 %v8508
    %v8853 = vunpack.c.l.b16 %v8509
    %v8854 = vunpack.c.h.b16 %v8509
    %v8855 = vunpack.c.l.b16 %v8510
    %v8856 = vunpack.c.h.b16 %v8510
    %v8857 = vunpack.c.l.b16 %v8511
    %v8858 = vunpack.c.h.b16 %v8511
    %v8859 = vunpack.c.l.b16 %v8512
    %v8860 = vunpack.c.h.b16 %v8512
    %v8861 = vunpack.c.l.b16 %v8513
    %v8862 = vunpack.c.h.b16 %v8513
    %v8863 = vunpack.c.l.b16 %v8514
    %v8864 = vunpack.c.h.b16 %v8514
    %v8865 = vunpack.c.l.b16 %v8515
    %v8866 = vunpack.c.h.b16 %v8515
    %v8867 = vunpack.c.l.b16 %v8516
    %v8868 = vunpack.c.h.b16 %v8516
    %v8869 = vunpack.c.l.b16 %v8517
    %v8870 = vunpack.c.h.b16 %v8517
    %v8871 = vunpack.c.l.b16 %v8518
    %v8872 = vunpack.c.h.b16 %v8518
    %v8873 = vunpack.c.l.b16 %v8519
    %v8874 = vunpack.c.h.b16 %v8519
    %v8875 = vunpack.c.l.b16 %v8520
    %v8876 = vunpack.c.h.b16 %v8520
    %v8877 = vunpack.c.l.b16 %v8521
    %v8878 = vunpack.c.h.b16 %v8521
    %v8879 = vunpack.c.l.b16 %v8522
    %v8880 = vunpack.c.h.b16 %v8522
    %v8881 = vunpack.c.l.b16 %v8523
    %v8882 = vunpack.c.h.b16 %v8523
    %v8883 = vunpack.c.l.b16 %v8524
    %v8884 = vunpack.c.h.b16 %v8524
    %v8885 = vunpack.c.l.b16 %v8525
    %v8886 = vunpack.c.h.b16 %v8525
    %v8887 = vunpack.c.l.b16 %v8526
    %v8888 = vunpack.c.h.b16 %v8526
    %v8889 = vunpack.c.l.b16 %v8527
    %v8890 = vunpack.c.h.b16 %v8527
    %v8891 = vunpack.c.l.b16 %v8528
    %v8892 = vunpack.c.h.b16 %v8528
    %v8893 = vunpack.c.l.b16 %v8529
    %v8894 = vunpack.c.h.b16 %v8529
    %v8895 = vunpack.c.l.b16 %v8530
    %v8896 = vunpack.c.h.b16 %v8530
    %v8897 = vunpack.c.l.b16 %v8531
    %v8898 = vunpack.c.h.b16 %v8531
    %v8899 = vunpack.c.l.b16 %v8532
    %v8900 = vunpack.c.h.b16 %v8532
    %v8901 = vunpack.c.l.b16 %v8533
    %v8902 = vunpack.c.h.b16 %v8533
    %v8903 = vunpack.c.l.b16 %v8534
    %v8904 = vunpack.c.h.b16 %v8534
    %v8905 = vunpack.c.l.b16 %v8535
    %v8906 = vunpack.c.h.b16 %v8535
    %v8907 = vunpack.c.l.b16 %v8536
    %v8908 = vunpack.c.h.b16 %v8536
    %v8909 = vunpack.c.l.b16 %v8537
    %v8910 = vunpack.c.h.b16 %v8537
    %v8911 = vunpack.c.l.b16 %v8538
    %v8912 = vunpack.c.h.b16 %v8538
    %v8913 = vunpack.c.l.b16 %v8539
    %v8914 = vunpack.c.h.b16 %v8539
    %v8915 = vunpack.c.l.b16 %v8540
    %v8916 = vunpack.c.h.b16 %v8540
    %v8917 = vunpack.c.l.b16 %v8541
    %v8918 = vunpack.c.h.b16 %v8541
    %v8919 = vunpack.c.l.b16 %v8542
    %v8920 = vunpack.c.h.b16 %v8542
    %v8921 = vunpack.c.l.b16 %v8543
    %v8922 = vunpack.c.h.b16 %v8543
    %v8923 = vunpack.c.l.b16 %v8544
    %v8924 = vunpack.c.h.b16 %v8544
    %v8925 = vunpack.c.l.b16 %v8545
    %v8926 = vunpack.c.h.b16 %v8545
    %v8927 = vunpack.c.l.b16 %v8546
    %v8928 = vunpack.c.h.b16 %v8546
    %v8929 = vunpack.c.l.b16 %v8547
    %v8930 = vunpack.c.h.b16 %v8547
    %v8931 = vunpack.c.l.b16 %v8548
    %v8932 = vunpack.c.h.b16 %v8548
    %v8933 = vpack.c.b16 %v8685, %v8677
    %v8934 = vpack.c.b16 %v8686, %v8678
    %v8935 = vpack.c.b16 %v8687, %v8679
    %v8936 = vpack.c.b16 %v8688, %v8680
    %v8937 = vpack.c.b16 %v8689, %v8681
    %v8938 = vpack.c.b16 %v8690, %v8682
    %v8939 = vpack.c.b16 %v8691, %v8683
    %v8940 = vpack.c.b16 %v8692, %v8684
    %v8941 = vpack.c.b16 %v8701, %v8693
    %v8942 = vpack.c.b16 %v8702, %v8694
    %v8943 = vpack.c.b16 %v8703, %v8695
    %v8944 = vpack.c.b16 %v8704, %v8696
    %v8945 = vpack.c.b16 %v8705, %v8697
    %v8946 = vpack.c.b16 %v8706, %v8698
    %v8947 = vpack.c.b16 %v8707, %v8699
    %v8948 = vpack.c.b16 %v8708, %v8700
    %v8949 = vpack.c.b16 %v8717, %v8709
    %v8950 = vpack.c.b16 %v8718, %v8710
    %v8951 = vpack.c.b16 %v8719, %v8711
    %v8952 = vpack.c.b16 %v8720, %v8712
    %v8953 = vpack.c.b16 %v8721, %v8713
    %v8954 = vpack.c.b16 %v8722, %v8714
    %v8955 = vpack.c.b16 %v8723, %v8715
    %v8956 = vpack.c.b16 %v8724, %v8716
    %v8957 = vpack.c.b16 %v8733, %v8725
    %v8958 = vpack.c.b16 %v8734, %v8726
    %v8959 = vpack.c.b16 %v8735, %v8727
    %v8960 = vpack.c.b16 %v8736, %v8728
    %v8961 = vpack.c.b16 %v8737, %v8729
    %v8962 = vpack.c.b16 %v8738, %v8730
    %v8963 = vpack.c.b16 %v8739, %v8731
    %v8964 = vpack.c.b16 %v8740, %v8732
    %v8965 = vpack.c.b16 %v8749, %v8741
    %v8966 = vpack.c.b16 %v8750, %v8742
    %v8967 = vpack.c.b16 %v8751, %v8743
    %v8968 = vpack.c.b16 %v8752, %v8744
    %v8969 = vpack.c.b16 %v8753, %v8745
    %v8970 = vpack.c.b16 %v8754, %v8746
    %v8971 = vpack.c.b16 %v8755, %v8747
    %v8972 = vpack.c.b16 %v8756, %v8748
    %v8973 = vpack.c.b16 %v8765, %v8757
    %v8974 = vpack.c.b16 %v8766, %v8758
    %v8975 = vpack.c.b16 %v8767, %v8759
    %v8976 = vpack.c.b16 %v8768, %v8760
    %v8977 = vpack.c.b16 %v8769, %v8761
    %v8978 = vpack.c.b16 %v8770, %v8762
    %v8979 = vpack.c.b16 %v8771, %v8763
    %v8980 = vpack.c.b16 %v8772, %v8764
    %v8981 = vpack.c.b16 %v8781, %v8773
    %v8982 = vpack.c.b16 %v8782, %v8774
    %v8983 = vpack.c.b16 %v8783, %v8775
    %v8984 = vpack.c.b16 %v8784, %v8776
    %v8985 = vpack.c.b16 %v8785, %v8777
    %v8986 = vpack.c.b16 %v8786, %v8778
    %v8987 = vpack.c.b16 %v8787, %v8779
    %v8988 = vpack.c.b16 %v8788, %v8780
    %v8989 = vpack.c.b16 %v8797, %v8789
    %v8990 = vpack.c.b16 %v8798, %v8790
    %v8991 = vpack.c.b16 %v8799, %v8791
    %v8992 = vpack.c.b16 %v8800, %v8792
    %v8993 = vpack.c.b16 %v8801, %v8793
    %v8994 = vpack.c.b16 %v8802, %v8794
    %v8995 = vpack.c.b16 %v8803, %v8795
    %v8996 = vpack.c.b16 %v8804, %v8796
    %v8997 = vpack.c.b16 %v8813, %v8805
    %v8998 = vpack.c.b16 %v8814, %v8806
    %v8999 = vpack.c.b16 %v8815, %v8807
    %v9000 = vpack.c.b16 %v8816, %v8808
    %v9001 = vpack.c.b16 %v8817, %v8809
    %v9002 = vpack.c.b16 %v8818, %v8810
    %v9003 = vpack.c.b16 %v8819, %v8811
    %v9004 = vpack.c.b16 %v8820, %v8812
    %v9005 = vpack.c.b16 %v8829, %v8821
    %v9006 = vpack.c.b16 %v8830, %v8822
    %v9007 = vpack.c.b16 %v8831, %v8823
    %v9008 = vpack.c.b16 %v8832, %v8824
    %v9009 = vpack.c.b16 %v8833, %v8825
    %v9010 = vpack.c.b16 %v8834, %v8826
    %v9011 = vpack.c.b16 %v8835, %v8827
    %v9012 = vpack.c.b16 %v8836, %v8828
    %v9013 = vpack.c.b16 %v8845, %v8837
    %v9014 = vpack.c.b16 %v8846, %v8838
    %v9015 = vpack.c.b16 %v8847, %v8839
    %v9016 = vpack.c.b16 %v8848, %v8840
    %v9017 = vpack.c.b16 %v8849, %v8841
    %v9018 = vpack.c.b16 %v8850, %v8842
    %v9019 = vpack.c.b16 %v8851, %v8843
    %v9020 = vpack.c.b16 %v8852, %v8844
    %v9021 = vpack.c.b16 %v8861, %v8853
    %v9022 = vpack.c.b16 %v8862, %v8854
    %v9023 = vpack.c.b16 %v8863, %v8855
    %v9024 = vpack.c.b16 %v8864, %v8856
    %v9025 = vpack.c.b16 %v8865, %v8857
    %v9026 = vpack.c.b16 %v8866, %v8858
    %v9027 = vpack.c.b16 %v8867, %v8859
    %v9028 = vpack.c.b16 %v8868, %v8860
    %v9029 = vpack.c.b16 %v8877, %v8869
    %v9030 = vpack.c.b16 %v8878, %v8870
    %v9031 = vpack.c.b16 %v8879, %v8871
    %v9032 = vpack.c.b16 %v8880, %v8872
    %v9033 = vpack.c.b16 %v8881, %v8873
    %v9034 = vpack.c.b16 %v8882, %v8874
    %v9035 = vpack.c.b16 %v8883, %v8875
    %v9036 = vpack.c.b16 %v8884, %v8876
    %v9037 = vpack.c.b16 %v8893, %v8885
    %v9038 = vpack.c.b16 %v8894, %v8886
    %v9039 = vpack.c.b16 %v8895, %v8887
    %v9040 = vpack.c.b16 %v8896, %v8888
    %v9041 = vpack.c.b16 %v8897, %v8889
    %v9042 = vpack.c.b16 %v8898, %v8890
    %v9043 = vpack.c.b16 %v8899, %v8891
    %v9044 = vpack.c.b16 %v8900, %v8892
    %v9045 = vpack.c.b16 %v8909, %v8901
    %v9046 = vpack.c.b16 %v8910, %v8902
    %v9047 = vpack.c.b16 %v8911, %v8903
    %v9048 = vpack.c.b16 %v8912, %v8904
    %v9049 = vpack.c.b16 %v8913, %v8905
    %v9050 = vpack.c.b16 %v8914, %v8906
    %v9051 = vpack.c.b16 %v8915, %v8907
    %v9052 = vpack.c.b16 %v8916, %v8908
    %v9053 = vpack.c.b16 %v8925, %v8917
    %v9054 = vpack.c.b16 %v8926, %v8918
    %v9055 = vpack.c.b16 %v8927, %v8919
    %v9056 = vpack.c.b16 %v8928, %v8920
    %v9057 = vpack.c.b16 %v8929, %v8921
    %v9058 = vpack.c.b16 %v8930, %v8922
    %v9059 = vpack.c.b16 %v8931, %v8923
    %v9060 = vpack.c.b16 %v8932, %v8924
    %9189 = vmatprep.subr.bf16.mxu0 %v8990
    %9190 = vmatpush1.bf16.msra.mxu0 %v8989
    %9191 = vmatprep.subr.bf16.mxu0 %v8982
    %9192 = vmatpush1.bf16.msra.mxu0 %v8981
    %9193 = vmatprep.subr.bf16.mxu0 %v8974
    %9194 = vmatpush1.bf16.msra.mxu0 %v8973
    %9195 = vmatprep.subr.bf16.mxu0 %v8966
    %9196 = vmatpush1.bf16.msra.mxu0 %v8965
    %9197 = vmatprep.subr.bf16.mxu0 %v8958
    %9198 = vmatpush1.bf16.msra.mxu0 %v8957
    %9199 = vmatprep.subr.bf16.mxu0 %v8950
    %9200 = vmatpush1.bf16.msra.mxu0 %v8949
    %9201 = vmatprep.subr.bf16.mxu0 %v8942
    %9202 = vmatpush1.bf16.msra.mxu0 %v8941
    %9203 = vmatprep.subr.bf16.mxu0 %v8934
    %9204 = vmatpush1.bf16.msra.mxu0 %v8933
    %9205 = vmatprep.subr.bf16.mxu0 %v9054
    %9206 = vmatpush2.bf16.msra.mxu0 %v9053
    %9207 = vmatprep.subr.bf16.mxu0 %v9046
    %9208 = vmatpush2.bf16.msra.mxu0 %v9045
    %9209 = vmatprep.subr.bf16.mxu0 %v9038
    %9210 = vmatpush2.bf16.msra.mxu0 %v9037
    %9211 = vmatprep.subr.bf16.mxu0 %v9030
    %9212 = vmatpush2.bf16.msra.mxu0 %v9029
    %9213 = vmatprep.subr.bf16.mxu0 %v9022
    %9214 = vmatpush2.bf16.msra.mxu0 %v9021
    %9215 = vmatprep.subr.bf16.mxu0 %v9014
    %9216 = vmatpush2.bf16.msra.mxu0 %v9013
    %9217 = vmatprep.subr.bf16.mxu0 %v9006
    %9218 = vmatpush2.bf16.msra.mxu0 %v9005
    %9219 = vmatprep.subr.bf16.mxu0 %v8998
    %9220 = vmatpush2.bf16.msra.mxu0 %v8997
    %9221 = vmatprep.mubr.bf16.mxu0 %v8420
    %9222 = vmatmul.mubr.bf16.gmra.mxu0 %v8419
    %v9223 = vpop.f32.mrf.mxu0
    %v9224 = vadd.f32 0.0, %v9223
    %v9225 = vpop.f32.mrf.mxu0
    %v9226 = vadd.f32 0.0, %v9225
    %v9227 = vpop.f32.mrf.mxu0
    %v9228 = vpop.f32.mrf.mxu0
    %9229 = vdwg.mxu0
    %9230 = vmatprep.subr.bf16.mxu0 %v8992
    %9231 = vmatpush1.bf16.msra.mxu0 %v8991
    %9232 = vmatprep.subr.bf16.mxu0 %v8984
    %9233 = vmatpush1.bf16.msra.mxu0 %v8983
    %9234 = vmatprep.subr.bf16.mxu0 %v8976
    %9235 = vmatpush1.bf16.msra.mxu0 %v8975
    %9236 = vmatprep.subr.bf16.mxu0 %v8968
    %9237 = vmatpush1.bf16.msra.mxu0 %v8967
    %9238 = vmatprep.subr.bf16.mxu0 %v8960
    %9239 = vmatpush1.bf16.msra.mxu0 %v8959
    %9240 = vmatprep.subr.bf16.mxu0 %v8952
    %9241 = vmatpush1.bf16.msra.mxu0 %v8951
    %9242 = vmatprep.subr.bf16.mxu0 %v8944
    %9243 = vmatpush1.bf16.msra.mxu0 %v8943
    %9244 = vmatprep.subr.bf16.mxu0 %v8936
    %9245 = vmatpush1.bf16.msra.mxu0 %v8935
    %9246 = vmatprep.subr.bf16.mxu0 %v9056
    %9247 = vmatpush2.bf16.msra.mxu0 %v9055
    %9248 = vmatprep.subr.bf16.mxu0 %v9048
    %9249 = vmatpush2.bf16.msra.mxu0 %v9047
    %9250 = vmatprep.subr.bf16.mxu0 %v9040
    %9251 = vmatpush2.bf16.msra.mxu0 %v9039
    %9252 = vmatprep.subr.bf16.mxu0 %v9032
    %9253 = vmatpush2.bf16.msra.mxu0 %v9031
    %9254 = vmatprep.subr.bf16.mxu0 %v9024
    %9255 = vmatpush2.bf16.msra.mxu0 %v9023
    %9256 = vmatprep.subr.bf16.mxu0 %v9016
    %9257 = vmatpush2.bf16.msra.mxu0 %v9015
    %9258 = vmatprep.subr.bf16.mxu0 %v9008
    %9259 = vmatpush2.bf16.msra.mxu0 %v9007
    %9260 = vmatprep.subr.bf16.mxu0 %v9000
    %9261 = vmatpush2.bf16.msra.mxu0 %v8999
    %9262 = vmatprep.mubr.bf16.mxu0 %v8420
    %9263 = vmatmul.mubr.bf16.gmra.mxu0 %v8419
    %v9264 = vpop.f32.mrf.mxu0
    %v9265 = vadd.f32 0.0, %v9264
    %v9266 = vpop.f32.mrf.mxu0
    %v9267 = vadd.f32 0.0, %v9266
    %v9268 = vpop.f32.mrf.mxu0
    %v9269 = vpop.f32.mrf.mxu0
    %9270 = vdwg.mxu0
    %9271 = vmatprep.subr.bf16.mxu0 %v8994
    %9272 = vmatpush1.bf16.msra.mxu0 %v8993
    %9273 = vmatprep.subr.bf16.mxu0 %v8986
    %9274 = vmatpush1.bf16.msra.mxu0 %v8985
    %9275 = vmatprep.subr.bf16.mxu0 %v8978
    %9276 = vmatpush1.bf16.msra.mxu0 %v8977
    %9277 = vmatprep.subr.bf16.mxu0 %v8970
    %9278 = vmatpush1.bf16.msra.mxu0 %v8969
    %9279 = vmatprep.subr.bf16.mxu0 %v8962
    %9280 = vmatpush1.bf16.msra.mxu0 %v8961
    %9281 = vmatprep.subr.bf16.mxu0 %v8954
    %9282 = vmatpush1.bf16.msra.mxu0 %v8953
    %9283 = vmatprep.subr.bf16.mxu0 %v8946
    %9284 = vmatpush1.bf16.msra.mxu0 %v8945
    %9285 = vmatprep.subr.bf16.mxu0 %v8938
    %9286 = vmatpush1.bf16.msra.mxu0 %v8937
    %9287 = vmatprep.subr.bf16.mxu0 %v9058
    %9288 = vmatpush2.bf16.msra.mxu0 %v9057
    %9289 = vmatprep.subr.bf16.mxu0 %v9050
    %9290 = vmatpush2.bf16.msra.mxu0 %v9049
    %9291 = vmatprep.subr.bf16.mxu0 %v9042
    %9292 = vmatpush2.bf16.msra.mxu0 %v9041
    %9293 = vmatprep.subr.bf16.mxu0 %v9034
    %9294 = vmatpush2.bf16.msra.mxu0 %v9033
    %9295 = vmatprep.subr.bf16.mxu0 %v9026
    %9296 = vmatpush2.bf16.msra.mxu0 %v9025
    %9297 = vmatprep.subr.bf16.mxu0 %v9018
    %9298 = vmatpush2.bf16.msra.mxu0 %v9017
    %9299 = vmatprep.subr.bf16.mxu0 %v9010
    %9300 = vmatpush2.bf16.msra.mxu0 %v9009
    %9301 = vmatprep.subr.bf16.mxu0 %v9002
    %9302 = vmatpush2.bf16.msra.mxu0 %v9001
    %9303 = vmatprep.mubr.bf16.mxu0 %v8420
    %9304 = vmatmul.mubr.bf16.gmra.mxu0 %v8419
    %v9305 = vpop.f32.mrf.mxu0
    %v9306 = vadd.f32 0.0, %v9305
    %v9307 = vpop.f32.mrf.mxu0
    %v9308 = vadd.f32 0.0, %v9307
    %v9309 = vpop.f32.mrf.mxu0
    %v9310 = vpop.f32.mrf.mxu0
    %9311 = vdwg.mxu0
    %9312 = vmatprep.subr.bf16.mxu0 %v8996
    %9313 = vmatpush1.bf16.msra.mxu0 %v8995
    %9314 = vmatprep.subr.bf16.mxu0 %v8988
    %9315 = vmatpush1.bf16.msra.mxu0 %v8987
    %9316 = vmatprep.subr.bf16.mxu0 %v8980
    %9317 = vmatpush1.bf16.msra.mxu0 %v8979
    %9318 = vmatprep.subr.bf16.mxu0 %v8972
    %9319 = vmatpush1.bf16.msra.mxu0 %v8971
    %9320 = vmatprep.subr.bf16.mxu0 %v8964
    %9321 = vmatpush1.bf16.msra.mxu0 %v8963
    %9322 = vmatprep.subr.bf16.mxu0 %v8956
    %9323 = vmatpush1.bf16.msra.mxu0 %v8955
    %9324 = vmatprep.subr.bf16.mxu0 %v8948
    %9325 = vmatpush1.bf16.msra.mxu0 %v8947
    %9326 = vmatprep.subr.bf16.mxu0 %v8940
    %9327 = vmatpush1.bf16.msra.mxu0 %v8939
    %9328 = vmatprep.subr.bf16.mxu0 %v9060
    %9329 = vmatpush2.bf16.msra.mxu0 %v9059
    %9330 = vmatprep.subr.bf16.mxu0 %v9052
    %9331 = vmatpush2.bf16.msra.mxu0 %v9051
    %9332 = vmatprep.subr.bf16.mxu0 %v9044
    %9333 = vmatpush2.bf16.msra.mxu0 %v9043
    %9334 = vmatprep.subr.bf16.mxu0 %v9036
    %9335 = vmatpush2.bf16.msra.mxu0 %v9035
    %9336 = vmatprep.subr.bf16.mxu0 %v9028
    %9337 = vmatpush2.bf16.msra.mxu0 %v9027
    %9338 = vmatprep.subr.bf16.mxu0 %v9020
    %9339 = vmatpush2.bf16.msra.mxu0 %v9019
    %9340 = vmatprep.subr.bf16.mxu0 %v9012
    %9341 = vmatpush2.bf16.msra.mxu0 %v9011
    %9342 = vmatprep.subr.bf16.mxu0 %v9004
    %9343 = vmatpush2.bf16.msra.mxu0 %v9003
    %9344 = vmatprep.mubr.bf16.mxu0 %v8420
    %9345 = vmatmul.mubr.bf16.gmra.mxu0 %v8419
    %v9346 = vpop.f32.mrf.mxu0
    %v9347 = vadd.f32 0.0, %v9346
    %v9348 = vpop.f32.mrf.mxu0
    %v9349 = vadd.f32 0.0, %v9348
    %v9350 = vpop.f32.mrf.mxu0
    %v9351 = vpop.f32.mrf.mxu0
    %9352 = vdwg.mxu0
    %v9353 = vadd.f32 %v8411, %v9224
    %v9354 = vadd.f32 %v8412, %v9226
    %v9355 = vadd.f32 %v8413, %v9265
    %v9356 = vadd.f32 %v8414, %v9267
    %v9357 = vadd.f32 %v8415, %v9306
    %v9358 = vadd.f32 %v8416, %v9308
    %v9359 = vadd.f32 %v8417, %v9347
    %v9360 = vadd.f32 %v8418, %v9349
    %v9361 = vxor.u32 %v9353, 2147483648
    %v9362 = vxor.u32 %v9354, 2147483648
    %v9363 = vxor.u32 %v9355, 2147483648
    %v9364 = vxor.u32 %v9356, 2147483648
    %v9365 = vxor.u32 %v9357, 2147483648
    %v9366 = vxor.u32 %v9358, 2147483648
    %v9367 = vmul.f32 %v9361, 1.442695
    %v9368 = vpow.pop %v9367
    %v9369 = vmul.f32 %v9362, 1.442695
    %v9370 = vpow.pop %v9369
    %v9371 = vmul.f32 %v9363, 1.442695
    %v9372 = vpow.pop %v9371
    %v9373 = vmul.f32 %v9364, 1.442695
    %v9374 = vpow.pop %v9373
    %v9375 = vmul.f32 %v9365, 1.442695
    %v9376 = vpow.pop %v9375
    %v9377 = vmul.f32 %v9366, 1.442695
    %v9378 = vpow.pop %v9377
    %v9379 = vadd.f32 %v9368, 1.0
    %v9380 = vadd.f32 %v9370, 1.0
    %v9381 = vadd.f32 %v9372, 1.0
    %v9382 = vadd.f32 %v9374, 1.0
    %v9383 = vadd.f32 %v9376, 1.0
    %v9384 = vadd.f32 %v9378, 1.0
    %v9385 = vrcp.pop %v9379
    %v9386 = vmul.f32 1.0, %v9385
    %v9387 = vrcp.pop %v9380
    %v9388 = vmul.f32 1.0, %v9387
    %v9389 = vrcp.pop %v9381
    %v9390 = vmul.f32 1.0, %v9389
    %v9391 = vrcp.pop %v9382
    %v9392 = vmul.f32 1.0, %v9391
    %v9393 = vrcp.pop %v9383
    %v9394 = vmul.f32 1.0, %v9393
    %v9395 = vrcp.pop %v9384
    %v9396 = vmul.f32 1.0, %v9395
    %v9397 = vtanh.pop %v9359
    %v9398 = vtanh.pop %v9360
    %v9399 = vmul.f32 %v9390, %v8403
    %v9400 = vmul.f32 %v9392, %v8404
    %v9401 = vmul.f32 %v9386, %v9397
    %v9402 = vmul.f32 %v9388, %v9398
    %v9403 = vadd.f32 %v9399, %v9401
    %v9404 = vadd.f32 %v9400, %v9402
    %v9405 = vtanh.pop %v9403
    %v9406 = vtanh.pop %v9404
    %v9407 = vmul.f32 %v9394, %v9405
    %v9408 = vmul.f32 %v9396, %v9406
    %9409 = vst [vmem:[#allocation3 + $0x60] sm:$0xff] %v9407
    %9410 = vst [vmem:[#allocation3 + $0x68] sm:$0xff] %v9408
    %v9411 = vld [vmem:[#allocation2 + $0x1c0] sm:$0xff]
    %v9412 = vld [vmem:[#allocation2 + $0x1c8] sm:$0xff]
    %v9413 = vld [vmem:[#allocation2 + $0x1d0] sm:$0xff]
    %v9414 = vld [vmem:[#allocation2 + $0x1d8] sm:$0xff]
    %v9415 = vld [vmem:[#allocation2 + $0x1e0] sm:$0xff]
    %v9416 = vld [vmem:[#allocation2 + $0x1e8] sm:$0xff]
    %v9417 = vld [vmem:[#allocation2 + $0x1f0] sm:$0xff]
    %v9418 = vld [vmem:[#allocation2 + $0x1f8] sm:$0xff]
    %v9419 = vpack.c.bf16 %v9407, %v9407
    %v9420 = vpack.c.bf16 %v9408, %v9408
    %v9421 = vld [vmem:[#allocation9] sm:$0xff]
    %v9422 = vld [vmem:[#allocation9 + $0x8] sm:$0xff]
    %v9423 = vld [vmem:[#allocation9 + $0x10] sm:$0xff]
    %v9424 = vld [vmem:[#allocation9 + $0x18] sm:$0xff]
    %v9425 = vld [vmem:[#allocation9 + $0x20] sm:$0xff]
    %v9426 = vld [vmem:[#allocation9 + $0x28] sm:$0xff]
    %v9427 = vld [vmem:[#allocation9 + $0x30] sm:$0xff]
    %v9428 = vld [vmem:[#allocation9 + $0x38] sm:$0xff]
    %v9429 = vld [vmem:[#allocation9 + $0x40] sm:$0xff]
    %v9430 = vld [vmem:[#allocation9 + $0x48] sm:$0xff]
    %v9431 = vld [vmem:[#allocation9 + $0x50] sm:$0xff]
    %v9432 = vld [vmem:[#allocation9 + $0x58] sm:$0xff]
    %v9433 = vld [vmem:[#allocation9 + $0x60] sm:$0xff]
    %v9434 = vld [vmem:[#allocation9 + $0x68] sm:$0xff]
    %v9435 = vld [vmem:[#allocation9 + $0x70] sm:$0xff]
    %v9436 = vld [vmem:[#allocation9 + $0x78] sm:$0xff]
    %v9437 = vld [vmem:[#allocation9 + $0x80] sm:$0xff]
    %v9438 = vld [vmem:[#allocation9 + $0x88] sm:$0xff]
    %v9439 = vld [vmem:[#allocation9 + $0x90] sm:$0xff]
    %v9440 = vld [vmem:[#allocation9 + $0x98] sm:$0xff]
    %v9441 = vld [vmem:[#allocation9 + $0xa0] sm:$0xff]
    %v9442 = vld [vmem:[#allocation9 + $0xa8] sm:$0xff]
    %v9443 = vld [vmem:[#allocation9 + $0xb0] sm:$0xff]
    %v9444 = vld [vmem:[#allocation9 + $0xb8] sm:$0xff]
    %v9445 = vld [vmem:[#allocation9 + $0xc0] sm:$0xff]
    %v9446 = vld [vmem:[#allocation9 + $0xc8] sm:$0xff]
    %v9447 = vld [vmem:[#allocation9 + $0xd0] sm:$0xff]
    %v9448 = vld [vmem:[#allocation9 + $0xd8] sm:$0xff]
    %v9449 = vld [vmem:[#allocation9 + $0xe0] sm:$0xff]
    %v9450 = vld [vmem:[#allocation9 + $0xe8] sm:$0xff]
    %v9451 = vld [vmem:[#allocation9 + $0xf0] sm:$0xff]
    %v9452 = vld [vmem:[#allocation9 + $0xf8] sm:$0xff]
    %v9453 = vld [vmem:[#allocation9 + $0x100] sm:$0xff]
    %v9454 = vld [vmem:[#allocation9 + $0x108] sm:$0xff]
    %v9455 = vld [vmem:[#allocation9 + $0x110] sm:$0xff]
    %v9456 = vld [vmem:[#allocation9 + $0x118] sm:$0xff]
    %v9457 = vld [vmem:[#allocation9 + $0x120] sm:$0xff]
    %v9458 = vld [vmem:[#allocation9 + $0x128] sm:$0xff]
    %v9459 = vld [vmem:[#allocation9 + $0x130] sm:$0xff]
    %v9460 = vld [vmem:[#allocation9 + $0x138] sm:$0xff]
    %v9461 = vld [vmem:[#allocation9 + $0x140] sm:$0xff]
    %v9462 = vld [vmem:[#allocation9 + $0x148] sm:$0xff]
    %v9463 = vld [vmem:[#allocation9 + $0x150] sm:$0xff]
    %v9464 = vld [vmem:[#allocation9 + $0x158] sm:$0xff]
    %v9465 = vld [vmem:[#allocation9 + $0x160] sm:$0xff]
    %v9466 = vld [vmem:[#allocation9 + $0x168] sm:$0xff]
    %v9467 = vld [vmem:[#allocation9 + $0x170] sm:$0xff]
    %v9468 = vld [vmem:[#allocation9 + $0x178] sm:$0xff]
    %v9469 = vld [vmem:[#allocation9 + $0x180] sm:$0xff]
    %v9470 = vld [vmem:[#allocation9 + $0x188] sm:$0xff]
    %v9471 = vld [vmem:[#allocation9 + $0x190] sm:$0xff]
    %v9472 = vld [vmem:[#allocation9 + $0x198] sm:$0xff]
    %v9473 = vld [vmem:[#allocation9 + $0x1a0] sm:$0xff]
    %v9474 = vld [vmem:[#allocation9 + $0x1a8] sm:$0xff]
    %v9475 = vld [vmem:[#allocation9 + $0x1b0] sm:$0xff]
    %v9476 = vld [vmem:[#allocation9 + $0x1b8] sm:$0xff]
    %v9477 = vld [vmem:[#allocation9 + $0x1c0] sm:$0xff]
    %v9478 = vld [vmem:[#allocation9 + $0x1c8] sm:$0xff]
    %v9479 = vld [vmem:[#allocation9 + $0x1d0] sm:$0xff]
    %v9480 = vld [vmem:[#allocation9 + $0x1d8] sm:$0xff]
    %v9481 = vld [vmem:[#allocation9 + $0x1e0] sm:$0xff]
    %v9482 = vld [vmem:[#allocation9 + $0x1e8] sm:$0xff]
    %v9483 = vld [vmem:[#allocation9 + $0x1f0] sm:$0xff]
    %v9484 = vld [vmem:[#allocation9 + $0x1f8] sm:$0xff]
    %v9485 = vld [vmem:[#allocation9 + $0x200] sm:$0xff]
    %v9486 = vld [vmem:[#allocation9 + $0x208] sm:$0xff]
    %v9487 = vld [vmem:[#allocation9 + $0x210] sm:$0xff]
    %v9488 = vld [vmem:[#allocation9 + $0x218] sm:$0xff]
    %v9489 = vld [vmem:[#allocation9 + $0x220] sm:$0xff]
    %v9490 = vld [vmem:[#allocation9 + $0x228] sm:$0xff]
    %v9491 = vld [vmem:[#allocation9 + $0x230] sm:$0xff]
    %v9492 = vld [vmem:[#allocation9 + $0x238] sm:$0xff]
    %v9493 = vld [vmem:[#allocation9 + $0x240] sm:$0xff]
    %v9494 = vld [vmem:[#allocation9 + $0x248] sm:$0xff]
    %v9495 = vld [vmem:[#allocation9 + $0x250] sm:$0xff]
    %v9496 = vld [vmem:[#allocation9 + $0x258] sm:$0xff]
    %v9497 = vld [vmem:[#allocation9 + $0x260] sm:$0xff]
    %v9498 = vld [vmem:[#allocation9 + $0x268] sm:$0xff]
    %v9499 = vld [vmem:[#allocation9 + $0x270] sm:$0xff]
    %v9500 = vld [vmem:[#allocation9 + $0x278] sm:$0xff]
    %v9501 = vld [vmem:[#allocation9 + $0x280] sm:$0xff]
    %v9502 = vld [vmem:[#allocation9 + $0x288] sm:$0xff]
    %v9503 = vld [vmem:[#allocation9 + $0x290] sm:$0xff]
    %v9504 = vld [vmem:[#allocation9 + $0x298] sm:$0xff]
    %v9505 = vld [vmem:[#allocation9 + $0x2a0] sm:$0xff]
    %v9506 = vld [vmem:[#allocation9 + $0x2a8] sm:$0xff]
    %v9507 = vld [vmem:[#allocation9 + $0x2b0] sm:$0xff]
    %v9508 = vld [vmem:[#allocation9 + $0x2b8] sm:$0xff]
    %v9509 = vld [vmem:[#allocation9 + $0x2c0] sm:$0xff]
    %v9510 = vld [vmem:[#allocation9 + $0x2c8] sm:$0xff]
    %v9511 = vld [vmem:[#allocation9 + $0x2d0] sm:$0xff]
    %v9512 = vld [vmem:[#allocation9 + $0x2d8] sm:$0xff]
    %v9513 = vld [vmem:[#allocation9 + $0x2e0] sm:$0xff]
    %v9514 = vld [vmem:[#allocation9 + $0x2e8] sm:$0xff]
    %v9515 = vld [vmem:[#allocation9 + $0x2f0] sm:$0xff]
    %v9516 = vld [vmem:[#allocation9 + $0x2f8] sm:$0xff]
    %v9517 = vld [vmem:[#allocation9 + $0x300] sm:$0xff]
    %v9518 = vld [vmem:[#allocation9 + $0x308] sm:$0xff]
    %v9519 = vld [vmem:[#allocation9 + $0x310] sm:$0xff]
    %v9520 = vld [vmem:[#allocation9 + $0x318] sm:$0xff]
    %v9521 = vld [vmem:[#allocation9 + $0x320] sm:$0xff]
    %v9522 = vld [vmem:[#allocation9 + $0x328] sm:$0xff]
    %v9523 = vld [vmem:[#allocation9 + $0x330] sm:$0xff]
    %v9524 = vld [vmem:[#allocation9 + $0x338] sm:$0xff]
    %v9525 = vld [vmem:[#allocation9 + $0x340] sm:$0xff]
    %v9526 = vld [vmem:[#allocation9 + $0x348] sm:$0xff]
    %v9527 = vld [vmem:[#allocation9 + $0x350] sm:$0xff]
    %v9528 = vld [vmem:[#allocation9 + $0x358] sm:$0xff]
    %v9529 = vld [vmem:[#allocation9 + $0x360] sm:$0xff]
    %v9530 = vld [vmem:[#allocation9 + $0x368] sm:$0xff]
    %v9531 = vld [vmem:[#allocation9 + $0x370] sm:$0xff]
    %v9532 = vld [vmem:[#allocation9 + $0x378] sm:$0xff]
    %v9533 = vld [vmem:[#allocation9 + $0x380] sm:$0xff]
    %v9534 = vld [vmem:[#allocation9 + $0x388] sm:$0xff]
    %v9535 = vld [vmem:[#allocation9 + $0x390] sm:$0xff]
    %v9536 = vld [vmem:[#allocation9 + $0x398] sm:$0xff]
    %v9537 = vld [vmem:[#allocation9 + $0x3a0] sm:$0xff]
    %v9538 = vld [vmem:[#allocation9 + $0x3a8] sm:$0xff]
    %v9539 = vld [vmem:[#allocation9 + $0x3b0] sm:$0xff]
    %v9540 = vld [vmem:[#allocation9 + $0x3b8] sm:$0xff]
    %v9541 = vld [vmem:[#allocation9 + $0x3c0] sm:$0xff]
    %v9542 = vld [vmem:[#allocation9 + $0x3c8] sm:$0xff]
    %v9543 = vld [vmem:[#allocation9 + $0x3d0] sm:$0xff]
    %v9544 = vld [vmem:[#allocation9 + $0x3d8] sm:$0xff]
    %v9545 = vld [vmem:[#allocation9 + $0x3e0] sm:$0xff]
    %v9546 = vld [vmem:[#allocation9 + $0x3e8] sm:$0xff]
    %v9547 = vld [vmem:[#allocation9 + $0x3f0] sm:$0xff]
    %v9548 = vld [vmem:[#allocation9 + $0x3f8] sm:$0xff]
    %v9677 = vunpack.c.l.b16 %v9421
    %v9678 = vunpack.c.h.b16 %v9421
    %v9679 = vunpack.c.l.b16 %v9422
    %v9680 = vunpack.c.h.b16 %v9422
    %v9681 = vunpack.c.l.b16 %v9423
    %v9682 = vunpack.c.h.b16 %v9423
    %v9683 = vunpack.c.l.b16 %v9424
    %v9684 = vunpack.c.h.b16 %v9424
    %v9685 = vunpack.c.l.b16 %v9425
    %v9686 = vunpack.c.h.b16 %v9425
    %v9687 = vunpack.c.l.b16 %v9426
    %v9688 = vunpack.c.h.b16 %v9426
    %v9689 = vunpack.c.l.b16 %v9427
    %v9690 = vunpack.c.h.b16 %v9427
    %v9691 = vunpack.c.l.b16 %v9428
    %v9692 = vunpack.c.h.b16 %v9428
    %v9693 = vunpack.c.l.b16 %v9429
    %v9694 = vunpack.c.h.b16 %v9429
    %v9695 = vunpack.c.l.b16 %v9430
    %v9696 = vunpack.c.h.b16 %v9430
    %v9697 = vunpack.c.l.b16 %v9431
    %v9698 = vunpack.c.h.b16 %v9431
    %v9699 = vunpack.c.l.b16 %v9432
    %v9700 = vunpack.c.h.b16 %v9432
    %v9701 = vunpack.c.l.b16 %v9433
    %v9702 = vunpack.c.h.b16 %v9433
    %v9703 = vunpack.c.l.b16 %v9434
    %v9704 = vunpack.c.h.b16 %v9434
    %v9705 = vunpack.c.l.b16 %v9435
    %v9706 = vunpack.c.h.b16 %v9435
    %v9707 = vunpack.c.l.b16 %v9436
    %v9708 = vunpack.c.h.b16 %v9436
    %v9709 = vunpack.c.l.b16 %v9437
    %v9710 = vunpack.c.h.b16 %v9437
    %v9711 = vunpack.c.l.b16 %v9438
    %v9712 = vunpack.c.h.b16 %v9438
    %v9713 = vunpack.c.l.b16 %v9439
    %v9714 = vunpack.c.h.b16 %v9439
    %v9715 = vunpack.c.l.b16 %v9440
    %v9716 = vunpack.c.h.b16 %v9440
    %v9717 = vunpack.c.l.b16 %v9441
    %v9718 = vunpack.c.h.b16 %v9441
    %v9719 = vunpack.c.l.b16 %v9442
    %v9720 = vunpack.c.h.b16 %v9442
    %v9721 = vunpack.c.l.b16 %v9443
    %v9722 = vunpack.c.h.b16 %v9443
    %v9723 = vunpack.c.l.b16 %v9444
    %v9724 = vunpack.c.h.b16 %v9444
    %v9725 = vunpack.c.l.b16 %v9445
    %v9726 = vunpack.c.h.b16 %v9445
    %v9727 = vunpack.c.l.b16 %v9446
    %v9728 = vunpack.c.h.b16 %v9446
    %v9729 = vunpack.c.l.b16 %v9447
    %v9730 = vunpack.c.h.b16 %v9447
    %v9731 = vunpack.c.l.b16 %v9448
    %v9732 = vunpack.c.h.b16 %v9448
    %v9733 = vunpack.c.l.b16 %v9449
    %v9734 = vunpack.c.h.b16 %v9449
    %v9735 = vunpack.c.l.b16 %v9450
    %v9736 = vunpack.c.h.b16 %v9450
    %v9737 = vunpack.c.l.b16 %v9451
    %v9738 = vunpack.c.h.b16 %v9451
    %v9739 = vunpack.c.l.b16 %v9452
    %v9740 = vunpack.c.h.b16 %v9452
    %v9741 = vunpack.c.l.b16 %v9453
    %v9742 = vunpack.c.h.b16 %v9453
    %v9743 = vunpack.c.l.b16 %v9454
    %v9744 = vunpack.c.h.b16 %v9454
    %v9745 = vunpack.c.l.b16 %v9455
    %v9746 = vunpack.c.h.b16 %v9455
    %v9747 = vunpack.c.l.b16 %v9456
    %v9748 = vunpack.c.h.b16 %v9456
    %v9749 = vunpack.c.l.b16 %v9457
    %v9750 = vunpack.c.h.b16 %v9457
    %v9751 = vunpack.c.l.b16 %v9458
    %v9752 = vunpack.c.h.b16 %v9458
    %v9753 = vunpack.c.l.b16 %v9459
    %v9754 = vunpack.c.h.b16 %v9459
    %v9755 = vunpack.c.l.b16 %v9460
    %v9756 = vunpack.c.h.b16 %v9460
    %v9757 = vunpack.c.l.b16 %v9461
    %v9758 = vunpack.c.h.b16 %v9461
    %v9759 = vunpack.c.l.b16 %v9462
    %v9760 = vunpack.c.h.b16 %v9462
    %v9761 = vunpack.c.l.b16 %v9463
    %v9762 = vunpack.c.h.b16 %v9463
    %v9763 = vunpack.c.l.b16 %v9464
    %v9764 = vunpack.c.h.b16 %v9464
    %v9765 = vunpack.c.l.b16 %v9465
    %v9766 = vunpack.c.h.b16 %v9465
    %v9767 = vunpack.c.l.b16 %v9466
    %v9768 = vunpack.c.h.b16 %v9466
    %v9769 = vunpack.c.l.b16 %v9467
    %v9770 = vunpack.c.h.b16 %v9467
    %v9771 = vunpack.c.l.b16 %v9468
    %v9772 = vunpack.c.h.b16 %v9468
    %v9773 = vunpack.c.l.b16 %v9469
    %v9774 = vunpack.c.h.b16 %v9469
    %v9775 = vunpack.c.l.b16 %v9470
    %v9776 = vunpack.c.h.b16 %v9470
    %v9777 = vunpack.c.l.b16 %v9471
    %v9778 = vunpack.c.h.b16 %v9471
    %v9779 = vunpack.c.l.b16 %v9472
    %v9780 = vunpack.c.h.b16 %v9472
    %v9781 = vunpack.c.l.b16 %v9473
    %v9782 = vunpack.c.h.b16 %v9473
    %v9783 = vunpack.c.l.b16 %v9474
    %v9784 = vunpack.c.h.b16 %v9474
    %v9785 = vunpack.c.l.b16 %v9475
    %v9786 = vunpack.c.h.b16 %v9475
    %v9787 = vunpack.c.l.b16 %v9476
    %v9788 = vunpack.c.h.b16 %v9476
    %v9789 = vunpack.c.l.b16 %v9477
    %v9790 = vunpack.c.h.b16 %v9477
    %v9791 = vunpack.c.l.b16 %v9478
    %v9792 = vunpack.c.h.b16 %v9478
    %v9793 = vunpack.c.l.b16 %v9479
    %v9794 = vunpack.c.h.b16 %v9479
    %v9795 = vunpack.c.l.b16 %v9480
    %v9796 = vunpack.c.h.b16 %v9480
    %v9797 = vunpack.c.l.b16 %v9481
    %v9798 = vunpack.c.h.b16 %v9481
    %v9799 = vunpack.c.l.b16 %v9482
    %v9800 = vunpack.c.h.b16 %v9482
    %v9801 = vunpack.c.l.b16 %v9483
    %v9802 = vunpack.c.h.b16 %v9483
    %v9803 = vunpack.c.l.b16 %v9484
    %v9804 = vunpack.c.h.b16 %v9484
    %v9805 = vunpack.c.l.b16 %v9485
    %v9806 = vunpack.c.h.b16 %v9485
    %v9807 = vunpack.c.l.b16 %v9486
    %v9808 = vunpack.c.h.b16 %v9486
    %v9809 = vunpack.c.l.b16 %v9487
    %v9810 = vunpack.c.h.b16 %v9487
    %v9811 = vunpack.c.l.b16 %v9488
    %v9812 = vunpack.c.h.b16 %v9488
    %v9813 = vunpack.c.l.b16 %v9489
    %v9814 = vunpack.c.h.b16 %v9489
    %v9815 = vunpack.c.l.b16 %v9490
    %v9816 = vunpack.c.h.b16 %v9490
    %v9817 = vunpack.c.l.b16 %v9491
    %v9818 = vunpack.c.h.b16 %v9491
    %v9819 = vunpack.c.l.b16 %v9492
    %v9820 = vunpack.c.h.b16 %v9492
    %v9821 = vunpack.c.l.b16 %v9493
    %v9822 = vunpack.c.h.b16 %v9493
    %v9823 = vunpack.c.l.b16 %v9494
    %v9824 = vunpack.c.h.b16 %v9494
    %v9825 = vunpack.c.l.b16 %v9495
    %v9826 = vunpack.c.h.b16 %v9495
    %v9827 = vunpack.c.l.b16 %v9496
    %v9828 = vunpack.c.h.b16 %v9496
    %v9829 = vunpack.c.l.b16 %v9497
    %v9830 = vunpack.c.h.b16 %v9497
    %v9831 = vunpack.c.l.b16 %v9498
    %v9832 = vunpack.c.h.b16 %v9498
    %v9833 = vunpack.c.l.b16 %v9499
    %v9834 = vunpack.c.h.b16 %v9499
    %v9835 = vunpack.c.l.b16 %v9500
    %v9836 = vunpack.c.h.b16 %v9500
    %v9837 = vunpack.c.l.b16 %v9501
    %v9838 = vunpack.c.h.b16 %v9501
    %v9839 = vunpack.c.l.b16 %v9502
    %v9840 = vunpack.c.h.b16 %v9502
    %v9841 = vunpack.c.l.b16 %v9503
    %v9842 = vunpack.c.h.b16 %v9503
    %v9843 = vunpack.c.l.b16 %v9504
    %v9844 = vunpack.c.h.b16 %v9504
    %v9845 = vunpack.c.l.b16 %v9505
    %v9846 = vunpack.c.h.b16 %v9505
    %v9847 = vunpack.c.l.b16 %v9506
    %v9848 = vunpack.c.h.b16 %v9506
    %v9849 = vunpack.c.l.b16 %v9507
    %v9850 = vunpack.c.h.b16 %v9507
    %v9851 = vunpack.c.l.b16 %v9508
    %v9852 = vunpack.c.h.b16 %v9508
    %v9853 = vunpack.c.l.b16 %v9509
    %v9854 = vunpack.c.h.b16 %v9509
    %v9855 = vunpack.c.l.b16 %v9510
    %v9856 = vunpack.c.h.b16 %v9510
    %v9857 = vunpack.c.l.b16 %v9511
    %v9858 = vunpack.c.h.b16 %v9511
    %v9859 = vunpack.c.l.b16 %v9512
    %v9860 = vunpack.c.h.b16 %v9512
    %v9861 = vunpack.c.l.b16 %v9513
    %v9862 = vunpack.c.h.b16 %v9513
    %v9863 = vunpack.c.l.b16 %v9514
    %v9864 = vunpack.c.h.b16 %v9514
    %v9865 = vunpack.c.l.b16 %v9515
    %v9866 = vunpack.c.h.b16 %v9515
    %v9867 = vunpack.c.l.b16 %v9516
    %v9868 = vunpack.c.h.b16 %v9516
    %v9869 = vunpack.c.l.b16 %v9517
    %v9870 = vunpack.c.h.b16 %v9517
    %v9871 = vunpack.c.l.b16 %v9518
    %v9872 = vunpack.c.h.b16 %v9518
    %v9873 = vunpack.c.l.b16 %v9519
    %v9874 = vunpack.c.h.b16 %v9519
    %v9875 = vunpack.c.l.b16 %v9520
    %v9876 = vunpack.c.h.b16 %v9520
    %v9877 = vunpack.c.l.b16 %v9521
    %v9878 = vunpack.c.h.b16 %v9521
    %v9879 = vunpack.c.l.b16 %v9522
    %v9880 = vunpack.c.h.b16 %v9522
    %v9881 = vunpack.c.l.b16 %v9523
    %v9882 = vunpack.c.h.b16 %v9523
    %v9883 = vunpack.c.l.b16 %v9524
    %v9884 = vunpack.c.h.b16 %v9524
    %v9885 = vunpack.c.l.b16 %v9525
    %v9886 = vunpack.c.h.b16 %v9525
    %v9887 = vunpack.c.l.b16 %v9526
    %v9888 = vunpack.c.h.b16 %v9526
    %v9889 = vunpack.c.l.b16 %v9527
    %v9890 = vunpack.c.h.b16 %v9527
    %v9891 = vunpack.c.l.b16 %v9528
    %v9892 = vunpack.c.h.b16 %v9528
    %v9893 = vunpack.c.l.b16 %v9529
    %v9894 = vunpack.c.h.b16 %v9529
    %v9895 = vunpack.c.l.b16 %v9530
    %v9896 = vunpack.c.h.b16 %v9530
    %v9897 = vunpack.c.l.b16 %v9531
    %v9898 = vunpack.c.h.b16 %v9531
    %v9899 = vunpack.c.l.b16 %v9532
    %v9900 = vunpack.c.h.b16 %v9532
    %v9901 = vunpack.c.l.b16 %v9533
    %v9902 = vunpack.c.h.b16 %v9533
    %v9903 = vunpack.c.l.b16 %v9534
    %v9904 = vunpack.c.h.b16 %v9534
    %v9905 = vunpack.c.l.b16 %v9535
    %v9906 = vunpack.c.h.b16 %v9535
    %v9907 = vunpack.c.l.b16 %v9536
    %v9908 = vunpack.c.h.b16 %v9536
    %v9909 = vunpack.c.l.b16 %v9537
    %v9910 = vunpack.c.h.b16 %v9537
    %v9911 = vunpack.c.l.b16 %v9538
    %v9912 = vunpack.c.h.b16 %v9538
    %v9913 = vunpack.c.l.b16 %v9539
    %v9914 = vunpack.c.h.b16 %v9539
    %v9915 = vunpack.c.l.b16 %v9540
    %v9916 = vunpack.c.h.b16 %v9540
    %v9917 = vunpack.c.l.b16 %v9541
    %v9918 = vunpack.c.h.b16 %v9541
    %v9919 = vunpack.c.l.b16 %v9542
    %v9920 = vunpack.c.h.b16 %v9542
    %v9921 = vunpack.c.l.b16 %v9543
    %v9922 = vunpack.c.h.b16 %v9543
    %v9923 = vunpack.c.l.b16 %v9544
    %v9924 = vunpack.c.h.b16 %v9544
    %v9925 = vunpack.c.l.b16 %v9545
    %v9926 = vunpack.c.h.b16 %v9545
    %v9927 = vunpack.c.l.b16 %v9546
    %v9928 = vunpack.c.h.b16 %v9546
    %v9929 = vunpack.c.l.b16 %v9547
    %v9930 = vunpack.c.h.b16 %v9547
    %v9931 = vunpack.c.l.b16 %v9548
    %v9932 = vunpack.c.h.b16 %v9548
    %v9933 = vpack.c.b16 %v9685, %v9677
    %v9934 = vpack.c.b16 %v9686, %v9678
    %v9935 = vpack.c.b16 %v9687, %v9679
    %v9936 = vpack.c.b16 %v9688, %v9680
    %v9937 = vpack.c.b16 %v9689, %v9681
    %v9938 = vpack.c.b16 %v9690, %v9682
    %v9939 = vpack.c.b16 %v9691, %v9683
    %v9940 = vpack.c.b16 %v9692, %v9684
    %v9941 = vpack.c.b16 %v9701, %v9693
    %v9942 = vpack.c.b16 %v9702, %v9694
    %v9943 = vpack.c.b16 %v9703, %v9695
    %v9944 = vpack.c.b16 %v9704, %v9696
    %v9945 = vpack.c.b16 %v9705, %v9697
    %v9946 = vpack.c.b16 %v9706, %v9698
    %v9947 = vpack.c.b16 %v9707, %v9699
    %v9948 = vpack.c.b16 %v9708, %v9700
    %v9949 = vpack.c.b16 %v9717, %v9709
    %v9950 = vpack.c.b16 %v9718, %v9710
    %v9951 = vpack.c.b16 %v9719, %v9711
    %v9952 = vpack.c.b16 %v9720, %v9712
    %v9953 = vpack.c.b16 %v9721, %v9713
    %v9954 = vpack.c.b16 %v9722, %v9714
    %v9955 = vpack.c.b16 %v9723, %v9715
    %v9956 = vpack.c.b16 %v9724, %v9716
    %v9957 = vpack.c.b16 %v9733, %v9725
    %v9958 = vpack.c.b16 %v9734, %v9726
    %v9959 = vpack.c.b16 %v9735, %v9727
    %v9960 = vpack.c.b16 %v9736, %v9728
    %v9961 = vpack.c.b16 %v9737, %v9729
    %v9962 = vpack.c.b16 %v9738, %v9730
    %v9963 = vpack.c.b16 %v9739, %v9731
    %v9964 = vpack.c.b16 %v9740, %v9732
    %v9965 = vpack.c.b16 %v9749, %v9741
    %v9966 = vpack.c.b16 %v9750, %v9742
    %v9967 = vpack.c.b16 %v9751, %v9743
    %v9968 = vpack.c.b16 %v9752, %v9744
    %v9969 = vpack.c.b16 %v9753, %v9745
    %v9970 = vpack.c.b16 %v9754, %v9746
    %v9971 = vpack.c.b16 %v9755, %v9747
    %v9972 = vpack.c.b16 %v9756, %v9748
    %v9973 = vpack.c.b16 %v9765, %v9757
    %v9974 = vpack.c.b16 %v9766, %v9758
    %v9975 = vpack.c.b16 %v9767, %v9759
    %v9976 = vpack.c.b16 %v9768, %v9760
    %v9977 = vpack.c.b16 %v9769, %v9761
    %v9978 = vpack.c.b16 %v9770, %v9762
    %v9979 = vpack.c.b16 %v9771, %v9763
    %v9980 = vpack.c.b16 %v9772, %v9764
    %v9981 = vpack.c.b16 %v9781, %v9773
    %v9982 = vpack.c.b16 %v9782, %v9774
    %v9983 = vpack.c.b16 %v9783, %v9775
    %v9984 = vpack.c.b16 %v9784, %v9776
    %v9985 = vpack.c.b16 %v9785, %v9777
    %v9986 = vpack.c.b16 %v9786, %v9778
    %v9987 = vpack.c.b16 %v9787, %v9779
    %v9988 = vpack.c.b16 %v9788, %v9780
    %v9989 = vpack.c.b16 %v9797, %v9789
    %v9990 = vpack.c.b16 %v9798, %v9790
    %v9991 = vpack.c.b16 %v9799, %v9791
    %v9992 = vpack.c.b16 %v9800, %v9792
    %v9993 = vpack.c.b16 %v9801, %v9793
    %v9994 = vpack.c.b16 %v9802, %v9794
    %v9995 = vpack.c.b16 %v9803, %v9795
    %v9996 = vpack.c.b16 %v9804, %v9796
    %v9997 = vpack.c.b16 %v9813, %v9805
    %v9998 = vpack.c.b16 %v9814, %v9806
    %v9999 = vpack.c.b16 %v9815, %v9807
    %v10000 = vpack.c.b16 %v9816, %v9808
    %v10001 = vpack.c.b16 %v9817, %v9809
    %v10002 = vpack.c.b16 %v9818, %v9810
    %v10003 = vpack.c.b16 %v9819, %v9811
    %v10004 = vpack.c.b16 %v9820, %v9812
    %v10005 = vpack.c.b16 %v9829, %v9821
    %v10006 = vpack.c.b16 %v9830, %v9822
    %v10007 = vpack.c.b16 %v9831, %v9823
    %v10008 = vpack.c.b16 %v9832, %v9824
    %v10009 = vpack.c.b16 %v9833, %v9825
    %v10010 = vpack.c.b16 %v9834, %v9826
    %v10011 = vpack.c.b16 %v9835, %v9827
    %v10012 = vpack.c.b16 %v9836, %v9828
    %v10013 = vpack.c.b16 %v9845, %v9837
    %v10014 = vpack.c.b16 %v9846, %v9838
    %v10015 = vpack.c.b16 %v9847, %v9839
    %v10016 = vpack.c.b16 %v9848, %v9840
    %v10017 = vpack.c.b16 %v9849, %v9841
    %v10018 = vpack.c.b16 %v9850, %v9842
    %v10019 = vpack.c.b16 %v9851, %v9843
    %v10020 = vpack.c.b16 %v9852, %v9844
    %v10021 = vpack.c.b16 %v9861, %v9853
    %v10022 = vpack.c.b16 %v9862, %v9854
    %v10023 = vpack.c.b16 %v9863, %v9855
    %v10024 = vpack.c.b16 %v9864, %v9856
    %v10025 = vpack.c.b16 %v9865, %v9857
    %v10026 = vpack.c.b16 %v9866, %v9858
    %v10027 = vpack.c.b16 %v9867, %v9859
    %v10028 = vpack.c.b16 %v9868, %v9860
    %v10029 = vpack.c.b16 %v9877, %v9869
    %v10030 = vpack.c.b16 %v9878, %v9870
    %v10031 = vpack.c.b16 %v9879, %v9871
    %v10032 = vpack.c.b16 %v9880, %v9872
    %v10033 = vpack.c.b16 %v9881, %v9873
    %v10034 = vpack.c.b16 %v9882, %v9874
    %v10035 = vpack.c.b16 %v9883, %v9875
    %v10036 = vpack.c.b16 %v9884, %v9876
    %v10037 = vpack.c.b16 %v9893, %v9885
    %v10038 = vpack.c.b16 %v9894, %v9886
    %v10039 = vpack.c.b16 %v9895, %v9887
    %v10040 = vpack.c.b16 %v9896, %v9888
    %v10041 = vpack.c.b16 %v9897, %v9889
    %v10042 = vpack.c.b16 %v9898, %v9890
    %v10043 = vpack.c.b16 %v9899, %v9891
    %v10044 = vpack.c.b16 %v9900, %v9892
    %v10045 = vpack.c.b16 %v9909, %v9901
    %v10046 = vpack.c.b16 %v9910, %v9902
    %v10047 = vpack.c.b16 %v9911, %v9903
    %v10048 = vpack.c.b16 %v9912, %v9904
    %v10049 = vpack.c.b16 %v9913, %v9905
    %v10050 = vpack.c.b16 %v9914, %v9906
    %v10051 = vpack.c.b16 %v9915, %v9907
    %v10052 = vpack.c.b16 %v9916, %v9908
    %v10053 = vpack.c.b16 %v9925, %v9917
    %v10054 = vpack.c.b16 %v9926, %v9918
    %v10055 = vpack.c.b16 %v9927, %v9919
    %v10056 = vpack.c.b16 %v9928, %v9920
    %v10057 = vpack.c.b16 %v9929, %v9921
    %v10058 = vpack.c.b16 %v9930, %v9922
    %v10059 = vpack.c.b16 %v9931, %v9923
    %v10060 = vpack.c.b16 %v9932, %v9924
    %10189 = vmatprep.subr.bf16.mxu0 %v9990
    %10190 = vmatpush1.bf16.msra.mxu0 %v9989
    %10191 = vmatprep.subr.bf16.mxu0 %v9982
    %10192 = vmatpush1.bf16.msra.mxu0 %v9981
    %10193 = vmatprep.subr.bf16.mxu0 %v9974
    %10194 = vmatpush1.bf16.msra.mxu0 %v9973
    %10195 = vmatprep.subr.bf16.mxu0 %v9966
    %10196 = vmatpush1.bf16.msra.mxu0 %v9965
    %10197 = vmatprep.subr.bf16.mxu0 %v9958
    %10198 = vmatpush1.bf16.msra.mxu0 %v9957
    %10199 = vmatprep.subr.bf16.mxu0 %v9950
    %10200 = vmatpush1.bf16.msra.mxu0 %v9949
    %10201 = vmatprep.subr.bf16.mxu0 %v9942
    %10202 = vmatpush1.bf16.msra.mxu0 %v9941
    %10203 = vmatprep.subr.bf16.mxu0 %v9934
    %10204 = vmatpush1.bf16.msra.mxu0 %v9933
    %10205 = vmatprep.subr.bf16.mxu0 %v10054
    %10206 = vmatpush2.bf16.msra.mxu0 %v10053
    %10207 = vmatprep.subr.bf16.mxu0 %v10046
    %10208 = vmatpush2.bf16.msra.mxu0 %v10045
    %10209 = vmatprep.subr.bf16.mxu0 %v10038
    %10210 = vmatpush2.bf16.msra.mxu0 %v10037
    %10211 = vmatprep.subr.bf16.mxu0 %v10030
    %10212 = vmatpush2.bf16.msra.mxu0 %v10029
    %10213 = vmatprep.subr.bf16.mxu0 %v10022
    %10214 = vmatpush2.bf16.msra.mxu0 %v10021
    %10215 = vmatprep.subr.bf16.mxu0 %v10014
    %10216 = vmatpush2.bf16.msra.mxu0 %v10013
    %10217 = vmatprep.subr.bf16.mxu0 %v10006
    %10218 = vmatpush2.bf16.msra.mxu0 %v10005
    %10219 = vmatprep.subr.bf16.mxu0 %v9998
    %10220 = vmatpush2.bf16.msra.mxu0 %v9997
    %10221 = vmatprep.mubr.bf16.mxu0 %v9420
    %10222 = vmatmul.mubr.bf16.gmra.mxu0 %v9419
    %v10223 = vpop.f32.mrf.mxu0
    %v10224 = vadd.f32 0.0, %v10223
    %v10225 = vpop.f32.mrf.mxu0
    %v10226 = vadd.f32 0.0, %v10225
    %v10227 = vpop.f32.mrf.mxu0
    %v10228 = vpop.f32.mrf.mxu0
    %10229 = vdwg.mxu0
    %10230 = vmatprep.subr.bf16.mxu0 %v9992
    %10231 = vmatpush1.bf16.msra.mxu0 %v9991
    %10232 = vmatprep.subr.bf16.mxu0 %v9984
    %10233 = vmatpush1.bf16.msra.mxu0 %v9983
    %10234 = vmatprep.subr.bf16.mxu0 %v9976
    %10235 = vmatpush1.bf16.msra.mxu0 %v9975
    %10236 = vmatprep.subr.bf16.mxu0 %v9968
    %10237 = vmatpush1.bf16.msra.mxu0 %v9967
    %10238 = vmatprep.subr.bf16.mxu0 %v9960
    %10239 = vmatpush1.bf16.msra.mxu0 %v9959
    %10240 = vmatprep.subr.bf16.mxu0 %v9952
    %10241 = vmatpush1.bf16.msra.mxu0 %v9951
    %10242 = vmatprep.subr.bf16.mxu0 %v9944
    %10243 = vmatpush1.bf16.msra.mxu0 %v9943
    %10244 = vmatprep.subr.bf16.mxu0 %v9936
    %10245 = vmatpush1.bf16.msra.mxu0 %v9935
    %10246 = vmatprep.subr.bf16.mxu0 %v10056
    %10247 = vmatpush2.bf16.msra.mxu0 %v10055
    %10248 = vmatprep.subr.bf16.mxu0 %v10048
    %10249 = vmatpush2.bf16.msra.mxu0 %v10047
    %10250 = vmatprep.subr.bf16.mxu0 %v10040
    %10251 = vmatpush2.bf16.msra.mxu0 %v10039
    %10252 = vmatprep.subr.bf16.mxu0 %v10032
    %10253 = vmatpush2.bf16.msra.mxu0 %v10031
    %10254 = vmatprep.subr.bf16.mxu0 %v10024
    %10255 = vmatpush2.bf16.msra.mxu0 %v10023
    %10256 = vmatprep.subr.bf16.mxu0 %v10016
    %10257 = vmatpush2.bf16.msra.mxu0 %v10015
    %10258 = vmatprep.subr.bf16.mxu0 %v10008
    %10259 = vmatpush2.bf16.msra.mxu0 %v10007
    %10260 = vmatprep.subr.bf16.mxu0 %v10000
    %10261 = vmatpush2.bf16.msra.mxu0 %v9999
    %10262 = vmatprep.mubr.bf16.mxu0 %v9420
    %10263 = vmatmul.mubr.bf16.gmra.mxu0 %v9419
    %v10264 = vpop.f32.mrf.mxu0
    %v10265 = vadd.f32 0.0, %v10264
    %v10266 = vpop.f32.mrf.mxu0
    %v10267 = vadd.f32 0.0, %v10266
    %v10268 = vpop.f32.mrf.mxu0
    %v10269 = vpop.f32.mrf.mxu0
    %10270 = vdwg.mxu0
    %10271 = vmatprep.subr.bf16.mxu0 %v9994
    %10272 = vmatpush1.bf16.msra.mxu0 %v9993
    %10273 = vmatprep.subr.bf16.mxu0 %v9986
    %10274 = vmatpush1.bf16.msra.mxu0 %v9985
    %10275 = vmatprep.subr.bf16.mxu0 %v9978
    %10276 = vmatpush1.bf16.msra.mxu0 %v9977
    %10277 = vmatprep.subr.bf16.mxu0 %v9970
    %10278 = vmatpush1.bf16.msra.mxu0 %v9969
    %10279 = vmatprep.subr.bf16.mxu0 %v9962
    %10280 = vmatpush1.bf16.msra.mxu0 %v9961
    %10281 = vmatprep.subr.bf16.mxu0 %v9954
    %10282 = vmatpush1.bf16.msra.mxu0 %v9953
    %10283 = vmatprep.subr.bf16.mxu0 %v9946
    %10284 = vmatpush1.bf16.msra.mxu0 %v9945
    %10285 = vmatprep.subr.bf16.mxu0 %v9938
    %10286 = vmatpush1.bf16.msra.mxu0 %v9937
    %10287 = vmatprep.subr.bf16.mxu0 %v10058
    %10288 = vmatpush2.bf16.msra.mxu0 %v10057
    %10289 = vmatprep.subr.bf16.mxu0 %v10050
    %10290 = vmatpush2.bf16.msra.mxu0 %v10049
    %10291 = vmatprep.subr.bf16.mxu0 %v10042
    %10292 = vmatpush2.bf16.msra.mxu0 %v10041
    %10293 = vmatprep.subr.bf16.mxu0 %v10034
    %10294 = vmatpush2.bf16.msra.mxu0 %v10033
    %10295 = vmatprep.subr.bf16.mxu0 %v10026
    %10296 = vmatpush2.bf16.msra.mxu0 %v10025
    %10297 = vmatprep.subr.bf16.mxu0 %v10018
    %10298 = vmatpush2.bf16.msra.mxu0 %v10017
    %10299 = vmatprep.subr.bf16.mxu0 %v10010
    %10300 = vmatpush2.bf16.msra.mxu0 %v10009
    %10301 = vmatprep.subr.bf16.mxu0 %v10002
    %10302 = vmatpush2.bf16.msra.mxu0 %v10001
    %10303 = vmatprep.mubr.bf16.mxu0 %v9420
    %10304 = vmatmul.mubr.bf16.gmra.mxu0 %v9419
    %v10305 = vpop.f32.mrf.mxu0
    %v10306 = vadd.f32 0.0, %v10305
    %v10307 = vpop.f32.mrf.mxu0
    %v10308 = vadd.f32 0.0, %v10307
    %v10309 = vpop.f32.mrf.mxu0
    %v10310 = vpop.f32.mrf.mxu0
    %10311 = vdwg.mxu0
    %10312 = vmatprep.subr.bf16.mxu0 %v9996
    %10313 = vmatpush1.bf16.msra.mxu0 %v9995
    %10314 = vmatprep.subr.bf16.mxu0 %v9988
    %10315 = vmatpush1.bf16.msra.mxu0 %v9987
    %10316 = vmatprep.subr.bf16.mxu0 %v9980
    %10317 = vmatpush1.bf16.msra.mxu0 %v9979
    %10318 = vmatprep.subr.bf16.mxu0 %v9972
    %10319 = vmatpush1.bf16.msra.mxu0 %v9971
    %10320 = vmatprep.subr.bf16.mxu0 %v9964
    %10321 = vmatpush1.bf16.msra.mxu0 %v9963
    %10322 = vmatprep.subr.bf16.mxu0 %v9956
    %10323 = vmatpush1.bf16.msra.mxu0 %v9955
    %10324 = vmatprep.subr.bf16.mxu0 %v9948
    %10325 = vmatpush1.bf16.msra.mxu0 %v9947
    %10326 = vmatprep.subr.bf16.mxu0 %v9940
    %10327 = vmatpush1.bf16.msra.mxu0 %v9939
    %10328 = vmatprep.subr.bf16.mxu0 %v10060
    %10329 = vmatpush2.bf16.msra.mxu0 %v10059
    %10330 = vmatprep.subr.bf16.mxu0 %v10052
    %10331 = vmatpush2.bf16.msra.mxu0 %v10051
    %10332 = vmatprep.subr.bf16.mxu0 %v10044
    %10333 = vmatpush2.bf16.msra.mxu0 %v10043
    %10334 = vmatprep.subr.bf16.mxu0 %v10036
    %10335 = vmatpush2.bf16.msra.mxu0 %v10035
    %10336 = vmatprep.subr.bf16.mxu0 %v10028
    %10337 = vmatpush2.bf16.msra.mxu0 %v10027
    %10338 = vmatprep.subr.bf16.mxu0 %v10020
    %10339 = vmatpush2.bf16.msra.mxu0 %v10019
    %10340 = vmatprep.subr.bf16.mxu0 %v10012
    %10341 = vmatpush2.bf16.msra.mxu0 %v10011
    %10342 = vmatprep.subr.bf16.mxu0 %v10004
    %10343 = vmatpush2.bf16.msra.mxu0 %v10003
    %10344 = vmatprep.mubr.bf16.mxu0 %v9420
    %10345 = vmatmul.mubr.bf16.gmra.mxu0 %v9419
    %v10346 = vpop.f32.mrf.mxu0
    %v10347 = vadd.f32 0.0, %v10346
    %v10348 = vpop.f32.mrf.mxu0
    %v10349 = vadd.f32 0.0, %v10348
    %v10350 = vpop.f32.mrf.mxu0
    %v10351 = vpop.f32.mrf.mxu0
    %10352 = vdwg.mxu0
    %v10353 = vadd.f32 %v9411, %v10224
    %v10354 = vadd.f32 %v9412, %v10226
    %v10355 = vadd.f32 %v9413, %v10265
    %v10356 = vadd.f32 %v9414, %v10267
    %v10357 = vadd.f32 %v9415, %v10306
    %v10358 = vadd.f32 %v9416, %v10308
    %v10359 = vadd.f32 %v9417, %v10347
    %v10360 = vadd.f32 %v9418, %v10349
    %v10361 = vxor.u32 %v10353, 2147483648
    %v10362 = vxor.u32 %v10354, 2147483648
    %v10363 = vxor.u32 %v10355, 2147483648
    %v10364 = vxor.u32 %v10356, 2147483648
    %v10365 = vxor.u32 %v10357, 2147483648
    %v10366 = vxor.u32 %v10358, 2147483648
    %v10367 = vmul.f32 %v10361, 1.442695
    %v10368 = vpow.pop %v10367
    %v10369 = vmul.f32 %v10362, 1.442695
    %v10370 = vpow.pop %v10369
    %v10371 = vmul.f32 %v10363, 1.442695
    %v10372 = vpow.pop %v10371
    %v10373 = vmul.f32 %v10364, 1.442695
    %v10374 = vpow.pop %v10373
    %v10375 = vmul.f32 %v10365, 1.442695
    %v10376 = vpow.pop %v10375
    %v10377 = vmul.f32 %v10366, 1.442695
    %v10378 = vpow.pop %v10377
    %v10379 = vadd.f32 %v10368, 1.0
    %v10380 = vadd.f32 %v10370, 1.0
    %v10381 = vadd.f32 %v10372, 1.0
    %v10382 = vadd.f32 %v10374, 1.0
    %v10383 = vadd.f32 %v10376, 1.0
    %v10384 = vadd.f32 %v10378, 1.0
    %v10385 = vrcp.pop %v10379
    %v10386 = vmul.f32 1.0, %v10385
    %v10387 = vrcp.pop %v10380
    %v10388 = vmul.f32 1.0, %v10387
    %v10389 = vrcp.pop %v10381
    %v10390 = vmul.f32 1.0, %v10389
    %v10391 = vrcp.pop %v10382
    %v10392 = vmul.f32 1.0, %v10391
    %v10393 = vrcp.pop %v10383
    %v10394 = vmul.f32 1.0, %v10393
    %v10395 = vrcp.pop %v10384
    %v10396 = vmul.f32 1.0, %v10395
    %v10397 = vtanh.pop %v10359
    %v10398 = vtanh.pop %v10360
    %v10399 = vmul.f32 %v10390, %v9403
    %v10400 = vmul.f32 %v10392, %v9404
    %v10401 = vmul.f32 %v10386, %v10397
    %v10402 = vmul.f32 %v10388, %v10398
    %v10403 = vadd.f32 %v10399, %v10401
    %v10404 = vadd.f32 %v10400, %v10402
    %v10405 = vtanh.pop %v10403
    %v10406 = vtanh.pop %v10404
    %v10407 = vmul.f32 %v10394, %v10405
    %v10408 = vmul.f32 %v10396, %v10406
    %10409 = vst [vmem:[#allocation3 + $0x70] sm:$0xff] %v10407
    %10410 = vst [vmem:[#allocation3 + $0x78] sm:$0xff] %v10408
    %v10411 = vld [vmem:[#allocation3] sm:$0xff]
    %v10412 = vld [vmem:[#allocation3 + $0x8] sm:$0xff]
    %v10413 = vld [vmem:[#allocation3 + $0x10] sm:$0xff]
    %v10414 = vld [vmem:[#allocation3 + $0x18] sm:$0xff]
    %v10415 = vld [vmem:[#allocation3 + $0x20] sm:$0xff]
    %v10416 = vld [vmem:[#allocation3 + $0x28] sm:$0xff]
    %v10417 = vld [vmem:[#allocation3 + $0x30] sm:$0xff]
    %v10418 = vld [vmem:[#allocation3 + $0x38] sm:$0xff]
    %v10419 = vld [vmem:[#allocation3 + $0x40] sm:$0xff]
    %v10420 = vld [vmem:[#allocation3 + $0x48] sm:$0xff]
    %v10421 = vld [vmem:[#allocation3 + $0x50] sm:$0xff]
    %v10422 = vld [vmem:[#allocation3 + $0x58] sm:$0xff]
    %v10423 = vld [vmem:[#allocation3 + $0x60] sm:$0xff]
    %v10424 = vld [vmem:[#allocation3 + $0x68] sm:$0xff]
    %v10425 = vld [vmem:[#allocation3 + $0x70] sm:$0xff]
    %v10426 = vld [vmem:[#allocation3 + $0x78] sm:$0xff]
    %v10427 = vpack.c.bf16 %v10413, %v10411
    %v10428 = vpack.c.bf16 %v10414, %v10412
    %v10429 = vpack.c.bf16 %v10417, %v10415
    %v10430 = vpack.c.bf16 %v10418, %v10416
    %v10431 = vpack.c.bf16 %v10421, %v10419
    %v10432 = vpack.c.bf16 %v10422, %v10420
    %v10433 = vpack.c.bf16 %v10425, %v10423
    %v10434 = vpack.c.bf16 %v10426, %v10424
    %v10435 = vld [vmem:[#allocation12] sm:$0xf]
    %v10436 = vld [vmem:[#allocation12 + $0x4] sm:$0xf]
    %v10437 = vld [vmem:[#allocation12 + $0x8] sm:$0xf]
    %v10438 = vld [vmem:[#allocation12 + $0xc] sm:$0xf]
    %v10439 = vld [vmem:[#allocation12 + $0x10] sm:$0xf]
    %v10440 = vld [vmem:[#allocation12 + $0x14] sm:$0xf]
    %v10441 = vld [vmem:[#allocation12 + $0x18] sm:$0xf]
    %v10442 = vld [vmem:[#allocation12 + $0x1c] sm:$0xf]
    %v10443 = vld [vmem:[#allocation12 + $0x20] sm:$0xf]
    %v10444 = vld [vmem:[#allocation12 + $0x24] sm:$0xf]
    %v10445 = vld [vmem:[#allocation12 + $0x28] sm:$0xf]
    %v10446 = vld [vmem:[#allocation12 + $0x2c] sm:$0xf]
    %v10447 = vld [vmem:[#allocation12 + $0x30] sm:$0xf]
    %v10448 = vld [vmem:[#allocation12 + $0x34] sm:$0xf]
    %v10449 = vld [vmem:[#allocation12 + $0x38] sm:$0xf]
    %v10450 = vld [vmem:[#allocation12 + $0x3c] sm:$0xf]
    %v10451 = vld [vmem:[#allocation12 + $0x40] sm:$0xf]
    %v10452 = vld [vmem:[#allocation12 + $0x44] sm:$0xf]
    %v10453 = vld [vmem:[#allocation12 + $0x48] sm:$0xf]
    %v10454 = vld [vmem:[#allocation12 + $0x4c] sm:$0xf]
    %v10455 = vld [vmem:[#allocation12 + $0x50] sm:$0xf]
    %v10456 = vld [vmem:[#allocation12 + $0x54] sm:$0xf]
    %v10457 = vld [vmem:[#allocation12 + $0x58] sm:$0xf]
    %v10458 = vld [vmem:[#allocation12 + $0x5c] sm:$0xf]
    %v10459 = vld [vmem:[#allocation12 + $0x60] sm:$0xf]
    %v10460 = vld [vmem:[#allocation12 + $0x64] sm:$0xf]
    %v10461 = vld [vmem:[#allocation12 + $0x68] sm:$0xf]
    %v10462 = vld [vmem:[#allocation12 + $0x6c] sm:$0xf]
    %v10463 = vld [vmem:[#allocation12 + $0x70] sm:$0xf]
    %v10464 = vld [vmem:[#allocation12 + $0x74] sm:$0xf]
    %v10465 = vld [vmem:[#allocation12 + $0x78] sm:$0xf]
    %v10466 = vld [vmem:[#allocation12 + $0x7c] sm:$0xf]
    %v10467 = vld [vmem:[%s5] sm:$0x1]
    %v10469 = vlaneseq
    %v10470 = vshrl.u32 %v10469, 7
    %v10471 = vsub.s32 0, %v10470
    %v10472 = vrot.slane %v10467, %v10471
    %v10506 = vunpack.c.l.b16 %v10435
    %v10507 = vunpack.c.l.b16 %v10436
    %v10508 = vunpack.c.l.b16 %v10437
    %v10509 = vunpack.c.l.b16 %v10438
    %v10510 = vunpack.c.l.b16 %v10439
    %v10511 = vunpack.c.l.b16 %v10440
    %v10512 = vunpack.c.l.b16 %v10441
    %v10513 = vunpack.c.l.b16 %v10442
    %v10514 = vunpack.c.l.b16 %v10443
    %v10515 = vunpack.c.l.b16 %v10444
    %v10516 = vunpack.c.l.b16 %v10445
    %v10517 = vunpack.c.l.b16 %v10446
    %v10518 = vunpack.c.l.b16 %v10447
    %v10519 = vunpack.c.l.b16 %v10448
    %v10520 = vunpack.c.l.b16 %v10449
    %v10521 = vunpack.c.l.b16 %v10450
    %v10522 = vunpack.c.l.b16 %v10451
    %v10523 = vunpack.c.l.b16 %v10452
    %v10524 = vunpack.c.l.b16 %v10453
    %v10525 = vunpack.c.l.b16 %v10454
    %v10526 = vunpack.c.l.b16 %v10455
    %v10527 = vunpack.c.l.b16 %v10456
    %v10528 = vunpack.c.l.b16 %v10457
    %v10529 = vunpack.c.l.b16 %v10458
    %v10530 = vunpack.c.l.b16 %v10459
    %v10531 = vunpack.c.l.b16 %v10460
    %v10532 = vunpack.c.l.b16 %v10461
    %v10533 = vunpack.c.l.b16 %v10462
    %v10534 = vunpack.c.l.b16 %v10463
    %v10535 = vunpack.c.l.b16 %v10464
    %v10536 = vunpack.c.l.b16 %v10465
    %v10537 = vunpack.c.l.b16 %v10466
    %v10538 = vpack.c.b16 %v10507, %v10506
    %v10539 = vpack.c.b16 %v10509, %v10508
    %v10540 = vpack.c.b16 %v10511, %v10510
    %v10541 = vpack.c.b16 %v10513, %v10512
    %v10542 = vpack.c.b16 %v10515, %v10514
    %v10543 = vpack.c.b16 %v10517, %v10516
    %v10544 = vpack.c.b16 %v10519, %v10518
    %v10545 = vpack.c.b16 %v10521, %v10520
    %v10546 = vpack.c.b16 %v10523, %v10522
    %v10547 = vpack.c.b16 %v10525, %v10524
    %v10548 = vpack.c.b16 %v10527, %v10526
    %v10549 = vpack.c.b16 %v10529, %v10528
    %v10550 = vpack.c.b16 %v10531, %v10530
    %v10551 = vpack.c.b16 %v10533, %v10532
    %v10552 = vpack.c.b16 %v10535, %v10534
    %v10553 = vpack.c.b16 %v10537, %v10536
    %10570 = vmatprep.subr.bf16.mxu0 0
    %10571 = vmatpush1.bf16.msra.mxu0 %v10545
    %10572 = vmatprep.subr.bf16.mxu0 0
    %10573 = vmatpush1.bf16.msra.mxu0 %v10544
    %10574 = vmatprep.subr.bf16.mxu0 0
    %10575 = vmatpush1.bf16.msra.mxu0 %v10543
    %10576 = vmatprep.subr.bf16.mxu0 0
    %10577 = vmatpush1.bf16.msra.mxu0 %v10542
    %10578 = vmatprep.subr.bf16.mxu0 0
    %10579 = vmatpush1.bf16.msra.mxu0 %v10541
    %10580 = vmatprep.subr.bf16.mxu0 0
    %10581 = vmatpush1.bf16.msra.mxu0 %v10540
    %10582 = vmatprep.subr.bf16.mxu0 0
    %10583 = vmatpush1.bf16.msra.mxu0 %v10539
    %10584 = vmatprep.subr.bf16.mxu0 0
    %10585 = vmatpush1.bf16.msra.mxu0 %v10538
    %10586 = vmatprep.subr.bf16.mxu0 0
    %10587 = vmatpush2.bf16.msra.mxu0 %v10553
    %10588 = vmatprep.subr.bf16.mxu0 0
    %10589 = vmatpush2.bf16.msra.mxu0 %v10552
    %10590 = vmatprep.subr.bf16.mxu0 0
    %10591 = vmatpush2.bf16.msra.mxu0 %v10551
    %10592 = vmatprep.subr.bf16.mxu0 0
    %10593 = vmatpush2.bf16.msra.mxu0 %v10550
    %10594 = vmatprep.subr.bf16.mxu0 0
    %10595 = vmatpush2.bf16.msra.mxu0 %v10549
    %10596 = vmatprep.subr.bf16.mxu0 0
    %10597 = vmatpush2.bf16.msra.mxu0 %v10548
    %10598 = vmatprep.subr.bf16.mxu0 0
    %10599 = vmatpush2.bf16.msra.mxu0 %v10547
    %10600 = vmatprep.subr.bf16.mxu0 0
    %10601 = vmatpush2.bf16.msra.mxu0 %v10546
    %10602 = vmatprep.mubr.bf16.mxu0 %v10428
    %10603 = vmatmul.mubr.bf16.gmra.mxu0 %v10427
    %v10604 = vpop.f32.mrf.mxu0
    %v10605 = vadd.f32 %v10472, %v10604
    %v10606 = vpop.f32.mrf.mxu0
    %v10607 = vpop.f32.mrf.mxu0
    %v10608 = vadd.f32 %v10472, %v10607
    %v10609 = vpop.f32.mrf.mxu0
    %10610 = vmatprep.mubr.bf16.mxu0 %v10430
    %10611 = vmatmul.mubr.bf16.gmra.mxu0 %v10429
    %v10612 = vpop.f32.mrf.mxu0
    %v10613 = vadd.f32 %v10472, %v10612
    %v10614 = vpop.f32.mrf.mxu0
    %v10615 = vpop.f32.mrf.mxu0
    %v10616 = vadd.f32 %v10472, %v10615
    %v10617 = vpop.f32.mrf.mxu0
    %10618 = vmatprep.mubr.bf16.mxu0 %v10432
    %10619 = vmatmul.mubr.bf16.gmra.mxu0 %v10431
    %v10620 = vpop.f32.mrf.mxu0
    %v10621 = vadd.f32 %v10472, %v10620
    %v10622 = vpop.f32.mrf.mxu0
    %v10623 = vpop.f32.mrf.mxu0
    %v10624 = vadd.f32 %v10472, %v10623
    %v10625 = vpop.f32.mrf.mxu0
    %10626 = vmatprep.mubr.bf16.mxu0 %v10434
    %10627 = vmatmul.mubr.bf16.gmra.mxu0 %v10433
    %v10628 = vpop.f32.mrf.mxu0
    %v10629 = vadd.f32 %v10472, %v10628
    %v10630 = vpop.f32.mrf.mxu0
    %v10631 = vpop.f32.mrf.mxu0
    %v10632 = vadd.f32 %v10472, %v10631
    %v10633 = vpop.f32.mrf.mxu0
    %10634 = vdwg.mxu0
    %10635 = vst [vmem:[#allocation13] sm:$0xff] %v10605
    %10636 = vst [vmem:[#allocation13 + $0x8] sm:$0xff] %v10608
    %10637 = vst [vmem:[#allocation13 + $0x10] sm:$0xff] %v10613
    %10638 = vst [vmem:[#allocation13 + $0x18] sm:$0xff] %v10616
    %10639 = vst [vmem:[#allocation13 + $0x20] sm:$0xff] %v10621
    %10640 = vst [vmem:[#allocation13 + $0x28] sm:$0xff] %v10624
    %10641 = vst [vmem:[#allocation13 + $0x30] sm:$0xff] %v10629
    %10642 = vst [vmem:[#allocation13 + $0x38] sm:$0xff] %v10632
    // Predicated region
    $region46: #{tpu_custom_call.1} parent=1 // pred_check
      _
    $region47: #{tpu_custom_call.1} parent=1 // pred_check_branch
      %10644 = sbr.rel (0) target = $region49
    $region48: #{tpu_custom_call.1} parent=1 // pred_region
      %s10646 = ssub.s32 1024, 1024
      %10647 = vsyncadd [#allocation6], %s10646
      %s10648 = sshll.u32 [#allocation13], 4
      %s10649 = int_to_ptr.vmem [resolvable:$true] %s10648
      %10654 = dma.vmem_to_hbm [thread:$0]  %s10649, 1024, %s6, [#allocation6], 128, 128, 8
    $region49: #{tpu_custom_call.1} parent=1 // pred_fallthru
      _
    // Predicated region
    $region50: #{tpu_custom_call.1} parent=1 // pred_check
      _
    $region51: #{tpu_custom_call.1} parent=1 // pred_check_branch
      %10656 = sbr.rel (0) target = $region53
    $region52: #{tpu_custom_call.1} parent=1 // pred_region
      %10657 = dma.done [#allocation6], 1024
    $region53: #{tpu_custom_call.1} parent=1 // pred_fallthru
      _
    %10658 = vsyncpa [#allocation5], 1
    %10659 = vsyncpa [#allocation8], 1
    %10660 = vsyncpa [#allocation11], 1
    %10661 = vsyncpa [#allocation6], 1

</llo_original>
